<compile_context>
chip_gen: v6e
topology: v6e:2x2x1
jax: 0.10.0
libtpu: 0.0.40
codegen_flags: <defaults>
</compile_context>

<pallas_src>
import functools

import jax
import jax.numpy as jnp
from jax import lax
from jax.experimental import pallas as pl
from jax.experimental.pallas import tpu as pltpu


# ----------------------------------------------------------------------------
# Fused multi-layer ConvLSTM kernel: one grid step == one batch element's
# whole sequence through all layers.
# ----------------------------------------------------------------------------
def _convlstm_fused_kernel(x_ref, *refs, T, H, W, KH, KW, cins, hid):
    """Refs (L = len(cins), Ctot_l = cins[l] + hid):
      x_ref   : (T, H, W, cins[0])          bf16  input sequence (this batch el.)
      per layer l:
        w_ref : (KH, KW*Ctot_l, 4*hid)      bf16  conv weights, (kw, c) folded
        b_ref : (1, 4*hid)                  f32   conv bias
      out_ref : (1, H, W, hid)              f32   h_{T-1} of the last layer
      scratch per layer:
        s_ref : (H+KH-1, W, KW*Ctot_l)      bf16  kw-stacked, height-padded
                                                  conv operand (x & h channels)
        c_ref : (H*W, hid)                  f32   cell state
    """
    L = len(cins)
    w_refs = [refs[2 * l] for l in range(L)]
    b_refs = [refs[2 * l + 1] for l in range(L)]
    out_ref = refs[2 * L]
    s_refs = [refs[2 * L + 1 + 2 * l] for l in range(L)]
    c_refs = [refs[2 * L + 2 + 2 * l] for l in range(L)]

    PH, PW = KH // 2, KW // 2
    C4 = 4 * hid

    # Fresh state for this batch element.  The halo rows (i = 0 / H+KH-2) and
    # the halo column ranges of every tap block are zeroed here and never
    # written again -> zero 'same' padding.  h_0 = 0, c_0 = 0.
    for l in range(L):
        s_refs[l][...] = jnp.zeros_like(s_refs[l])
        c_refs[l][...] = jnp.zeros_like(c_refs[l])

    # Hoisted out of the T loop (JAX does not CSE broadcasted iota).
    not_g_mask = lax.broadcasted_iota(jnp.int32, (H * W, C4), 1) < 3 * hid

    def scatter_taps(s_ref, img, ctot, coff):
        """Write img (H, W, C) into the KW kw-shifted tap blocks of s_ref."""
        C = img.shape[-1]
        for kw in range(KW):
            dj = kw - PW
            j0 = max(0, -dj)
            j1 = W - max(0, dj)
            c0 = kw * ctot + coff
            s_ref[PH:PH + H, j0:j1, c0:c0 + C] = img[:, j0 + dj:j1 + dj, :]

    def step(t, carry):
        # Layer 0 input for this timestep.
        scatter_taps(s_refs[0], x_ref[t], cins[0] + hid, 0)

        for l in range(L):
            ctot = cins[l] + hid

            # conv(cat([x, h])) as KH matmuls with K = KW*ctot.  The kh shift
            # is a slice of S's untiled leading axis; the reshape merges W=16
            # (multiple of 8) rows into sublanes, so it is layout preserving.
            acc = jnp.zeros((H * W, C4), dtype=jnp.float32)
            for kh in range(KH):
                op = s_refs[l][kh:kh + H].reshape(H * W, KW * ctot)
                acc = acc + jnp.dot(op, w_refs[l][kh],
                                    preferred_element_type=jnp.float32)
            acc = acc + b_refs[l][...].astype(jnp.float32)

            # Gates in torch.chunk order [i, f, o, g].  One full-width sigmoid
            # pass; tanh(g) == 2*sigmoid(2g) - 1 (exact identity).
            z = jnp.where(not_g_mask, acc, acc + acc)
            p = jax.nn.sigmoid(z)
            gi = p[:, 0 * hid:1 * hid]
            gf = p[:, 1 * hid:2 * hid]
            go = p[:, 2 * hid:3 * hid]
            gg = 2.0 * p[:, 3 * hid:4 * hid] - 1.0

            c_new = gf * c_refs[l][...] + gi * gg
            h_new = go * jnp.tanh(c_new)
            c_refs[l][...] = c_new

            h_img = h_new.reshape(H, W, hid).astype(jnp.bfloat16)
            # Recurrence: h_t into this layer's own h channel blocks.
            scatter_taps(s_refs[l], h_img, ctot, cins[l])
            if l + 1 < L:
                # Feed the next layer's x channel blocks at this timestep
                # (intermediate sequences never leave VMEM).
                scatter_taps(s_refs[l + 1], h_img, cins[l + 1] + hid, 0)
            else:
                # Only the final hidden state of the last layer reaches HBM.
                @pl.when(t == T - 1)
                def _():
                    out_ref[0] = h_new.reshape(H, W, hid)
        return carry

    lax.fori_loop(0, T, step, 0)


# ----------------------------------------------------------------------------
# Host-side, one-time weight packing (outside jit).
# ----------------------------------------------------------------------------
def pack_convlstm_params(params):
    """params: list of (w, b); w: (KH, KW, Cin_l + hid, 4*hid) HWIO (input
    channels ordered [x, h]); b: (4*hid,).
    Returns list of (w_packed (KH, KW*(Cin_l+hid), 4*hid) bf16, b (1,4*hid) f32)."""
    packed = []
    for w, b in params:
        kh, kw, ctot, c4 = w.shape
        wk = jnp.asarray(w, dtype=jnp.bfloat16).reshape(kh, kw * ctot, c4)
        bk = jnp.asarray(b, dtype=jnp.float32).reshape(1, c4)
        packed.append((wk, bk))
    return packed


# ----------------------------------------------------------------------------
# Multi-layer ConvLSTM forward (mirrors the PyTorch ConvLSTM.forward).
# ----------------------------------------------------------------------------
def convlstm_forward(x_btchw, packed_params, k_size=(3, 3)):
    """x_btchw: (B, T, C, H, W) f32 (PyTorch layout, batch_first=True).
    packed_params: output of pack_convlstm_params.
    Returns the last layer's hidden state at the last timestep, (B, hid, H, W)."""
    B, T, C, H, W = x_btchw.shape
    KH, KW = k_size
    hid = packed_params[0][1].shape[-1] // 4
    cins = tuple(wk.shape[1] // KW - hid for wk, _ in packed_params)
    assert cins[0] == C
    C4 = 4 * hid

    # NCHW -> NHWC, fold (B, T), bf16 for the MXU.
    x_seq = jnp.transpose(x_btchw, (0, 1, 3, 4, 2)).reshape(B * T, H, W, C)
    x_seq = x_seq.astype(jnp.bfloat16)

    kernel = functools.partial(_convlstm_fused_kernel, T=T, H=H, W=W,
                               KH=KH, KW=KW, cins=cins, hid=hid)

    in_specs = [pl.BlockSpec((T, H, W, C), lambda b: (b, 0, 0, 0))]
    args = [x_seq]
    scratch = []
    for (wk, bk), cin in zip(packed_params, cins):
        in_specs.append(pl.BlockSpec(wk.shape, lambda b: (0, 0, 0)))
        in_specs.append(pl.BlockSpec(bk.shape, lambda b: (0, 0)))
        args.extend([wk, bk])
        scratch.append(pltpu.VMEM((H + KH - 1, W, KW * (cin + hid)),
                                  jnp.bfloat16))
        scratch.append(pltpu.VMEM((H * W, hid), jnp.float32))

    out = pl.pallas_call(
        kernel,
        out_shape=jax.ShapeDtypeStruct((B, H, W, hid), jnp.float32),
        grid_spec=pltpu.PrefetchScalarGridSpec(
            num_scalar_prefetch=0,
            grid=(B,),
            in_specs=in_specs,
            out_specs=pl.BlockSpec((1, H, W, hid), lambda b: (b, 0, 0, 0)),
            scratch_shapes=scratch,
        ),
        compiler_params=pltpu.CompilerParams(
            dimension_semantics=("parallel",)),
    )(*args)

    # (B, H, W, hid) f32 -> PyTorch NCHW.
    return jnp.transpose(out, (0, 3, 1, 2))


# ----------------------------------------------------------------------------
# Pure-JAX reference (same bf16 conv-input / f32 accumulation recipe).
# ----------------------------------------------------------------------------
def _ref_forward(x_btchw, params):
    B, T, C, H, W = x_btchw.shape
    seq = jnp.transpose(x_btchw, (0, 1, 3, 4, 2))            # (B, T, H, W, C)
    for (w, b) in params:
        hid = w.shape[-1] // 4
        h = jnp.zeros((B, H, W, hid), jnp.float32)
        c = jnp.zeros((B, H, W, hid), jnp.float32)
        outs = []
        for ti in range(T):
            y = jnp.concatenate([seq[:, ti].astype(jnp.bfloat16),
                                 h.astype(jnp.bfloat16)], axis=-1)
            conv = lax.conv_general_dilated(
                y, w.astype(jnp.bfloat16), (1, 1), "SAME",
                dimension_numbers=("NHWC", "HWIO", "NHWC"),
                preferred_element_type=jnp.float32) + b.astype(jnp.float32)
            i = jax.nn.sigmoid(conv[..., 0 * hid:1 * hid])
            f = jax.nn.sigmoid(conv[..., 1 * hid:2 * hid])
            o = jax.nn.sigmoid(conv[..., 2 * hid:3 * hid])
            g = jnp.tanh(conv[..., 3 * hid:4 * hid])
            c = f * c + i * g
            h = o * jnp.tanh(c)
            outs.append(h)
        seq = jnp.stack(outs, axis=1)                         # (B, T, H, W, hid)
    return jnp.transpose(seq[:, -1], (0, 3, 1, 2))            # (B, hid, H, W)


# ----------------------------------------------------------------------------
if __name__ == "__main__":
    # Small shapes consistent with the module: (B, T, C, H, W)
    B, T, C, H, W = 2, 8, 4, 16, 16
    hid_ch = 32
    layers = 2
    KH, KW = 3, 3

    key = jax.random.PRNGKey(0)
    kx, *kparams = jax.random.split(key, 1 + 2 * layers)

    x = jax.random.normal(kx, (B, T, C, H, W), dtype=jnp.float32)

    # Parameters in HWIO with the input-channel axis ordered [x, h]
    # (shapes match nn.Conv2d(cin + hid, 4*hid, 3x3)).
    params = []
    for l in range(layers):
        cin = C if l == 0 else hid_ch
        w = 0.1 * jax.random.normal(kparams[2 * l],
                                    (KH, KW, cin + hid_ch, 4 * hid_ch),
                                    dtype=jnp.float32)
        b = 0.1 * jax.random.normal(kparams[2 * l + 1],
                                    (4 * hid_ch,), dtype=jnp.float32)
        params.append((w, b))

    packed = pack_convlstm_params(params)   # host-side, once (outside jit)

    fwd = jax.jit(convlstm_forward)
    out = jax.block_until_ready(fwd(x, packed))
    ref = jax.block_until_ready(_ref_forward(x, params))

    assert out.shape == (B, hid_ch, H, W)
    max_err = float(jnp.max(jnp.abs(out - ref)))
    assert jnp.allclose(out, ref, atol=3e-3, rtol=3e-3), \
        f"mismatch vs JAX reference, max abs err = {max_err}"

    print("KERNEL_OK")
</pallas_src>

<mosaic_0001>
module attributes {stable_mosaic.version = 11 : i64} {
  func.func @_convlstm_fused_kernel(%arg0: i32, %arg1: memref<8x16x16x4xbf16, #tpu.memory_space<vmem>>, %arg2: memref<3x108x128xbf16, #tpu.memory_space<vmem>>, %arg3: memref<1x128xf32, #tpu.memory_space<vmem>>, %arg4: memref<3x192x128xbf16, #tpu.memory_space<vmem>>, %arg5: memref<1x128xf32, #tpu.memory_space<vmem>>, %arg6: memref<1x16x16x32xf32, #tpu.memory_space<vmem>>, %arg7: memref<18x16x108xbf16, #tpu.memory_space<vmem>>, %arg8: memref<256x32xf32, #tpu.memory_space<vmem>>, %arg9: memref<18x16x192xbf16, #tpu.memory_space<vmem>>, %arg10: memref<256x32xf32, #tpu.memory_space<vmem>>) attributes {dimension_semantics = [#tpu.dimension_semantics<parallel>], iteration_bounds = array<i64: 2>, scalar_prefetch = 0 : i64, scratch_operands = 4 : i64, tpu.core_type = #tpu.core_type<tc>, window_params = [{transform_indices = @transform_0, window_bounds = array<i64: 8, 16, 16, 4>}, {pipeline_mode = #tpu.pipeline_mode<synchronous>, transform_indices = @transform_1, window_bounds = array<i64: 3, 108, 128>}, {pipeline_mode = #tpu.pipeline_mode<synchronous>, transform_indices = @transform_2, window_bounds = array<i64: 1, 128>}, {pipeline_mode = #tpu.pipeline_mode<synchronous>, transform_indices = @transform_3, window_bounds = array<i64: 3, 192, 128>}, {pipeline_mode = #tpu.pipeline_mode<synchronous>, transform_indices = @transform_4, window_bounds = array<i64: 1, 128>}, {transform_indices = @transform_5, window_bounds = array<i64: 1, 16, 16, 32>}]} {
    %cst = arith.constant 0.000000e+00 : bf16
    %0 = vector.broadcast %cst : bf16 to vector<18x16x108xbf16>
    %c0 = arith.constant 0 : index
    %c0_0 = arith.constant 0 : index
    %c0_1 = arith.constant 0 : index
    %1 = vector.load %arg7[%c0, %c0_0, %c0_1] : memref<18x16x108xbf16, #tpu.memory_space<vmem>>, vector<18x16x108xbf16>
    tpu.vector_store %arg7[%c0, %c0_0, %c0_1], %0 {strides = array<i32>} : memref<18x16x108xbf16, #tpu.memory_space<vmem>>, vector<18x16x108xbf16>,
    %cst_2 = arith.constant 0.000000e+00 : f32
    %2 = vector.broadcast %cst_2 : f32 to vector<256x32xf32>
    %c0_3 = arith.constant 0 : index
    %c0_4 = arith.constant 0 : index
    %3 = vector.load %arg8[%c0_3, %c0_4] : memref<256x32xf32, #tpu.memory_space<vmem>>, vector<256x32xf32>
    tpu.vector_store %arg8[%c0_3, %c0_4], %2 {strides = array<i32>} : memref<256x32xf32, #tpu.memory_space<vmem>>, vector<256x32xf32>,
    %cst_5 = arith.constant 0.000000e+00 : bf16
    %4 = vector.broadcast %cst_5 : bf16 to vector<18x16x192xbf16>
    %c0_6 = arith.constant 0 : index
    %c0_7 = arith.constant 0 : index
    %c0_8 = arith.constant 0 : index
    %5 = vector.load %arg9[%c0_6, %c0_7, %c0_8] : memref<18x16x192xbf16, #tpu.memory_space<vmem>>, vector<18x16x192xbf16>
    tpu.vector_store %arg9[%c0_6, %c0_7, %c0_8], %4 {strides = array<i32>} : memref<18x16x192xbf16, #tpu.memory_space<vmem>>, vector<18x16x192xbf16>,
    %cst_9 = arith.constant 0.000000e+00 : f32
    %6 = vector.broadcast %cst_9 : f32 to vector<256x32xf32>
    %c0_10 = arith.constant 0 : index
    %c0_11 = arith.constant 0 : index
    %7 = vector.load %arg10[%c0_10, %c0_11] : memref<256x32xf32, #tpu.memory_space<vmem>>, vector<256x32xf32>
    tpu.vector_store %arg10[%c0_10, %c0_11], %6 {strides = array<i32>} : memref<256x32xf32, #tpu.memory_space<vmem>>, vector<256x32xf32>,
    %8 = tpu.iota {dimensions = array<i32: 1>} : vector<256x128xi32>
    %c96_i32 = arith.constant 96 : i32
    %9 = vector.broadcast %c96_i32 : i32 to vector<256x128xi32>
    %10 = arith.cmpi slt, %8, %9 : vector<256x128xi32>
    %c0_i32 = arith.constant 0 : i32
    %c8_i32 = arith.constant 8 : i32
    %11 = arith.addi %c0_i32, %c8_i32 : i32
    %c1_i32 = arith.constant 1 : i32
    scf.for %arg11 = %c0_i32 to %11 step %c1_i32  : i32 {
      %12 = arith.index_cast %arg11 : i32 to index
      %c0_13 = arith.constant 0 : index
      %c0_14 = arith.constant 0 : index
      %c0_15 = arith.constant 0 : index
      %13 = vector.load %arg1[%12, %c0_13, %c0_14, %c0_15] : memref<8x16x16x4xbf16, #tpu.memory_space<vmem>>, vector<1x16x16x4xbf16>
      %14 = vector.shape_cast %13 : vector<1x16x16x4xbf16> to vector<16x16x4xbf16>
      %15 = vector.extract_strided_slice %14 {offsets = [0, 0, 0], sizes = [16, 15, 4], strides = [1, 1, 1]} : vector<16x16x4xbf16> to vector<16x15x4xbf16>
      %c1 = arith.constant 1 : index
      %c1_16 = arith.constant 1 : index
      %c0_17 = arith.constant 0 : index
      %16 = vector.load %arg7[%c1, %c1_16, %c0_17] : memref<18x16x108xbf16, #tpu.memory_space<vmem>>, vector<16x15x4xbf16>
      tpu.vector_store %arg7[%c1, %c1_16, %c0_17], %15 {strides = array<i32>} : memref<18x16x108xbf16, #tpu.memory_space<vmem>>, vector<16x15x4xbf16>,
      %c1_18 = arith.constant 1 : index
      %c0_19 = arith.constant 0 : index
      %c36 = arith.constant 36 : index
      %17 = vector.load %arg7[%c1_18, %c0_19, %c36] : memref<18x16x108xbf16, #tpu.memory_space<vmem>>, vector<16x16x4xbf16>
      tpu.vector_store %arg7[%c1_18, %c0_19, %c36], %14 {strides = array<i32>} : memref<18x16x108xbf16, #tpu.memory_space<vmem>>, vector<16x16x4xbf16>,
      %18 = vector.extract_strided_slice %14 {offsets = [0, 1, 0], sizes = [16, 15, 4], strides = [1, 1, 1]} : vector<16x16x4xbf16> to vector<16x15x4xbf16>
      %c1_20 = arith.constant 1 : index
      %c0_21 = arith.constant 0 : index
      %c72 = arith.constant 72 : index
      %19 = vector.load %arg7[%c1_20, %c0_21, %c72] : memref<18x16x108xbf16, #tpu.memory_space<vmem>>, vector<16x15x4xbf16>
      tpu.vector_store %arg7[%c1_20, %c0_21, %c72], %18 {strides = array<i32>} : memref<18x16x108xbf16, #tpu.memory_space<vmem>>, vector<16x15x4xbf16>,
      %cst_22 = arith.constant 0.000000e+00 : f32
      %20 = vector.broadcast %cst_22 : f32 to vector<256x128xf32>
      %c0_23 = arith.constant 0 : index
      %c0_24 = arith.constant 0 : index
      %c0_25 = arith.constant 0 : index
      %21 = vector.load %arg7[%c0_23, %c0_24, %c0_25] : memref<18x16x108xbf16, #tpu.memory_space<vmem>>, vector<16x16x108xbf16>
      %22 = vector.shape_cast %21 : vector<16x16x108xbf16> to vector<256x108xbf16>
      %c0_26 = arith.constant 0 : index
      %c0_27 = arith.constant 0 : index
      %c0_28 = arith.constant 0 : index
      %23 = vector.load %arg2[%c0_26, %c0_27, %c0_28] : memref<3x108x128xbf16, #tpu.memory_space<vmem>>, vector<1x108x128xbf16>
      %24 = vector.shape_cast %23 : vector<1x108x128xbf16> to vector<108x128xbf16>
      %cst_29 = arith.constant dense<0.000000e+00> : vector<256x128xf32>
      %25 = tpu.matmul %22, %24, %cst_29 {dimension_numbers = #tpu.dot_dimension_numbers<[1], [0], [0], [1], [0, 0, 1, 1], [], []>} : vector<256x108xbf16>, vector<108x128xbf16>, vector<256x128xf32> -> vector<256x128xf32>
      %26 = arith.addf %20, %25 : vector<256x128xf32>
      %c1_30 = arith.constant 1 : index
      %c0_31 = arith.constant 0 : index
      %c0_32 = arith.constant 0 : index
      %27 = vector.load %arg7[%c1_30, %c0_31, %c0_32] : memref<18x16x108xbf16, #tpu.memory_space<vmem>>, vector<16x16x108xbf16>
      %28 = vector.shape_cast %27 : vector<16x16x108xbf16> to vector<256x108xbf16>
      %c1_33 = arith.constant 1 : index
      %c0_34 = arith.constant 0 : index
      %c0_35 = arith.constant 0 : index
      %29 = vector.load %arg2[%c1_33, %c0_34, %c0_35] : memref<3x108x128xbf16, #tpu.memory_space<vmem>>, vector<1x108x128xbf16>
      %30 = vector.shape_cast %29 : vector<1x108x128xbf16> to vector<108x128xbf16>
      %cst_36 = arith.constant dense<0.000000e+00> : vector<256x128xf32>
      %31 = tpu.matmul %28, %30, %cst_36 {dimension_numbers = #tpu.dot_dimension_numbers<[1], [0], [0], [1], [0, 0, 1, 1], [], []>} : vector<256x108xbf16>, vector<108x128xbf16>, vector<256x128xf32> -> vector<256x128xf32>
      %32 = arith.addf %26, %31 : vector<256x128xf32>
      %c2 = arith.constant 2 : index
      %c0_37 = arith.constant 0 : index
      %c0_38 = arith.constant 0 : index
      %33 = vector.load %arg7[%c2, %c0_37, %c0_38] : memref<18x16x108xbf16, #tpu.memory_space<vmem>>, vector<16x16x108xbf16>
      %34 = vector.shape_cast %33 : vector<16x16x108xbf16> to vector<256x108xbf16>
      %c2_39 = arith.constant 2 : index
      %c0_40 = arith.constant 0 : index
      %c0_41 = arith.constant 0 : index
      %35 = vector.load %arg2[%c2_39, %c0_40, %c0_41] : memref<3x108x128xbf16, #tpu.memory_space<vmem>>, vector<1x108x128xbf16>
      %36 = vector.shape_cast %35 : vector<1x108x128xbf16> to vector<108x128xbf16>
      %cst_42 = arith.constant dense<0.000000e+00> : vector<256x128xf32>
      %37 = tpu.matmul %34, %36, %cst_42 {dimension_numbers = #tpu.dot_dimension_numbers<[1], [0], [0], [1], [0, 0, 1, 1], [], []>} : vector<256x108xbf16>, vector<108x128xbf16>, vector<256x128xf32> -> vector<256x128xf32>
      %38 = arith.addf %32, %37 : vector<256x128xf32>
      %c0_43 = arith.constant 0 : index
      %c0_44 = arith.constant 0 : index
      %39 = vector.load %arg3[%c0_43, %c0_44] : memref<1x128xf32, #tpu.memory_space<vmem>>, vector<1x128xf32>
      %40 = vector.broadcast %39 : vector<1x128xf32> to vector<256x128xf32>
      %41 = arith.addf %38, %40 : vector<256x128xf32>
      %42 = arith.addf %41, %41 : vector<256x128xf32>
      %43 = arith.select %10, %41, %42 : vector<256x128xi1>, vector<256x128xf32>
      %44 = arith.negf %43 : vector<256x128xf32>
      %45 = math.exp %44 : vector<256x128xf32>
      %cst_45 = arith.constant 1.000000e+00 : f32
      %46 = vector.broadcast %cst_45 : f32 to vector<256x128xf32>
      %47 = arith.addf %46, %45 : vector<256x128xf32>
      %48 = arith.divf %46, %47 : vector<256x128xf32>
      %49 = vector.extract_strided_slice %48 {offsets = [0, 0], sizes = [256, 32], strides = [1, 1]} : vector<256x128xf32> to vector<256x32xf32>
      %50 = vector.extract_strided_slice %48 {offsets = [0, 32], sizes = [256, 32], strides = [1, 1]} : vector<256x128xf32> to vector<256x32xf32>
      %51 = vector.extract_strided_slice %48 {offsets = [0, 64], sizes = [256, 32], strides = [1, 1]} : vector<256x128xf32> to vector<256x32xf32>
      %52 = vector.extract_strided_slice %48 {offsets = [0, 96], sizes = [256, 32], strides = [1, 1]} : vector<256x128xf32> to vector<256x32xf32>
      %cst_46 = arith.constant 2.000000e+00 : f32
      %53 = vector.broadcast %cst_46 : f32 to vector<256x32xf32>
      %54 = arith.mulf %53, %52 : vector<256x32xf32>
      %cst_47 = arith.constant 1.000000e+00 : f32
      %55 = vector.broadcast %cst_47 : f32 to vector<256x32xf32>
      %56 = arith.subf %54, %55 : vector<256x32xf32>
      %c0_48 = arith.constant 0 : index
      %c0_49 = arith.constant 0 : index
      %57 = vector.load %arg8[%c0_48, %c0_49] : memref<256x32xf32, #tpu.memory_space<vmem>>, vector<256x32xf32>
      %58 = arith.mulf %50, %57 : vector<256x32xf32>
      %59 = arith.mulf %49, %56 : vector<256x32xf32>
      %60 = arith.addf %58, %59 : vector<256x32xf32>
      %61 = math.tanh %60 : vector<256x32xf32>
      %62 = arith.mulf %51, %61 : vector<256x32xf32>
      %c0_50 = arith.constant 0 : index
      %c0_51 = arith.constant 0 : index
      %63 = vector.load %arg8[%c0_50, %c0_51] : memref<256x32xf32, #tpu.memory_space<vmem>>, vector<256x32xf32>
      tpu.vector_store %arg8[%c0_50, %c0_51], %60 {strides = array<i32>} : memref<256x32xf32, #tpu.memory_space<vmem>>, vector<256x32xf32>,
      %64 = vector.shape_cast %62 : vector<256x32xf32> to vector<16x16x32xf32>
      %65 = arith.truncf %64 : vector<16x16x32xf32> to vector<16x16x32xbf16>
      %66 = vector.extract_strided_slice %65 {offsets = [0, 0, 0], sizes = [16, 15, 32], strides = [1, 1, 1]} : vector<16x16x32xbf16> to vector<16x15x32xbf16>
      %c1_52 = arith.constant 1 : index
      %c1_53 = arith.constant 1 : index
      %c4 = arith.constant 4 : index
      %67 = vector.load %arg7[%c1_52, %c1_53, %c4] : memref<18x16x108xbf16, #tpu.memory_space<vmem>>, vector<16x15x32xbf16>
      tpu.vector_store %arg7[%c1_52, %c1_53, %c4], %66 {strides = array<i32>} : memref<18x16x108xbf16, #tpu.memory_space<vmem>>, vector<16x15x32xbf16>,
      %c1_54 = arith.constant 1 : index
      %c0_55 = arith.constant 0 : index
      %c40 = arith.constant 40 : index
      %68 = vector.load %arg7[%c1_54, %c0_55, %c40] : memref<18x16x108xbf16, #tpu.memory_space<vmem>>, vector<16x16x32xbf16>
      tpu.vector_store %arg7[%c1_54, %c0_55, %c40], %65 {strides = array<i32>} : memref<18x16x108xbf16, #tpu.memory_space<vmem>>, vector<16x16x32xbf16>,
      %69 = vector.extract_strided_slice %65 {offsets = [0, 1, 0], sizes = [16, 15, 32], strides = [1, 1, 1]} : vector<16x16x32xbf16> to vector<16x15x32xbf16>
      %c1_56 = arith.constant 1 : index
      %c0_57 = arith.constant 0 : index
      %c76 = arith.constant 76 : index
      %70 = vector.load %arg7[%c1_56, %c0_57, %c76] : memref<18x16x108xbf16, #tpu.memory_space<vmem>>, vector<16x15x32xbf16>
      tpu.vector_store %arg7[%c1_56, %c0_57, %c76], %69 {strides = array<i32>} : memref<18x16x108xbf16, #tpu.memory_space<vmem>>, vector<16x15x32xbf16>,
      %71 = vector.extract_strided_slice %65 {offsets = [0, 0, 0], sizes = [16, 15, 32], strides = [1, 1, 1]} : vector<16x16x32xbf16> to vector<16x15x32xbf16>
      %c1_58 = arith.constant 1 : index
      %c1_59 = arith.constant 1 : index
      %c0_60 = arith.constant 0 : index
      %72 = vector.load %arg9[%c1_58, %c1_59, %c0_60] : memref<18x16x192xbf16, #tpu.memory_space<vmem>>, vector<16x15x32xbf16>
      tpu.vector_store %arg9[%c1_58, %c1_59, %c0_60], %71 {strides = array<i32>} : memref<18x16x192xbf16, #tpu.memory_space<vmem>>, vector<16x15x32xbf16>,
      %c1_61 = arith.constant 1 : index
      %c0_62 = arith.constant 0 : index
      %c64 = arith.constant 64 : index
      %73 = vector.load %arg9[%c1_61, %c0_62, %c64] : memref<18x16x192xbf16, #tpu.memory_space<vmem>>, vector<16x16x32xbf16>
      tpu.vector_store %arg9[%c1_61, %c0_62, %c64], %65 {strides = array<i32>} : memref<18x16x192xbf16, #tpu.memory_space<vmem>>, vector<16x16x32xbf16>,
      %74 = vector.extract_strided_slice %65 {offsets = [0, 1, 0], sizes = [16, 15, 32], strides = [1, 1, 1]} : vector<16x16x32xbf16> to vector<16x15x32xbf16>
      %c1_63 = arith.constant 1 : index
      %c0_64 = arith.constant 0 : index
      %c128 = arith.constant 128 : index
      %75 = vector.load %arg9[%c1_63, %c0_64, %c128] : memref<18x16x192xbf16, #tpu.memory_space<vmem>>, vector<16x15x32xbf16>
      tpu.vector_store %arg9[%c1_63, %c0_64, %c128], %74 {strides = array<i32>} : memref<18x16x192xbf16, #tpu.memory_space<vmem>>, vector<16x15x32xbf16>,
      %cst_65 = arith.constant 0.000000e+00 : f32
      %76 = vector.broadcast %cst_65 : f32 to vector<256x128xf32>
      %c0_66 = arith.constant 0 : index
      %c0_67 = arith.constant 0 : index
      %c0_68 = arith.constant 0 : index
      %77 = vector.load %arg9[%c0_66, %c0_67, %c0_68] : memref<18x16x192xbf16, #tpu.memory_space<vmem>>, vector<16x16x192xbf16>
      %78 = vector.shape_cast %77 : vector<16x16x192xbf16> to vector<256x192xbf16>
      %c0_69 = arith.constant 0 : index
      %c0_70 = arith.constant 0 : index
      %c0_71 = arith.constant 0 : index
      %79 = vector.load %arg4[%c0_69, %c0_70, %c0_71] : memref<3x192x128xbf16, #tpu.memory_space<vmem>>, vector<1x192x128xbf16>
      %80 = vector.shape_cast %79 : vector<1x192x128xbf16> to vector<192x128xbf16>
      %cst_72 = arith.constant dense<0.000000e+00> : vector<256x128xf32>
      %81 = tpu.matmul %78, %80, %cst_72 {dimension_numbers = #tpu.dot_dimension_numbers<[1], [0], [0], [1], [0, 0, 1, 1], [], []>} : vector<256x192xbf16>, vector<192x128xbf16>, vector<256x128xf32> -> vector<256x128xf32>
      %82 = arith.addf %76, %81 : vector<256x128xf32>
      %c1_73 = arith.constant 1 : index
      %c0_74 = arith.constant 0 : index
      %c0_75 = arith.constant 0 : index
      %83 = vector.load %arg9[%c1_73, %c0_74, %c0_75] : memref<18x16x192xbf16, #tpu.memory_space<vmem>>, vector<16x16x192xbf16>
      %84 = vector.shape_cast %83 : vector<16x16x192xbf16> to vector<256x192xbf16>
      %c1_76 = arith.constant 1 : index
      %c0_77 = arith.constant 0 : index
      %c0_78 = arith.constant 0 : index
      %85 = vector.load %arg4[%c1_76, %c0_77, %c0_78] : memref<3x192x128xbf16, #tpu.memory_space<vmem>>, vector<1x192x128xbf16>
      %86 = vector.shape_cast %85 : vector<1x192x128xbf16> to vector<192x128xbf16>
      %cst_79 = arith.constant dense<0.000000e+00> : vector<256x128xf32>
      %87 = tpu.matmul %84, %86, %cst_79 {dimension_numbers = #tpu.dot_dimension_numbers<[1], [0], [0], [1], [0, 0, 1, 1], [], []>} : vector<256x192xbf16>, vector<192x128xbf16>, vector<256x128xf32> -> vector<256x128xf32>
      %88 = arith.addf %82, %87 : vector<256x128xf32>
      %c2_80 = arith.constant 2 : index
      %c0_81 = arith.constant 0 : index
      %c0_82 = arith.constant 0 : index
      %89 = vector.load %arg9[%c2_80, %c0_81, %c0_82] : memref<18x16x192xbf16, #tpu.memory_space<vmem>>, vector<16x16x192xbf16>
      %90 = vector.shape_cast %89 : vector<16x16x192xbf16> to vector<256x192xbf16>
      %c2_83 = arith.constant 2 : index
      %c0_84 = arith.constant 0 : index
      %c0_85 = arith.constant 0 : index
      %91 = vector.load %arg4[%c2_83, %c0_84, %c0_85] : memref<3x192x128xbf16, #tpu.memory_space<vmem>>, vector<1x192x128xbf16>
      %92 = vector.shape_cast %91 : vector<1x192x128xbf16> to vector<192x128xbf16>
      %cst_86 = arith.constant dense<0.000000e+00> : vector<256x128xf32>
      %93 = tpu.matmul %90, %92, %cst_86 {dimension_numbers = #tpu.dot_dimension_numbers<[1], [0], [0], [1], [0, 0, 1, 1], [], []>} : vector<256x192xbf16>, vector<192x128xbf16>, vector<256x128xf32> -> vector<256x128xf32>
      %94 = arith.addf %88, %93 : vector<256x128xf32>
      %c0_87 = arith.constant 0 : index
      %c0_88 = arith.constant 0 : index
      %95 = vector.load %arg5[%c0_87, %c0_88] : memref<1x128xf32, #tpu.memory_space<vmem>>, vector<1x128xf32>
      %96 = vector.broadcast %95 : vector<1x128xf32> to vector<256x128xf32>
      %97 = arith.addf %94, %96 : vector<256x128xf32>
      %98 = arith.addf %97, %97 : vector<256x128xf32>
      %99 = arith.select %10, %97, %98 : vector<256x128xi1>, vector<256x128xf32>
      %100 = arith.negf %99 : vector<256x128xf32>
      %101 = math.exp %100 : vector<256x128xf32>
      %cst_89 = arith.constant 1.000000e+00 : f32
      %102 = vector.broadcast %cst_89 : f32 to vector<256x128xf32>
      %103 = arith.addf %102, %101 : vector<256x128xf32>
      %104 = arith.divf %102, %103 : vector<256x128xf32>
      %105 = vector.extract_strided_slice %104 {offsets = [0, 0], sizes = [256, 32], strides = [1, 1]} : vector<256x128xf32> to vector<256x32xf32>
      %106 = vector.extract_strided_slice %104 {offsets = [0, 32], sizes = [256, 32], strides = [1, 1]} : vector<256x128xf32> to vector<256x32xf32>
      %107 = vector.extract_strided_slice %104 {offsets = [0, 64], sizes = [256, 32], strides = [1, 1]} : vector<256x128xf32> to vector<256x32xf32>
      %108 = vector.extract_strided_slice %104 {offsets = [0, 96], sizes = [256, 32], strides = [1, 1]} : vector<256x128xf32> to vector<256x32xf32>
      %cst_90 = arith.constant 2.000000e+00 : f32
      %109 = vector.broadcast %cst_90 : f32 to vector<256x32xf32>
      %110 = arith.mulf %109, %108 : vector<256x32xf32>
      %cst_91 = arith.constant 1.000000e+00 : f32
      %111 = vector.broadcast %cst_91 : f32 to vector<256x32xf32>
      %112 = arith.subf %110, %111 : vector<256x32xf32>
      %c0_92 = arith.constant 0 : index
      %c0_93 = arith.constant 0 : index
      %113 = vector.load %arg10[%c0_92, %c0_93] : memref<256x32xf32, #tpu.memory_space<vmem>>, vector<256x32xf32>
      %114 = arith.mulf %106, %113 : vector<256x32xf32>
      %115 = arith.mulf %105, %112 : vector<256x32xf32>
      %116 = arith.addf %114, %115 : vector<256x32xf32>
      %117 = math.tanh %116 : vector<256x32xf32>
      %118 = arith.mulf %107, %117 : vector<256x32xf32>
      %c0_94 = arith.constant 0 : index
      %c0_95 = arith.constant 0 : index
      %119 = vector.load %arg10[%c0_94, %c0_95] : memref<256x32xf32, #tpu.memory_space<vmem>>, vector<256x32xf32>
      tpu.vector_store %arg10[%c0_94, %c0_95], %116 {strides = array<i32>} : memref<256x32xf32, #tpu.memory_space<vmem>>, vector<256x32xf32>,
      %120 = vector.shape_cast %118 : vector<256x32xf32> to vector<16x16x32xf32>
      %121 = arith.truncf %120 : vector<16x16x32xf32> to vector<16x16x32xbf16>
      %122 = vector.extract_strided_slice %121 {offsets = [0, 0, 0], sizes = [16, 15, 32], strides = [1, 1, 1]} : vector<16x16x32xbf16> to vector<16x15x32xbf16>
      %c1_96 = arith.constant 1 : index
      %c1_97 = arith.constant 1 : index
      %c32 = arith.constant 32 : index
      %123 = vector.load %arg9[%c1_96, %c1_97, %c32] : memref<18x16x192xbf16, #tpu.memory_space<vmem>>, vector<16x15x32xbf16>
      tpu.vector_store %arg9[%c1_96, %c1_97, %c32], %122 {strides = array<i32>} : memref<18x16x192xbf16, #tpu.memory_space<vmem>>, vector<16x15x32xbf16>,
      %c1_98 = arith.constant 1 : index
      %c0_99 = arith.constant 0 : index
      %c96 = arith.constant 96 : index
      %124 = vector.load %arg9[%c1_98, %c0_99, %c96] : memref<18x16x192xbf16, #tpu.memory_space<vmem>>, vector<16x16x32xbf16>
      tpu.vector_store %arg9[%c1_98, %c0_99, %c96], %121 {strides = array<i32>} : memref<18x16x192xbf16, #tpu.memory_space<vmem>>, vector<16x16x32xbf16>,
      %125 = vector.extract_strided_slice %121 {offsets = [0, 1, 0], sizes = [16, 15, 32], strides = [1, 1, 1]} : vector<16x16x32xbf16> to vector<16x15x32xbf16>
      %c1_100 = arith.constant 1 : index
      %c0_101 = arith.constant 0 : index
      %c160 = arith.constant 160 : index
      %126 = vector.load %arg9[%c1_100, %c0_101, %c160] : memref<18x16x192xbf16, #tpu.memory_space<vmem>>, vector<16x15x32xbf16>
      tpu.vector_store %arg9[%c1_100, %c0_101, %c160], %125 {strides = array<i32>} : memref<18x16x192xbf16, #tpu.memory_space<vmem>>, vector<16x15x32xbf16>,
      %c7_i32 = arith.constant 7 : i32
      %127 = arith.cmpi eq, %arg11, %c7_i32 : i32
      %128 = arith.extui %127 : i1 to i32
      %c0_i32_102 = arith.constant 0 : i32
      %129 = arith.cmpi ne, %128, %c0_i32_102 : i32
      scf.if %129 {
        %130 = vector.shape_cast %118 : vector<256x32xf32> to vector<16x16x32xf32>
        %c0_103 = arith.constant 0 : index
        %c0_104 = arith.constant 0 : index
        %c0_105 = arith.constant 0 : index
        %c0_106 = arith.constant 0 : index
        %131 = vector.load %arg6[%c0_103, %c0_104, %c0_105, %c0_106] : memref<1x16x16x32xf32, #tpu.memory_space<vmem>>, vector<1x16x16x32xf32>
        %132 = vector.shape_cast %131 : vector<1x16x16x32xf32> to vector<16x16x32xf32>
        %133 = vector.shape_cast %130 : vector<16x16x32xf32> to vector<1x16x16x32xf32>
        tpu.vector_store %arg6[%c0_103, %c0_104, %c0_105, %c0_106], %133 {strides = array<i32>} : memref<1x16x16x32xf32, #tpu.memory_space<vmem>>, vector<1x16x16x32xf32>,
      } else {
      }
    }
    %c8_i32_12 = arith.constant 8 : i32
    return
  }
  func.func @transform_0(%arg0: i32) -> (i32, i32, i32, i32) {
    %c0_i32 = arith.constant 0 : i32
    %c0_i32_0 = arith.constant 0 : i32
    %c0_i32_1 = arith.constant 0 : i32
    %c0_i32_2 = arith.constant 0 : i32
    return %arg0, %c0_i32, %c0_i32_0, %c0_i32_1 : i32, i32, i32, i32
  }
  func.func @transform_1(%arg0: i32) -> (i32, i32, i32) {
    %c0_i32 = arith.constant 0 : i32
    %c0_i32_0 = arith.constant 0 : i32
    %c0_i32_1 = arith.constant 0 : i32
    %c0_i32_2 = arith.constant 0 : i32
    return %c0_i32, %c0_i32_0, %c0_i32_1 : i32, i32, i32
  }
  func.func @transform_2(%arg0: i32) -> (i32, i32) {
    %c0_i32 = arith.constant 0 : i32
    %c0_i32_0 = arith.constant 0 : i32
    %c0_i32_1 = arith.constant 0 : i32
    return %c0_i32, %c0_i32_0 : i32, i32
  }
  func.func @transform_3(%arg0: i32) -> (i32, i32, i32) {
    %c0_i32 = arith.constant 0 : i32
    %c0_i32_0 = arith.constant 0 : i32
    %c0_i32_1 = arith.constant 0 : i32
    %c0_i32_2 = arith.constant 0 : i32
    return %c0_i32, %c0_i32_0, %c0_i32_1 : i32, i32, i32
  }
  func.func @transform_4(%arg0: i32) -> (i32, i32) {
    %c0_i32 = arith.constant 0 : i32
    %c0_i32_0 = arith.constant 0 : i32
    %c0_i32_1 = arith.constant 0 : i32
    return %c0_i32, %c0_i32_0 : i32, i32
  }
  func.func @transform_5(%arg0: i32) -> (i32, i32, i32, i32) {
    %c0_i32 = arith.constant 0 : i32
    %c0_i32_0 = arith.constant 0 : i32
    %c0_i32_1 = arith.constant 0 : i32
    %c0_i32_2 = arith.constant 0 : i32
    return %arg0, %c0_i32, %c0_i32_0, %c0_i32_1 : i32, i32, i32, i32
  }
}

</mosaic_0001>

<llo_original>
// kernel: convlstm_forward.1
$region0: #{convlstm_forward.1}
  #allocation0 [shape = 'u32[]', space=smem, size = 0x4, offset = 0x4, fixed_abs, tag = 'smem constant byte address 0x4 - core index']
  #allocation1 [shape = 'u32[144,128]{1,0:T(1,128)}', space=vmem, size = 0x12000, scoped, tag = 'internal scratch']
  #allocation2 [shape = 'bf16[18,16,108]{2,1,0:T(8,128)(2,1)}', space=vmem, size = 0x12000, scoped, tag = 'scratch operand']
  #allocation3 [shape = 'f32[256,32]{1,0:T(8,128)}', space=vmem, size = 0x20000, scoped, tag = 'scratch operand']
  #allocation4 [shape = 'bf16[18,16,192]{2,1,0:T(8,128)(2,1)}', space=vmem, size = 0x24000, scoped, tag = 'scratch operand']
  #allocation5 [shape = 'f32[256,32]{1,0:T(8,128)}', space=vmem, size = 0x20000, scoped, tag = 'scratch operand']
  %s0 = inlined_call_operand.vmem [shape: bf16[16,16,16,4], index: 0, kind: input, shape index: {}]
  %s1 = inlined_call_operand.vmem [shape: bf16[3,108,128], index: 1, kind: input, shape index: {}]
  %s2 = inlined_call_operand.vmem [shape: f32[1,128], index: 2, kind: input, shape index: {}]
  %s3 = inlined_call_operand.vmem [shape: bf16[3,192,128], index: 3, kind: input, shape index: {}]
  %s4 = inlined_call_operand.vmem [shape: f32[1,128], index: 4, kind: input, shape index: {}]
  %s5 = inlined_call_operand.hbm [shape: f32[2,16,16,32], index: 5, kind: output, shape index: {}]
  %s6 = sld [smem:[#allocation0]]
  $region64: #{convlstm_forward.1} parent=0
    _
  %s8 = ssub.s32 1, %s6
  %s9 = scalar_select 0, %s8, %s6
  $region1: #{convlstm_forward.1} parent=0
    #allocation6 [shape = 'u8[262144]{0}', space=vmem, size = 0x40000, scoped, tag = 'output window, operand 0']
    #allocation7 [shape = 's32[2]{0}', space=sflag, size = 0x8, scoped, tag = 'scoped memory for convlstm_forward.1']
    %10 = vsyncpa [#allocation7], 0
    %s11 = scalar_lea.sflag [#allocation7], 1
    %12 = vsyncpa %s11, 0
    loop: start=0, step=1, limit=4
    $region2: #{convlstm_forward.1} parent=1 // loop_pre_header
      _
    $region3: #{convlstm_forward.1} parent=1 // loop_header
      %s14 = sphi 0, %s18
      %p15 = scmp.ge.s32.totalorder %s14, 4
      %s24 = sphi 0, %s26
      %s27 = sphi 0, %s24
      %s28 = sphi 0, %s27
      %s44 = sphi 0, %s28
      %s48 = sphi 0, %s48
      %s50 = sphi 0, %s48
      %s51 = sphi 0, %s50
      %s65 = sphi 0, %s51
      %s69 = sphi 0, %s69
      %s71 = sphi 0, %s69
      %s72 = sphi 0, %s71
      %s86 = sphi 0, %s72
      %s90 = sphi 0, %s90
      %s92 = sphi 0, %s90
      %s93 = sphi 0, %s92
      %s107 = sphi 0, %s93
      %s111 = sphi 0, %s111
      %s113 = sphi 0, %s111
      %s114 = sphi 0, %s113
      %s128 = sphi 0, %s114
      %s134 = sphi 0, %s136
      %s137 = sphi 0, %s134
      %s138 = sphi 0, %s137
      %s154 = sphi 0, %s138
    $region4: #{convlstm_forward.1} parent=1 // loop_header_branch
      %17 = sbr.rel (%p15) target = $region8
    $region5: #{convlstm_forward.1} parent=1 // loop_body
      %s19 = ssub.s32 %s14, 1
      %s20 = ssub.s32 %s14, 2
      %s21 = sadd.s32 %s14, 1
      %s22 = ssub.s32 %s14, %s21
      %p23 = scmp.eq.s32.totalorder %s22, 0
      %s25 = sadd.s32 %s24, 1
      %s26 = scalar_select %p23, %s24, %s25
      %p29 = pneg %p23
      %p30 = scmp.eq.s32.totalorder %s14, 1
      %p31 = por %p29, %p30
      %p32 = scmp.ne.s32.totalorder %s24, %s27
      %p33 = scmp.eq.s32.totalorder %s14, 0
      %p34 = por %p32, %p33
      %p35 = scmp.ne.s32.totalorder %s24, %s27
      %p36 = scmp.eq.s32.totalorder %s19, 1
      %p37 = por %p35, %p36
      %p38 = scmp.ne.s32.totalorder %s27, %s28
      %p39 = scmp.eq.s32.totalorder %s19, 0
      %p40 = por %p38, %p39
      %p41 = scmp.ne.s32.totalorder %s27, %s28
      %p42 = scmp.eq.s32.totalorder %s20, 1
      %p43 = por %p41, %p42
      %p45 = scmp.ne.s32.totalorder %s28, %s44
      %p46 = scmp.eq.s32.totalorder %s20, 0
      %p47 = por %p45, %p46
      %s49 = sadd.s32 %s48, 1
      %p52 = scmp.eq.s32.totalorder %s14, 1
      %p53 = scmp.ne.s32.totalorder %s48, %s50
      %p54 = scmp.eq.s32.totalorder %s14, 0
      %p55 = por %p53, %p54
      %p56 = scmp.ne.s32.totalorder %s48, %s50
      %p57 = scmp.eq.s32.totalorder %s19, 1
      %p58 = por %p56, %p57
      %p59 = scmp.ne.s32.totalorder %s50, %s51
      %p60 = scmp.eq.s32.totalorder %s19, 0
      %p61 = por %p59, %p60
      %p62 = scmp.ne.s32.totalorder %s50, %s51
      %p63 = scmp.eq.s32.totalorder %s20, 1
      %p64 = por %p62, %p63
      %p66 = scmp.ne.s32.totalorder %s51, %s65
      %p67 = scmp.eq.s32.totalorder %s20, 0
      %p68 = por %p66, %p67
      %s70 = sadd.s32 %s69, 1
      %p73 = scmp.eq.s32.totalorder %s14, 1
      %p74 = scmp.ne.s32.totalorder %s69, %s71
      %p75 = scmp.eq.s32.totalorder %s14, 0
      %p76 = por %p74, %p75
      %p77 = scmp.ne.s32.totalorder %s69, %s71
      %p78 = scmp.eq.s32.totalorder %s19, 1
      %p79 = por %p77, %p78
      %p80 = scmp.ne.s32.totalorder %s71, %s72
      %p81 = scmp.eq.s32.totalorder %s19, 0
      %p82 = por %p80, %p81
      %p83 = scmp.ne.s32.totalorder %s71, %s72
      %p84 = scmp.eq.s32.totalorder %s20, 1
      %p85 = por %p83, %p84
      %p87 = scmp.ne.s32.totalorder %s72, %s86
      %p88 = scmp.eq.s32.totalorder %s20, 0
      %p89 = por %p87, %p88
      %s91 = sadd.s32 %s90, 1
      %p94 = scmp.eq.s32.totalorder %s14, 1
      %p95 = scmp.ne.s32.totalorder %s90, %s92
      %p96 = scmp.eq.s32.totalorder %s14, 0
      %p97 = por %p95, %p96
      %p98 = scmp.ne.s32.totalorder %s90, %s92
      %p99 = scmp.eq.s32.totalorder %s19, 1
      %p100 = por %p98, %p99
      %p101 = scmp.ne.s32.totalorder %s92, %s93
      %p102 = scmp.eq.s32.totalorder %s19, 0
      %p103 = por %p101, %p102
      %p104 = scmp.ne.s32.totalorder %s92, %s93
      %p105 = scmp.eq.s32.totalorder %s20, 1
      %p106 = por %p104, %p105
      %p108 = scmp.ne.s32.totalorder %s93, %s107
      %p109 = scmp.eq.s32.totalorder %s20, 0
      %p110 = por %p108, %p109
      %s112 = sadd.s32 %s111, 1
      %p115 = scmp.eq.s32.totalorder %s14, 1
      %p116 = scmp.ne.s32.totalorder %s111, %s113
      %p117 = scmp.eq.s32.totalorder %s14, 0
      %p118 = por %p116, %p117
      %p119 = scmp.ne.s32.totalorder %s111, %s113
      %p120 = scmp.eq.s32.totalorder %s19, 1
      %p121 = por %p119, %p120
      %p122 = scmp.ne.s32.totalorder %s113, %s114
      %p123 = scmp.eq.s32.totalorder %s19, 0
      %p124 = por %p122, %p123
      %p125 = scmp.ne.s32.totalorder %s113, %s114
      %p126 = scmp.eq.s32.totalorder %s20, 1
      %p127 = por %p125, %p126
      %p129 = scmp.ne.s32.totalorder %s114, %s128
      %p130 = scmp.eq.s32.totalorder %s20, 0
      %p131 = por %p129, %p130
      %s132 = ssub.s32 %s14, %s21
      %p133 = scmp.eq.s32.totalorder %s132, 0
      %s135 = sadd.s32 %s134, 1
      %s136 = scalar_select %p133, %s134, %s135
      %p139 = pneg %p133
      %p140 = scmp.eq.s32.totalorder %s14, 1
      %p141 = por %p139, %p140
      %p142 = scmp.ne.s32.totalorder %s134, %s137
      %p143 = scmp.eq.s32.totalorder %s14, 0
      %p144 = por %p142, %p143
      %p145 = scmp.ne.s32.totalorder %s134, %s137
      %p146 = scmp.eq.s32.totalorder %s19, 1
      %p147 = por %p145, %p146
      %p148 = scmp.ne.s32.totalorder %s137, %s138
      %p149 = scmp.eq.s32.totalorder %s19, 0
      %p150 = por %p148, %p149
      %p151 = scmp.ne.s32.totalorder %s137, %s138
      %p152 = scmp.eq.s32.totalorder %s20, 1
      %p153 = por %p151, %p152
      %p155 = scmp.ne.s32.totalorder %s138, %s154
      %p156 = scmp.eq.s32.totalorder %s20, 0
      %p157 = por %p155, %p156
      %p158 = scmp.le.s32.totalorder 1, %s14
      %p159 = scmp.lt.s32.totalorder %s14, 3
      %p160 = pnand %p158, %p159
      %p161 = pneg %p160
      // Predicated region
      $region9: #{convlstm_forward.1} parent=5 // pred_check
        _
      $region10: #{convlstm_forward.1} parent=5 // pred_check_branch
        %163 = sbr.rel (%p160) target = $region12
      $region11: #{convlstm_forward.1} parent=5 // pred_region
        %s164 = ssub.s32 %s14, 1
        // Predicated region
        $region13: #{convlstm_forward.1} parent=11 // pred_check
          %p165 = pneg %p61
        $region14: #{convlstm_forward.1} parent=11 // pred_check_branch
          %167 = sbr.rel (%p165) target = $region16
        $region15: #{convlstm_forward.1} parent=11 // pred_region
          _
        $region16: #{convlstm_forward.1} parent=11 // pred_fallthru
          _
        // Predicated region
        $region17: #{convlstm_forward.1} parent=11 // pred_check
          %p168 = pneg %p82
        $region18: #{convlstm_forward.1} parent=11 // pred_check_branch
          %170 = sbr.rel (%p168) target = $region20
        $region19: #{convlstm_forward.1} parent=11 // pred_region
          _
        $region20: #{convlstm_forward.1} parent=11 // pred_fallthru
          _
        // Predicated region
        $region21: #{convlstm_forward.1} parent=11 // pred_check
          %p171 = pneg %p103
        $region22: #{convlstm_forward.1} parent=11 // pred_check_branch
          %173 = sbr.rel (%p171) target = $region24
        $region23: #{convlstm_forward.1} parent=11 // pred_region
          _
        $region24: #{convlstm_forward.1} parent=11 // pred_fallthru
          _
        // Predicated region
        $region25: #{convlstm_forward.1} parent=11 // pred_check
          %p174 = pneg %p124
        $region26: #{convlstm_forward.1} parent=11 // pred_check_branch
          %176 = sbr.rel (%p174) target = $region28
        $region27: #{convlstm_forward.1} parent=11 // pred_region
          _
        $region28: #{convlstm_forward.1} parent=11 // pred_fallthru
          _
      $region12: #{convlstm_forward.1} parent=5 // pred_fallthru
        _
      %p177 = scmp.lt.s32.totalorder %s14, 2
      // Predicated region
      $region29: #{convlstm_forward.1} parent=5 // pred_check
        %p178 = pneg %p177
      $region30: #{convlstm_forward.1} parent=5 // pred_check_branch
        %180 = sbr.rel (%p178) target = $region32
      $region31: #{convlstm_forward.1} parent=5 // pred_region
        // Predicated region
        $region33: #{convlstm_forward.1} parent=31 // pred_check
          %p181 = pneg %p34
        $region34: #{convlstm_forward.1} parent=31 // pred_check_branch
          %183 = sbr.rel (%p181) target = $region36
        $region35: #{convlstm_forward.1} parent=31 // pred_region
          %s184 = smul.u32 8, %s14
          %p185 = scmp.lt.s32.totalorder %s184, 15
          %s186 = scalar_select %p185, %s184, 15
          %s187 = smul.addr %s186, 32
          %s188 = smul.addr %s187, 4
          %s189 = scalar_lea.vmem %s0, %s188
          %s190 = smul.u32 8, %s14
        $region36: #{convlstm_forward.1} parent=31 // pred_fallthru
          _
      $region32: #{convlstm_forward.1} parent=5 // pred_fallthru
        _
      %p191 = scmp.le.s32.totalorder 1, %s14
      %p192 = scmp.lt.s32.totalorder %s14, 3
      %p193 = pnand %p191, %p192
      %p194 = pneg %p193
      // Predicated region
      $region37: #{convlstm_forward.1} parent=5 // pred_check
        _
      $region38: #{convlstm_forward.1} parent=5 // pred_check_branch
        %196 = sbr.rel (%p193) target = $region40
      $region39: #{convlstm_forward.1} parent=5 // pred_region
        %s197 = ssub.s32 %s14, 1
        %s198 = smul.u32 8, %s19
        %p199 = scmp.lt.s32.totalorder %s198, 15
        %s200 = scalar_select %p199, %s198, 15
        %s201 = smul.addr %s200, 32
        %s202 = smul.addr %s201, 4
        %s203 = scalar_lea.vmem %s0, %s202
        %p204 = pneg %p40
        %p205 = pneg %p37
        %p206 = pneg %p61
        %p207 = pneg %p58
        %p208 = pneg %p82
        %p209 = pneg %p79
        %p210 = pneg %p103
        %p211 = pneg %p100
        %p212 = pneg %p124
        %p213 = pneg %p121
        %p214 = pneg %p150
        %p215 = pneg %p147
        %s216 = sand.u32 %s137, 1
        %s217 = scalar_lea.sflag [#allocation7], %s216
        %s218 = sand.u32 %s137, 1
        %s219 = smul.addr %s218, 256
        %s220 = scalar_lea.vmem [#allocation6], %s219
        %s221 = smul.u32 8, %s19
        %p222 = scmp.lt.s32.totalorder %s221, 15
        %s223 = scalar_select %p222, %s221, 15
        %s224 = smul.addr %s223, 32
        %s225 = smul.addr %s224, 4
        %s226 = scalar_lea.vmem %s0, %s225
        %s227 = smul.u32 8, %s19
        %vm229 = vcmask 879616
        %230 = vst.msk [vmem:[#allocation2] sm:$0xf] %vm229, 0
        %231 = vst.msk [vmem:[#allocation2 + $0x4] sm:$0xf] %vm229, 0
        %232 = vst.msk [vmem:[#allocation2 + $0x8] sm:$0xf] %vm229, 0
        %233 = vst.msk [vmem:[#allocation2 + $0xc] sm:$0xf] %vm229, 0
        %234 = vst.msk [vmem:[#allocation2 + $0x10] sm:$0xf] %vm229, 0
        %235 = vst.msk [vmem:[#allocation2 + $0x14] sm:$0xf] %vm229, 0
        %236 = vst.msk [vmem:[#allocation2 + $0x18] sm:$0xf] %vm229, 0
        %237 = vst.msk [vmem:[#allocation2 + $0x1c] sm:$0xf] %vm229, 0
        %238 = vst.msk [vmem:[#allocation2 + $0x20] sm:$0xf] %vm229, 0
        %239 = vst.msk [vmem:[#allocation2 + $0x24] sm:$0xf] %vm229, 0
        %240 = vst.msk [vmem:[#allocation2 + $0x28] sm:$0xf] %vm229, 0
        %241 = vst.msk [vmem:[#allocation2 + $0x2c] sm:$0xf] %vm229, 0
        %242 = vst.msk [vmem:[#allocation2 + $0x30] sm:$0xf] %vm229, 0
        %243 = vst.msk [vmem:[#allocation2 + $0x34] sm:$0xf] %vm229, 0
        %244 = vst.msk [vmem:[#allocation2 + $0x38] sm:$0xf] %vm229, 0
        %245 = vst.msk [vmem:[#allocation2 + $0x3c] sm:$0xf] %vm229, 0
        %246 = vst.msk [vmem:[#allocation2 + $0x40] sm:$0xf] %vm229, 0
        %247 = vst.msk [vmem:[#allocation2 + $0x44] sm:$0xf] %vm229, 0
        %248 = vst.msk [vmem:[#allocation2 + $0x48] sm:$0xf] %vm229, 0
        %249 = vst.msk [vmem:[#allocation2 + $0x4c] sm:$0xf] %vm229, 0
        %250 = vst.msk [vmem:[#allocation2 + $0x50] sm:$0xf] %vm229, 0
        %251 = vst.msk [vmem:[#allocation2 + $0x54] sm:$0xf] %vm229, 0
        %252 = vst.msk [vmem:[#allocation2 + $0x58] sm:$0xf] %vm229, 0
        %253 = vst.msk [vmem:[#allocation2 + $0x5c] sm:$0xf] %vm229, 0
        %254 = vst.msk [vmem:[#allocation2 + $0x60] sm:$0xf] %vm229, 0
        %255 = vst.msk [vmem:[#allocation2 + $0x64] sm:$0xf] %vm229, 0
        %256 = vst.msk [vmem:[#allocation2 + $0x68] sm:$0xf] %vm229, 0
        %257 = vst.msk [vmem:[#allocation2 + $0x6c] sm:$0xf] %vm229, 0
        %258 = vst.msk [vmem:[#allocation2 + $0x70] sm:$0xf] %vm229, 0
        %259 = vst.msk [vmem:[#allocation2 + $0x74] sm:$0xf] %vm229, 0
        %260 = vst.msk [vmem:[#allocation2 + $0x78] sm:$0xf] %vm229, 0
        %261 = vst.msk [vmem:[#allocation2 + $0x7c] sm:$0xf] %vm229, 0
        %262 = vst.msk [vmem:[#allocation2 + $0x80] sm:$0xf] %vm229, 0
        %263 = vst.msk [vmem:[#allocation2 + $0x84] sm:$0xf] %vm229, 0
        %264 = vst.msk [vmem:[#allocation2 + $0x88] sm:$0xf] %vm229, 0
        %265 = vst.msk [vmem:[#allocation2 + $0x8c] sm:$0xf] %vm229, 0
        %vm266 = vcmask 261120
        %267 = vst.msk [vmem:[#allocation3] sm:$0xff] %vm266, 0.0
        %268 = vst.msk [vmem:[#allocation3 + $0x8] sm:$0xff] %vm266, 0.0
        %269 = vst.msk [vmem:[#allocation3 + $0x10] sm:$0xff] %vm266, 0.0
        %270 = vst.msk [vmem:[#allocation3 + $0x18] sm:$0xff] %vm266, 0.0
        %271 = vst.msk [vmem:[#allocation3 + $0x20] sm:$0xff] %vm266, 0.0
        %272 = vst.msk [vmem:[#allocation3 + $0x28] sm:$0xff] %vm266, 0.0
        %273 = vst.msk [vmem:[#allocation3 + $0x30] sm:$0xff] %vm266, 0.0
        %274 = vst.msk [vmem:[#allocation3 + $0x38] sm:$0xff] %vm266, 0.0
        %275 = vst.msk [vmem:[#allocation3 + $0x40] sm:$0xff] %vm266, 0.0
        %276 = vst.msk [vmem:[#allocation3 + $0x48] sm:$0xff] %vm266, 0.0
        %277 = vst.msk [vmem:[#allocation3 + $0x50] sm:$0xff] %vm266, 0.0
        %278 = vst.msk [vmem:[#allocation3 + $0x58] sm:$0xff] %vm266, 0.0
        %279 = vst.msk [vmem:[#allocation3 + $0x60] sm:$0xff] %vm266, 0.0
        %280 = vst.msk [vmem:[#allocation3 + $0x68] sm:$0xff] %vm266, 0.0
        %281 = vst.msk [vmem:[#allocation3 + $0x70] sm:$0xff] %vm266, 0.0
        %282 = vst.msk [vmem:[#allocation3 + $0x78] sm:$0xff] %vm266, 0.0
        %283 = vst.msk [vmem:[#allocation3 + $0x80] sm:$0xff] %vm266, 0.0
        %284 = vst.msk [vmem:[#allocation3 + $0x88] sm:$0xff] %vm266, 0.0
        %285 = vst.msk [vmem:[#allocation3 + $0x90] sm:$0xff] %vm266, 0.0
        %286 = vst.msk [vmem:[#allocation3 + $0x98] sm:$0xff] %vm266, 0.0
        %287 = vst.msk [vmem:[#allocation3 + $0xa0] sm:$0xff] %vm266, 0.0
        %288 = vst.msk [vmem:[#allocation3 + $0xa8] sm:$0xff] %vm266, 0.0
        %289 = vst.msk [vmem:[#allocation3 + $0xb0] sm:$0xff] %vm266, 0.0
        %290 = vst.msk [vmem:[#allocation3 + $0xb8] sm:$0xff] %vm266, 0.0
        %291 = vst.msk [vmem:[#allocation3 + $0xc0] sm:$0xff] %vm266, 0.0
        %292 = vst.msk [vmem:[#allocation3 + $0xc8] sm:$0xff] %vm266, 0.0
        %293 = vst.msk [vmem:[#allocation3 + $0xd0] sm:$0xff] %vm266, 0.0
        %294 = vst.msk [vmem:[#allocation3 + $0xd8] sm:$0xff] %vm266, 0.0
        %295 = vst.msk [vmem:[#allocation3 + $0xe0] sm:$0xff] %vm266, 0.0
        %296 = vst.msk [vmem:[#allocation3 + $0xe8] sm:$0xff] %vm266, 0.0
        %297 = vst.msk [vmem:[#allocation3 + $0xf0] sm:$0xff] %vm266, 0.0
        %298 = vst.msk [vmem:[#allocation3 + $0xf8] sm:$0xff] %vm266, 0.0
        %vm299 = vcmask 1043456
        %vm300 = vcmask 523268
        %vm301 = vmor %vm300, %vm299
        %302 = vst.msk [vmem:[#allocation4] sm:$0xff] %vm301, 0
        %303 = vst.msk [vmem:[#allocation4 + $0x8] sm:$0xff] %vm301, 0
        %304 = vst.msk [vmem:[#allocation4 + $0x10] sm:$0xff] %vm301, 0
        %305 = vst.msk [vmem:[#allocation4 + $0x18] sm:$0xff] %vm301, 0
        %306 = vst.msk [vmem:[#allocation4 + $0x20] sm:$0xff] %vm301, 0
        %307 = vst.msk [vmem:[#allocation4 + $0x28] sm:$0xff] %vm301, 0
        %308 = vst.msk [vmem:[#allocation4 + $0x30] sm:$0xff] %vm301, 0
        %309 = vst.msk [vmem:[#allocation4 + $0x38] sm:$0xff] %vm301, 0
        %310 = vst.msk [vmem:[#allocation4 + $0x40] sm:$0xff] %vm301, 0
        %311 = vst.msk [vmem:[#allocation4 + $0x48] sm:$0xff] %vm301, 0
        %312 = vst.msk [vmem:[#allocation4 + $0x50] sm:$0xff] %vm301, 0
        %313 = vst.msk [vmem:[#allocation4 + $0x58] sm:$0xff] %vm301, 0
        %314 = vst.msk [vmem:[#allocation4 + $0x60] sm:$0xff] %vm301, 0
        %315 = vst.msk [vmem:[#allocation4 + $0x68] sm:$0xff] %vm301, 0
        %316 = vst.msk [vmem:[#allocation4 + $0x70] sm:$0xff] %vm301, 0
        %317 = vst.msk [vmem:[#allocation4 + $0x78] sm:$0xff] %vm301, 0
        %318 = vst.msk [vmem:[#allocation4 + $0x80] sm:$0xff] %vm301, 0
        %319 = vst.msk [vmem:[#allocation4 + $0x88] sm:$0xff] %vm301, 0
        %320 = vst.msk [vmem:[#allocation4 + $0x90] sm:$0xff] %vm301, 0
        %321 = vst.msk [vmem:[#allocation4 + $0x98] sm:$0xff] %vm301, 0
        %322 = vst.msk [vmem:[#allocation4 + $0xa0] sm:$0xff] %vm301, 0
        %323 = vst.msk [vmem:[#allocation4 + $0xa8] sm:$0xff] %vm301, 0
        %324 = vst.msk [vmem:[#allocation4 + $0xb0] sm:$0xff] %vm301, 0
        %325 = vst.msk [vmem:[#allocation4 + $0xb8] sm:$0xff] %vm301, 0
        %326 = vst.msk [vmem:[#allocation4 + $0xc0] sm:$0xff] %vm301, 0
        %327 = vst.msk [vmem:[#allocation4 + $0xc8] sm:$0xff] %vm301, 0
        %328 = vst.msk [vmem:[#allocation4 + $0xd0] sm:$0xff] %vm301, 0
        %329 = vst.msk [vmem:[#allocation4 + $0xd8] sm:$0xff] %vm301, 0
        %330 = vst.msk [vmem:[#allocation4 + $0xe0] sm:$0xff] %vm301, 0
        %331 = vst.msk [vmem:[#allocation4 + $0xe8] sm:$0xff] %vm301, 0
        %332 = vst.msk [vmem:[#allocation4 + $0xf0] sm:$0xff] %vm301, 0
        %333 = vst.msk [vmem:[#allocation4 + $0xf8] sm:$0xff] %vm301, 0
        %334 = vst.msk [vmem:[#allocation4 + $0x100] sm:$0xff] %vm301, 0
        %335 = vst.msk [vmem:[#allocation4 + $0x108] sm:$0xff] %vm301, 0
        %336 = vst.msk [vmem:[#allocation4 + $0x110] sm:$0xff] %vm301, 0
        %337 = vst.msk [vmem:[#allocation4 + $0x118] sm:$0xff] %vm301, 0
        %338 = vst.msk [vmem:[#allocation5] sm:$0xff] %vm266, 0.0
        %339 = vst.msk [vmem:[#allocation5 + $0x8] sm:$0xff] %vm266, 0.0
        %340 = vst.msk [vmem:[#allocation5 + $0x10] sm:$0xff] %vm266, 0.0
        %341 = vst.msk [vmem:[#allocation5 + $0x18] sm:$0xff] %vm266, 0.0
        %342 = vst.msk [vmem:[#allocation5 + $0x20] sm:$0xff] %vm266, 0.0
        %343 = vst.msk [vmem:[#allocation5 + $0x28] sm:$0xff] %vm266, 0.0
        %344 = vst.msk [vmem:[#allocation5 + $0x30] sm:$0xff] %vm266, 0.0
        %345 = vst.msk [vmem:[#allocation5 + $0x38] sm:$0xff] %vm266, 0.0
        %346 = vst.msk [vmem:[#allocation5 + $0x40] sm:$0xff] %vm266, 0.0
        %347 = vst.msk [vmem:[#allocation5 + $0x48] sm:$0xff] %vm266, 0.0
        %348 = vst.msk [vmem:[#allocation5 + $0x50] sm:$0xff] %vm266, 0.0
        %349 = vst.msk [vmem:[#allocation5 + $0x58] sm:$0xff] %vm266, 0.0
        %350 = vst.msk [vmem:[#allocation5 + $0x60] sm:$0xff] %vm266, 0.0
        %351 = vst.msk [vmem:[#allocation5 + $0x68] sm:$0xff] %vm266, 0.0
        %352 = vst.msk [vmem:[#allocation5 + $0x70] sm:$0xff] %vm266, 0.0
        %353 = vst.msk [vmem:[#allocation5 + $0x78] sm:$0xff] %vm266, 0.0
        %354 = vst.msk [vmem:[#allocation5 + $0x80] sm:$0xff] %vm266, 0.0
        %355 = vst.msk [vmem:[#allocation5 + $0x88] sm:$0xff] %vm266, 0.0
        %356 = vst.msk [vmem:[#allocation5 + $0x90] sm:$0xff] %vm266, 0.0
        %357 = vst.msk [vmem:[#allocation5 + $0x98] sm:$0xff] %vm266, 0.0
        %358 = vst.msk [vmem:[#allocation5 + $0xa0] sm:$0xff] %vm266, 0.0
        %359 = vst.msk [vmem:[#allocation5 + $0xa8] sm:$0xff] %vm266, 0.0
        %360 = vst.msk [vmem:[#allocation5 + $0xb0] sm:$0xff] %vm266, 0.0
        %361 = vst.msk [vmem:[#allocation5 + $0xb8] sm:$0xff] %vm266, 0.0
        %362 = vst.msk [vmem:[#allocation5 + $0xc0] sm:$0xff] %vm266, 0.0
        %363 = vst.msk [vmem:[#allocation5 + $0xc8] sm:$0xff] %vm266, 0.0
        %364 = vst.msk [vmem:[#allocation5 + $0xd0] sm:$0xff] %vm266, 0.0
        %365 = vst.msk [vmem:[#allocation5 + $0xd8] sm:$0xff] %vm266, 0.0
        %366 = vst.msk [vmem:[#allocation5 + $0xe0] sm:$0xff] %vm266, 0.0
        %367 = vst.msk [vmem:[#allocation5 + $0xe8] sm:$0xff] %vm266, 0.0
        %368 = vst.msk [vmem:[#allocation5 + $0xf0] sm:$0xff] %vm266, 0.0
        %369 = vst.msk [vmem:[#allocation5 + $0xf8] sm:$0xff] %vm266, 0.0
        %v370 = vlaneseq
        %v371 = vand.u32 %v370, 127
        %vm372 = vcmp.lt.s32.totalorder %v371, 96
        loop: start=0, step=1, limit=8
        $region41: #{convlstm_forward.1} parent=39 // loop_pre_header
          _
        $region42: #{convlstm_forward.1} parent=39 // loop_header
          %s374 = sphi 0, %s378
          %p375 = scmp.ge.s32.totalorder %s374, 8
        $region43: #{convlstm_forward.1} parent=39 // loop_header_branch
          %377 = sbr.rel (%p375) target = $region47
        $region44: #{convlstm_forward.1} parent=39 // loop_body
          %s379 = smul.u32 %s374, 32
          %s380 = smul.addr %s379, 4
          %s381 = scalar_lea.vmem %s226, %s380
          %v382 = vld [vmem:[%s381] sm:$0xf]
          %v383 = vld [vmem:[%s381 + $0x4] sm:$0xf]
          %v384 = vld [vmem:[%s381 + $0x8] sm:$0xf]
          %v385 = vld [vmem:[%s381 + $0xc] sm:$0xf]
          %v386 = vld [vmem:[%s381 + $0x10] sm:$0xf]
          %v387 = vld [vmem:[%s381 + $0x14] sm:$0xf]
          %v388 = vld [vmem:[%s381 + $0x18] sm:$0xf]
          %v389 = vld [vmem:[%s381 + $0x1c] sm:$0xf]
          %v390 = vld [vmem:[%s381 + $0x20] sm:$0xf]
          %v391 = vld [vmem:[%s381 + $0x24] sm:$0xf]
          %v392 = vld [vmem:[%s381 + $0x28] sm:$0xf]
          %v393 = vld [vmem:[%s381 + $0x2c] sm:$0xf]
          %v394 = vld [vmem:[%s381 + $0x30] sm:$0xf]
          %v395 = vld [vmem:[%s381 + $0x34] sm:$0xf]
          %v396 = vld [vmem:[%s381 + $0x38] sm:$0xf]
          %v397 = vld [vmem:[%s381 + $0x3c] sm:$0xf]
          %v398 = vld [vmem:[%s381 + $0x40] sm:$0xf]
          %v399 = vld [vmem:[%s381 + $0x44] sm:$0xf]
          %v400 = vld [vmem:[%s381 + $0x48] sm:$0xf]
          %v401 = vld [vmem:[%s381 + $0x4c] sm:$0xf]
          %v402 = vld [vmem:[%s381 + $0x50] sm:$0xf]
          %v403 = vld [vmem:[%s381 + $0x54] sm:$0xf]
          %v404 = vld [vmem:[%s381 + $0x58] sm:$0xf]
          %v405 = vld [vmem:[%s381 + $0x5c] sm:$0xf]
          %v406 = vld [vmem:[%s381 + $0x60] sm:$0xf]
          %v407 = vld [vmem:[%s381 + $0x64] sm:$0xf]
          %v408 = vld [vmem:[%s381 + $0x68] sm:$0xf]
          %v409 = vld [vmem:[%s381 + $0x6c] sm:$0xf]
          %v410 = vld [vmem:[%s381 + $0x70] sm:$0xf]
          %v411 = vld [vmem:[%s381 + $0x74] sm:$0xf]
          %v412 = vld [vmem:[%s381 + $0x78] sm:$0xf]
          %v413 = vld [vmem:[%s381 + $0x7c] sm:$0xf]
          %vm414 = vsmask.f32 256
          %vm415 = vsmask.f32 4368
          %vm416 = vmor %vm414, %vm415
          %v418 = vshrl.u32 %v382, 16
          %v420 = vrot.slane %v418, 7
          %v421 = vshll.u32 %v382, 16
          %v423 = vor.u32 %v420, %v421
          %v424 = vrot.slane %v420, 4
          %v426 = vshrl.u32 %v383, 16
          %v428 = vrot.slane %v426, 7
          %v429 = vshll.u32 %v383, 16
          %v431 = vor.u32 %v428, %v429
          %v432 = vsel %vm416, %v424, %v431
          %v434 = vshrl.u32 %v384, 16
          %v436 = vrot.slane %v434, 7
          %v437 = vshll.u32 %v384, 16
          %v439 = vor.u32 %v436, %v437
          %v440 = vrot.slane %v436, 4
          %v442 = vshrl.u32 %v385, 16
          %v444 = vrot.slane %v442, 7
          %v445 = vshll.u32 %v385, 16
          %v447 = vor.u32 %v444, %v445
          %v448 = vsel %vm416, %v440, %v447
          %v450 = vshrl.u32 %v386, 16
          %v452 = vrot.slane %v450, 7
          %v453 = vshll.u32 %v386, 16
          %v455 = vor.u32 %v452, %v453
          %v456 = vrot.slane %v452, 4
          %v458 = vshrl.u32 %v387, 16
          %v460 = vrot.slane %v458, 7
          %v461 = vshll.u32 %v387, 16
          %v463 = vor.u32 %v460, %v461
          %v464 = vsel %vm416, %v456, %v463
          %v466 = vshrl.u32 %v388, 16
          %v468 = vrot.slane %v466, 7
          %v469 = vshll.u32 %v388, 16
          %v471 = vor.u32 %v468, %v469
          %v472 = vrot.slane %v468, 4
          %v474 = vshrl.u32 %v389, 16
          %v476 = vrot.slane %v474, 7
          %v477 = vshll.u32 %v389, 16
          %v479 = vor.u32 %v476, %v477
          %v480 = vsel %vm416, %v472, %v479
          %v482 = vshrl.u32 %v390, 16
          %v484 = vrot.slane %v482, 7
          %v485 = vshll.u32 %v390, 16
          %v487 = vor.u32 %v484, %v485
          %v488 = vrot.slane %v484, 4
          %v490 = vshrl.u32 %v391, 16
          %v492 = vrot.slane %v490, 7
          %v493 = vshll.u32 %v391, 16
          %v495 = vor.u32 %v492, %v493
          %v496 = vsel %vm416, %v488, %v495
          %v498 = vshrl.u32 %v392, 16
          %v500 = vrot.slane %v498, 7
          %v501 = vshll.u32 %v392, 16
          %v503 = vor.u32 %v500, %v501
          %v504 = vrot.slane %v500, 4
          %v506 = vshrl.u32 %v393, 16
          %v508 = vrot.slane %v506, 7
          %v509 = vshll.u32 %v393, 16
          %v511 = vor.u32 %v508, %v509
          %v512 = vsel %vm416, %v504, %v511
          %v514 = vshrl.u32 %v394, 16
          %v516 = vrot.slane %v514, 7
          %v517 = vshll.u32 %v394, 16
          %v519 = vor.u32 %v516, %v517
          %v520 = vrot.slane %v516, 4
          %v522 = vshrl.u32 %v395, 16
          %v524 = vrot.slane %v522, 7
          %v525 = vshll.u32 %v395, 16
          %v527 = vor.u32 %v524, %v525
          %v528 = vsel %vm416, %v520, %v527
          %v530 = vshrl.u32 %v396, 16
          %v532 = vrot.slane %v530, 7
          %v533 = vshll.u32 %v396, 16
          %v535 = vor.u32 %v532, %v533
          %v536 = vrot.slane %v532, 4
          %v538 = vshrl.u32 %v397, 16
          %v540 = vrot.slane %v538, 7
          %v541 = vshll.u32 %v397, 16
          %v543 = vor.u32 %v540, %v541
          %v544 = vsel %vm416, %v536, %v543
          %v546 = vshrl.u32 %v398, 16
          %v548 = vrot.slane %v546, 7
          %v549 = vshll.u32 %v398, 16
          %v551 = vor.u32 %v548, %v549
          %v552 = vrot.slane %v548, 4
          %v554 = vshrl.u32 %v399, 16
          %v556 = vrot.slane %v554, 7
          %v557 = vshll.u32 %v399, 16
          %v559 = vor.u32 %v556, %v557
          %v560 = vsel %vm416, %v552, %v559
          %v562 = vshrl.u32 %v400, 16
          %v564 = vrot.slane %v562, 7
          %v565 = vshll.u32 %v400, 16
          %v567 = vor.u32 %v564, %v565
          %v568 = vrot.slane %v564, 4
          %v570 = vshrl.u32 %v401, 16
          %v572 = vrot.slane %v570, 7
          %v573 = vshll.u32 %v401, 16
          %v575 = vor.u32 %v572, %v573
          %v576 = vsel %vm416, %v568, %v575
          %v578 = vshrl.u32 %v402, 16
          %v580 = vrot.slane %v578, 7
          %v581 = vshll.u32 %v402, 16
          %v583 = vor.u32 %v580, %v581
          %v584 = vrot.slane %v580, 4
          %v586 = vshrl.u32 %v403, 16
          %v588 = vrot.slane %v586, 7
          %v589 = vshll.u32 %v403, 16
          %v591 = vor.u32 %v588, %v589
          %v592 = vsel %vm416, %v584, %v591
          %v594 = vshrl.u32 %v404, 16
          %v596 = vrot.slane %v594, 7
          %v597 = vshll.u32 %v404, 16
          %v599 = vor.u32 %v596, %v597
          %v600 = vrot.slane %v596, 4
          %v602 = vshrl.u32 %v405, 16
          %v604 = vrot.slane %v602, 7
          %v605 = vshll.u32 %v405, 16
          %v607 = vor.u32 %v604, %v605
          %v608 = vsel %vm416, %v600, %v607
          %v610 = vshrl.u32 %v406, 16
          %v612 = vrot.slane %v610, 7
          %v613 = vshll.u32 %v406, 16
          %v615 = vor.u32 %v612, %v613
          %v616 = vrot.slane %v612, 4
          %v618 = vshrl.u32 %v407, 16
          %v620 = vrot.slane %v618, 7
          %v621 = vshll.u32 %v407, 16
          %v623 = vor.u32 %v620, %v621
          %v624 = vsel %vm416, %v616, %v623
          %v626 = vshrl.u32 %v408, 16
          %v628 = vrot.slane %v626, 7
          %v629 = vshll.u32 %v408, 16
          %v631 = vor.u32 %v628, %v629
          %v632 = vrot.slane %v628, 4
          %v634 = vshrl.u32 %v409, 16
          %v636 = vrot.slane %v634, 7
          %v637 = vshll.u32 %v409, 16
          %v639 = vor.u32 %v636, %v637
          %v640 = vsel %vm416, %v632, %v639
          %v642 = vshrl.u32 %v410, 16
          %v644 = vrot.slane %v642, 7
          %v645 = vshll.u32 %v410, 16
          %v647 = vor.u32 %v644, %v645
          %v648 = vrot.slane %v644, 4
          %v650 = vshrl.u32 %v411, 16
          %v652 = vrot.slane %v650, 7
          %v653 = vshll.u32 %v411, 16
          %v655 = vor.u32 %v652, %v653
          %v656 = vsel %vm416, %v648, %v655
          %v658 = vshrl.u32 %v412, 16
          %v660 = vrot.slane %v658, 7
          %v661 = vshll.u32 %v412, 16
          %v663 = vor.u32 %v660, %v661
          %v664 = vrot.slane %v660, 4
          %v666 = vshrl.u32 %v413, 16
          %v668 = vrot.slane %v666, 7
          %v669 = vshll.u32 %v413, 16
          %v671 = vor.u32 %v668, %v669
          %v672 = vsel %vm416, %v664, %v671
          %s705 = scalar_lea.vmem [#allocation2], 8
          %vm706 = vcmask 27648
          %vm707 = vsmask.f32 7938
          %vm708 = vmand %vm706, %vm707
          %v709 = vld [vmem:[%s705] sm:$0xf]
          %v710 = vsel %vm708, %v423, %v709
          %711 = vst [vmem:[%s705] sm:$0xf] %v710
          %vm712 = vcmask 27648
          %713 = vst.msk [vmem:[%s705 + $0x4] sm:$0xf] %vm712, %v432
          %v714 = vld [vmem:[%s705 + $0x8] sm:$0xf]
          %v715 = vsel %vm708, %v439, %v714
          %716 = vst [vmem:[%s705 + $0x8] sm:$0xf] %v715
          %717 = vst.msk [vmem:[%s705 + $0xc] sm:$0xf] %vm712, %v448
          %v718 = vld [vmem:[%s705 + $0x10] sm:$0xf]
          %v719 = vsel %vm708, %v455, %v718
          %720 = vst [vmem:[%s705 + $0x10] sm:$0xf] %v719
          %721 = vst.msk [vmem:[%s705 + $0x14] sm:$0xf] %vm712, %v464
          %v722 = vld [vmem:[%s705 + $0x18] sm:$0xf]
          %v723 = vsel %vm708, %v471, %v722
          %724 = vst [vmem:[%s705 + $0x18] sm:$0xf] %v723
          %725 = vst.msk [vmem:[%s705 + $0x1c] sm:$0xf] %vm712, %v480
          %v726 = vld [vmem:[%s705 + $0x20] sm:$0xf]
          %v727 = vsel %vm708, %v487, %v726
          %728 = vst [vmem:[%s705 + $0x20] sm:$0xf] %v727
          %729 = vst.msk [vmem:[%s705 + $0x24] sm:$0xf] %vm712, %v496
          %v730 = vld [vmem:[%s705 + $0x28] sm:$0xf]
          %v731 = vsel %vm708, %v503, %v730
          %732 = vst [vmem:[%s705 + $0x28] sm:$0xf] %v731
          %733 = vst.msk [vmem:[%s705 + $0x2c] sm:$0xf] %vm712, %v512
          %v734 = vld [vmem:[%s705 + $0x30] sm:$0xf]
          %v735 = vsel %vm708, %v519, %v734
          %736 = vst [vmem:[%s705 + $0x30] sm:$0xf] %v735
          %737 = vst.msk [vmem:[%s705 + $0x34] sm:$0xf] %vm712, %v528
          %v738 = vld [vmem:[%s705 + $0x38] sm:$0xf]
          %v739 = vsel %vm708, %v535, %v738
          %740 = vst [vmem:[%s705 + $0x38] sm:$0xf] %v739
          %741 = vst.msk [vmem:[%s705 + $0x3c] sm:$0xf] %vm712, %v544
          %v742 = vld [vmem:[%s705 + $0x40] sm:$0xf]
          %v743 = vsel %vm708, %v551, %v742
          %744 = vst [vmem:[%s705 + $0x40] sm:$0xf] %v743
          %745 = vst.msk [vmem:[%s705 + $0x44] sm:$0xf] %vm712, %v560
          %v746 = vld [vmem:[%s705 + $0x48] sm:$0xf]
          %v747 = vsel %vm708, %v567, %v746
          %748 = vst [vmem:[%s705 + $0x48] sm:$0xf] %v747
          %749 = vst.msk [vmem:[%s705 + $0x4c] sm:$0xf] %vm712, %v576
          %v750 = vld [vmem:[%s705 + $0x50] sm:$0xf]
          %v751 = vsel %vm708, %v583, %v750
          %752 = vst [vmem:[%s705 + $0x50] sm:$0xf] %v751
          %753 = vst.msk [vmem:[%s705 + $0x54] sm:$0xf] %vm712, %v592
          %v754 = vld [vmem:[%s705 + $0x58] sm:$0xf]
          %v755 = vsel %vm708, %v599, %v754
          %756 = vst [vmem:[%s705 + $0x58] sm:$0xf] %v755
          %757 = vst.msk [vmem:[%s705 + $0x5c] sm:$0xf] %vm712, %v608
          %v758 = vld [vmem:[%s705 + $0x60] sm:$0xf]
          %v759 = vsel %vm708, %v615, %v758
          %760 = vst [vmem:[%s705 + $0x60] sm:$0xf] %v759
          %761 = vst.msk [vmem:[%s705 + $0x64] sm:$0xf] %vm712, %v624
          %v762 = vld [vmem:[%s705 + $0x68] sm:$0xf]
          %v763 = vsel %vm708, %v631, %v762
          %764 = vst [vmem:[%s705 + $0x68] sm:$0xf] %v763
          %765 = vst.msk [vmem:[%s705 + $0x6c] sm:$0xf] %vm712, %v640
          %v766 = vld [vmem:[%s705 + $0x70] sm:$0xf]
          %v767 = vsel %vm708, %v647, %v766
          %768 = vst [vmem:[%s705 + $0x70] sm:$0xf] %v767
          %769 = vst.msk [vmem:[%s705 + $0x74] sm:$0xf] %vm712, %v656
          %v770 = vld [vmem:[%s705 + $0x78] sm:$0xf]
          %v771 = vsel %vm708, %v663, %v770
          %772 = vst [vmem:[%s705 + $0x78] sm:$0xf] %v771
          %773 = vst.msk [vmem:[%s705 + $0x7c] sm:$0xf] %vm712, %v672
          %806 = vrot.lane.b32.xlu0 %v382, 36
          %v807 = vpop.permute.xlu0 %806
          %808 = vrot.lane.b32.xlu0 %v383, 36
          %v809 = vpop.permute.xlu0 %808
          %810 = vrot.lane.b32.xlu0 %v384, 36
          %v811 = vpop.permute.xlu0 %810
          %812 = vrot.lane.b32.xlu0 %v385, 36
          %v813 = vpop.permute.xlu0 %812
          %814 = vrot.lane.b32.xlu0 %v386, 36
          %v815 = vpop.permute.xlu0 %814
          %816 = vrot.lane.b32.xlu0 %v387, 36
          %v817 = vpop.permute.xlu0 %816
          %818 = vrot.lane.b32.xlu0 %v388, 36
          %v819 = vpop.permute.xlu0 %818
          %820 = vrot.lane.b32.xlu0 %v389, 36
          %v821 = vpop.permute.xlu0 %820
          %822 = vrot.lane.b32.xlu0 %v390, 36
          %v823 = vpop.permute.xlu0 %822
          %824 = vrot.lane.b32.xlu0 %v391, 36
          %v825 = vpop.permute.xlu0 %824
          %826 = vrot.lane.b32.xlu0 %v392, 36
          %v827 = vpop.permute.xlu0 %826
          %828 = vrot.lane.b32.xlu0 %v393, 36
          %v829 = vpop.permute.xlu0 %828
          %830 = vrot.lane.b32.xlu0 %v394, 36
          %v831 = vpop.permute.xlu0 %830
          %832 = vrot.lane.b32.xlu0 %v395, 36
          %v833 = vpop.permute.xlu0 %832
          %834 = vrot.lane.b32.xlu0 %v396, 36
          %v835 = vpop.permute.xlu0 %834
          %836 = vrot.lane.b32.xlu0 %v397, 36
          %v837 = vpop.permute.xlu0 %836
          %838 = vrot.lane.b32.xlu0 %v398, 36
          %v839 = vpop.permute.xlu0 %838
          %840 = vrot.lane.b32.xlu0 %v399, 36
          %v841 = vpop.permute.xlu0 %840
          %842 = vrot.lane.b32.xlu0 %v400, 36
          %v843 = vpop.permute.xlu0 %842
          %844 = vrot.lane.b32.xlu0 %v401, 36
          %v845 = vpop.permute.xlu0 %844
          %846 = vrot.lane.b32.xlu0 %v402, 36
          %v847 = vpop.permute.xlu0 %846
          %848 = vrot.lane.b32.xlu0 %v403, 36
          %v849 = vpop.permute.xlu0 %848
          %850 = vrot.lane.b32.xlu0 %v404, 36
          %v851 = vpop.permute.xlu0 %850
          %852 = vrot.lane.b32.xlu0 %v405, 36
          %v853 = vpop.permute.xlu0 %852
          %854 = vrot.lane.b32.xlu0 %v406, 36
          %v855 = vpop.permute.xlu0 %854
          %856 = vrot.lane.b32.xlu0 %v407, 36
          %v857 = vpop.permute.xlu0 %856
          %858 = vrot.lane.b32.xlu0 %v408, 36
          %v859 = vpop.permute.xlu0 %858
          %860 = vrot.lane.b32.xlu0 %v409, 36
          %v861 = vpop.permute.xlu0 %860
          %862 = vrot.lane.b32.xlu0 %v410, 36
          %v863 = vpop.permute.xlu0 %862
          %864 = vrot.lane.b32.xlu0 %v411, 36
          %v865 = vpop.permute.xlu0 %864
          %866 = vrot.lane.b32.xlu0 %v412, 36
          %v867 = vpop.permute.xlu0 %866
          %868 = vrot.lane.b32.xlu0 %v413, 36
          %v869 = vpop.permute.xlu0 %868
          %vm902 = vcmask 322848
          %903 = vst.msk [vmem:[%s705] sm:$0xf] %vm902, %v807
          %904 = vst.msk [vmem:[%s705 + $0x4] sm:$0xf] %vm902, %v809
          %905 = vst.msk [vmem:[%s705 + $0x8] sm:$0xf] %vm902, %v811
          %906 = vst.msk [vmem:[%s705 + $0xc] sm:$0xf] %vm902, %v813
          %907 = vst.msk [vmem:[%s705 + $0x10] sm:$0xf] %vm902, %v815
          %908 = vst.msk [vmem:[%s705 + $0x14] sm:$0xf] %vm902, %v817
          %909 = vst.msk [vmem:[%s705 + $0x18] sm:$0xf] %vm902, %v819
          %910 = vst.msk [vmem:[%s705 + $0x1c] sm:$0xf] %vm902, %v821
          %911 = vst.msk [vmem:[%s705 + $0x20] sm:$0xf] %vm902, %v823
          %912 = vst.msk [vmem:[%s705 + $0x24] sm:$0xf] %vm902, %v825
          %913 = vst.msk [vmem:[%s705 + $0x28] sm:$0xf] %vm902, %v827
          %914 = vst.msk [vmem:[%s705 + $0x2c] sm:$0xf] %vm902, %v829
          %915 = vst.msk [vmem:[%s705 + $0x30] sm:$0xf] %vm902, %v831
          %916 = vst.msk [vmem:[%s705 + $0x34] sm:$0xf] %vm902, %v833
          %917 = vst.msk [vmem:[%s705 + $0x38] sm:$0xf] %vm902, %v835
          %918 = vst.msk [vmem:[%s705 + $0x3c] sm:$0xf] %vm902, %v837
          %919 = vst.msk [vmem:[%s705 + $0x40] sm:$0xf] %vm902, %v839
          %920 = vst.msk [vmem:[%s705 + $0x44] sm:$0xf] %vm902, %v841
          %921 = vst.msk [vmem:[%s705 + $0x48] sm:$0xf] %vm902, %v843
          %922 = vst.msk [vmem:[%s705 + $0x4c] sm:$0xf] %vm902, %v845
          %923 = vst.msk [vmem:[%s705 + $0x50] sm:$0xf] %vm902, %v847
          %924 = vst.msk [vmem:[%s705 + $0x54] sm:$0xf] %vm902, %v849
          %925 = vst.msk [vmem:[%s705 + $0x58] sm:$0xf] %vm902, %v851
          %926 = vst.msk [vmem:[%s705 + $0x5c] sm:$0xf] %vm902, %v853
          %927 = vst.msk [vmem:[%s705 + $0x60] sm:$0xf] %vm902, %v855
          %928 = vst.msk [vmem:[%s705 + $0x64] sm:$0xf] %vm902, %v857
          %929 = vst.msk [vmem:[%s705 + $0x68] sm:$0xf] %vm902, %v859
          %930 = vst.msk [vmem:[%s705 + $0x6c] sm:$0xf] %vm902, %v861
          %931 = vst.msk [vmem:[%s705 + $0x70] sm:$0xf] %vm902, %v863
          %932 = vst.msk [vmem:[%s705 + $0x74] sm:$0xf] %vm902, %v865
          %933 = vst.msk [vmem:[%s705 + $0x78] sm:$0xf] %vm902, %v867
          %934 = vst.msk [vmem:[%s705 + $0x7c] sm:$0xf] %vm902, %v869
          %vm935 = vsmask.f32 3328
          %vm936 = vsmask.f32 7440
          %vm937 = vmor %vm935, %vm936
          %v938 = vrot.slane %v418, 4
          %v939 = vrot.slane %v421, 5
          %v940 = vor.u32 %v938, %v939
          %v941 = vrot.slane %v940, 4
          %v942 = vrot.slane %v429, 5
          %v943 = vsel %vm937, %v941, %v942
          %v944 = vrot.slane %v426, 4
          %v945 = vor.u32 %v944, %v942
          %v946 = vrot.slane %v945, 4
          %v947 = vrot.slane %v434, 4
          %v948 = vrot.slane %v437, 5
          %v949 = vor.u32 %v947, %v948
          %v950 = vrot.slane %v949, 4
          %v951 = vrot.slane %v445, 5
          %v952 = vsel %vm937, %v950, %v951
          %v953 = vrot.slane %v442, 4
          %v954 = vor.u32 %v953, %v951
          %v955 = vrot.slane %v954, 4
          %v956 = vrot.slane %v450, 4
          %v957 = vrot.slane %v453, 5
          %v958 = vor.u32 %v956, %v957
          %v959 = vrot.slane %v958, 4
          %v960 = vrot.slane %v461, 5
          %v961 = vsel %vm937, %v959, %v960
          %v962 = vrot.slane %v458, 4
          %v963 = vor.u32 %v962, %v960
          %v964 = vrot.slane %v963, 4
          %v965 = vrot.slane %v466, 4
          %v966 = vrot.slane %v469, 5
          %v967 = vor.u32 %v965, %v966
          %v968 = vrot.slane %v967, 4
          %v969 = vrot.slane %v477, 5
          %v970 = vsel %vm937, %v968, %v969
          %v971 = vrot.slane %v474, 4
          %v972 = vor.u32 %v971, %v969
          %v973 = vrot.slane %v972, 4
          %v974 = vrot.slane %v482, 4
          %v975 = vrot.slane %v485, 5
          %v976 = vor.u32 %v974, %v975
          %v977 = vrot.slane %v976, 4
          %v978 = vrot.slane %v493, 5
          %v979 = vsel %vm937, %v977, %v978
          %v980 = vrot.slane %v490, 4
          %v981 = vor.u32 %v980, %v978
          %v982 = vrot.slane %v981, 4
          %v983 = vrot.slane %v498, 4
          %v984 = vrot.slane %v501, 5
          %v985 = vor.u32 %v983, %v984
          %v986 = vrot.slane %v985, 4
          %v987 = vrot.slane %v509, 5
          %v988 = vsel %vm937, %v986, %v987
          %v989 = vrot.slane %v506, 4
          %v990 = vor.u32 %v989, %v987
          %v991 = vrot.slane %v990, 4
          %v992 = vrot.slane %v514, 4
          %v993 = vrot.slane %v517, 5
          %v994 = vor.u32 %v992, %v993
          %v995 = vrot.slane %v994, 4
          %v996 = vrot.slane %v525, 5
          %v997 = vsel %vm937, %v995, %v996
          %v998 = vrot.slane %v522, 4
          %v999 = vor.u32 %v998, %v996
          %v1000 = vrot.slane %v999, 4
          %v1001 = vrot.slane %v530, 4
          %v1002 = vrot.slane %v533, 5
          %v1003 = vor.u32 %v1001, %v1002
          %v1004 = vrot.slane %v1003, 4
          %v1005 = vrot.slane %v541, 5
          %v1006 = vsel %vm937, %v1004, %v1005
          %v1007 = vrot.slane %v538, 4
          %v1008 = vor.u32 %v1007, %v1005
          %v1009 = vrot.slane %v1008, 4
          %v1010 = vrot.slane %v546, 4
          %v1011 = vrot.slane %v549, 5
          %v1012 = vor.u32 %v1010, %v1011
          %v1013 = vrot.slane %v1012, 4
          %v1014 = vrot.slane %v557, 5
          %v1015 = vsel %vm937, %v1013, %v1014
          %v1016 = vrot.slane %v554, 4
          %v1017 = vor.u32 %v1016, %v1014
          %v1018 = vrot.slane %v1017, 4
          %v1019 = vrot.slane %v562, 4
          %v1020 = vrot.slane %v565, 5
          %v1021 = vor.u32 %v1019, %v1020
          %v1022 = vrot.slane %v1021, 4
          %v1023 = vrot.slane %v573, 5
          %v1024 = vsel %vm937, %v1022, %v1023
          %v1025 = vrot.slane %v570, 4
          %v1026 = vor.u32 %v1025, %v1023
          %v1027 = vrot.slane %v1026, 4
          %v1028 = vrot.slane %v578, 4
          %v1029 = vrot.slane %v581, 5
          %v1030 = vor.u32 %v1028, %v1029
          %v1031 = vrot.slane %v1030, 4
          %v1032 = vrot.slane %v589, 5
          %v1033 = vsel %vm937, %v1031, %v1032
          %v1034 = vrot.slane %v586, 4
          %v1035 = vor.u32 %v1034, %v1032
          %v1036 = vrot.slane %v1035, 4
          %v1037 = vrot.slane %v594, 4
          %v1038 = vrot.slane %v597, 5
          %v1039 = vor.u32 %v1037, %v1038
          %v1040 = vrot.slane %v1039, 4
          %v1041 = vrot.slane %v605, 5
          %v1042 = vsel %vm937, %v1040, %v1041
          %v1043 = vrot.slane %v602, 4
          %v1044 = vor.u32 %v1043, %v1041
          %v1045 = vrot.slane %v1044, 4
          %v1046 = vrot.slane %v610, 4
          %v1047 = vrot.slane %v613, 5
          %v1048 = vor.u32 %v1046, %v1047
          %v1049 = vrot.slane %v1048, 4
          %v1050 = vrot.slane %v621, 5
          %v1051 = vsel %vm937, %v1049, %v1050
          %v1052 = vrot.slane %v618, 4
          %v1053 = vor.u32 %v1052, %v1050
          %v1054 = vrot.slane %v1053, 4
          %v1055 = vrot.slane %v626, 4
          %v1056 = vrot.slane %v629, 5
          %v1057 = vor.u32 %v1055, %v1056
          %v1058 = vrot.slane %v1057, 4
          %v1059 = vrot.slane %v637, 5
          %v1060 = vsel %vm937, %v1058, %v1059
          %v1061 = vrot.slane %v634, 4
          %v1062 = vor.u32 %v1061, %v1059
          %v1063 = vrot.slane %v1062, 4
          %v1064 = vrot.slane %v642, 4
          %v1065 = vrot.slane %v645, 5
          %v1066 = vor.u32 %v1064, %v1065
          %v1067 = vrot.slane %v1066, 4
          %v1068 = vrot.slane %v653, 5
          %v1069 = vsel %vm937, %v1067, %v1068
          %v1070 = vrot.slane %v650, 4
          %v1071 = vor.u32 %v1070, %v1068
          %v1072 = vrot.slane %v1071, 4
          %v1073 = vrot.slane %v658, 4
          %v1074 = vrot.slane %v661, 5
          %v1075 = vor.u32 %v1073, %v1074
          %v1076 = vrot.slane %v1075, 4
          %v1077 = vrot.slane %v669, 5
          %v1078 = vsel %vm937, %v1076, %v1077
          %v1079 = vrot.slane %v666, 4
          %v1080 = vor.u32 %v1079, %v1077
          %v1081 = vrot.slane %v1080, 4
          %1082 = vrot.lane.b32.xlu0 %v943, 72
          %v1083 = vpop.permute.xlu0 %1082
          %1084 = vrot.lane.b32.xlu0 %v946, 72
          %v1085 = vpop.permute.xlu0 %1084
          %1086 = vrot.lane.b32.xlu0 %v952, 72
          %v1087 = vpop.permute.xlu0 %1086
          %1088 = vrot.lane.b32.xlu0 %v955, 72
          %v1089 = vpop.permute.xlu0 %1088
          %1090 = vrot.lane.b32.xlu0 %v961, 72
          %v1091 = vpop.permute.xlu0 %1090
          %1092 = vrot.lane.b32.xlu0 %v964, 72
          %v1093 = vpop.permute.xlu0 %1092
          %1094 = vrot.lane.b32.xlu0 %v970, 72
          %v1095 = vpop.permute.xlu0 %1094
          %1096 = vrot.lane.b32.xlu0 %v973, 72
          %v1097 = vpop.permute.xlu0 %1096
          %1098 = vrot.lane.b32.xlu0 %v979, 72
          %v1099 = vpop.permute.xlu0 %1098
          %1100 = vrot.lane.b32.xlu0 %v982, 72
          %v1101 = vpop.permute.xlu0 %1100
          %1102 = vrot.lane.b32.xlu0 %v988, 72
          %v1103 = vpop.permute.xlu0 %1102
          %1104 = vrot.lane.b32.xlu0 %v991, 72
          %v1105 = vpop.permute.xlu0 %1104
          %1106 = vrot.lane.b32.xlu0 %v997, 72
          %v1107 = vpop.permute.xlu0 %1106
          %1108 = vrot.lane.b32.xlu0 %v1000, 72
          %v1109 = vpop.permute.xlu0 %1108
          %1110 = vrot.lane.b32.xlu0 %v1006, 72
          %v1111 = vpop.permute.xlu0 %1110
          %1112 = vrot.lane.b32.xlu0 %v1009, 72
          %v1113 = vpop.permute.xlu0 %1112
          %1114 = vrot.lane.b32.xlu0 %v1015, 72
          %v1115 = vpop.permute.xlu0 %1114
          %1116 = vrot.lane.b32.xlu0 %v1018, 72
          %v1117 = vpop.permute.xlu0 %1116
          %1118 = vrot.lane.b32.xlu0 %v1024, 72
          %v1119 = vpop.permute.xlu0 %1118
          %1120 = vrot.lane.b32.xlu0 %v1027, 72
          %v1121 = vpop.permute.xlu0 %1120
          %1122 = vrot.lane.b32.xlu0 %v1033, 72
          %v1123 = vpop.permute.xlu0 %1122
          %1124 = vrot.lane.b32.xlu0 %v1036, 72
          %v1125 = vpop.permute.xlu0 %1124
          %1126 = vrot.lane.b32.xlu0 %v1042, 72
          %v1127 = vpop.permute.xlu0 %1126
          %1128 = vrot.lane.b32.xlu0 %v1045, 72
          %v1129 = vpop.permute.xlu0 %1128
          %1130 = vrot.lane.b32.xlu0 %v1051, 72
          %v1131 = vpop.permute.xlu0 %1130
          %1132 = vrot.lane.b32.xlu0 %v1054, 72
          %v1133 = vpop.permute.xlu0 %1132
          %1134 = vrot.lane.b32.xlu0 %v1060, 72
          %v1135 = vpop.permute.xlu0 %1134
          %1136 = vrot.lane.b32.xlu0 %v1063, 72
          %v1137 = vpop.permute.xlu0 %1136
          %1138 = vrot.lane.b32.xlu0 %v1069, 72
          %v1139 = vpop.permute.xlu0 %1138
          %1140 = vrot.lane.b32.xlu0 %v1072, 72
          %v1141 = vpop.permute.xlu0 %1140
          %1142 = vrot.lane.b32.xlu0 %v1078, 72
          %v1143 = vpop.permute.xlu0 %1142
          %1144 = vrot.lane.b32.xlu0 %v1081, 72
          %v1145 = vpop.permute.xlu0 %1144
          %vm1178 = vcmask 618048
          %1179 = vst.msk [vmem:[%s705] sm:$0xf] %vm1178, %v1083
          %vm1180 = vcmask 618048
          %vm1181 = vmand %vm1180, %vm935
          %v1182 = vld [vmem:[%s705 + $0x4] sm:$0xf]
          %v1183 = vsel %vm1181, %v1085, %v1182
          %1184 = vst [vmem:[%s705 + $0x4] sm:$0xf] %v1183
          %1185 = vst.msk [vmem:[%s705 + $0x8] sm:$0xf] %vm1178, %v1087
          %v1186 = vld [vmem:[%s705 + $0xc] sm:$0xf]
          %v1187 = vsel %vm1181, %v1089, %v1186
          %1188 = vst [vmem:[%s705 + $0xc] sm:$0xf] %v1187
          %1189 = vst.msk [vmem:[%s705 + $0x10] sm:$0xf] %vm1178, %v1091
          %v1190 = vld [vmem:[%s705 + $0x14] sm:$0xf]
          %v1191 = vsel %vm1181, %v1093, %v1190
          %1192 = vst [vmem:[%s705 + $0x14] sm:$0xf] %v1191
          %1193 = vst.msk [vmem:[%s705 + $0x18] sm:$0xf] %vm1178, %v1095
          %v1194 = vld [vmem:[%s705 + $0x1c] sm:$0xf]
          %v1195 = vsel %vm1181, %v1097, %v1194
          %1196 = vst [vmem:[%s705 + $0x1c] sm:$0xf] %v1195
          %1197 = vst.msk [vmem:[%s705 + $0x20] sm:$0xf] %vm1178, %v1099
          %v1198 = vld [vmem:[%s705 + $0x24] sm:$0xf]
          %v1199 = vsel %vm1181, %v1101, %v1198
          %1200 = vst [vmem:[%s705 + $0x24] sm:$0xf] %v1199
          %1201 = vst.msk [vmem:[%s705 + $0x28] sm:$0xf] %vm1178, %v1103
          %v1202 = vld [vmem:[%s705 + $0x2c] sm:$0xf]
          %v1203 = vsel %vm1181, %v1105, %v1202
          %1204 = vst [vmem:[%s705 + $0x2c] sm:$0xf] %v1203
          %1205 = vst.msk [vmem:[%s705 + $0x30] sm:$0xf] %vm1178, %v1107
          %v1206 = vld [vmem:[%s705 + $0x34] sm:$0xf]
          %v1207 = vsel %vm1181, %v1109, %v1206
          %1208 = vst [vmem:[%s705 + $0x34] sm:$0xf] %v1207
          %1209 = vst.msk [vmem:[%s705 + $0x38] sm:$0xf] %vm1178, %v1111
          %v1210 = vld [vmem:[%s705 + $0x3c] sm:$0xf]
          %v1211 = vsel %vm1181, %v1113, %v1210
          %1212 = vst [vmem:[%s705 + $0x3c] sm:$0xf] %v1211
          %1213 = vst.msk [vmem:[%s705 + $0x40] sm:$0xf] %vm1178, %v1115
          %v1214 = vld [vmem:[%s705 + $0x44] sm:$0xf]
          %v1215 = vsel %vm1181, %v1117, %v1214
          %1216 = vst [vmem:[%s705 + $0x44] sm:$0xf] %v1215
          %1217 = vst.msk [vmem:[%s705 + $0x48] sm:$0xf] %vm1178, %v1119
          %v1218 = vld [vmem:[%s705 + $0x4c] sm:$0xf]
          %v1219 = vsel %vm1181, %v1121, %v1218
          %1220 = vst [vmem:[%s705 + $0x4c] sm:$0xf] %v1219
          %1221 = vst.msk [vmem:[%s705 + $0x50] sm:$0xf] %vm1178, %v1123
          %v1222 = vld [vmem:[%s705 + $0x54] sm:$0xf]
          %v1223 = vsel %vm1181, %v1125, %v1222
          %1224 = vst [vmem:[%s705 + $0x54] sm:$0xf] %v1223
          %1225 = vst.msk [vmem:[%s705 + $0x58] sm:$0xf] %vm1178, %v1127
          %v1226 = vld [vmem:[%s705 + $0x5c] sm:$0xf]
          %v1227 = vsel %vm1181, %v1129, %v1226
          %1228 = vst [vmem:[%s705 + $0x5c] sm:$0xf] %v1227
          %1229 = vst.msk [vmem:[%s705 + $0x60] sm:$0xf] %vm1178, %v1131
          %v1230 = vld [vmem:[%s705 + $0x64] sm:$0xf]
          %v1231 = vsel %vm1181, %v1133, %v1230
          %1232 = vst [vmem:[%s705 + $0x64] sm:$0xf] %v1231
          %1233 = vst.msk [vmem:[%s705 + $0x68] sm:$0xf] %vm1178, %v1135
          %v1234 = vld [vmem:[%s705 + $0x6c] sm:$0xf]
          %v1235 = vsel %vm1181, %v1137, %v1234
          %1236 = vst [vmem:[%s705 + $0x6c] sm:$0xf] %v1235
          %1237 = vst.msk [vmem:[%s705 + $0x70] sm:$0xf] %vm1178, %v1139
          %v1238 = vld [vmem:[%s705 + $0x74] sm:$0xf]
          %v1239 = vsel %vm1181, %v1141, %v1238
          %1240 = vst [vmem:[%s705 + $0x74] sm:$0xf] %v1239
          %1241 = vst.msk [vmem:[%s705 + $0x78] sm:$0xf] %vm1178, %v1143
          %v1242 = vld [vmem:[%s705 + $0x7c] sm:$0xf]
          %v1243 = vsel %vm1181, %v1145, %v1242
          %1244 = vst [vmem:[%s705 + $0x7c] sm:$0xf] %v1243
          %v1245 = vld [vmem:[#allocation2] sm:$0xf]
          %v1246 = vld [vmem:[#allocation2 + $0x4] sm:$0xf]
          %v1247 = vld [vmem:[#allocation2 + $0x8] sm:$0xf]
          %v1248 = vld [vmem:[#allocation2 + $0xc] sm:$0xf]
          %v1249 = vld [vmem:[#allocation2 + $0x10] sm:$0xf]
          %v1250 = vld [vmem:[#allocation2 + $0x14] sm:$0xf]
          %v1251 = vld [vmem:[#allocation2 + $0x18] sm:$0xf]
          %v1252 = vld [vmem:[#allocation2 + $0x1c] sm:$0xf]
          %v1253 = vld [vmem:[#allocation2 + $0x20] sm:$0xf]
          %v1254 = vld [vmem:[#allocation2 + $0x24] sm:$0xf]
          %v1255 = vld [vmem:[#allocation2 + $0x28] sm:$0xf]
          %v1256 = vld [vmem:[#allocation2 + $0x2c] sm:$0xf]
          %v1257 = vld [vmem:[#allocation2 + $0x30] sm:$0xf]
          %v1258 = vld [vmem:[#allocation2 + $0x34] sm:$0xf]
          %v1259 = vld [vmem:[#allocation2 + $0x38] sm:$0xf]
          %v1260 = vld [vmem:[#allocation2 + $0x3c] sm:$0xf]
          %v1261 = vld [vmem:[#allocation2 + $0x40] sm:$0xf]
          %v1262 = vld [vmem:[#allocation2 + $0x44] sm:$0xf]
          %v1263 = vld [vmem:[#allocation2 + $0x48] sm:$0xf]
          %v1264 = vld [vmem:[#allocation2 + $0x4c] sm:$0xf]
          %v1265 = vld [vmem:[#allocation2 + $0x50] sm:$0xf]
          %v1266 = vld [vmem:[#allocation2 + $0x54] sm:$0xf]
          %v1267 = vld [vmem:[#allocation2 + $0x58] sm:$0xf]
          %v1268 = vld [vmem:[#allocation2 + $0x5c] sm:$0xf]
          %v1269 = vld [vmem:[#allocation2 + $0x60] sm:$0xf]
          %v1270 = vld [vmem:[#allocation2 + $0x64] sm:$0xf]
          %v1271 = vld [vmem:[#allocation2 + $0x68] sm:$0xf]
          %v1272 = vld [vmem:[#allocation2 + $0x6c] sm:$0xf]
          %v1273 = vld [vmem:[#allocation2 + $0x70] sm:$0xf]
          %v1274 = vld [vmem:[#allocation2 + $0x74] sm:$0xf]
          %v1275 = vld [vmem:[#allocation2 + $0x78] sm:$0xf]
          %v1276 = vld [vmem:[#allocation2 + $0x7c] sm:$0xf]
          %v1277 = vld [vmem:[%s1] sm:$0xf]
          %v1278 = vld [vmem:[%s1 + $0x4] sm:$0xf]
          %v1279 = vld [vmem:[%s1 + $0x8] sm:$0xf]
          %v1280 = vld [vmem:[%s1 + $0xc] sm:$0xf]
          %v1281 = vld [vmem:[%s1 + $0x10] sm:$0xf]
          %v1282 = vld [vmem:[%s1 + $0x14] sm:$0xf]
          %v1283 = vld [vmem:[%s1 + $0x18] sm:$0xf]
          %v1284 = vld [vmem:[%s1 + $0x1c] sm:$0xf]
          %v1285 = vld [vmem:[%s1 + $0x20] sm:$0xf]
          %v1286 = vld [vmem:[%s1 + $0x24] sm:$0xf]
          %v1287 = vld [vmem:[%s1 + $0x28] sm:$0xf]
          %v1288 = vld [vmem:[%s1 + $0x2c] sm:$0xf]
          %v1289 = vld [vmem:[%s1 + $0x30] sm:$0xf]
          %v1290 = vld [vmem:[%s1 + $0x34] sm:$0x3]
          %v1291 = vld [vmem:[%s705] sm:$0xf]
          %v1292 = vld [vmem:[%s705 + $0x4] sm:$0xf]
          %v1293 = vld [vmem:[%s705 + $0x8] sm:$0xf]
          %v1294 = vld [vmem:[%s705 + $0xc] sm:$0xf]
          %v1295 = vld [vmem:[%s705 + $0x10] sm:$0xf]
          %v1296 = vld [vmem:[%s705 + $0x14] sm:$0xf]
          %v1297 = vld [vmem:[%s705 + $0x18] sm:$0xf]
          %v1298 = vld [vmem:[%s705 + $0x1c] sm:$0xf]
          %v1299 = vld [vmem:[%s705 + $0x20] sm:$0xf]
          %v1300 = vld [vmem:[%s705 + $0x24] sm:$0xf]
          %v1301 = vld [vmem:[%s705 + $0x28] sm:$0xf]
          %v1302 = vld [vmem:[%s705 + $0x2c] sm:$0xf]
          %v1303 = vld [vmem:[%s705 + $0x30] sm:$0xf]
          %v1304 = vld [vmem:[%s705 + $0x34] sm:$0xf]
          %v1305 = vld [vmem:[%s705 + $0x38] sm:$0xf]
          %v1306 = vld [vmem:[%s705 + $0x3c] sm:$0xf]
          %v1307 = vld [vmem:[%s705 + $0x40] sm:$0xf]
          %v1308 = vld [vmem:[%s705 + $0x44] sm:$0xf]
          %v1309 = vld [vmem:[%s705 + $0x48] sm:$0xf]
          %v1310 = vld [vmem:[%s705 + $0x4c] sm:$0xf]
          %v1311 = vld [vmem:[%s705 + $0x50] sm:$0xf]
          %v1312 = vld [vmem:[%s705 + $0x54] sm:$0xf]
          %v1313 = vld [vmem:[%s705 + $0x58] sm:$0xf]
          %v1314 = vld [vmem:[%s705 + $0x5c] sm:$0xf]
          %v1315 = vld [vmem:[%s705 + $0x60] sm:$0xf]
          %v1316 = vld [vmem:[%s705 + $0x64] sm:$0xf]
          %v1317 = vld [vmem:[%s705 + $0x68] sm:$0xf]
          %v1318 = vld [vmem:[%s705 + $0x6c] sm:$0xf]
          %v1319 = vld [vmem:[%s705 + $0x70] sm:$0xf]
          %v1320 = vld [vmem:[%s705 + $0x74] sm:$0xf]
          %v1321 = vld [vmem:[%s705 + $0x78] sm:$0xf]
          %v1322 = vld [vmem:[%s705 + $0x7c] sm:$0xf]
          %s1323 = scalar_lea.vmem %s1, 56
          %v1324 = vld [vmem:[%s1323] sm:$0xf]
          %v1325 = vld [vmem:[%s1323 + $0x4] sm:$0xf]
          %v1326 = vld [vmem:[%s1323 + $0x8] sm:$0xf]
          %v1327 = vld [vmem:[%s1323 + $0xc] sm:$0xf]
          %v1328 = vld [vmem:[%s1323 + $0x10] sm:$0xf]
          %v1329 = vld [vmem:[%s1323 + $0x14] sm:$0xf]
          %v1330 = vld [vmem:[%s1323 + $0x18] sm:$0xf]
          %v1331 = vld [vmem:[%s1323 + $0x1c] sm:$0xf]
          %v1332 = vld [vmem:[%s1323 + $0x20] sm:$0xf]
          %v1333 = vld [vmem:[%s1323 + $0x24] sm:$0xf]
          %v1334 = vld [vmem:[%s1323 + $0x28] sm:$0xf]
          %v1335 = vld [vmem:[%s1323 + $0x2c] sm:$0xf]
          %v1336 = vld [vmem:[%s1323 + $0x30] sm:$0xf]
          %v1337 = vld [vmem:[%s1323 + $0x34] sm:$0x3]
          %v1370 = vunpack.c.l.b16 %v1291
          %v1371 = vunpack.c.l.b16 %v1292
          %v1372 = vunpack.c.l.b16 %v1293
          %v1373 = vunpack.c.l.b16 %v1294
          %v1374 = vunpack.c.l.b16 %v1295
          %v1375 = vunpack.c.l.b16 %v1296
          %v1376 = vunpack.c.l.b16 %v1297
          %v1377 = vunpack.c.l.b16 %v1298
          %v1378 = vunpack.c.l.b16 %v1299
          %v1379 = vunpack.c.l.b16 %v1300
          %v1380 = vunpack.c.l.b16 %v1301
          %v1381 = vunpack.c.l.b16 %v1302
          %v1382 = vunpack.c.l.b16 %v1303
          %v1383 = vunpack.c.l.b16 %v1304
          %v1384 = vunpack.c.l.b16 %v1305
          %v1385 = vunpack.c.l.b16 %v1306
          %v1386 = vunpack.c.l.b16 %v1307
          %v1387 = vunpack.c.l.b16 %v1308
          %v1388 = vunpack.c.l.b16 %v1309
          %v1389 = vunpack.c.l.b16 %v1310
          %v1390 = vunpack.c.l.b16 %v1311
          %v1391 = vunpack.c.l.b16 %v1312
          %v1392 = vunpack.c.l.b16 %v1313
          %v1393 = vunpack.c.l.b16 %v1314
          %v1394 = vunpack.c.l.b16 %v1315
          %v1395 = vunpack.c.l.b16 %v1316
          %v1396 = vunpack.c.l.b16 %v1317
          %v1397 = vunpack.c.l.b16 %v1318
          %v1398 = vunpack.c.l.b16 %v1319
          %v1399 = vunpack.c.l.b16 %v1320
          %v1400 = vunpack.c.l.b16 %v1321
          %v1401 = vunpack.c.l.b16 %v1322
          %v1402 = vpack.c.b16 %v1371, %v1370
          %v1403 = vpack.c.b16 %v1373, %v1372
          %v1404 = vpack.c.b16 %v1375, %v1374
          %v1405 = vpack.c.b16 %v1377, %v1376
          %v1406 = vpack.c.b16 %v1379, %v1378
          %v1407 = vpack.c.b16 %v1381, %v1380
          %v1408 = vpack.c.b16 %v1383, %v1382
          %v1409 = vpack.c.b16 %v1385, %v1384
          %v1410 = vpack.c.b16 %v1387, %v1386
          %v1411 = vpack.c.b16 %v1389, %v1388
          %v1412 = vpack.c.b16 %v1391, %v1390
          %v1413 = vpack.c.b16 %v1393, %v1392
          %v1414 = vpack.c.b16 %v1395, %v1394
          %v1415 = vpack.c.b16 %v1397, %v1396
          %v1416 = vpack.c.b16 %v1399, %v1398
          %v1417 = vpack.c.b16 %v1401, %v1400
          %v1432 = vunpack.c.l.b16 %v1324
          %v1433 = vunpack.c.l.b16 %v1325
          %v1434 = vunpack.c.l.b16 %v1326
          %v1435 = vunpack.c.l.b16 %v1327
          %v1436 = vunpack.c.l.b16 %v1328
          %v1437 = vunpack.c.l.b16 %v1329
          %v1438 = vunpack.c.l.b16 %v1330
          %v1439 = vunpack.c.l.b16 %v1331
          %v1440 = vunpack.c.l.b16 %v1332
          %v1441 = vunpack.c.l.b16 %v1333
          %v1442 = vunpack.c.l.b16 %v1334
          %v1443 = vunpack.c.l.b16 %v1335
          %v1444 = vunpack.c.l.b16 %v1336
          %v1445 = vunpack.c.l.b16 %v1337
          %v1446 = vpack.c.b16 %v1433, %v1432
          %v1447 = vpack.c.b16 %v1435, %v1434
          %v1448 = vpack.c.b16 %v1437, %v1436
          %v1449 = vpack.c.b16 %v1439, %v1438
          %v1450 = vpack.c.b16 %v1441, %v1440
          %v1451 = vpack.c.b16 %v1443, %v1442
          %v1452 = vpack.c.b16 %v1445, %v1444
          %vm1459 = vcmask 883712
          %v1461 = vsel %vm1459, %v1402, 0
          %v1464 = vsel %vm1459, %v1403, 0
          %v1467 = vsel %vm1459, %v1404, 0
          %v1470 = vsel %vm1459, %v1405, 0
          %v1473 = vsel %vm1459, %v1406, 0
          %v1476 = vsel %vm1459, %v1407, 0
          %v1479 = vsel %vm1459, %v1408, 0
          %v1482 = vsel %vm1459, %v1409, 0
          %v1485 = vsel %vm1459, %v1410, 0
          %v1488 = vsel %vm1459, %v1411, 0
          %v1491 = vsel %vm1459, %v1412, 0
          %v1494 = vsel %vm1459, %v1413, 0
          %v1497 = vsel %vm1459, %v1414, 0
          %v1500 = vsel %vm1459, %v1415, 0
          %v1503 = vsel %vm1459, %v1416, 0
          %v1506 = vsel %vm1459, %v1417, 0
          %vm1508 = vcmask 1045504
          %v1510 = vsel %vm1508, %v1452, 0
          %1512 = vmatprep.subr.bf16.mxu0 0
          %1513 = vmatpush1.bf16.msra.mxu0 0
          %1514 = vmatprep.subr.bf16.mxu0 0
          %1515 = vmatpush1.bf16.msra.mxu0 %v1510
          %1516 = vmatprep.subr.bf16.mxu0 0
          %1517 = vmatpush1.bf16.msra.mxu0 %v1451
          %1518 = vmatprep.subr.bf16.mxu0 0
          %1519 = vmatpush1.bf16.msra.mxu0 %v1450
          %1520 = vmatprep.subr.bf16.mxu0 0
          %1521 = vmatpush1.bf16.msra.mxu0 %v1449
          %1522 = vmatprep.subr.bf16.mxu0 0
          %1523 = vmatpush1.bf16.msra.mxu0 %v1448
          %1524 = vmatprep.subr.bf16.mxu0 0
          %1525 = vmatpush1.bf16.msra.mxu0 %v1447
          %1526 = vmatprep.subr.bf16.mxu0 0
          %1527 = vmatpush1.bf16.msra.mxu0 %v1446
          %1528 = vmatprep.subr.bf16.mxu0 0
          %1529 = vmatpush2.bf16.msra.mxu0 0
          %1530 = vmatprep.subr.bf16.mxu0 0
          %1531 = vmatpush2.bf16.msra.mxu0 0
          %1532 = vmatprep.subr.bf16.mxu0 0
          %1533 = vmatpush2.bf16.msra.mxu0 0
          %1534 = vmatprep.subr.bf16.mxu0 0
          %1535 = vmatpush2.bf16.msra.mxu0 0
          %1536 = vmatprep.subr.bf16.mxu0 0
          %1537 = vmatpush2.bf16.msra.mxu0 0
          %1538 = vmatprep.subr.bf16.mxu0 0
          %1539 = vmatpush2.bf16.msra.mxu0 0
          %1540 = vmatprep.subr.bf16.mxu0 0
          %1541 = vmatpush2.bf16.msra.mxu0 0
          %1542 = vmatprep.subr.bf16.mxu0 0
          %1543 = vmatpush2.bf16.msra.mxu0 0
          %1544 = vmatprep.mubr.bf16.mxu0 0
          %1545 = vmatmul.mubr.bf16.gmra.mxu0 %v1461
          %v1546 = vpop.f32.mrf.mxu0
          %v1547 = vadd.f32 0.0, %v1546
          %v1548 = vpop.f32.mrf.mxu0
          %v1549 = vpop.f32.mrf.mxu0
          %v1550 = vadd.f32 0.0, %v1549
          %v1551 = vpop.f32.mrf.mxu0
          %1552 = vmatprep.mubr.bf16.mxu0 0
          %1553 = vmatmul.mubr.bf16.gmra.mxu0 %v1464
          %v1554 = vpop.f32.mrf.mxu0
          %v1555 = vadd.f32 0.0, %v1554
          %v1556 = vpop.f32.mrf.mxu0
          %v1557 = vpop.f32.mrf.mxu0
          %v1558 = vadd.f32 0.0, %v1557
          %v1559 = vpop.f32.mrf.mxu0
          %1560 = vmatprep.mubr.bf16.mxu0 0
          %1561 = vmatmul.mubr.bf16.gmra.mxu0 %v1467
          %v1562 = vpop.f32.mrf.mxu0
          %v1563 = vadd.f32 0.0, %v1562
          %v1564 = vpop.f32.mrf.mxu0
          %v1565 = vpop.f32.mrf.mxu0
          %v1566 = vadd.f32 0.0, %v1565
          %v1567 = vpop.f32.mrf.mxu0
          %1568 = vmatprep.mubr.bf16.mxu0 0
          %1569 = vmatmul.mubr.bf16.gmra.mxu0 %v1470
          %v1570 = vpop.f32.mrf.mxu0
          %v1571 = vadd.f32 0.0, %v1570
          %v1572 = vpop.f32.mrf.mxu0
          %v1573 = vpop.f32.mrf.mxu0
          %v1574 = vadd.f32 0.0, %v1573
          %v1575 = vpop.f32.mrf.mxu0
          %1576 = vmatprep.mubr.bf16.mxu0 0
          %1577 = vmatmul.mubr.bf16.gmra.mxu0 %v1473
          %v1578 = vpop.f32.mrf.mxu0
          %v1579 = vadd.f32 0.0, %v1578
          %v1580 = vpop.f32.mrf.mxu0
          %v1581 = vpop.f32.mrf.mxu0
          %v1582 = vadd.f32 0.0, %v1581
          %v1583 = vpop.f32.mrf.mxu0
          %1584 = vmatprep.mubr.bf16.mxu0 0
          %1585 = vmatmul.mubr.bf16.gmra.mxu0 %v1476
          %v1586 = vpop.f32.mrf.mxu0
          %v1587 = vadd.f32 0.0, %v1586
          %v1588 = vpop.f32.mrf.mxu0
          %v1589 = vpop.f32.mrf.mxu0
          %v1590 = vadd.f32 0.0, %v1589
          %v1591 = vpop.f32.mrf.mxu0
          %1592 = vmatprep.mubr.bf16.mxu0 0
          %1593 = vmatmul.mubr.bf16.gmra.mxu0 %v1479
          %v1594 = vpop.f32.mrf.mxu0
          %v1595 = vadd.f32 0.0, %v1594
          %v1596 = vpop.f32.mrf.mxu0
          %v1597 = vpop.f32.mrf.mxu0
          %v1598 = vadd.f32 0.0, %v1597
          %v1599 = vpop.f32.mrf.mxu0
          %1600 = vmatprep.mubr.bf16.mxu0 0
          %1601 = vmatmul.mubr.bf16.gmra.mxu0 %v1482
          %v1602 = vpop.f32.mrf.mxu0
          %v1603 = vadd.f32 0.0, %v1602
          %v1604 = vpop.f32.mrf.mxu0
          %v1605 = vpop.f32.mrf.mxu0
          %v1606 = vadd.f32 0.0, %v1605
          %v1607 = vpop.f32.mrf.mxu0
          %1608 = vmatprep.mubr.bf16.mxu0 0
          %1609 = vmatmul.mubr.bf16.gmra.mxu0 %v1485
          %v1610 = vpop.f32.mrf.mxu0
          %v1611 = vadd.f32 0.0, %v1610
          %v1612 = vpop.f32.mrf.mxu0
          %v1613 = vpop.f32.mrf.mxu0
          %v1614 = vadd.f32 0.0, %v1613
          %v1615 = vpop.f32.mrf.mxu0
          %1616 = vmatprep.mubr.bf16.mxu0 0
          %1617 = vmatmul.mubr.bf16.gmra.mxu0 %v1488
          %v1618 = vpop.f32.mrf.mxu0
          %v1619 = vadd.f32 0.0, %v1618
          %v1620 = vpop.f32.mrf.mxu0
          %v1621 = vpop.f32.mrf.mxu0
          %v1622 = vadd.f32 0.0, %v1621
          %v1623 = vpop.f32.mrf.mxu0
          %1624 = vmatprep.mubr.bf16.mxu0 0
          %1625 = vmatmul.mubr.bf16.gmra.mxu0 %v1491
          %v1626 = vpop.f32.mrf.mxu0
          %v1627 = vadd.f32 0.0, %v1626
          %v1628 = vpop.f32.mrf.mxu0
          %v1629 = vpop.f32.mrf.mxu0
          %v1630 = vadd.f32 0.0, %v1629
          %v1631 = vpop.f32.mrf.mxu0
          %1632 = vmatprep.mubr.bf16.mxu0 0
          %1633 = vmatmul.mubr.bf16.gmra.mxu0 %v1494
          %v1634 = vpop.f32.mrf.mxu0
          %v1635 = vadd.f32 0.0, %v1634
          %v1636 = vpop.f32.mrf.mxu0
          %v1637 = vpop.f32.mrf.mxu0
          %v1638 = vadd.f32 0.0, %v1637
          %v1639 = vpop.f32.mrf.mxu0
          %1640 = vmatprep.mubr.bf16.mxu0 0
          %1641 = vmatmul.mubr.bf16.gmra.mxu0 %v1497
          %v1642 = vpop.f32.mrf.mxu0
          %v1643 = vadd.f32 0.0, %v1642
          %v1644 = vpop.f32.mrf.mxu0
          %v1645 = vpop.f32.mrf.mxu0
          %v1646 = vadd.f32 0.0, %v1645
          %v1647 = vpop.f32.mrf.mxu0
          %1648 = vmatprep.mubr.bf16.mxu0 0
          %1649 = vmatmul.mubr.bf16.gmra.mxu0 %v1500
          %v1650 = vpop.f32.mrf.mxu0
          %v1651 = vadd.f32 0.0, %v1650
          %v1652 = vpop.f32.mrf.mxu0
          %v1653 = vpop.f32.mrf.mxu0
          %v1654 = vadd.f32 0.0, %v1653
          %v1655 = vpop.f32.mrf.mxu0
          %1656 = vmatprep.mubr.bf16.mxu0 0
          %1657 = vmatmul.mubr.bf16.gmra.mxu0 %v1503
          %v1658 = vpop.f32.mrf.mxu0
          %v1659 = vadd.f32 0.0, %v1658
          %v1660 = vpop.f32.mrf.mxu0
          %v1661 = vpop.f32.mrf.mxu0
          %v1662 = vadd.f32 0.0, %v1661
          %v1663 = vpop.f32.mrf.mxu0
          %1664 = vmatprep.mubr.bf16.mxu0 0
          %1665 = vmatmul.mubr.bf16.gmra.mxu0 %v1506
          %v1666 = vpop.f32.mrf.mxu0
          %v1667 = vadd.f32 0.0, %v1666
          %v1668 = vpop.f32.mrf.mxu0
          %v1669 = vpop.f32.mrf.mxu0
          %v1670 = vadd.f32 0.0, %v1669
          %v1671 = vpop.f32.mrf.mxu0
          %1672 = vdwg.mxu0
          %v1705 = vunpack.c.l.b16 %v1245
          %v1706 = vunpack.c.l.b16 %v1246
          %v1707 = vunpack.c.l.b16 %v1247
          %v1708 = vunpack.c.l.b16 %v1248
          %v1709 = vunpack.c.l.b16 %v1249
          %v1710 = vunpack.c.l.b16 %v1250
          %v1711 = vunpack.c.l.b16 %v1251
          %v1712 = vunpack.c.l.b16 %v1252
          %v1713 = vunpack.c.l.b16 %v1253
          %v1714 = vunpack.c.l.b16 %v1254
          %v1715 = vunpack.c.l.b16 %v1255
          %v1716 = vunpack.c.l.b16 %v1256
          %v1717 = vunpack.c.l.b16 %v1257
          %v1718 = vunpack.c.l.b16 %v1258
          %v1719 = vunpack.c.l.b16 %v1259
          %v1720 = vunpack.c.l.b16 %v1260
          %v1721 = vunpack.c.l.b16 %v1261
          %v1722 = vunpack.c.l.b16 %v1262
          %v1723 = vunpack.c.l.b16 %v1263
          %v1724 = vunpack.c.l.b16 %v1264
          %v1725 = vunpack.c.l.b16 %v1265
          %v1726 = vunpack.c.l.b16 %v1266
          %v1727 = vunpack.c.l.b16 %v1267
          %v1728 = vunpack.c.l.b16 %v1268
          %v1729 = vunpack.c.l.b16 %v1269
          %v1730 = vunpack.c.l.b16 %v1270
          %v1731 = vunpack.c.l.b16 %v1271
          %v1732 = vunpack.c.l.b16 %v1272
          %v1733 = vunpack.c.l.b16 %v1273
          %v1734 = vunpack.c.l.b16 %v1274
          %v1735 = vunpack.c.l.b16 %v1275
          %v1736 = vunpack.c.l.b16 %v1276
          %v1737 = vpack.c.b16 %v1706, %v1705
          %v1738 = vpack.c.b16 %v1708, %v1707
          %v1739 = vpack.c.b16 %v1710, %v1709
          %v1740 = vpack.c.b16 %v1712, %v1711
          %v1741 = vpack.c.b16 %v1714, %v1713
          %v1742 = vpack.c.b16 %v1716, %v1715
          %v1743 = vpack.c.b16 %v1718, %v1717
          %v1744 = vpack.c.b16 %v1720, %v1719
          %v1745 = vpack.c.b16 %v1722, %v1721
          %v1746 = vpack.c.b16 %v1724, %v1723
          %v1747 = vpack.c.b16 %v1726, %v1725
          %v1748 = vpack.c.b16 %v1728, %v1727
          %v1749 = vpack.c.b16 %v1730, %v1729
          %v1750 = vpack.c.b16 %v1732, %v1731
          %v1751 = vpack.c.b16 %v1734, %v1733
          %v1752 = vpack.c.b16 %v1736, %v1735
          %v1767 = vunpack.c.l.b16 %v1277
          %v1768 = vunpack.c.l.b16 %v1278
          %v1769 = vunpack.c.l.b16 %v1279
          %v1770 = vunpack.c.l.b16 %v1280
          %v1771 = vunpack.c.l.b16 %v1281
          %v1772 = vunpack.c.l.b16 %v1282
          %v1773 = vunpack.c.l.b16 %v1283
          %v1774 = vunpack.c.l.b16 %v1284
          %v1775 = vunpack.c.l.b16 %v1285
          %v1776 = vunpack.c.l.b16 %v1286
          %v1777 = vunpack.c.l.b16 %v1287
          %v1778 = vunpack.c.l.b16 %v1288
          %v1779 = vunpack.c.l.b16 %v1289
          %v1780 = vunpack.c.l.b16 %v1290
          %v1781 = vpack.c.b16 %v1768, %v1767
          %v1782 = vpack.c.b16 %v1770, %v1769
          %v1783 = vpack.c.b16 %v1772, %v1771
          %v1784 = vpack.c.b16 %v1774, %v1773
          %v1785 = vpack.c.b16 %v1776, %v1775
          %v1786 = vpack.c.b16 %v1778, %v1777
          %v1787 = vpack.c.b16 %v1780, %v1779
          %v1795 = vsel %vm1459, %v1737, 0
          %v1798 = vsel %vm1459, %v1738, 0
          %v1801 = vsel %vm1459, %v1739, 0
          %v1804 = vsel %vm1459, %v1740, 0
          %v1807 = vsel %vm1459, %v1741, 0
          %v1810 = vsel %vm1459, %v1742, 0
          %v1813 = vsel %vm1459, %v1743, 0
          %v1816 = vsel %vm1459, %v1744, 0
          %v1819 = vsel %vm1459, %v1745, 0
          %v1822 = vsel %vm1459, %v1746, 0
          %v1825 = vsel %vm1459, %v1747, 0
          %v1828 = vsel %vm1459, %v1748, 0
          %v1831 = vsel %vm1459, %v1749, 0
          %v1834 = vsel %vm1459, %v1750, 0
          %v1837 = vsel %vm1459, %v1751, 0
          %v1840 = vsel %vm1459, %v1752, 0
          %v1843 = vsel %vm1508, %v1787, 0
          %1845 = vmatprep.subr.bf16.mxu0 0
          %1846 = vmatpush1.bf16.msra.mxu0 0
          %1847 = vmatprep.subr.bf16.mxu0 0
          %1848 = vmatpush1.bf16.msra.mxu0 %v1843
          %1849 = vmatprep.subr.bf16.mxu0 0
          %1850 = vmatpush1.bf16.msra.mxu0 %v1786
          %1851 = vmatprep.subr.bf16.mxu0 0
          %1852 = vmatpush1.bf16.msra.mxu0 %v1785
          %1853 = vmatprep.subr.bf16.mxu0 0
          %1854 = vmatpush1.bf16.msra.mxu0 %v1784
          %1855 = vmatprep.subr.bf16.mxu0 0
          %1856 = vmatpush1.bf16.msra.mxu0 %v1783
          %1857 = vmatprep.subr.bf16.mxu0 0
          %1858 = vmatpush1.bf16.msra.mxu0 %v1782
          %1859 = vmatprep.subr.bf16.mxu0 0
          %1860 = vmatpush1.bf16.msra.mxu0 %v1781
          %1861 = vmatprep.subr.bf16.mxu0 0
          %1862 = vmatpush2.bf16.msra.mxu0 0
          %1863 = vmatprep.subr.bf16.mxu0 0
          %1864 = vmatpush2.bf16.msra.mxu0 0
          %1865 = vmatprep.subr.bf16.mxu0 0
          %1866 = vmatpush2.bf16.msra.mxu0 0
          %1867 = vmatprep.subr.bf16.mxu0 0
          %1868 = vmatpush2.bf16.msra.mxu0 0
          %1869 = vmatprep.subr.bf16.mxu0 0
          %1870 = vmatpush2.bf16.msra.mxu0 0
          %1871 = vmatprep.subr.bf16.mxu0 0
          %1872 = vmatpush2.bf16.msra.mxu0 0
          %1873 = vmatprep.subr.bf16.mxu0 0
          %1874 = vmatpush2.bf16.msra.mxu0 0
          %1875 = vmatprep.subr.bf16.mxu0 0
          %1876 = vmatpush2.bf16.msra.mxu0 0
          %1877 = vmatprep.mubr.bf16.mxu0 0
          %1878 = vmatmul.mubr.bf16.gmra.mxu0 %v1795
          %v1879 = vpop.f32.mrf.mxu0
          %v1880 = vadd.f32 %v1547, %v1879
          %v1881 = vpop.f32.mrf.mxu0
          %v1882 = vpop.f32.mrf.mxu0
          %v1883 = vadd.f32 %v1550, %v1882
          %v1884 = vpop.f32.mrf.mxu0
          %1885 = vmatprep.mubr.bf16.mxu0 0
          %1886 = vmatmul.mubr.bf16.gmra.mxu0 %v1798
          %v1887 = vpop.f32.mrf.mxu0
          %v1888 = vadd.f32 %v1555, %v1887
          %v1889 = vpop.f32.mrf.mxu0
          %v1890 = vpop.f32.mrf.mxu0
          %v1891 = vadd.f32 %v1558, %v1890
          %v1892 = vpop.f32.mrf.mxu0
          %1893 = vmatprep.mubr.bf16.mxu0 0
          %1894 = vmatmul.mubr.bf16.gmra.mxu0 %v1801
          %v1895 = vpop.f32.mrf.mxu0
          %v1896 = vadd.f32 %v1563, %v1895
          %v1897 = vpop.f32.mrf.mxu0
          %v1898 = vpop.f32.mrf.mxu0
          %v1899 = vadd.f32 %v1566, %v1898
          %v1900 = vpop.f32.mrf.mxu0
          %1901 = vmatprep.mubr.bf16.mxu0 0
          %1902 = vmatmul.mubr.bf16.gmra.mxu0 %v1804
          %v1903 = vpop.f32.mrf.mxu0
          %v1904 = vadd.f32 %v1571, %v1903
          %v1905 = vpop.f32.mrf.mxu0
          %v1906 = vpop.f32.mrf.mxu0
          %v1907 = vadd.f32 %v1574, %v1906
          %v1908 = vpop.f32.mrf.mxu0
          %1909 = vmatprep.mubr.bf16.mxu0 0
          %1910 = vmatmul.mubr.bf16.gmra.mxu0 %v1807
          %v1911 = vpop.f32.mrf.mxu0
          %v1912 = vadd.f32 %v1579, %v1911
          %v1913 = vpop.f32.mrf.mxu0
          %v1914 = vpop.f32.mrf.mxu0
          %v1915 = vadd.f32 %v1582, %v1914
          %v1916 = vpop.f32.mrf.mxu0
          %1917 = vmatprep.mubr.bf16.mxu0 0
          %1918 = vmatmul.mubr.bf16.gmra.mxu0 %v1810
          %v1919 = vpop.f32.mrf.mxu0
          %v1920 = vadd.f32 %v1587, %v1919
          %v1921 = vpop.f32.mrf.mxu0
          %v1922 = vpop.f32.mrf.mxu0
          %v1923 = vadd.f32 %v1590, %v1922
          %v1924 = vpop.f32.mrf.mxu0
          %1925 = vmatprep.mubr.bf16.mxu0 0
          %1926 = vmatmul.mubr.bf16.gmra.mxu0 %v1813
          %v1927 = vpop.f32.mrf.mxu0
          %v1928 = vadd.f32 %v1595, %v1927
          %v1929 = vpop.f32.mrf.mxu0
          %v1930 = vpop.f32.mrf.mxu0
          %v1931 = vadd.f32 %v1598, %v1930
          %v1932 = vpop.f32.mrf.mxu0
          %1933 = vmatprep.mubr.bf16.mxu0 0
          %1934 = vmatmul.mubr.bf16.gmra.mxu0 %v1816
          %v1935 = vpop.f32.mrf.mxu0
          %v1936 = vadd.f32 %v1603, %v1935
          %v1937 = vpop.f32.mrf.mxu0
          %v1938 = vpop.f32.mrf.mxu0
          %v1939 = vadd.f32 %v1606, %v1938
          %v1940 = vpop.f32.mrf.mxu0
          %1941 = vmatprep.mubr.bf16.mxu0 0
          %1942 = vmatmul.mubr.bf16.gmra.mxu0 %v1819
          %v1943 = vpop.f32.mrf.mxu0
          %v1944 = vadd.f32 %v1611, %v1943
          %v1945 = vpop.f32.mrf.mxu0
          %v1946 = vpop.f32.mrf.mxu0
          %v1947 = vadd.f32 %v1614, %v1946
          %v1948 = vpop.f32.mrf.mxu0
          %1949 = vmatprep.mubr.bf16.mxu0 0
          %1950 = vmatmul.mubr.bf16.gmra.mxu0 %v1822
          %v1951 = vpop.f32.mrf.mxu0
          %v1952 = vadd.f32 %v1619, %v1951
          %v1953 = vpop.f32.mrf.mxu0
          %v1954 = vpop.f32.mrf.mxu0
          %v1955 = vadd.f32 %v1622, %v1954
          %v1956 = vpop.f32.mrf.mxu0
          %1957 = vmatprep.mubr.bf16.mxu0 0
          %1958 = vmatmul.mubr.bf16.gmra.mxu0 %v1825
          %v1959 = vpop.f32.mrf.mxu0
          %v1960 = vadd.f32 %v1627, %v1959
          %v1961 = vpop.f32.mrf.mxu0
          %v1962 = vpop.f32.mrf.mxu0
          %v1963 = vadd.f32 %v1630, %v1962
          %v1964 = vpop.f32.mrf.mxu0
          %1965 = vmatprep.mubr.bf16.mxu0 0
          %1966 = vmatmul.mubr.bf16.gmra.mxu0 %v1828
          %v1967 = vpop.f32.mrf.mxu0
          %v1968 = vadd.f32 %v1635, %v1967
          %v1969 = vpop.f32.mrf.mxu0
          %v1970 = vpop.f32.mrf.mxu0
          %v1971 = vadd.f32 %v1638, %v1970
          %v1972 = vpop.f32.mrf.mxu0
          %1973 = vmatprep.mubr.bf16.mxu0 0
          %1974 = vmatmul.mubr.bf16.gmra.mxu0 %v1831
          %v1975 = vpop.f32.mrf.mxu0
          %v1976 = vadd.f32 %v1643, %v1975
          %v1977 = vpop.f32.mrf.mxu0
          %v1978 = vpop.f32.mrf.mxu0
          %v1979 = vadd.f32 %v1646, %v1978
          %v1980 = vpop.f32.mrf.mxu0
          %1981 = vmatprep.mubr.bf16.mxu0 0
          %1982 = vmatmul.mubr.bf16.gmra.mxu0 %v1834
          %v1983 = vpop.f32.mrf.mxu0
          %v1984 = vadd.f32 %v1651, %v1983
          %v1985 = vpop.f32.mrf.mxu0
          %v1986 = vpop.f32.mrf.mxu0
          %v1987 = vadd.f32 %v1654, %v1986
          %v1988 = vpop.f32.mrf.mxu0
          %1989 = vmatprep.mubr.bf16.mxu0 0
          %1990 = vmatmul.mubr.bf16.gmra.mxu0 %v1837
          %v1991 = vpop.f32.mrf.mxu0
          %v1992 = vadd.f32 %v1659, %v1991
          %v1993 = vpop.f32.mrf.mxu0
          %v1994 = vpop.f32.mrf.mxu0
          %v1995 = vadd.f32 %v1662, %v1994
          %v1996 = vpop.f32.mrf.mxu0
          %1997 = vmatprep.mubr.bf16.mxu0 0
          %1998 = vmatmul.mubr.bf16.gmra.mxu0 %v1840
          %v1999 = vpop.f32.mrf.mxu0
          %v2000 = vadd.f32 %v1667, %v1999
          %v2001 = vpop.f32.mrf.mxu0
          %v2002 = vpop.f32.mrf.mxu0
          %v2003 = vadd.f32 %v1670, %v2002
          %v2004 = vpop.f32.mrf.mxu0
          %2005 = vdwg.mxu0
          %s2006 = scalar_lea.vmem [#allocation2], 16
          %v2007 = vld [vmem:[%s2006] sm:$0xf]
          %v2008 = vld [vmem:[%s2006 + $0x4] sm:$0xf]
          %v2009 = vld [vmem:[%s2006 + $0x8] sm:$0xf]
          %v2010 = vld [vmem:[%s2006 + $0xc] sm:$0xf]
          %v2011 = vld [vmem:[%s2006 + $0x10] sm:$0xf]
          %v2012 = vld [vmem:[%s2006 + $0x14] sm:$0xf]
          %v2013 = vld [vmem:[%s2006 + $0x18] sm:$0xf]
          %v2014 = vld [vmem:[%s2006 + $0x1c] sm:$0xf]
          %v2015 = vld [vmem:[%s2006 + $0x20] sm:$0xf]
          %v2016 = vld [vmem:[%s2006 + $0x24] sm:$0xf]
          %v2017 = vld [vmem:[%s2006 + $0x28] sm:$0xf]
          %v2018 = vld [vmem:[%s2006 + $0x2c] sm:$0xf]
          %v2019 = vld [vmem:[%s2006 + $0x30] sm:$0xf]
          %v2020 = vld [vmem:[%s2006 + $0x34] sm:$0xf]
          %v2021 = vld [vmem:[%s2006 + $0x38] sm:$0xf]
          %v2022 = vld [vmem:[%s2006 + $0x3c] sm:$0xf]
          %v2023 = vld [vmem:[%s2006 + $0x40] sm:$0xf]
          %v2024 = vld [vmem:[%s2006 + $0x44] sm:$0xf]
          %v2025 = vld [vmem:[%s2006 + $0x48] sm:$0xf]
          %v2026 = vld [vmem:[%s2006 + $0x4c] sm:$0xf]
          %v2027 = vld [vmem:[%s2006 + $0x50] sm:$0xf]
          %v2028 = vld [vmem:[%s2006 + $0x54] sm:$0xf]
          %v2029 = vld [vmem:[%s2006 + $0x58] sm:$0xf]
          %v2030 = vld [vmem:[%s2006 + $0x5c] sm:$0xf]
          %v2031 = vld [vmem:[%s2006 + $0x60] sm:$0xf]
          %v2032 = vld [vmem:[%s2006 + $0x64] sm:$0xf]
          %v2033 = vld [vmem:[%s2006 + $0x68] sm:$0xf]
          %v2034 = vld [vmem:[%s2006 + $0x6c] sm:$0xf]
          %v2035 = vld [vmem:[%s2006 + $0x70] sm:$0xf]
          %v2036 = vld [vmem:[%s2006 + $0x74] sm:$0xf]
          %v2037 = vld [vmem:[%s2006 + $0x78] sm:$0xf]
          %v2038 = vld [vmem:[%s2006 + $0x7c] sm:$0xf]
          %s2039 = scalar_lea.vmem %s1, 112
          %v2040 = vld [vmem:[%s2039] sm:$0xf]
          %v2041 = vld [vmem:[%s2039 + $0x4] sm:$0xf]
          %v2042 = vld [vmem:[%s2039 + $0x8] sm:$0xf]
          %v2043 = vld [vmem:[%s2039 + $0xc] sm:$0xf]
          %v2044 = vld [vmem:[%s2039 + $0x10] sm:$0xf]
          %v2045 = vld [vmem:[%s2039 + $0x14] sm:$0xf]
          %v2046 = vld [vmem:[%s2039 + $0x18] sm:$0xf]
          %v2047 = vld [vmem:[%s2039 + $0x1c] sm:$0xf]
          %v2048 = vld [vmem:[%s2039 + $0x20] sm:$0xf]
          %v2049 = vld [vmem:[%s2039 + $0x24] sm:$0xf]
          %v2050 = vld [vmem:[%s2039 + $0x28] sm:$0xf]
          %v2051 = vld [vmem:[%s2039 + $0x2c] sm:$0xf]
          %v2052 = vld [vmem:[%s2039 + $0x30] sm:$0xf]
          %v2053 = vld [vmem:[%s2039 + $0x34] sm:$0x3]
          %v2086 = vunpack.c.l.b16 %v2007
          %v2087 = vunpack.c.l.b16 %v2008
          %v2088 = vunpack.c.l.b16 %v2009
          %v2089 = vunpack.c.l.b16 %v2010
          %v2090 = vunpack.c.l.b16 %v2011
          %v2091 = vunpack.c.l.b16 %v2012
          %v2092 = vunpack.c.l.b16 %v2013
          %v2093 = vunpack.c.l.b16 %v2014
          %v2094 = vunpack.c.l.b16 %v2015
          %v2095 = vunpack.c.l.b16 %v2016
          %v2096 = vunpack.c.l.b16 %v2017
          %v2097 = vunpack.c.l.b16 %v2018
          %v2098 = vunpack.c.l.b16 %v2019
          %v2099 = vunpack.c.l.b16 %v2020
          %v2100 = vunpack.c.l.b16 %v2021
          %v2101 = vunpack.c.l.b16 %v2022
          %v2102 = vunpack.c.l.b16 %v2023
          %v2103 = vunpack.c.l.b16 %v2024
          %v2104 = vunpack.c.l.b16 %v2025
          %v2105 = vunpack.c.l.b16 %v2026
          %v2106 = vunpack.c.l.b16 %v2027
          %v2107 = vunpack.c.l.b16 %v2028
          %v2108 = vunpack.c.l.b16 %v2029
          %v2109 = vunpack.c.l.b16 %v2030
          %v2110 = vunpack.c.l.b16 %v2031
          %v2111 = vunpack.c.l.b16 %v2032
          %v2112 = vunpack.c.l.b16 %v2033
          %v2113 = vunpack.c.l.b16 %v2034
          %v2114 = vunpack.c.l.b16 %v2035
          %v2115 = vunpack.c.l.b16 %v2036
          %v2116 = vunpack.c.l.b16 %v2037
          %v2117 = vunpack.c.l.b16 %v2038
          %v2118 = vpack.c.b16 %v2087, %v2086
          %v2119 = vpack.c.b16 %v2089, %v2088
          %v2120 = vpack.c.b16 %v2091, %v2090
          %v2121 = vpack.c.b16 %v2093, %v2092
          %v2122 = vpack.c.b16 %v2095, %v2094
          %v2123 = vpack.c.b16 %v2097, %v2096
          %v2124 = vpack.c.b16 %v2099, %v2098
          %v2125 = vpack.c.b16 %v2101, %v2100
          %v2126 = vpack.c.b16 %v2103, %v2102
          %v2127 = vpack.c.b16 %v2105, %v2104
          %v2128 = vpack.c.b16 %v2107, %v2106
          %v2129 = vpack.c.b16 %v2109, %v2108
          %v2130 = vpack.c.b16 %v2111, %v2110
          %v2131 = vpack.c.b16 %v2113, %v2112
          %v2132 = vpack.c.b16 %v2115, %v2114
          %v2133 = vpack.c.b16 %v2117, %v2116
          %v2148 = vunpack.c.l.b16 %v2040
          %v2149 = vunpack.c.l.b16 %v2041
          %v2150 = vunpack.c.l.b16 %v2042
          %v2151 = vunpack.c.l.b16 %v2043
          %v2152 = vunpack.c.l.b16 %v2044
          %v2153 = vunpack.c.l.b16 %v2045
          %v2154 = vunpack.c.l.b16 %v2046
          %v2155 = vunpack.c.l.b16 %v2047
          %v2156 = vunpack.c.l.b16 %v2048
          %v2157 = vunpack.c.l.b16 %v2049
          %v2158 = vunpack.c.l.b16 %v2050
          %v2159 = vunpack.c.l.b16 %v2051
          %v2160 = vunpack.c.l.b16 %v2052
          %v2161 = vunpack.c.l.b16 %v2053
          %v2162 = vpack.c.b16 %v2149, %v2148
          %v2163 = vpack.c.b16 %v2151, %v2150
          %v2164 = vpack.c.b16 %v2153, %v2152
          %v2165 = vpack.c.b16 %v2155, %v2154
          %v2166 = vpack.c.b16 %v2157, %v2156
          %v2167 = vpack.c.b16 %v2159, %v2158
          %v2168 = vpack.c.b16 %v2161, %v2160
          %v2176 = vsel %vm1459, %v2118, 0
          %v2179 = vsel %vm1459, %v2119, 0
          %v2182 = vsel %vm1459, %v2120, 0
          %v2185 = vsel %vm1459, %v2121, 0
          %v2188 = vsel %vm1459, %v2122, 0
          %v2191 = vsel %vm1459, %v2123, 0
          %v2194 = vsel %vm1459, %v2124, 0
          %v2197 = vsel %vm1459, %v2125, 0
          %v2200 = vsel %vm1459, %v2126, 0
          %v2203 = vsel %vm1459, %v2127, 0
          %v2206 = vsel %vm1459, %v2128, 0
          %v2209 = vsel %vm1459, %v2129, 0
          %v2212 = vsel %vm1459, %v2130, 0
          %v2215 = vsel %vm1459, %v2131, 0
          %v2218 = vsel %vm1459, %v2132, 0
          %v2221 = vsel %vm1459, %v2133, 0
          %v2224 = vsel %vm1508, %v2168, 0
          %2226 = vmatprep.subr.bf16.mxu0 0
          %2227 = vmatpush1.bf16.msra.mxu0 0
          %2228 = vmatprep.subr.bf16.mxu0 0
          %2229 = vmatpush1.bf16.msra.mxu0 %v2224
          %2230 = vmatprep.subr.bf16.mxu0 0
          %2231 = vmatpush1.bf16.msra.mxu0 %v2167
          %2232 = vmatprep.subr.bf16.mxu0 0
          %2233 = vmatpush1.bf16.msra.mxu0 %v2166
          %2234 = vmatprep.subr.bf16.mxu0 0
          %2235 = vmatpush1.bf16.msra.mxu0 %v2165
          %2236 = vmatprep.subr.bf16.mxu0 0
          %2237 = vmatpush1.bf16.msra.mxu0 %v2164
          %2238 = vmatprep.subr.bf16.mxu0 0
          %2239 = vmatpush1.bf16.msra.mxu0 %v2163
          %2240 = vmatprep.subr.bf16.mxu0 0
          %2241 = vmatpush1.bf16.msra.mxu0 %v2162
          %2242 = vmatprep.subr.bf16.mxu0 0
          %2243 = vmatpush2.bf16.msra.mxu0 0
          %2244 = vmatprep.subr.bf16.mxu0 0
          %2245 = vmatpush2.bf16.msra.mxu0 0
          %2246 = vmatprep.subr.bf16.mxu0 0
          %2247 = vmatpush2.bf16.msra.mxu0 0
          %2248 = vmatprep.subr.bf16.mxu0 0
          %2249 = vmatpush2.bf16.msra.mxu0 0
          %2250 = vmatprep.subr.bf16.mxu0 0
          %2251 = vmatpush2.bf16.msra.mxu0 0
          %2252 = vmatprep.subr.bf16.mxu0 0
          %2253 = vmatpush2.bf16.msra.mxu0 0
          %2254 = vmatprep.subr.bf16.mxu0 0
          %2255 = vmatpush2.bf16.msra.mxu0 0
          %2256 = vmatprep.subr.bf16.mxu0 0
          %2257 = vmatpush2.bf16.msra.mxu0 0
          %2258 = vmatprep.mubr.bf16.mxu0 0
          %2259 = vmatmul.mubr.bf16.gmra.mxu0 %v2176
          %v2260 = vpop.f32.mrf.mxu0
          %v2261 = vadd.f32 0.0, %v2260
          %v2262 = vpop.f32.mrf.mxu0
          %v2263 = vpop.f32.mrf.mxu0
          %v2264 = vadd.f32 0.0, %v2263
          %v2265 = vpop.f32.mrf.mxu0
          %2266 = vmatprep.mubr.bf16.mxu0 0
          %2267 = vmatmul.mubr.bf16.gmra.mxu0 %v2179
          %v2268 = vpop.f32.mrf.mxu0
          %v2269 = vadd.f32 0.0, %v2268
          %v2270 = vpop.f32.mrf.mxu0
          %v2271 = vpop.f32.mrf.mxu0
          %v2272 = vadd.f32 0.0, %v2271
          %v2273 = vpop.f32.mrf.mxu0
          %2274 = vmatprep.mubr.bf16.mxu0 0
          %2275 = vmatmul.mubr.bf16.gmra.mxu0 %v2182
          %v2276 = vpop.f32.mrf.mxu0
          %v2277 = vadd.f32 0.0, %v2276
          %v2278 = vpop.f32.mrf.mxu0
          %v2279 = vpop.f32.mrf.mxu0
          %v2280 = vadd.f32 0.0, %v2279
          %v2281 = vpop.f32.mrf.mxu0
          %2282 = vmatprep.mubr.bf16.mxu0 0
          %2283 = vmatmul.mubr.bf16.gmra.mxu0 %v2185
          %v2284 = vpop.f32.mrf.mxu0
          %v2285 = vadd.f32 0.0, %v2284
          %v2286 = vpop.f32.mrf.mxu0
          %v2287 = vpop.f32.mrf.mxu0
          %v2288 = vadd.f32 0.0, %v2287
          %v2289 = vpop.f32.mrf.mxu0
          %2290 = vmatprep.mubr.bf16.mxu0 0
          %2291 = vmatmul.mubr.bf16.gmra.mxu0 %v2188
          %v2292 = vpop.f32.mrf.mxu0
          %v2293 = vadd.f32 0.0, %v2292
          %v2294 = vpop.f32.mrf.mxu0
          %v2295 = vpop.f32.mrf.mxu0
          %v2296 = vadd.f32 0.0, %v2295
          %v2297 = vpop.f32.mrf.mxu0
          %2298 = vmatprep.mubr.bf16.mxu0 0
          %2299 = vmatmul.mubr.bf16.gmra.mxu0 %v2191
          %v2300 = vpop.f32.mrf.mxu0
          %v2301 = vadd.f32 0.0, %v2300
          %v2302 = vpop.f32.mrf.mxu0
          %v2303 = vpop.f32.mrf.mxu0
          %v2304 = vadd.f32 0.0, %v2303
          %v2305 = vpop.f32.mrf.mxu0
          %2306 = vmatprep.mubr.bf16.mxu0 0
          %2307 = vmatmul.mubr.bf16.gmra.mxu0 %v2194
          %v2308 = vpop.f32.mrf.mxu0
          %v2309 = vadd.f32 0.0, %v2308
          %v2310 = vpop.f32.mrf.mxu0
          %v2311 = vpop.f32.mrf.mxu0
          %v2312 = vadd.f32 0.0, %v2311
          %v2313 = vpop.f32.mrf.mxu0
          %2314 = vmatprep.mubr.bf16.mxu0 0
          %2315 = vmatmul.mubr.bf16.gmra.mxu0 %v2197
          %v2316 = vpop.f32.mrf.mxu0
          %v2317 = vadd.f32 0.0, %v2316
          %v2318 = vpop.f32.mrf.mxu0
          %v2319 = vpop.f32.mrf.mxu0
          %v2320 = vadd.f32 0.0, %v2319
          %v2321 = vpop.f32.mrf.mxu0
          %2322 = vmatprep.mubr.bf16.mxu0 0
          %2323 = vmatmul.mubr.bf16.gmra.mxu0 %v2200
          %v2324 = vpop.f32.mrf.mxu0
          %v2325 = vadd.f32 0.0, %v2324
          %v2326 = vpop.f32.mrf.mxu0
          %v2327 = vpop.f32.mrf.mxu0
          %v2328 = vadd.f32 0.0, %v2327
          %v2329 = vpop.f32.mrf.mxu0
          %2330 = vmatprep.mubr.bf16.mxu0 0
          %2331 = vmatmul.mubr.bf16.gmra.mxu0 %v2203
          %v2332 = vpop.f32.mrf.mxu0
          %v2333 = vadd.f32 0.0, %v2332
          %v2334 = vpop.f32.mrf.mxu0
          %v2335 = vpop.f32.mrf.mxu0
          %v2336 = vadd.f32 0.0, %v2335
          %v2337 = vpop.f32.mrf.mxu0
          %2338 = vmatprep.mubr.bf16.mxu0 0
          %2339 = vmatmul.mubr.bf16.gmra.mxu0 %v2206
          %v2340 = vpop.f32.mrf.mxu0
          %v2341 = vadd.f32 0.0, %v2340
          %v2342 = vpop.f32.mrf.mxu0
          %v2343 = vpop.f32.mrf.mxu0
          %v2344 = vadd.f32 0.0, %v2343
          %v2345 = vpop.f32.mrf.mxu0
          %2346 = vmatprep.mubr.bf16.mxu0 0
          %2347 = vmatmul.mubr.bf16.gmra.mxu0 %v2209
          %v2348 = vpop.f32.mrf.mxu0
          %v2349 = vadd.f32 0.0, %v2348
          %v2350 = vpop.f32.mrf.mxu0
          %v2351 = vpop.f32.mrf.mxu0
          %v2352 = vadd.f32 0.0, %v2351
          %v2353 = vpop.f32.mrf.mxu0
          %2354 = vmatprep.mubr.bf16.mxu0 0
          %2355 = vmatmul.mubr.bf16.gmra.mxu0 %v2212
          %v2356 = vpop.f32.mrf.mxu0
          %v2357 = vadd.f32 0.0, %v2356
          %v2358 = vpop.f32.mrf.mxu0
          %v2359 = vpop.f32.mrf.mxu0
          %v2360 = vadd.f32 0.0, %v2359
          %v2361 = vpop.f32.mrf.mxu0
          %2362 = vmatprep.mubr.bf16.mxu0 0
          %2363 = vmatmul.mubr.bf16.gmra.mxu0 %v2215
          %v2364 = vpop.f32.mrf.mxu0
          %v2365 = vadd.f32 0.0, %v2364
          %v2366 = vpop.f32.mrf.mxu0
          %v2367 = vpop.f32.mrf.mxu0
          %v2368 = vadd.f32 0.0, %v2367
          %v2369 = vpop.f32.mrf.mxu0
          %2370 = vmatprep.mubr.bf16.mxu0 0
          %2371 = vmatmul.mubr.bf16.gmra.mxu0 %v2218
          %v2372 = vpop.f32.mrf.mxu0
          %v2373 = vadd.f32 0.0, %v2372
          %v2374 = vpop.f32.mrf.mxu0
          %v2375 = vpop.f32.mrf.mxu0
          %v2376 = vadd.f32 0.0, %v2375
          %v2377 = vpop.f32.mrf.mxu0
          %2378 = vmatprep.mubr.bf16.mxu0 0
          %2379 = vmatmul.mubr.bf16.gmra.mxu0 %v2221
          %v2380 = vpop.f32.mrf.mxu0
          %v2381 = vadd.f32 0.0, %v2380
          %v2382 = vpop.f32.mrf.mxu0
          %v2383 = vpop.f32.mrf.mxu0
          %v2384 = vadd.f32 0.0, %v2383
          %v2385 = vpop.f32.mrf.mxu0
          %2386 = vdwg.mxu0
          %v2387 = vadd.f32 %v1880, %v2261
          %v2388 = vadd.f32 %v1883, %v2264
          %v2389 = vadd.f32 %v1888, %v2269
          %v2390 = vadd.f32 %v1891, %v2272
          %v2391 = vadd.f32 %v1896, %v2277
          %v2392 = vadd.f32 %v1899, %v2280
          %v2393 = vadd.f32 %v1904, %v2285
          %v2394 = vadd.f32 %v1907, %v2288
          %v2395 = vadd.f32 %v1912, %v2293
          %v2396 = vadd.f32 %v1915, %v2296
          %v2397 = vadd.f32 %v1920, %v2301
          %v2398 = vadd.f32 %v1923, %v2304
          %v2399 = vadd.f32 %v1928, %v2309
          %v2400 = vadd.f32 %v1931, %v2312
          %v2401 = vadd.f32 %v1936, %v2317
          %v2402 = vadd.f32 %v1939, %v2320
          %v2403 = vadd.f32 %v1944, %v2325
          %v2404 = vadd.f32 %v1947, %v2328
          %v2405 = vadd.f32 %v1952, %v2333
          %v2406 = vadd.f32 %v1955, %v2336
          %v2407 = vadd.f32 %v1960, %v2341
          %v2408 = vadd.f32 %v1963, %v2344
          %v2409 = vadd.f32 %v1968, %v2349
          %v2410 = vadd.f32 %v1971, %v2352
          %v2411 = vadd.f32 %v1976, %v2357
          %v2412 = vadd.f32 %v1979, %v2360
          %v2413 = vadd.f32 %v1984, %v2365
          %v2414 = vadd.f32 %v1987, %v2368
          %v2415 = vadd.f32 %v1992, %v2373
          %v2416 = vadd.f32 %v1995, %v2376
          %v2417 = vadd.f32 %v2000, %v2381
          %v2418 = vadd.f32 %v2003, %v2384
          %v2419 = vld [vmem:[%s2] sm:$0x1]
          %v2421 = vlaneseq
          %v2422 = vshrl.u32 %v2421, 7
          %v2423 = vsub.s32 0, %v2422
          %v2424 = vrot.slane %v2419, %v2423
          %v2426 = vadd.f32 %v2387, %v2424
          %v2427 = vadd.f32 %v2388, %v2424
          %v2428 = vadd.f32 %v2389, %v2424
          %v2429 = vadd.f32 %v2390, %v2424
          %v2430 = vadd.f32 %v2391, %v2424
          %v2431 = vadd.f32 %v2392, %v2424
          %v2432 = vadd.f32 %v2393, %v2424
          %v2433 = vadd.f32 %v2394, %v2424
          %v2434 = vadd.f32 %v2395, %v2424
          %v2435 = vadd.f32 %v2396, %v2424
          %v2436 = vadd.f32 %v2397, %v2424
          %v2437 = vadd.f32 %v2398, %v2424
          %v2438 = vadd.f32 %v2399, %v2424
          %v2439 = vadd.f32 %v2400, %v2424
          %v2440 = vadd.f32 %v2401, %v2424
          %v2441 = vadd.f32 %v2402, %v2424
          %v2442 = vadd.f32 %v2403, %v2424
          %v2443 = vadd.f32 %v2404, %v2424
          %v2444 = vadd.f32 %v2405, %v2424
          %v2445 = vadd.f32 %v2406, %v2424
          %v2446 = vadd.f32 %v2407, %v2424
          %v2447 = vadd.f32 %v2408, %v2424
          %v2448 = vadd.f32 %v2409, %v2424
          %v2449 = vadd.f32 %v2410, %v2424
          %v2450 = vadd.f32 %v2411, %v2424
          %v2451 = vadd.f32 %v2412, %v2424
          %v2452 = vadd.f32 %v2413, %v2424
          %v2453 = vadd.f32 %v2414, %v2424
          %v2454 = vadd.f32 %v2415, %v2424
          %v2455 = vadd.f32 %v2416, %v2424
          %v2456 = vadd.f32 %v2417, %v2424
          %v2457 = vadd.f32 %v2418, %v2424
          %v2458 = vadd.f32 %v2426, %v2426
          %v2459 = vadd.f32 %v2427, %v2427
          %v2460 = vadd.f32 %v2428, %v2428
          %v2461 = vadd.f32 %v2429, %v2429
          %v2462 = vadd.f32 %v2430, %v2430
          %v2463 = vadd.f32 %v2431, %v2431
          %v2464 = vadd.f32 %v2432, %v2432
          %v2465 = vadd.f32 %v2433, %v2433
          %v2466 = vadd.f32 %v2434, %v2434
          %v2467 = vadd.f32 %v2435, %v2435
          %v2468 = vadd.f32 %v2436, %v2436
          %v2469 = vadd.f32 %v2437, %v2437
          %v2470 = vadd.f32 %v2438, %v2438
          %v2471 = vadd.f32 %v2439, %v2439
          %v2472 = vadd.f32 %v2440, %v2440
          %v2473 = vadd.f32 %v2441, %v2441
          %v2474 = vadd.f32 %v2442, %v2442
          %v2475 = vadd.f32 %v2443, %v2443
          %v2476 = vadd.f32 %v2444, %v2444
          %v2477 = vadd.f32 %v2445, %v2445
          %v2478 = vadd.f32 %v2446, %v2446
          %v2479 = vadd.f32 %v2447, %v2447
          %v2480 = vadd.f32 %v2448, %v2448
          %v2481 = vadd.f32 %v2449, %v2449
          %v2482 = vadd.f32 %v2450, %v2450
          %v2483 = vadd.f32 %v2451, %v2451
          %v2484 = vadd.f32 %v2452, %v2452
          %v2485 = vadd.f32 %v2453, %v2453
          %v2486 = vadd.f32 %v2454, %v2454
          %v2487 = vadd.f32 %v2455, %v2455
          %v2488 = vadd.f32 %v2456, %v2456
          %v2489 = vadd.f32 %v2457, %v2457
          %v2490 = vsel %vm372, %v2426, %v2458
          %v2491 = vsel %vm372, %v2427, %v2459
          %v2492 = vsel %vm372, %v2428, %v2460
          %v2493 = vsel %vm372, %v2429, %v2461
          %v2494 = vsel %vm372, %v2430, %v2462
          %v2495 = vsel %vm372, %v2431, %v2463
          %v2496 = vsel %vm372, %v2432, %v2464
          %v2497 = vsel %vm372, %v2433, %v2465
          %v2498 = vsel %vm372, %v2434, %v2466
          %v2499 = vsel %vm372, %v2435, %v2467
          %v2500 = vsel %vm372, %v2436, %v2468
          %v2501 = vsel %vm372, %v2437, %v2469
          %v2502 = vsel %vm372, %v2438, %v2470
          %v2503 = vsel %vm372, %v2439, %v2471
          %v2504 = vsel %vm372, %v2440, %v2472
          %v2505 = vsel %vm372, %v2441, %v2473
          %v2506 = vsel %vm372, %v2442, %v2474
          %v2507 = vsel %vm372, %v2443, %v2475
          %v2508 = vsel %vm372, %v2444, %v2476
          %v2509 = vsel %vm372, %v2445, %v2477
          %v2510 = vsel %vm372, %v2446, %v2478
          %v2511 = vsel %vm372, %v2447, %v2479
          %v2512 = vsel %vm372, %v2448, %v2480
          %v2513 = vsel %vm372, %v2449, %v2481
          %v2514 = vsel %vm372, %v2450, %v2482
          %v2515 = vsel %vm372, %v2451, %v2483
          %v2516 = vsel %vm372, %v2452, %v2484
          %v2517 = vsel %vm372, %v2453, %v2485
          %v2518 = vsel %vm372, %v2454, %v2486
          %v2519 = vsel %vm372, %v2455, %v2487
          %v2520 = vsel %vm372, %v2456, %v2488
          %v2521 = vsel %vm372, %v2457, %v2489
          %v2522 = vxor.u32 %v2490, 2147483648
          %v2523 = vxor.u32 %v2491, 2147483648
          %v2524 = vxor.u32 %v2492, 2147483648
          %v2525 = vxor.u32 %v2493, 2147483648
          %v2526 = vxor.u32 %v2494, 2147483648
          %v2527 = vxor.u32 %v2495, 2147483648
          %v2528 = vxor.u32 %v2496, 2147483648
          %v2529 = vxor.u32 %v2497, 2147483648
          %v2530 = vxor.u32 %v2498, 2147483648
          %v2531 = vxor.u32 %v2499, 2147483648
          %v2532 = vxor.u32 %v2500, 2147483648
          %v2533 = vxor.u32 %v2501, 2147483648
          %v2534 = vxor.u32 %v2502, 2147483648
          %v2535 = vxor.u32 %v2503, 2147483648
          %v2536 = vxor.u32 %v2504, 2147483648
          %v2537 = vxor.u32 %v2505, 2147483648
          %v2538 = vxor.u32 %v2506, 2147483648
          %v2539 = vxor.u32 %v2507, 2147483648
          %v2540 = vxor.u32 %v2508, 2147483648
          %v2541 = vxor.u32 %v2509, 2147483648
          %v2542 = vxor.u32 %v2510, 2147483648
          %v2543 = vxor.u32 %v2511, 2147483648
          %v2544 = vxor.u32 %v2512, 2147483648
          %v2545 = vxor.u32 %v2513, 2147483648
          %v2546 = vxor.u32 %v2514, 2147483648
          %v2547 = vxor.u32 %v2515, 2147483648
          %v2548 = vxor.u32 %v2516, 2147483648
          %v2549 = vxor.u32 %v2517, 2147483648
          %v2550 = vxor.u32 %v2518, 2147483648
          %v2551 = vxor.u32 %v2519, 2147483648
          %v2552 = vxor.u32 %v2520, 2147483648
          %v2553 = vxor.u32 %v2521, 2147483648
          %v2554 = vmul.f32 %v2522, 1.442695
          %v2555 = vpow.pop %v2554
          %v2556 = vmul.f32 %v2523, 1.442695
          %v2557 = vpow.pop %v2556
          %v2558 = vmul.f32 %v2524, 1.442695
          %v2559 = vpow.pop %v2558
          %v2560 = vmul.f32 %v2525, 1.442695
          %v2561 = vpow.pop %v2560
          %v2562 = vmul.f32 %v2526, 1.442695
          %v2563 = vpow.pop %v2562
          %v2564 = vmul.f32 %v2527, 1.442695
          %v2565 = vpow.pop %v2564
          %v2566 = vmul.f32 %v2528, 1.442695
          %v2567 = vpow.pop %v2566
          %v2568 = vmul.f32 %v2529, 1.442695
          %v2569 = vpow.pop %v2568
          %v2570 = vmul.f32 %v2530, 1.442695
          %v2571 = vpow.pop %v2570
          %v2572 = vmul.f32 %v2531, 1.442695
          %v2573 = vpow.pop %v2572
          %v2574 = vmul.f32 %v2532, 1.442695
          %v2575 = vpow.pop %v2574
          %v2576 = vmul.f32 %v2533, 1.442695
          %v2577 = vpow.pop %v2576
          %v2578 = vmul.f32 %v2534, 1.442695
          %v2579 = vpow.pop %v2578
          %v2580 = vmul.f32 %v2535, 1.442695
          %v2581 = vpow.pop %v2580
          %v2582 = vmul.f32 %v2536, 1.442695
          %v2583 = vpow.pop %v2582
          %v2584 = vmul.f32 %v2537, 1.442695
          %v2585 = vpow.pop %v2584
          %v2586 = vmul.f32 %v2538, 1.442695
          %v2587 = vpow.pop %v2586
          %v2588 = vmul.f32 %v2539, 1.442695
          %v2589 = vpow.pop %v2588
          %v2590 = vmul.f32 %v2540, 1.442695
          %v2591 = vpow.pop %v2590
          %v2592 = vmul.f32 %v2541, 1.442695
          %v2593 = vpow.pop %v2592
          %v2594 = vmul.f32 %v2542, 1.442695
          %v2595 = vpow.pop %v2594
          %v2596 = vmul.f32 %v2543, 1.442695
          %v2597 = vpow.pop %v2596
          %v2598 = vmul.f32 %v2544, 1.442695
          %v2599 = vpow.pop %v2598
          %v2600 = vmul.f32 %v2545, 1.442695
          %v2601 = vpow.pop %v2600
          %v2602 = vmul.f32 %v2546, 1.442695
          %v2603 = vpow.pop %v2602
          %v2604 = vmul.f32 %v2547, 1.442695
          %v2605 = vpow.pop %v2604
          %v2606 = vmul.f32 %v2548, 1.442695
          %v2607 = vpow.pop %v2606
          %v2608 = vmul.f32 %v2549, 1.442695
          %v2609 = vpow.pop %v2608
          %v2610 = vmul.f32 %v2550, 1.442695
          %v2611 = vpow.pop %v2610
          %v2612 = vmul.f32 %v2551, 1.442695
          %v2613 = vpow.pop %v2612
          %v2614 = vmul.f32 %v2552, 1.442695
          %v2615 = vpow.pop %v2614
          %v2616 = vmul.f32 %v2553, 1.442695
          %v2617 = vpow.pop %v2616
          %v2618 = vadd.f32 %v2555, 1.0
          %v2619 = vadd.f32 %v2557, 1.0
          %v2620 = vadd.f32 %v2559, 1.0
          %v2621 = vadd.f32 %v2561, 1.0
          %v2622 = vadd.f32 %v2563, 1.0
          %v2623 = vadd.f32 %v2565, 1.0
          %v2624 = vadd.f32 %v2567, 1.0
          %v2625 = vadd.f32 %v2569, 1.0
          %v2626 = vadd.f32 %v2571, 1.0
          %v2627 = vadd.f32 %v2573, 1.0
          %v2628 = vadd.f32 %v2575, 1.0
          %v2629 = vadd.f32 %v2577, 1.0
          %v2630 = vadd.f32 %v2579, 1.0
          %v2631 = vadd.f32 %v2581, 1.0
          %v2632 = vadd.f32 %v2583, 1.0
          %v2633 = vadd.f32 %v2585, 1.0
          %v2634 = vadd.f32 %v2587, 1.0
          %v2635 = vadd.f32 %v2589, 1.0
          %v2636 = vadd.f32 %v2591, 1.0
          %v2637 = vadd.f32 %v2593, 1.0
          %v2638 = vadd.f32 %v2595, 1.0
          %v2639 = vadd.f32 %v2597, 1.0
          %v2640 = vadd.f32 %v2599, 1.0
          %v2641 = vadd.f32 %v2601, 1.0
          %v2642 = vadd.f32 %v2603, 1.0
          %v2643 = vadd.f32 %v2605, 1.0
          %v2644 = vadd.f32 %v2607, 1.0
          %v2645 = vadd.f32 %v2609, 1.0
          %v2646 = vadd.f32 %v2611, 1.0
          %v2647 = vadd.f32 %v2613, 1.0
          %v2648 = vadd.f32 %v2615, 1.0
          %v2649 = vadd.f32 %v2617, 1.0
          %v2650 = vrcp.pop %v2618
          %v2651 = vmul.f32 1.0, %v2650
          %v2652 = vrcp.pop %v2619
          %v2653 = vmul.f32 1.0, %v2652
          %v2654 = vrcp.pop %v2620
          %v2655 = vmul.f32 1.0, %v2654
          %v2656 = vrcp.pop %v2621
          %v2657 = vmul.f32 1.0, %v2656
          %v2658 = vrcp.pop %v2622
          %v2659 = vmul.f32 1.0, %v2658
          %v2660 = vrcp.pop %v2623
          %v2661 = vmul.f32 1.0, %v2660
          %v2662 = vrcp.pop %v2624
          %v2663 = vmul.f32 1.0, %v2662
          %v2664 = vrcp.pop %v2625
          %v2665 = vmul.f32 1.0, %v2664
          %v2666 = vrcp.pop %v2626
          %v2667 = vmul.f32 1.0, %v2666
          %v2668 = vrcp.pop %v2627
          %v2669 = vmul.f32 1.0, %v2668
          %v2670 = vrcp.pop %v2628
          %v2671 = vmul.f32 1.0, %v2670
          %v2672 = vrcp.pop %v2629
          %v2673 = vmul.f32 1.0, %v2672
          %v2674 = vrcp.pop %v2630
          %v2675 = vmul.f32 1.0, %v2674
          %v2676 = vrcp.pop %v2631
          %v2677 = vmul.f32 1.0, %v2676
          %v2678 = vrcp.pop %v2632
          %v2679 = vmul.f32 1.0, %v2678
          %v2680 = vrcp.pop %v2633
          %v2681 = vmul.f32 1.0, %v2680
          %v2682 = vrcp.pop %v2634
          %v2683 = vmul.f32 1.0, %v2682
          %v2684 = vrcp.pop %v2635
          %v2685 = vmul.f32 1.0, %v2684
          %v2686 = vrcp.pop %v2636
          %v2687 = vmul.f32 1.0, %v2686
          %v2688 = vrcp.pop %v2637
          %v2689 = vmul.f32 1.0, %v2688
          %v2690 = vrcp.pop %v2638
          %v2691 = vmul.f32 1.0, %v2690
          %v2692 = vrcp.pop %v2639
          %v2693 = vmul.f32 1.0, %v2692
          %v2694 = vrcp.pop %v2640
          %v2695 = vmul.f32 1.0, %v2694
          %v2696 = vrcp.pop %v2641
          %v2697 = vmul.f32 1.0, %v2696
          %v2698 = vrcp.pop %v2642
          %v2699 = vmul.f32 1.0, %v2698
          %v2700 = vrcp.pop %v2643
          %v2701 = vmul.f32 1.0, %v2700
          %v2702 = vrcp.pop %v2644
          %v2703 = vmul.f32 1.0, %v2702
          %v2704 = vrcp.pop %v2645
          %v2705 = vmul.f32 1.0, %v2704
          %v2706 = vrcp.pop %v2646
          %v2707 = vmul.f32 1.0, %v2706
          %v2708 = vrcp.pop %v2647
          %v2709 = vmul.f32 1.0, %v2708
          %v2710 = vrcp.pop %v2648
          %v2711 = vmul.f32 1.0, %v2710
          %v2712 = vrcp.pop %v2649
          %v2713 = vmul.f32 1.0, %v2712
          %v2714 = vmul.f32 %v2651, 2.0
          %v2715 = vmul.f32 %v2653, 2.0
          %v2716 = vmul.f32 %v2655, 2.0
          %v2717 = vmul.f32 %v2657, 2.0
          %v2718 = vmul.f32 %v2659, 2.0
          %v2719 = vmul.f32 %v2661, 2.0
          %v2720 = vmul.f32 %v2663, 2.0
          %v2721 = vmul.f32 %v2665, 2.0
          %v2722 = vmul.f32 %v2667, 2.0
          %v2723 = vmul.f32 %v2669, 2.0
          %v2724 = vmul.f32 %v2671, 2.0
          %v2725 = vmul.f32 %v2673, 2.0
          %v2726 = vmul.f32 %v2675, 2.0
          %v2727 = vmul.f32 %v2677, 2.0
          %v2728 = vmul.f32 %v2679, 2.0
          %v2729 = vmul.f32 %v2681, 2.0
          %v2730 = vmul.f32 %v2683, 2.0
          %v2731 = vmul.f32 %v2685, 2.0
          %v2732 = vmul.f32 %v2687, 2.0
          %v2733 = vmul.f32 %v2689, 2.0
          %v2734 = vmul.f32 %v2691, 2.0
          %v2735 = vmul.f32 %v2693, 2.0
          %v2736 = vmul.f32 %v2695, 2.0
          %v2737 = vmul.f32 %v2697, 2.0
          %v2738 = vmul.f32 %v2699, 2.0
          %v2739 = vmul.f32 %v2701, 2.0
          %v2740 = vmul.f32 %v2703, 2.0
          %v2741 = vmul.f32 %v2705, 2.0
          %v2742 = vmul.f32 %v2707, 2.0
          %v2743 = vmul.f32 %v2709, 2.0
          %v2744 = vmul.f32 %v2711, 2.0
          %v2745 = vmul.f32 %v2713, 2.0
          %v2746 = vsub.f32 %v2714, 1.0
          %v2747 = vsub.f32 %v2715, 1.0
          %v2748 = vsub.f32 %v2716, 1.0
          %v2749 = vsub.f32 %v2717, 1.0
          %v2750 = vsub.f32 %v2718, 1.0
          %v2751 = vsub.f32 %v2719, 1.0
          %v2752 = vsub.f32 %v2720, 1.0
          %v2753 = vsub.f32 %v2721, 1.0
          %v2754 = vsub.f32 %v2722, 1.0
          %v2755 = vsub.f32 %v2723, 1.0
          %v2756 = vsub.f32 %v2724, 1.0
          %v2757 = vsub.f32 %v2725, 1.0
          %v2758 = vsub.f32 %v2726, 1.0
          %v2759 = vsub.f32 %v2727, 1.0
          %v2760 = vsub.f32 %v2728, 1.0
          %v2761 = vsub.f32 %v2729, 1.0
          %v2762 = vsub.f32 %v2730, 1.0
          %v2763 = vsub.f32 %v2731, 1.0
          %v2764 = vsub.f32 %v2732, 1.0
          %v2765 = vsub.f32 %v2733, 1.0
          %v2766 = vsub.f32 %v2734, 1.0
          %v2767 = vsub.f32 %v2735, 1.0
          %v2768 = vsub.f32 %v2736, 1.0
          %v2769 = vsub.f32 %v2737, 1.0
          %v2770 = vsub.f32 %v2738, 1.0
          %v2771 = vsub.f32 %v2739, 1.0
          %v2772 = vsub.f32 %v2740, 1.0
          %v2773 = vsub.f32 %v2741, 1.0
          %v2774 = vsub.f32 %v2742, 1.0
          %v2775 = vsub.f32 %v2743, 1.0
          %v2776 = vsub.f32 %v2744, 1.0
          %v2777 = vsub.f32 %v2745, 1.0
          %v2778 = vld [vmem:[#allocation3] sm:$0xff]
          %v2779 = vld [vmem:[#allocation3 + $0x8] sm:$0xff]
          %v2780 = vld [vmem:[#allocation3 + $0x10] sm:$0xff]
          %v2781 = vld [vmem:[#allocation3 + $0x18] sm:$0xff]
          %v2782 = vld [vmem:[#allocation3 + $0x20] sm:$0xff]
          %v2783 = vld [vmem:[#allocation3 + $0x28] sm:$0xff]
          %v2784 = vld [vmem:[#allocation3 + $0x30] sm:$0xff]
          %v2785 = vld [vmem:[#allocation3 + $0x38] sm:$0xff]
          %v2786 = vld [vmem:[#allocation3 + $0x40] sm:$0xff]
          %v2787 = vld [vmem:[#allocation3 + $0x48] sm:$0xff]
          %v2788 = vld [vmem:[#allocation3 + $0x50] sm:$0xff]
          %v2789 = vld [vmem:[#allocation3 + $0x58] sm:$0xff]
          %v2790 = vld [vmem:[#allocation3 + $0x60] sm:$0xff]
          %v2791 = vld [vmem:[#allocation3 + $0x68] sm:$0xff]
          %v2792 = vld [vmem:[#allocation3 + $0x70] sm:$0xff]
          %v2793 = vld [vmem:[#allocation3 + $0x78] sm:$0xff]
          %v2794 = vld [vmem:[#allocation3 + $0x80] sm:$0xff]
          %v2795 = vld [vmem:[#allocation3 + $0x88] sm:$0xff]
          %v2796 = vld [vmem:[#allocation3 + $0x90] sm:$0xff]
          %v2797 = vld [vmem:[#allocation3 + $0x98] sm:$0xff]
          %v2798 = vld [vmem:[#allocation3 + $0xa0] sm:$0xff]
          %v2799 = vld [vmem:[#allocation3 + $0xa8] sm:$0xff]
          %v2800 = vld [vmem:[#allocation3 + $0xb0] sm:$0xff]
          %v2801 = vld [vmem:[#allocation3 + $0xb8] sm:$0xff]
          %v2802 = vld [vmem:[#allocation3 + $0xc0] sm:$0xff]
          %v2803 = vld [vmem:[#allocation3 + $0xc8] sm:$0xff]
          %v2804 = vld [vmem:[#allocation3 + $0xd0] sm:$0xff]
          %v2805 = vld [vmem:[#allocation3 + $0xd8] sm:$0xff]
          %v2806 = vld [vmem:[#allocation3 + $0xe0] sm:$0xff]
          %v2807 = vld [vmem:[#allocation3 + $0xe8] sm:$0xff]
          %v2808 = vld [vmem:[#allocation3 + $0xf0] sm:$0xff]
          %v2809 = vld [vmem:[#allocation3 + $0xf8] sm:$0xff]
          %2842 = vrot.lane.b32.xlu0 %v2778, 32
          %v2843 = vpop.permute.xlu0 %2842
          %2844 = vrot.lane.b32.xlu0 %v2779, 32
          %v2845 = vpop.permute.xlu0 %2844
          %2846 = vrot.lane.b32.xlu0 %v2780, 32
          %v2847 = vpop.permute.xlu0 %2846
          %2848 = vrot.lane.b32.xlu0 %v2781, 32
          %v2849 = vpop.permute.xlu0 %2848
          %2850 = vrot.lane.b32.xlu0 %v2782, 32
          %v2851 = vpop.permute.xlu0 %2850
          %2852 = vrot.lane.b32.xlu0 %v2783, 32
          %v2853 = vpop.permute.xlu0 %2852
          %2854 = vrot.lane.b32.xlu0 %v2784, 32
          %v2855 = vpop.permute.xlu0 %2854
          %2856 = vrot.lane.b32.xlu0 %v2785, 32
          %v2857 = vpop.permute.xlu0 %2856
          %2858 = vrot.lane.b32.xlu0 %v2786, 32
          %v2859 = vpop.permute.xlu0 %2858
          %2860 = vrot.lane.b32.xlu0 %v2787, 32
          %v2861 = vpop.permute.xlu0 %2860
          %2862 = vrot.lane.b32.xlu0 %v2788, 32
          %v2863 = vpop.permute.xlu0 %2862
          %2864 = vrot.lane.b32.xlu0 %v2789, 32
          %v2865 = vpop.permute.xlu0 %2864
          %2866 = vrot.lane.b32.xlu0 %v2790, 32
          %v2867 = vpop.permute.xlu0 %2866
          %2868 = vrot.lane.b32.xlu0 %v2791, 32
          %v2869 = vpop.permute.xlu0 %2868
          %2870 = vrot.lane.b32.xlu0 %v2792, 32
          %v2871 = vpop.permute.xlu0 %2870
          %2872 = vrot.lane.b32.xlu0 %v2793, 32
          %v2873 = vpop.permute.xlu0 %2872
          %2874 = vrot.lane.b32.xlu0 %v2794, 32
          %v2875 = vpop.permute.xlu0 %2874
          %2876 = vrot.lane.b32.xlu0 %v2795, 32
          %v2877 = vpop.permute.xlu0 %2876
          %2878 = vrot.lane.b32.xlu0 %v2796, 32
          %v2879 = vpop.permute.xlu0 %2878
          %2880 = vrot.lane.b32.xlu0 %v2797, 32
          %v2881 = vpop.permute.xlu0 %2880
          %2882 = vrot.lane.b32.xlu0 %v2798, 32
          %v2883 = vpop.permute.xlu0 %2882
          %2884 = vrot.lane.b32.xlu0 %v2799, 32
          %v2885 = vpop.permute.xlu0 %2884
          %2886 = vrot.lane.b32.xlu0 %v2800, 32
          %v2887 = vpop.permute.xlu0 %2886
          %2888 = vrot.lane.b32.xlu0 %v2801, 32
          %v2889 = vpop.permute.xlu0 %2888
          %2890 = vrot.lane.b32.xlu0 %v2802, 32
          %v2891 = vpop.permute.xlu0 %2890
          %2892 = vrot.lane.b32.xlu0 %v2803, 32
          %v2893 = vpop.permute.xlu0 %2892
          %2894 = vrot.lane.b32.xlu0 %v2804, 32
          %v2895 = vpop.permute.xlu0 %2894
          %2896 = vrot.lane.b32.xlu0 %v2805, 32
          %v2897 = vpop.permute.xlu0 %2896
          %2898 = vrot.lane.b32.xlu0 %v2806, 32
          %v2899 = vpop.permute.xlu0 %2898
          %2900 = vrot.lane.b32.xlu0 %v2807, 32
          %v2901 = vpop.permute.xlu0 %2900
          %2902 = vrot.lane.b32.xlu0 %v2808, 32
          %v2903 = vpop.permute.xlu0 %2902
          %2904 = vrot.lane.b32.xlu0 %v2809, 32
          %v2905 = vpop.permute.xlu0 %2904
          %v2938 = vmul.f32 %v2651, %v2843
          %v2939 = vmul.f32 %v2653, %v2845
          %v2940 = vmul.f32 %v2655, %v2847
          %v2941 = vmul.f32 %v2657, %v2849
          %v2942 = vmul.f32 %v2659, %v2851
          %v2943 = vmul.f32 %v2661, %v2853
          %v2944 = vmul.f32 %v2663, %v2855
          %v2945 = vmul.f32 %v2665, %v2857
          %v2946 = vmul.f32 %v2667, %v2859
          %v2947 = vmul.f32 %v2669, %v2861
          %v2948 = vmul.f32 %v2671, %v2863
          %v2949 = vmul.f32 %v2673, %v2865
          %v2950 = vmul.f32 %v2675, %v2867
          %v2951 = vmul.f32 %v2677, %v2869
          %v2952 = vmul.f32 %v2679, %v2871
          %v2953 = vmul.f32 %v2681, %v2873
          %v2954 = vmul.f32 %v2683, %v2875
          %v2955 = vmul.f32 %v2685, %v2877
          %v2956 = vmul.f32 %v2687, %v2879
          %v2957 = vmul.f32 %v2689, %v2881
          %v2958 = vmul.f32 %v2691, %v2883
          %v2959 = vmul.f32 %v2693, %v2885
          %v2960 = vmul.f32 %v2695, %v2887
          %v2961 = vmul.f32 %v2697, %v2889
          %v2962 = vmul.f32 %v2699, %v2891
          %v2963 = vmul.f32 %v2701, %v2893
          %v2964 = vmul.f32 %v2703, %v2895
          %v2965 = vmul.f32 %v2705, %v2897
          %v2966 = vmul.f32 %v2707, %v2899
          %v2967 = vmul.f32 %v2709, %v2901
          %v2968 = vmul.f32 %v2711, %v2903
          %v2969 = vmul.f32 %v2713, %v2905
          %3002 = vrot.lane.b32.xlu0 %v2746, 32
          %v3003 = vpop.permute.xlu0 %3002
          %3004 = vrot.lane.b32.xlu0 %v2747, 32
          %v3005 = vpop.permute.xlu0 %3004
          %3006 = vrot.lane.b32.xlu0 %v2748, 32
          %v3007 = vpop.permute.xlu0 %3006
          %3008 = vrot.lane.b32.xlu0 %v2749, 32
          %v3009 = vpop.permute.xlu0 %3008
          %3010 = vrot.lane.b32.xlu0 %v2750, 32
          %v3011 = vpop.permute.xlu0 %3010
          %3012 = vrot.lane.b32.xlu0 %v2751, 32
          %v3013 = vpop.permute.xlu0 %3012
          %3014 = vrot.lane.b32.xlu0 %v2752, 32
          %v3015 = vpop.permute.xlu0 %3014
          %3016 = vrot.lane.b32.xlu0 %v2753, 32
          %v3017 = vpop.permute.xlu0 %3016
          %3018 = vrot.lane.b32.xlu0 %v2754, 32
          %v3019 = vpop.permute.xlu0 %3018
          %3020 = vrot.lane.b32.xlu0 %v2755, 32
          %v3021 = vpop.permute.xlu0 %3020
          %3022 = vrot.lane.b32.xlu0 %v2756, 32
          %v3023 = vpop.permute.xlu0 %3022
          %3024 = vrot.lane.b32.xlu0 %v2757, 32
          %v3025 = vpop.permute.xlu0 %3024
          %3026 = vrot.lane.b32.xlu0 %v2758, 32
          %v3027 = vpop.permute.xlu0 %3026
          %3028 = vrot.lane.b32.xlu0 %v2759, 32
          %v3029 = vpop.permute.xlu0 %3028
          %3030 = vrot.lane.b32.xlu0 %v2760, 32
          %v3031 = vpop.permute.xlu0 %3030
          %3032 = vrot.lane.b32.xlu0 %v2761, 32
          %v3033 = vpop.permute.xlu0 %3032
          %3034 = vrot.lane.b32.xlu0 %v2762, 32
          %v3035 = vpop.permute.xlu0 %3034
          %3036 = vrot.lane.b32.xlu0 %v2763, 32
          %v3037 = vpop.permute.xlu0 %3036
          %3038 = vrot.lane.b32.xlu0 %v2764, 32
          %v3039 = vpop.permute.xlu0 %3038
          %3040 = vrot.lane.b32.xlu0 %v2765, 32
          %v3041 = vpop.permute.xlu0 %3040
          %3042 = vrot.lane.b32.xlu0 %v2766, 32
          %v3043 = vpop.permute.xlu0 %3042
          %3044 = vrot.lane.b32.xlu0 %v2767, 32
          %v3045 = vpop.permute.xlu0 %3044
          %3046 = vrot.lane.b32.xlu0 %v2768, 32
          %v3047 = vpop.permute.xlu0 %3046
          %3048 = vrot.lane.b32.xlu0 %v2769, 32
          %v3049 = vpop.permute.xlu0 %3048
          %3050 = vrot.lane.b32.xlu0 %v2770, 32
          %v3051 = vpop.permute.xlu0 %3050
          %3052 = vrot.lane.b32.xlu0 %v2771, 32
          %v3053 = vpop.permute.xlu0 %3052
          %3054 = vrot.lane.b32.xlu0 %v2772, 32
          %v3055 = vpop.permute.xlu0 %3054
          %3056 = vrot.lane.b32.xlu0 %v2773, 32
          %v3057 = vpop.permute.xlu0 %3056
          %3058 = vrot.lane.b32.xlu0 %v2774, 32
          %v3059 = vpop.permute.xlu0 %3058
          %3060 = vrot.lane.b32.xlu0 %v2775, 32
          %v3061 = vpop.permute.xlu0 %3060
          %3062 = vrot.lane.b32.xlu0 %v2776, 32
          %v3063 = vpop.permute.xlu0 %3062
          %3064 = vrot.lane.b32.xlu0 %v2777, 32
          %v3065 = vpop.permute.xlu0 %3064
          %v3098 = vmul.f32 %v2651, %v3003
          %v3099 = vmul.f32 %v2653, %v3005
          %v3100 = vmul.f32 %v2655, %v3007
          %v3101 = vmul.f32 %v2657, %v3009
          %v3102 = vmul.f32 %v2659, %v3011
          %v3103 = vmul.f32 %v2661, %v3013
          %v3104 = vmul.f32 %v2663, %v3015
          %v3105 = vmul.f32 %v2665, %v3017
          %v3106 = vmul.f32 %v2667, %v3019
          %v3107 = vmul.f32 %v2669, %v3021
          %v3108 = vmul.f32 %v2671, %v3023
          %v3109 = vmul.f32 %v2673, %v3025
          %v3110 = vmul.f32 %v2675, %v3027
          %v3111 = vmul.f32 %v2677, %v3029
          %v3112 = vmul.f32 %v2679, %v3031
          %v3113 = vmul.f32 %v2681, %v3033
          %v3114 = vmul.f32 %v2683, %v3035
          %v3115 = vmul.f32 %v2685, %v3037
          %v3116 = vmul.f32 %v2687, %v3039
          %v3117 = vmul.f32 %v2689, %v3041
          %v3118 = vmul.f32 %v2691, %v3043
          %v3119 = vmul.f32 %v2693, %v3045
          %v3120 = vmul.f32 %v2695, %v3047
          %v3121 = vmul.f32 %v2697, %v3049
          %v3122 = vmul.f32 %v2699, %v3051
          %v3123 = vmul.f32 %v2701, %v3053
          %v3124 = vmul.f32 %v2703, %v3055
          %v3125 = vmul.f32 %v2705, %v3057
          %v3126 = vmul.f32 %v2707, %v3059
          %v3127 = vmul.f32 %v2709, %v3061
          %v3128 = vmul.f32 %v2711, %v3063
          %v3129 = vmul.f32 %v2713, %v3065
          %3162 = vrot.lane.b32.xlu0 %v3098, 32
          %v3163 = vpop.permute.xlu0 %3162
          %3164 = vrot.lane.b32.xlu0 %v3099, 32
          %v3165 = vpop.permute.xlu0 %3164
          %3166 = vrot.lane.b32.xlu0 %v3100, 32
          %v3167 = vpop.permute.xlu0 %3166
          %3168 = vrot.lane.b32.xlu0 %v3101, 32
          %v3169 = vpop.permute.xlu0 %3168
          %3170 = vrot.lane.b32.xlu0 %v3102, 32
          %v3171 = vpop.permute.xlu0 %3170
          %3172 = vrot.lane.b32.xlu0 %v3103, 32
          %v3173 = vpop.permute.xlu0 %3172
          %3174 = vrot.lane.b32.xlu0 %v3104, 32
          %v3175 = vpop.permute.xlu0 %3174
          %3176 = vrot.lane.b32.xlu0 %v3105, 32
          %v3177 = vpop.permute.xlu0 %3176
          %3178 = vrot.lane.b32.xlu0 %v3106, 32
          %v3179 = vpop.permute.xlu0 %3178
          %3180 = vrot.lane.b32.xlu0 %v3107, 32
          %v3181 = vpop.permute.xlu0 %3180
          %3182 = vrot.lane.b32.xlu0 %v3108, 32
          %v3183 = vpop.permute.xlu0 %3182
          %3184 = vrot.lane.b32.xlu0 %v3109, 32
          %v3185 = vpop.permute.xlu0 %3184
          %3186 = vrot.lane.b32.xlu0 %v3110, 32
          %v3187 = vpop.permute.xlu0 %3186
          %3188 = vrot.lane.b32.xlu0 %v3111, 32
          %v3189 = vpop.permute.xlu0 %3188
          %3190 = vrot.lane.b32.xlu0 %v3112, 32
          %v3191 = vpop.permute.xlu0 %3190
          %3192 = vrot.lane.b32.xlu0 %v3113, 32
          %v3193 = vpop.permute.xlu0 %3192
          %3194 = vrot.lane.b32.xlu0 %v3114, 32
          %v3195 = vpop.permute.xlu0 %3194
          %3196 = vrot.lane.b32.xlu0 %v3115, 32
          %v3197 = vpop.permute.xlu0 %3196
          %3198 = vrot.lane.b32.xlu0 %v3116, 32
          %v3199 = vpop.permute.xlu0 %3198
          %3200 = vrot.lane.b32.xlu0 %v3117, 32
          %v3201 = vpop.permute.xlu0 %3200
          %3202 = vrot.lane.b32.xlu0 %v3118, 32
          %v3203 = vpop.permute.xlu0 %3202
          %3204 = vrot.lane.b32.xlu0 %v3119, 32
          %v3205 = vpop.permute.xlu0 %3204
          %3206 = vrot.lane.b32.xlu0 %v3120, 32
          %v3207 = vpop.permute.xlu0 %3206
          %3208 = vrot.lane.b32.xlu0 %v3121, 32
          %v3209 = vpop.permute.xlu0 %3208
          %3210 = vrot.lane.b32.xlu0 %v3122, 32
          %v3211 = vpop.permute.xlu0 %3210
          %3212 = vrot.lane.b32.xlu0 %v3123, 32
          %v3213 = vpop.permute.xlu0 %3212
          %3214 = vrot.lane.b32.xlu0 %v3124, 32
          %v3215 = vpop.permute.xlu0 %3214
          %3216 = vrot.lane.b32.xlu0 %v3125, 32
          %v3217 = vpop.permute.xlu0 %3216
          %3218 = vrot.lane.b32.xlu0 %v3126, 32
          %v3219 = vpop.permute.xlu0 %3218
          %3220 = vrot.lane.b32.xlu0 %v3127, 32
          %v3221 = vpop.permute.xlu0 %3220
          %3222 = vrot.lane.b32.xlu0 %v3128, 32
          %v3223 = vpop.permute.xlu0 %3222
          %3224 = vrot.lane.b32.xlu0 %v3129, 32
          %v3225 = vpop.permute.xlu0 %3224
          %v3258 = vadd.f32 %v2938, %v3163
          %v3259 = vadd.f32 %v2939, %v3165
          %v3260 = vadd.f32 %v2940, %v3167
          %v3261 = vadd.f32 %v2941, %v3169
          %v3262 = vadd.f32 %v2942, %v3171
          %v3263 = vadd.f32 %v2943, %v3173
          %v3264 = vadd.f32 %v2944, %v3175
          %v3265 = vadd.f32 %v2945, %v3177
          %v3266 = vadd.f32 %v2946, %v3179
          %v3267 = vadd.f32 %v2947, %v3181
          %v3268 = vadd.f32 %v2948, %v3183
          %v3269 = vadd.f32 %v2949, %v3185
          %v3270 = vadd.f32 %v2950, %v3187
          %v3271 = vadd.f32 %v2951, %v3189
          %v3272 = vadd.f32 %v2952, %v3191
          %v3273 = vadd.f32 %v2953, %v3193
          %v3274 = vadd.f32 %v2954, %v3195
          %v3275 = vadd.f32 %v2955, %v3197
          %v3276 = vadd.f32 %v2956, %v3199
          %v3277 = vadd.f32 %v2957, %v3201
          %v3278 = vadd.f32 %v2958, %v3203
          %v3279 = vadd.f32 %v2959, %v3205
          %v3280 = vadd.f32 %v2960, %v3207
          %v3281 = vadd.f32 %v2961, %v3209
          %v3282 = vadd.f32 %v2962, %v3211
          %v3283 = vadd.f32 %v2963, %v3213
          %v3284 = vadd.f32 %v2964, %v3215
          %v3285 = vadd.f32 %v2965, %v3217
          %v3286 = vadd.f32 %v2966, %v3219
          %v3287 = vadd.f32 %v2967, %v3221
          %v3288 = vadd.f32 %v2968, %v3223
          %v3289 = vadd.f32 %v2969, %v3225
          %v3290 = vtanh.pop %v3258
          %v3291 = vtanh.pop %v3259
          %v3292 = vtanh.pop %v3260
          %v3293 = vtanh.pop %v3261
          %v3294 = vtanh.pop %v3262
          %v3295 = vtanh.pop %v3263
          %v3296 = vtanh.pop %v3264
          %v3297 = vtanh.pop %v3265
          %v3298 = vtanh.pop %v3266
          %v3299 = vtanh.pop %v3267
          %v3300 = vtanh.pop %v3268
          %v3301 = vtanh.pop %v3269
          %v3302 = vtanh.pop %v3270
          %v3303 = vtanh.pop %v3271
          %v3304 = vtanh.pop %v3272
          %v3305 = vtanh.pop %v3273
          %v3306 = vtanh.pop %v3274
          %v3307 = vtanh.pop %v3275
          %v3308 = vtanh.pop %v3276
          %v3309 = vtanh.pop %v3277
          %v3310 = vtanh.pop %v3278
          %v3311 = vtanh.pop %v3279
          %v3312 = vtanh.pop %v3280
          %v3313 = vtanh.pop %v3281
          %v3314 = vtanh.pop %v3282
          %v3315 = vtanh.pop %v3283
          %v3316 = vtanh.pop %v3284
          %v3317 = vtanh.pop %v3285
          %v3318 = vtanh.pop %v3286
          %v3319 = vtanh.pop %v3287
          %v3320 = vtanh.pop %v3288
          %v3321 = vtanh.pop %v3289
          %3354 = vrot.lane.b32.xlu0 %v3290, 32
          %v3355 = vpop.permute.xlu0 %3354
          %3356 = vrot.lane.b32.xlu0 %v3291, 32
          %v3357 = vpop.permute.xlu0 %3356
          %3358 = vrot.lane.b32.xlu0 %v3292, 32
          %v3359 = vpop.permute.xlu0 %3358
          %3360 = vrot.lane.b32.xlu0 %v3293, 32
          %v3361 = vpop.permute.xlu0 %3360
          %3362 = vrot.lane.b32.xlu0 %v3294, 32
          %v3363 = vpop.permute.xlu0 %3362
          %3364 = vrot.lane.b32.xlu0 %v3295, 32
          %v3365 = vpop.permute.xlu0 %3364
          %3366 = vrot.lane.b32.xlu0 %v3296, 32
          %v3367 = vpop.permute.xlu0 %3366
          %3368 = vrot.lane.b32.xlu0 %v3297, 32
          %v3369 = vpop.permute.xlu0 %3368
          %3370 = vrot.lane.b32.xlu0 %v3298, 32
          %v3371 = vpop.permute.xlu0 %3370
          %3372 = vrot.lane.b32.xlu0 %v3299, 32
          %v3373 = vpop.permute.xlu0 %3372
          %3374 = vrot.lane.b32.xlu0 %v3300, 32
          %v3375 = vpop.permute.xlu0 %3374
          %3376 = vrot.lane.b32.xlu0 %v3301, 32
          %v3377 = vpop.permute.xlu0 %3376
          %3378 = vrot.lane.b32.xlu0 %v3302, 32
          %v3379 = vpop.permute.xlu0 %3378
          %3380 = vrot.lane.b32.xlu0 %v3303, 32
          %v3381 = vpop.permute.xlu0 %3380
          %3382 = vrot.lane.b32.xlu0 %v3304, 32
          %v3383 = vpop.permute.xlu0 %3382
          %3384 = vrot.lane.b32.xlu0 %v3305, 32
          %v3385 = vpop.permute.xlu0 %3384
          %3386 = vrot.lane.b32.xlu0 %v3306, 32
          %v3387 = vpop.permute.xlu0 %3386
          %3388 = vrot.lane.b32.xlu0 %v3307, 32
          %v3389 = vpop.permute.xlu0 %3388
          %3390 = vrot.lane.b32.xlu0 %v3308, 32
          %v3391 = vpop.permute.xlu0 %3390
          %3392 = vrot.lane.b32.xlu0 %v3309, 32
          %v3393 = vpop.permute.xlu0 %3392
          %3394 = vrot.lane.b32.xlu0 %v3310, 32
          %v3395 = vpop.permute.xlu0 %3394
          %3396 = vrot.lane.b32.xlu0 %v3311, 32
          %v3397 = vpop.permute.xlu0 %3396
          %3398 = vrot.lane.b32.xlu0 %v3312, 32
          %v3399 = vpop.permute.xlu0 %3398
          %3400 = vrot.lane.b32.xlu0 %v3313, 32
          %v3401 = vpop.permute.xlu0 %3400
          %3402 = vrot.lane.b32.xlu0 %v3314, 32
          %v3403 = vpop.permute.xlu0 %3402
          %3404 = vrot.lane.b32.xlu0 %v3315, 32
          %v3405 = vpop.permute.xlu0 %3404
          %3406 = vrot.lane.b32.xlu0 %v3316, 32
          %v3407 = vpop.permute.xlu0 %3406
          %3408 = vrot.lane.b32.xlu0 %v3317, 32
          %v3409 = vpop.permute.xlu0 %3408
          %3410 = vrot.lane.b32.xlu0 %v3318, 32
          %v3411 = vpop.permute.xlu0 %3410
          %3412 = vrot.lane.b32.xlu0 %v3319, 32
          %v3413 = vpop.permute.xlu0 %3412
          %3414 = vrot.lane.b32.xlu0 %v3320, 32
          %v3415 = vpop.permute.xlu0 %3414
          %3416 = vrot.lane.b32.xlu0 %v3321, 32
          %v3417 = vpop.permute.xlu0 %3416
          %v3450 = vmul.f32 %v2651, %v3355
          %v3451 = vmul.f32 %v2653, %v3357
          %v3452 = vmul.f32 %v2655, %v3359
          %v3453 = vmul.f32 %v2657, %v3361
          %v3454 = vmul.f32 %v2659, %v3363
          %v3455 = vmul.f32 %v2661, %v3365
          %v3456 = vmul.f32 %v2663, %v3367
          %v3457 = vmul.f32 %v2665, %v3369
          %v3458 = vmul.f32 %v2667, %v3371
          %v3459 = vmul.f32 %v2669, %v3373
          %v3460 = vmul.f32 %v2671, %v3375
          %v3461 = vmul.f32 %v2673, %v3377
          %v3462 = vmul.f32 %v2675, %v3379
          %v3463 = vmul.f32 %v2677, %v3381
          %v3464 = vmul.f32 %v2679, %v3383
          %v3465 = vmul.f32 %v2681, %v3385
          %v3466 = vmul.f32 %v2683, %v3387
          %v3467 = vmul.f32 %v2685, %v3389
          %v3468 = vmul.f32 %v2687, %v3391
          %v3469 = vmul.f32 %v2689, %v3393
          %v3470 = vmul.f32 %v2691, %v3395
          %v3471 = vmul.f32 %v2693, %v3397
          %v3472 = vmul.f32 %v2695, %v3399
          %v3473 = vmul.f32 %v2697, %v3401
          %v3474 = vmul.f32 %v2699, %v3403
          %v3475 = vmul.f32 %v2701, %v3405
          %v3476 = vmul.f32 %v2703, %v3407
          %v3477 = vmul.f32 %v2705, %v3409
          %v3478 = vmul.f32 %v2707, %v3411
          %v3479 = vmul.f32 %v2709, %v3413
          %v3480 = vmul.f32 %v2711, %v3415
          %v3481 = vmul.f32 %v2713, %v3417
          %3514 = vrot.lane.b32.xlu0 %v3258, 96
          %v3515 = vpop.permute.xlu0 %3514
          %3516 = vrot.lane.b32.xlu0 %v3259, 96
          %v3517 = vpop.permute.xlu0 %3516
          %3518 = vrot.lane.b32.xlu0 %v3260, 96
          %v3519 = vpop.permute.xlu0 %3518
          %3520 = vrot.lane.b32.xlu0 %v3261, 96
          %v3521 = vpop.permute.xlu0 %3520
          %3522 = vrot.lane.b32.xlu0 %v3262, 96
          %v3523 = vpop.permute.xlu0 %3522
          %3524 = vrot.lane.b32.xlu0 %v3263, 96
          %v3525 = vpop.permute.xlu0 %3524
          %3526 = vrot.lane.b32.xlu0 %v3264, 96
          %v3527 = vpop.permute.xlu0 %3526
          %3528 = vrot.lane.b32.xlu0 %v3265, 96
          %v3529 = vpop.permute.xlu0 %3528
          %3530 = vrot.lane.b32.xlu0 %v3266, 96
          %v3531 = vpop.permute.xlu0 %3530
          %3532 = vrot.lane.b32.xlu0 %v3267, 96
          %v3533 = vpop.permute.xlu0 %3532
          %3534 = vrot.lane.b32.xlu0 %v3268, 96
          %v3535 = vpop.permute.xlu0 %3534
          %3536 = vrot.lane.b32.xlu0 %v3269, 96
          %v3537 = vpop.permute.xlu0 %3536
          %3538 = vrot.lane.b32.xlu0 %v3270, 96
          %v3539 = vpop.permute.xlu0 %3538
          %3540 = vrot.lane.b32.xlu0 %v3271, 96
          %v3541 = vpop.permute.xlu0 %3540
          %3542 = vrot.lane.b32.xlu0 %v3272, 96
          %v3543 = vpop.permute.xlu0 %3542
          %3544 = vrot.lane.b32.xlu0 %v3273, 96
          %v3545 = vpop.permute.xlu0 %3544
          %3546 = vrot.lane.b32.xlu0 %v3274, 96
          %v3547 = vpop.permute.xlu0 %3546
          %3548 = vrot.lane.b32.xlu0 %v3275, 96
          %v3549 = vpop.permute.xlu0 %3548
          %3550 = vrot.lane.b32.xlu0 %v3276, 96
          %v3551 = vpop.permute.xlu0 %3550
          %3552 = vrot.lane.b32.xlu0 %v3277, 96
          %v3553 = vpop.permute.xlu0 %3552
          %3554 = vrot.lane.b32.xlu0 %v3278, 96
          %v3555 = vpop.permute.xlu0 %3554
          %3556 = vrot.lane.b32.xlu0 %v3279, 96
          %v3557 = vpop.permute.xlu0 %3556
          %3558 = vrot.lane.b32.xlu0 %v3280, 96
          %v3559 = vpop.permute.xlu0 %3558
          %3560 = vrot.lane.b32.xlu0 %v3281, 96
          %v3561 = vpop.permute.xlu0 %3560
          %3562 = vrot.lane.b32.xlu0 %v3282, 96
          %v3563 = vpop.permute.xlu0 %3562
          %3564 = vrot.lane.b32.xlu0 %v3283, 96
          %v3565 = vpop.permute.xlu0 %3564
          %3566 = vrot.lane.b32.xlu0 %v3284, 96
          %v3567 = vpop.permute.xlu0 %3566
          %3568 = vrot.lane.b32.xlu0 %v3285, 96
          %v3569 = vpop.permute.xlu0 %3568
          %3570 = vrot.lane.b32.xlu0 %v3286, 96
          %v3571 = vpop.permute.xlu0 %3570
          %3572 = vrot.lane.b32.xlu0 %v3287, 96
          %v3573 = vpop.permute.xlu0 %3572
          %3574 = vrot.lane.b32.xlu0 %v3288, 96
          %v3575 = vpop.permute.xlu0 %3574
          %3576 = vrot.lane.b32.xlu0 %v3289, 96
          %v3577 = vpop.permute.xlu0 %3576
          %3610 = vst.msk [vmem:[#allocation3] sm:$0xff] %vm266, %v3515
          %3611 = vst.msk [vmem:[#allocation3 + $0x8] sm:$0xff] %vm266, %v3517
          %3612 = vst.msk [vmem:[#allocation3 + $0x10] sm:$0xff] %vm266, %v3519
          %3613 = vst.msk [vmem:[#allocation3 + $0x18] sm:$0xff] %vm266, %v3521
          %3614 = vst.msk [vmem:[#allocation3 + $0x20] sm:$0xff] %vm266, %v3523
          %3615 = vst.msk [vmem:[#allocation3 + $0x28] sm:$0xff] %vm266, %v3525
          %3616 = vst.msk [vmem:[#allocation3 + $0x30] sm:$0xff] %vm266, %v3527
          %3617 = vst.msk [vmem:[#allocation3 + $0x38] sm:$0xff] %vm266, %v3529
          %3618 = vst.msk [vmem:[#allocation3 + $0x40] sm:$0xff] %vm266, %v3531
          %3619 = vst.msk [vmem:[#allocation3 + $0x48] sm:$0xff] %vm266, %v3533
          %3620 = vst.msk [vmem:[#allocation3 + $0x50] sm:$0xff] %vm266, %v3535
          %3621 = vst.msk [vmem:[#allocation3 + $0x58] sm:$0xff] %vm266, %v3537
          %3622 = vst.msk [vmem:[#allocation3 + $0x60] sm:$0xff] %vm266, %v3539
          %3623 = vst.msk [vmem:[#allocation3 + $0x68] sm:$0xff] %vm266, %v3541
          %3624 = vst.msk [vmem:[#allocation3 + $0x70] sm:$0xff] %vm266, %v3543
          %3625 = vst.msk [vmem:[#allocation3 + $0x78] sm:$0xff] %vm266, %v3545
          %3626 = vst.msk [vmem:[#allocation3 + $0x80] sm:$0xff] %vm266, %v3547
          %3627 = vst.msk [vmem:[#allocation3 + $0x88] sm:$0xff] %vm266, %v3549
          %3628 = vst.msk [vmem:[#allocation3 + $0x90] sm:$0xff] %vm266, %v3551
          %3629 = vst.msk [vmem:[#allocation3 + $0x98] sm:$0xff] %vm266, %v3553
          %3630 = vst.msk [vmem:[#allocation3 + $0xa0] sm:$0xff] %vm266, %v3555
          %3631 = vst.msk [vmem:[#allocation3 + $0xa8] sm:$0xff] %vm266, %v3557
          %3632 = vst.msk [vmem:[#allocation3 + $0xb0] sm:$0xff] %vm266, %v3559
          %3633 = vst.msk [vmem:[#allocation3 + $0xb8] sm:$0xff] %vm266, %v3561
          %3634 = vst.msk [vmem:[#allocation3 + $0xc0] sm:$0xff] %vm266, %v3563
          %3635 = vst.msk [vmem:[#allocation3 + $0xc8] sm:$0xff] %vm266, %v3565
          %3636 = vst.msk [vmem:[#allocation3 + $0xd0] sm:$0xff] %vm266, %v3567
          %3637 = vst.msk [vmem:[#allocation3 + $0xd8] sm:$0xff] %vm266, %v3569
          %3638 = vst.msk [vmem:[#allocation3 + $0xe0] sm:$0xff] %vm266, %v3571
          %3639 = vst.msk [vmem:[#allocation3 + $0xe8] sm:$0xff] %vm266, %v3573
          %3640 = vst.msk [vmem:[#allocation3 + $0xf0] sm:$0xff] %vm266, %v3575
          %3641 = vst.msk [vmem:[#allocation3 + $0xf8] sm:$0xff] %vm266, %v3577
          %v3642 = vpack.c.bf16 %v3451, %v3450
          %v3643 = vpack.c.bf16 %v3453, %v3452
          %v3644 = vpack.c.bf16 %v3455, %v3454
          %v3645 = vpack.c.bf16 %v3457, %v3456
          %v3646 = vpack.c.bf16 %v3459, %v3458
          %v3647 = vpack.c.bf16 %v3461, %v3460
          %v3648 = vpack.c.bf16 %v3463, %v3462
          %v3649 = vpack.c.bf16 %v3465, %v3464
          %v3650 = vpack.c.bf16 %v3467, %v3466
          %v3651 = vpack.c.bf16 %v3469, %v3468
          %v3652 = vpack.c.bf16 %v3471, %v3470
          %v3653 = vpack.c.bf16 %v3473, %v3472
          %v3654 = vpack.c.bf16 %v3475, %v3474
          %v3655 = vpack.c.bf16 %v3477, %v3476
          %v3656 = vpack.c.bf16 %v3479, %v3478
          %v3657 = vpack.c.bf16 %v3481, %v3480
          %v3674 = vunpack.c.l.b16 %v3642
          %v3675 = vunpack.c.h.b16 %v3642
          %v3676 = vunpack.c.l.b16 %v3643
          %v3677 = vunpack.c.h.b16 %v3643
          %v3678 = vunpack.c.l.b16 %v3644
          %v3679 = vunpack.c.h.b16 %v3644
          %v3680 = vunpack.c.l.b16 %v3645
          %v3681 = vunpack.c.h.b16 %v3645
          %v3682 = vunpack.c.l.b16 %v3646
          %v3683 = vunpack.c.h.b16 %v3646
          %v3684 = vunpack.c.l.b16 %v3647
          %v3685 = vunpack.c.h.b16 %v3647
          %v3686 = vunpack.c.l.b16 %v3648
          %v3687 = vunpack.c.h.b16 %v3648
          %v3688 = vunpack.c.l.b16 %v3649
          %v3689 = vunpack.c.h.b16 %v3649
          %v3690 = vunpack.c.l.b16 %v3650
          %v3691 = vunpack.c.h.b16 %v3650
          %v3692 = vunpack.c.l.b16 %v3651
          %v3693 = vunpack.c.h.b16 %v3651
          %v3694 = vunpack.c.l.b16 %v3652
          %v3695 = vunpack.c.h.b16 %v3652
          %v3696 = vunpack.c.l.b16 %v3653
          %v3697 = vunpack.c.h.b16 %v3653
          %v3698 = vunpack.c.l.b16 %v3654
          %v3699 = vunpack.c.h.b16 %v3654
          %v3700 = vunpack.c.l.b16 %v3655
          %v3701 = vunpack.c.h.b16 %v3655
          %v3702 = vunpack.c.l.b16 %v3656
          %v3703 = vunpack.c.h.b16 %v3656
          %v3704 = vunpack.c.l.b16 %v3657
          %v3705 = vunpack.c.h.b16 %v3657
          %v3706 = vpack.c.b16 %v3674, %v3674
          %v3707 = vpack.c.b16 %v3675, %v3675
          %v3708 = vpack.c.b16 %v3676, %v3676
          %v3709 = vpack.c.b16 %v3677, %v3677
          %v3710 = vpack.c.b16 %v3678, %v3678
          %v3711 = vpack.c.b16 %v3679, %v3679
          %v3712 = vpack.c.b16 %v3680, %v3680
          %v3713 = vpack.c.b16 %v3681, %v3681
          %v3714 = vpack.c.b16 %v3682, %v3682
          %v3715 = vpack.c.b16 %v3683, %v3683
          %v3716 = vpack.c.b16 %v3684, %v3684
          %v3717 = vpack.c.b16 %v3685, %v3685
          %v3718 = vpack.c.b16 %v3686, %v3686
          %v3719 = vpack.c.b16 %v3687, %v3687
          %v3720 = vpack.c.b16 %v3688, %v3688
          %v3721 = vpack.c.b16 %v3689, %v3689
          %v3722 = vpack.c.b16 %v3690, %v3690
          %v3723 = vpack.c.b16 %v3691, %v3691
          %v3724 = vpack.c.b16 %v3692, %v3692
          %v3725 = vpack.c.b16 %v3693, %v3693
          %v3726 = vpack.c.b16 %v3694, %v3694
          %v3727 = vpack.c.b16 %v3695, %v3695
          %v3728 = vpack.c.b16 %v3696, %v3696
          %v3729 = vpack.c.b16 %v3697, %v3697
          %v3730 = vpack.c.b16 %v3698, %v3698
          %v3731 = vpack.c.b16 %v3699, %v3699
          %v3732 = vpack.c.b16 %v3700, %v3700
          %v3733 = vpack.c.b16 %v3701, %v3701
          %v3734 = vpack.c.b16 %v3702, %v3702
          %v3735 = vpack.c.b16 %v3703, %v3703
          %v3736 = vpack.c.b16 %v3704, %v3704
          %v3737 = vpack.c.b16 %v3705, %v3705
          %v3739 = vshrl.u32 %v3706, 16
          %v3741 = vrot.slane %v3739, 7
          %v3742 = vshll.u32 %v3706, 16
          %v3744 = vor.u32 %v3741, %v3742
          %v3745 = vrot.slane %v3741, 4
          %v3747 = vshrl.u32 %v3707, 16
          %v3749 = vrot.slane %v3747, 7
          %v3750 = vshll.u32 %v3707, 16
          %v3752 = vor.u32 %v3749, %v3750
          %v3753 = vsel %vm416, %v3745, %v3752
          %v3755 = vshrl.u32 %v3708, 16
          %v3757 = vrot.slane %v3755, 7
          %v3758 = vshll.u32 %v3708, 16
          %v3760 = vor.u32 %v3757, %v3758
          %v3761 = vrot.slane %v3757, 4
          %v3763 = vshrl.u32 %v3709, 16
          %v3765 = vrot.slane %v3763, 7
          %v3766 = vshll.u32 %v3709, 16
          %v3768 = vor.u32 %v3765, %v3766
          %v3769 = vsel %vm416, %v3761, %v3768
          %v3771 = vshrl.u32 %v3710, 16
          %v3773 = vrot.slane %v3771, 7
          %v3774 = vshll.u32 %v3710, 16
          %v3776 = vor.u32 %v3773, %v3774
          %v3777 = vrot.slane %v3773, 4
          %v3779 = vshrl.u32 %v3711, 16
          %v3781 = vrot.slane %v3779, 7
          %v3782 = vshll.u32 %v3711, 16
          %v3784 = vor.u32 %v3781, %v3782
          %v3785 = vsel %vm416, %v3777, %v3784
          %v3787 = vshrl.u32 %v3712, 16
          %v3789 = vrot.slane %v3787, 7
          %v3790 = vshll.u32 %v3712, 16
          %v3792 = vor.u32 %v3789, %v3790
          %v3793 = vrot.slane %v3789, 4
          %v3795 = vshrl.u32 %v3713, 16
          %v3797 = vrot.slane %v3795, 7
          %v3798 = vshll.u32 %v3713, 16
          %v3800 = vor.u32 %v3797, %v3798
          %v3801 = vsel %vm416, %v3793, %v3800
          %v3803 = vshrl.u32 %v3714, 16
          %v3805 = vrot.slane %v3803, 7
          %v3806 = vshll.u32 %v3714, 16
          %v3808 = vor.u32 %v3805, %v3806
          %v3809 = vrot.slane %v3805, 4
          %v3811 = vshrl.u32 %v3715, 16
          %v3813 = vrot.slane %v3811, 7
          %v3814 = vshll.u32 %v3715, 16
          %v3816 = vor.u32 %v3813, %v3814
          %v3817 = vsel %vm416, %v3809, %v3816
          %v3819 = vshrl.u32 %v3716, 16
          %v3821 = vrot.slane %v3819, 7
          %v3822 = vshll.u32 %v3716, 16
          %v3824 = vor.u32 %v3821, %v3822
          %v3825 = vrot.slane %v3821, 4
          %v3827 = vshrl.u32 %v3717, 16
          %v3829 = vrot.slane %v3827, 7
          %v3830 = vshll.u32 %v3717, 16
          %v3832 = vor.u32 %v3829, %v3830
          %v3833 = vsel %vm416, %v3825, %v3832
          %v3835 = vshrl.u32 %v3718, 16
          %v3837 = vrot.slane %v3835, 7
          %v3838 = vshll.u32 %v3718, 16
          %v3840 = vor.u32 %v3837, %v3838
          %v3841 = vrot.slane %v3837, 4
          %v3843 = vshrl.u32 %v3719, 16
          %v3845 = vrot.slane %v3843, 7
          %v3846 = vshll.u32 %v3719, 16
          %v3848 = vor.u32 %v3845, %v3846
          %v3849 = vsel %vm416, %v3841, %v3848
          %v3851 = vshrl.u32 %v3720, 16
          %v3853 = vrot.slane %v3851, 7
          %v3854 = vshll.u32 %v3720, 16
          %v3856 = vor.u32 %v3853, %v3854
          %v3857 = vrot.slane %v3853, 4
          %v3859 = vshrl.u32 %v3721, 16
          %v3861 = vrot.slane %v3859, 7
          %v3862 = vshll.u32 %v3721, 16
          %v3864 = vor.u32 %v3861, %v3862
          %v3865 = vsel %vm416, %v3857, %v3864
          %v3867 = vshrl.u32 %v3722, 16
          %v3869 = vrot.slane %v3867, 7
          %v3870 = vshll.u32 %v3722, 16
          %v3872 = vor.u32 %v3869, %v3870
          %v3873 = vrot.slane %v3869, 4
          %v3875 = vshrl.u32 %v3723, 16
          %v3877 = vrot.slane %v3875, 7
          %v3878 = vshll.u32 %v3723, 16
          %v3880 = vor.u32 %v3877, %v3878
          %v3881 = vsel %vm416, %v3873, %v3880
          %v3883 = vshrl.u32 %v3724, 16
          %v3885 = vrot.slane %v3883, 7
          %v3886 = vshll.u32 %v3724, 16
          %v3888 = vor.u32 %v3885, %v3886
          %v3889 = vrot.slane %v3885, 4
          %v3891 = vshrl.u32 %v3725, 16
          %v3893 = vrot.slane %v3891, 7
          %v3894 = vshll.u32 %v3725, 16
          %v3896 = vor.u32 %v3893, %v3894
          %v3897 = vsel %vm416, %v3889, %v3896
          %v3899 = vshrl.u32 %v3726, 16
          %v3901 = vrot.slane %v3899, 7
          %v3902 = vshll.u32 %v3726, 16
          %v3904 = vor.u32 %v3901, %v3902
          %v3905 = vrot.slane %v3901, 4
          %v3907 = vshrl.u32 %v3727, 16
          %v3909 = vrot.slane %v3907, 7
          %v3910 = vshll.u32 %v3727, 16
          %v3912 = vor.u32 %v3909, %v3910
          %v3913 = vsel %vm416, %v3905, %v3912
          %v3915 = vshrl.u32 %v3728, 16
          %v3917 = vrot.slane %v3915, 7
          %v3918 = vshll.u32 %v3728, 16
          %v3920 = vor.u32 %v3917, %v3918
          %v3921 = vrot.slane %v3917, 4
          %v3923 = vshrl.u32 %v3729, 16
          %v3925 = vrot.slane %v3923, 7
          %v3926 = vshll.u32 %v3729, 16
          %v3928 = vor.u32 %v3925, %v3926
          %v3929 = vsel %vm416, %v3921, %v3928
          %v3931 = vshrl.u32 %v3730, 16
          %v3933 = vrot.slane %v3931, 7
          %v3934 = vshll.u32 %v3730, 16
          %v3936 = vor.u32 %v3933, %v3934
          %v3937 = vrot.slane %v3933, 4
          %v3939 = vshrl.u32 %v3731, 16
          %v3941 = vrot.slane %v3939, 7
          %v3942 = vshll.u32 %v3731, 16
          %v3944 = vor.u32 %v3941, %v3942
          %v3945 = vsel %vm416, %v3937, %v3944
          %v3947 = vshrl.u32 %v3732, 16
          %v3949 = vrot.slane %v3947, 7
          %v3950 = vshll.u32 %v3732, 16
          %v3952 = vor.u32 %v3949, %v3950
          %v3953 = vrot.slane %v3949, 4
          %v3955 = vshrl.u32 %v3733, 16
          %v3957 = vrot.slane %v3955, 7
          %v3958 = vshll.u32 %v3733, 16
          %v3960 = vor.u32 %v3957, %v3958
          %v3961 = vsel %vm416, %v3953, %v3960
          %v3963 = vshrl.u32 %v3734, 16
          %v3965 = vrot.slane %v3963, 7
          %v3966 = vshll.u32 %v3734, 16
          %v3968 = vor.u32 %v3965, %v3966
          %v3969 = vrot.slane %v3965, 4
          %v3971 = vshrl.u32 %v3735, 16
          %v3973 = vrot.slane %v3971, 7
          %v3974 = vshll.u32 %v3735, 16
          %v3976 = vor.u32 %v3973, %v3974
          %v3977 = vsel %vm416, %v3969, %v3976
          %v3979 = vshrl.u32 %v3736, 16
          %v3981 = vrot.slane %v3979, 7
          %v3982 = vshll.u32 %v3736, 16
          %v3984 = vor.u32 %v3981, %v3982
          %v3985 = vrot.slane %v3981, 4
          %v3987 = vshrl.u32 %v3737, 16
          %v3989 = vrot.slane %v3987, 7
          %v3990 = vshll.u32 %v3737, 16
          %v3992 = vor.u32 %v3989, %v3990
          %v3993 = vsel %vm416, %v3985, %v3992
          %3994 = vrot.lane.b32.xlu0 %v3744, 68
          %v3995 = vpop.permute.xlu0 %3994
          %3996 = vrot.lane.b32.xlu0 %v3753, 68
          %v3997 = vpop.permute.xlu0 %3996
          %3998 = vrot.lane.b32.xlu0 %v3760, 68
          %v3999 = vpop.permute.xlu0 %3998
          %4000 = vrot.lane.b32.xlu0 %v3769, 68
          %v4001 = vpop.permute.xlu0 %4000
          %4002 = vrot.lane.b32.xlu0 %v3776, 68
          %v4003 = vpop.permute.xlu0 %4002
          %4004 = vrot.lane.b32.xlu0 %v3785, 68
          %v4005 = vpop.permute.xlu0 %4004
          %4006 = vrot.lane.b32.xlu0 %v3792, 68
          %v4007 = vpop.permute.xlu0 %4006
          %4008 = vrot.lane.b32.xlu0 %v3801, 68
          %v4009 = vpop.permute.xlu0 %4008
          %4010 = vrot.lane.b32.xlu0 %v3808, 68
          %v4011 = vpop.permute.xlu0 %4010
          %4012 = vrot.lane.b32.xlu0 %v3817, 68
          %v4013 = vpop.permute.xlu0 %4012
          %4014 = vrot.lane.b32.xlu0 %v3824, 68
          %v4015 = vpop.permute.xlu0 %4014
          %4016 = vrot.lane.b32.xlu0 %v3833, 68
          %v4017 = vpop.permute.xlu0 %4016
          %4018 = vrot.lane.b32.xlu0 %v3840, 68
          %v4019 = vpop.permute.xlu0 %4018
          %4020 = vrot.lane.b32.xlu0 %v3849, 68
          %v4021 = vpop.permute.xlu0 %4020
          %4022 = vrot.lane.b32.xlu0 %v3856, 68
          %v4023 = vpop.permute.xlu0 %4022
          %4024 = vrot.lane.b32.xlu0 %v3865, 68
          %v4025 = vpop.permute.xlu0 %4024
          %4026 = vrot.lane.b32.xlu0 %v3872, 68
          %v4027 = vpop.permute.xlu0 %4026
          %4028 = vrot.lane.b32.xlu0 %v3881, 68
          %v4029 = vpop.permute.xlu0 %4028
          %4030 = vrot.lane.b32.xlu0 %v3888, 68
          %v4031 = vpop.permute.xlu0 %4030
          %4032 = vrot.lane.b32.xlu0 %v3897, 68
          %v4033 = vpop.permute.xlu0 %4032
          %4034 = vrot.lane.b32.xlu0 %v3904, 68
          %v4035 = vpop.permute.xlu0 %4034
          %4036 = vrot.lane.b32.xlu0 %v3913, 68
          %v4037 = vpop.permute.xlu0 %4036
          %4038 = vrot.lane.b32.xlu0 %v3920, 68
          %v4039 = vpop.permute.xlu0 %4038
          %4040 = vrot.lane.b32.xlu0 %v3929, 68
          %v4041 = vpop.permute.xlu0 %4040
          %4042 = vrot.lane.b32.xlu0 %v3936, 68
          %v4043 = vpop.permute.xlu0 %4042
          %4044 = vrot.lane.b32.xlu0 %v3945, 68
          %v4045 = vpop.permute.xlu0 %4044
          %4046 = vrot.lane.b32.xlu0 %v3952, 68
          %v4047 = vpop.permute.xlu0 %4046
          %4048 = vrot.lane.b32.xlu0 %v3961, 68
          %v4049 = vpop.permute.xlu0 %4048
          %4050 = vrot.lane.b32.xlu0 %v3968, 68
          %v4051 = vpop.permute.xlu0 %4050
          %4052 = vrot.lane.b32.xlu0 %v3977, 68
          %v4053 = vpop.permute.xlu0 %4052
          %4054 = vrot.lane.b32.xlu0 %v3984, 68
          %v4055 = vpop.permute.xlu0 %4054
          %4056 = vrot.lane.b32.xlu0 %v3993, 68
          %v4057 = vpop.permute.xlu0 %4056
          %vm4090 = vcmask 289824
          %vm4091 = vmand %vm4090, %vm707
          %v4092 = vld [vmem:[%s705] sm:$0xf]
          %v4093 = vsel %vm4091, %v3995, %v4092
          %4094 = vst [vmem:[%s705] sm:$0xf] %v4093
          %vm4095 = vcmask 289824
          %4096 = vst.msk [vmem:[%s705 + $0x4] sm:$0xf] %vm4095, %v3997
          %v4097 = vld [vmem:[%s705 + $0x8] sm:$0xf]
          %v4098 = vsel %vm4091, %v3999, %v4097
          %4099 = vst [vmem:[%s705 + $0x8] sm:$0xf] %v4098
          %4100 = vst.msk [vmem:[%s705 + $0xc] sm:$0xf] %vm4095, %v4001
          %v4101 = vld [vmem:[%s705 + $0x10] sm:$0xf]
          %v4102 = vsel %vm4091, %v4003, %v4101
          %4103 = vst [vmem:[%s705 + $0x10] sm:$0xf] %v4102
          %4104 = vst.msk [vmem:[%s705 + $0x14] sm:$0xf] %vm4095, %v4005
          %v4105 = vld [vmem:[%s705 + $0x18] sm:$0xf]
          %v4106 = vsel %vm4091, %v4007, %v4105
          %4107 = vst [vmem:[%s705 + $0x18] sm:$0xf] %v4106
          %4108 = vst.msk [vmem:[%s705 + $0x1c] sm:$0xf] %vm4095, %v4009
          %v4109 = vld [vmem:[%s705 + $0x20] sm:$0xf]
          %v4110 = vsel %vm4091, %v4011, %v4109
          %4111 = vst [vmem:[%s705 + $0x20] sm:$0xf] %v4110
          %4112 = vst.msk [vmem:[%s705 + $0x24] sm:$0xf] %vm4095, %v4013
          %v4113 = vld [vmem:[%s705 + $0x28] sm:$0xf]
          %v4114 = vsel %vm4091, %v4015, %v4113
          %4115 = vst [vmem:[%s705 + $0x28] sm:$0xf] %v4114
          %4116 = vst.msk [vmem:[%s705 + $0x2c] sm:$0xf] %vm4095, %v4017
          %v4117 = vld [vmem:[%s705 + $0x30] sm:$0xf]
          %v4118 = vsel %vm4091, %v4019, %v4117
          %4119 = vst [vmem:[%s705 + $0x30] sm:$0xf] %v4118
          %4120 = vst.msk [vmem:[%s705 + $0x34] sm:$0xf] %vm4095, %v4021
          %v4121 = vld [vmem:[%s705 + $0x38] sm:$0xf]
          %v4122 = vsel %vm4091, %v4023, %v4121
          %4123 = vst [vmem:[%s705 + $0x38] sm:$0xf] %v4122
          %4124 = vst.msk [vmem:[%s705 + $0x3c] sm:$0xf] %vm4095, %v4025
          %v4125 = vld [vmem:[%s705 + $0x40] sm:$0xf]
          %v4126 = vsel %vm4091, %v4027, %v4125
          %4127 = vst [vmem:[%s705 + $0x40] sm:$0xf] %v4126
          %4128 = vst.msk [vmem:[%s705 + $0x44] sm:$0xf] %vm4095, %v4029
          %v4129 = vld [vmem:[%s705 + $0x48] sm:$0xf]
          %v4130 = vsel %vm4091, %v4031, %v4129
          %4131 = vst [vmem:[%s705 + $0x48] sm:$0xf] %v4130
          %4132 = vst.msk [vmem:[%s705 + $0x4c] sm:$0xf] %vm4095, %v4033
          %v4133 = vld [vmem:[%s705 + $0x50] sm:$0xf]
          %v4134 = vsel %vm4091, %v4035, %v4133
          %4135 = vst [vmem:[%s705 + $0x50] sm:$0xf] %v4134
          %4136 = vst.msk [vmem:[%s705 + $0x54] sm:$0xf] %vm4095, %v4037
          %v4137 = vld [vmem:[%s705 + $0x58] sm:$0xf]
          %v4138 = vsel %vm4091, %v4039, %v4137
          %4139 = vst [vmem:[%s705 + $0x58] sm:$0xf] %v4138
          %4140 = vst.msk [vmem:[%s705 + $0x5c] sm:$0xf] %vm4095, %v4041
          %v4141 = vld [vmem:[%s705 + $0x60] sm:$0xf]
          %v4142 = vsel %vm4091, %v4043, %v4141
          %4143 = vst [vmem:[%s705 + $0x60] sm:$0xf] %v4142
          %4144 = vst.msk [vmem:[%s705 + $0x64] sm:$0xf] %vm4095, %v4045
          %v4145 = vld [vmem:[%s705 + $0x68] sm:$0xf]
          %v4146 = vsel %vm4091, %v4047, %v4145
          %4147 = vst [vmem:[%s705 + $0x68] sm:$0xf] %v4146
          %4148 = vst.msk [vmem:[%s705 + $0x6c] sm:$0xf] %vm4095, %v4049
          %v4149 = vld [vmem:[%s705 + $0x70] sm:$0xf]
          %v4150 = vsel %vm4091, %v4051, %v4149
          %4151 = vst [vmem:[%s705 + $0x70] sm:$0xf] %v4150
          %4152 = vst.msk [vmem:[%s705 + $0x74] sm:$0xf] %vm4095, %v4053
          %v4153 = vld [vmem:[%s705 + $0x78] sm:$0xf]
          %v4154 = vsel %vm4091, %v4055, %v4153
          %4155 = vst [vmem:[%s705 + $0x78] sm:$0xf] %v4154
          %4156 = vst.msk [vmem:[%s705 + $0x7c] sm:$0xf] %vm4095, %v4057
          %4157 = vrot.lane.b32.xlu0 %v3706, 104
          %v4158 = vpop.permute.xlu0 %4157
          %4159 = vrot.lane.b32.xlu0 %v3707, 104
          %v4160 = vpop.permute.xlu0 %4159
          %4161 = vrot.lane.b32.xlu0 %v3708, 104
          %v4162 = vpop.permute.xlu0 %4161
          %4163 = vrot.lane.b32.xlu0 %v3709, 104
          %v4164 = vpop.permute.xlu0 %4163
          %4165 = vrot.lane.b32.xlu0 %v3710, 104
          %v4166 = vpop.permute.xlu0 %4165
          %4167 = vrot.lane.b32.xlu0 %v3711, 104
          %v4168 = vpop.permute.xlu0 %4167
          %4169 = vrot.lane.b32.xlu0 %v3712, 104
          %v4170 = vpop.permute.xlu0 %4169
          %4171 = vrot.lane.b32.xlu0 %v3713, 104
          %v4172 = vpop.permute.xlu0 %4171
          %4173 = vrot.lane.b32.xlu0 %v3714, 104
          %v4174 = vpop.permute.xlu0 %4173
          %4175 = vrot.lane.b32.xlu0 %v3715, 104
          %v4176 = vpop.permute.xlu0 %4175
          %4177 = vrot.lane.b32.xlu0 %v3716, 104
          %v4178 = vpop.permute.xlu0 %4177
          %4179 = vrot.lane.b32.xlu0 %v3717, 104
          %v4180 = vpop.permute.xlu0 %4179
          %4181 = vrot.lane.b32.xlu0 %v3718, 104
          %v4182 = vpop.permute.xlu0 %4181
          %4183 = vrot.lane.b32.xlu0 %v3719, 104
          %v4184 = vpop.permute.xlu0 %4183
          %4185 = vrot.lane.b32.xlu0 %v3720, 104
          %v4186 = vpop.permute.xlu0 %4185
          %4187 = vrot.lane.b32.xlu0 %v3721, 104
          %v4188 = vpop.permute.xlu0 %4187
          %4189 = vrot.lane.b32.xlu0 %v3722, 104
          %v4190 = vpop.permute.xlu0 %4189
          %4191 = vrot.lane.b32.xlu0 %v3723, 104
          %v4192 = vpop.permute.xlu0 %4191
          %4193 = vrot.lane.b32.xlu0 %v3724, 104
          %v4194 = vpop.permute.xlu0 %4193
          %4195 = vrot.lane.b32.xlu0 %v3725, 104
          %v4196 = vpop.permute.xlu0 %4195
          %4197 = vrot.lane.b32.xlu0 %v3726, 104
          %v4198 = vpop.permute.xlu0 %4197
          %4199 = vrot.lane.b32.xlu0 %v3727, 104
          %v4200 = vpop.permute.xlu0 %4199
          %4201 = vrot.lane.b32.xlu0 %v3728, 104
          %v4202 = vpop.permute.xlu0 %4201
          %4203 = vrot.lane.b32.xlu0 %v3729, 104
          %v4204 = vpop.permute.xlu0 %4203
          %4205 = vrot.lane.b32.xlu0 %v3730, 104
          %v4206 = vpop.permute.xlu0 %4205
          %4207 = vrot.lane.b32.xlu0 %v3731, 104
          %v4208 = vpop.permute.xlu0 %4207
          %4209 = vrot.lane.b32.xlu0 %v3732, 104
          %v4210 = vpop.permute.xlu0 %4209
          %4211 = vrot.lane.b32.xlu0 %v3733, 104
          %v4212 = vpop.permute.xlu0 %4211
          %4213 = vrot.lane.b32.xlu0 %v3734, 104
          %v4214 = vpop.permute.xlu0 %4213
          %4215 = vrot.lane.b32.xlu0 %v3735, 104
          %v4216 = vpop.permute.xlu0 %4215
          %4217 = vrot.lane.b32.xlu0 %v3736, 104
          %v4218 = vpop.permute.xlu0 %4217
          %4219 = vrot.lane.b32.xlu0 %v3737, 104
          %v4220 = vpop.permute.xlu0 %4219
          %vm4253 = vcmask 585024
          %4254 = vst.msk [vmem:[%s705] sm:$0xf] %vm4253, %v4158
          %4255 = vst.msk [vmem:[%s705 + $0x4] sm:$0xf] %vm4253, %v4160
          %4256 = vst.msk [vmem:[%s705 + $0x8] sm:$0xf] %vm4253, %v4162
          %4257 = vst.msk [vmem:[%s705 + $0xc] sm:$0xf] %vm4253, %v4164
          %4258 = vst.msk [vmem:[%s705 + $0x10] sm:$0xf] %vm4253, %v4166
          %4259 = vst.msk [vmem:[%s705 + $0x14] sm:$0xf] %vm4253, %v4168
          %4260 = vst.msk [vmem:[%s705 + $0x18] sm:$0xf] %vm4253, %v4170
          %4261 = vst.msk [vmem:[%s705 + $0x1c] sm:$0xf] %vm4253, %v4172
          %4262 = vst.msk [vmem:[%s705 + $0x20] sm:$0xf] %vm4253, %v4174
          %4263 = vst.msk [vmem:[%s705 + $0x24] sm:$0xf] %vm4253, %v4176
          %4264 = vst.msk [vmem:[%s705 + $0x28] sm:$0xf] %vm4253, %v4178
          %4265 = vst.msk [vmem:[%s705 + $0x2c] sm:$0xf] %vm4253, %v4180
          %4266 = vst.msk [vmem:[%s705 + $0x30] sm:$0xf] %vm4253, %v4182
          %4267 = vst.msk [vmem:[%s705 + $0x34] sm:$0xf] %vm4253, %v4184
          %4268 = vst.msk [vmem:[%s705 + $0x38] sm:$0xf] %vm4253, %v4186
          %4269 = vst.msk [vmem:[%s705 + $0x3c] sm:$0xf] %vm4253, %v4188
          %4270 = vst.msk [vmem:[%s705 + $0x40] sm:$0xf] %vm4253, %v4190
          %4271 = vst.msk [vmem:[%s705 + $0x44] sm:$0xf] %vm4253, %v4192
          %4272 = vst.msk [vmem:[%s705 + $0x48] sm:$0xf] %vm4253, %v4194
          %4273 = vst.msk [vmem:[%s705 + $0x4c] sm:$0xf] %vm4253, %v4196
          %4274 = vst.msk [vmem:[%s705 + $0x50] sm:$0xf] %vm4253, %v4198
          %4275 = vst.msk [vmem:[%s705 + $0x54] sm:$0xf] %vm4253, %v4200
          %4276 = vst.msk [vmem:[%s705 + $0x58] sm:$0xf] %vm4253, %v4202
          %4277 = vst.msk [vmem:[%s705 + $0x5c] sm:$0xf] %vm4253, %v4204
          %4278 = vst.msk [vmem:[%s705 + $0x60] sm:$0xf] %vm4253, %v4206
          %4279 = vst.msk [vmem:[%s705 + $0x64] sm:$0xf] %vm4253, %v4208
          %4280 = vst.msk [vmem:[%s705 + $0x68] sm:$0xf] %vm4253, %v4210
          %4281 = vst.msk [vmem:[%s705 + $0x6c] sm:$0xf] %vm4253, %v4212
          %4282 = vst.msk [vmem:[%s705 + $0x70] sm:$0xf] %vm4253, %v4214
          %4283 = vst.msk [vmem:[%s705 + $0x74] sm:$0xf] %vm4253, %v4216
          %4284 = vst.msk [vmem:[%s705 + $0x78] sm:$0xf] %vm4253, %v4218
          %4285 = vst.msk [vmem:[%s705 + $0x7c] sm:$0xf] %vm4253, %v4220
          %v4286 = vrot.slane %v3739, 4
          %v4287 = vrot.slane %v3742, 5
          %v4288 = vor.u32 %v4286, %v4287
          %v4289 = vrot.slane %v4288, 4
          %v4290 = vrot.slane %v3750, 5
          %v4291 = vsel %vm937, %v4289, %v4290
          %v4292 = vrot.slane %v3747, 4
          %v4293 = vor.u32 %v4292, %v4290
          %v4294 = vrot.slane %v4293, 4
          %v4295 = vrot.slane %v3755, 4
          %v4296 = vrot.slane %v3758, 5
          %v4297 = vor.u32 %v4295, %v4296
          %v4298 = vrot.slane %v4297, 4
          %v4299 = vrot.slane %v3766, 5
          %v4300 = vsel %vm937, %v4298, %v4299
          %v4301 = vrot.slane %v3763, 4
          %v4302 = vor.u32 %v4301, %v4299
          %v4303 = vrot.slane %v4302, 4
          %v4304 = vrot.slane %v3771, 4
          %v4305 = vrot.slane %v3774, 5
          %v4306 = vor.u32 %v4304, %v4305
          %v4307 = vrot.slane %v4306, 4
          %v4308 = vrot.slane %v3782, 5
          %v4309 = vsel %vm937, %v4307, %v4308
          %v4310 = vrot.slane %v3779, 4
          %v4311 = vor.u32 %v4310, %v4308
          %v4312 = vrot.slane %v4311, 4
          %v4313 = vrot.slane %v3787, 4
          %v4314 = vrot.slane %v3790, 5
          %v4315 = vor.u32 %v4313, %v4314
          %v4316 = vrot.slane %v4315, 4
          %v4317 = vrot.slane %v3798, 5
          %v4318 = vsel %vm937, %v4316, %v4317
          %v4319 = vrot.slane %v3795, 4
          %v4320 = vor.u32 %v4319, %v4317
          %v4321 = vrot.slane %v4320, 4
          %v4322 = vrot.slane %v3803, 4
          %v4323 = vrot.slane %v3806, 5
          %v4324 = vor.u32 %v4322, %v4323
          %v4325 = vrot.slane %v4324, 4
          %v4326 = vrot.slane %v3814, 5
          %v4327 = vsel %vm937, %v4325, %v4326
          %v4328 = vrot.slane %v3811, 4
          %v4329 = vor.u32 %v4328, %v4326
          %v4330 = vrot.slane %v4329, 4
          %v4331 = vrot.slane %v3819, 4
          %v4332 = vrot.slane %v3822, 5
          %v4333 = vor.u32 %v4331, %v4332
          %v4334 = vrot.slane %v4333, 4
          %v4335 = vrot.slane %v3830, 5
          %v4336 = vsel %vm937, %v4334, %v4335
          %v4337 = vrot.slane %v3827, 4
          %v4338 = vor.u32 %v4337, %v4335
          %v4339 = vrot.slane %v4338, 4
          %v4340 = vrot.slane %v3835, 4
          %v4341 = vrot.slane %v3838, 5
          %v4342 = vor.u32 %v4340, %v4341
          %v4343 = vrot.slane %v4342, 4
          %v4344 = vrot.slane %v3846, 5
          %v4345 = vsel %vm937, %v4343, %v4344
          %v4346 = vrot.slane %v3843, 4
          %v4347 = vor.u32 %v4346, %v4344
          %v4348 = vrot.slane %v4347, 4
          %v4349 = vrot.slane %v3851, 4
          %v4350 = vrot.slane %v3854, 5
          %v4351 = vor.u32 %v4349, %v4350
          %v4352 = vrot.slane %v4351, 4
          %v4353 = vrot.slane %v3862, 5
          %v4354 = vsel %vm937, %v4352, %v4353
          %v4355 = vrot.slane %v3859, 4
          %v4356 = vor.u32 %v4355, %v4353
          %v4357 = vrot.slane %v4356, 4
          %v4358 = vrot.slane %v3867, 4
          %v4359 = vrot.slane %v3870, 5
          %v4360 = vor.u32 %v4358, %v4359
          %v4361 = vrot.slane %v4360, 4
          %v4362 = vrot.slane %v3878, 5
          %v4363 = vsel %vm937, %v4361, %v4362
          %v4364 = vrot.slane %v3875, 4
          %v4365 = vor.u32 %v4364, %v4362
          %v4366 = vrot.slane %v4365, 4
          %v4367 = vrot.slane %v3883, 4
          %v4368 = vrot.slane %v3886, 5
          %v4369 = vor.u32 %v4367, %v4368
          %v4370 = vrot.slane %v4369, 4
          %v4371 = vrot.slane %v3894, 5
          %v4372 = vsel %vm937, %v4370, %v4371
          %v4373 = vrot.slane %v3891, 4
          %v4374 = vor.u32 %v4373, %v4371
          %v4375 = vrot.slane %v4374, 4
          %v4376 = vrot.slane %v3899, 4
          %v4377 = vrot.slane %v3902, 5
          %v4378 = vor.u32 %v4376, %v4377
          %v4379 = vrot.slane %v4378, 4
          %v4380 = vrot.slane %v3910, 5
          %v4381 = vsel %vm937, %v4379, %v4380
          %v4382 = vrot.slane %v3907, 4
          %v4383 = vor.u32 %v4382, %v4380
          %v4384 = vrot.slane %v4383, 4
          %v4385 = vrot.slane %v3915, 4
          %v4386 = vrot.slane %v3918, 5
          %v4387 = vor.u32 %v4385, %v4386
          %v4388 = vrot.slane %v4387, 4
          %v4389 = vrot.slane %v3926, 5
          %v4390 = vsel %vm937, %v4388, %v4389
          %v4391 = vrot.slane %v3923, 4
          %v4392 = vor.u32 %v4391, %v4389
          %v4393 = vrot.slane %v4392, 4
          %v4394 = vrot.slane %v3931, 4
          %v4395 = vrot.slane %v3934, 5
          %v4396 = vor.u32 %v4394, %v4395
          %v4397 = vrot.slane %v4396, 4
          %v4398 = vrot.slane %v3942, 5
          %v4399 = vsel %vm937, %v4397, %v4398
          %v4400 = vrot.slane %v3939, 4
          %v4401 = vor.u32 %v4400, %v4398
          %v4402 = vrot.slane %v4401, 4
          %v4403 = vrot.slane %v3947, 4
          %v4404 = vrot.slane %v3950, 5
          %v4405 = vor.u32 %v4403, %v4404
          %v4406 = vrot.slane %v4405, 4
          %v4407 = vrot.slane %v3958, 5
          %v4408 = vsel %vm937, %v4406, %v4407
          %v4409 = vrot.slane %v3955, 4
          %v4410 = vor.u32 %v4409, %v4407
          %v4411 = vrot.slane %v4410, 4
          %v4412 = vrot.slane %v3963, 4
          %v4413 = vrot.slane %v3966, 5
          %v4414 = vor.u32 %v4412, %v4413
          %v4415 = vrot.slane %v4414, 4
          %v4416 = vrot.slane %v3974, 5
          %v4417 = vsel %vm937, %v4415, %v4416
          %v4418 = vrot.slane %v3971, 4
          %v4419 = vor.u32 %v4418, %v4416
          %v4420 = vrot.slane %v4419, 4
          %v4421 = vrot.slane %v3979, 4
          %v4422 = vrot.slane %v3982, 5
          %v4423 = vor.u32 %v4421, %v4422
          %v4424 = vrot.slane %v4423, 4
          %v4425 = vrot.slane %v3990, 5
          %v4426 = vsel %vm937, %v4424, %v4425
          %v4427 = vrot.slane %v3987, 4
          %v4428 = vor.u32 %v4427, %v4425
          %v4429 = vrot.slane %v4428, 4
          %4430 = vrot.lane.b32.xlu0 %v4291, 12
          %v4431 = vpop.permute.xlu0 %4430
          %4432 = vrot.lane.b32.xlu0 %v4294, 12
          %v4433 = vpop.permute.xlu0 %4432
          %4434 = vrot.lane.b32.xlu0 %v4300, 12
          %v4435 = vpop.permute.xlu0 %4434
          %4436 = vrot.lane.b32.xlu0 %v4303, 12
          %v4437 = vpop.permute.xlu0 %4436
          %4438 = vrot.lane.b32.xlu0 %v4309, 12
          %v4439 = vpop.permute.xlu0 %4438
          %4440 = vrot.lane.b32.xlu0 %v4312, 12
          %v4441 = vpop.permute.xlu0 %4440
          %4442 = vrot.lane.b32.xlu0 %v4318, 12
          %v4443 = vpop.permute.xlu0 %4442
          %4444 = vrot.lane.b32.xlu0 %v4321, 12
          %v4445 = vpop.permute.xlu0 %4444
          %4446 = vrot.lane.b32.xlu0 %v4327, 12
          %v4447 = vpop.permute.xlu0 %4446
          %4448 = vrot.lane.b32.xlu0 %v4330, 12
          %v4449 = vpop.permute.xlu0 %4448
          %4450 = vrot.lane.b32.xlu0 %v4336, 12
          %v4451 = vpop.permute.xlu0 %4450
          %4452 = vrot.lane.b32.xlu0 %v4339, 12
          %v4453 = vpop.permute.xlu0 %4452
          %4454 = vrot.lane.b32.xlu0 %v4345, 12
          %v4455 = vpop.permute.xlu0 %4454
          %4456 = vrot.lane.b32.xlu0 %v4348, 12
          %v4457 = vpop.permute.xlu0 %4456
          %4458 = vrot.lane.b32.xlu0 %v4354, 12
          %v4459 = vpop.permute.xlu0 %4458
          %4460 = vrot.lane.b32.xlu0 %v4357, 12
          %v4461 = vpop.permute.xlu0 %4460
          %4462 = vrot.lane.b32.xlu0 %v4363, 12
          %v4463 = vpop.permute.xlu0 %4462
          %4464 = vrot.lane.b32.xlu0 %v4366, 12
          %v4465 = vpop.permute.xlu0 %4464
          %4466 = vrot.lane.b32.xlu0 %v4372, 12
          %v4467 = vpop.permute.xlu0 %4466
          %4468 = vrot.lane.b32.xlu0 %v4375, 12
          %v4469 = vpop.permute.xlu0 %4468
          %4470 = vrot.lane.b32.xlu0 %v4381, 12
          %v4471 = vpop.permute.xlu0 %4470
          %4472 = vrot.lane.b32.xlu0 %v4384, 12
          %v4473 = vpop.permute.xlu0 %4472
          %4474 = vrot.lane.b32.xlu0 %v4390, 12
          %v4475 = vpop.permute.xlu0 %4474
          %4476 = vrot.lane.b32.xlu0 %v4393, 12
          %v4477 = vpop.permute.xlu0 %4476
          %4478 = vrot.lane.b32.xlu0 %v4399, 12
          %v4479 = vpop.permute.xlu0 %4478
          %4480 = vrot.lane.b32.xlu0 %v4402, 12
          %v4481 = vpop.permute.xlu0 %4480
          %4482 = vrot.lane.b32.xlu0 %v4408, 12
          %v4483 = vpop.permute.xlu0 %4482
          %4484 = vrot.lane.b32.xlu0 %v4411, 12
          %v4485 = vpop.permute.xlu0 %4484
          %4486 = vrot.lane.b32.xlu0 %v4417, 12
          %v4487 = vpop.permute.xlu0 %4486
          %4488 = vrot.lane.b32.xlu0 %v4420, 12
          %v4489 = vpop.permute.xlu0 %4488
          %4490 = vrot.lane.b32.xlu0 %v4426, 12
          %v4491 = vpop.permute.xlu0 %4490
          %4492 = vrot.lane.b32.xlu0 %v4429, 12
          %v4493 = vpop.permute.xlu0 %4492
          %vm4526 = vcmask 880224
          %4527 = vst.msk [vmem:[%s705] sm:$0xf] %vm4526, %v4431
          %vm4528 = vcmask 880224
          %vm4529 = vmand %vm4528, %vm935
          %v4530 = vld [vmem:[%s705 + $0x4] sm:$0xf]
          %v4531 = vsel %vm4529, %v4433, %v4530
          %4532 = vst [vmem:[%s705 + $0x4] sm:$0xf] %v4531
          %4533 = vst.msk [vmem:[%s705 + $0x8] sm:$0xf] %vm4526, %v4435
          %v4534 = vld [vmem:[%s705 + $0xc] sm:$0xf]
          %v4535 = vsel %vm4529, %v4437, %v4534
          %4536 = vst [vmem:[%s705 + $0xc] sm:$0xf] %v4535
          %4537 = vst.msk [vmem:[%s705 + $0x10] sm:$0xf] %vm4526, %v4439
          %v4538 = vld [vmem:[%s705 + $0x14] sm:$0xf]
          %v4539 = vsel %vm4529, %v4441, %v4538
          %4540 = vst [vmem:[%s705 + $0x14] sm:$0xf] %v4539
          %4541 = vst.msk [vmem:[%s705 + $0x18] sm:$0xf] %vm4526, %v4443
          %v4542 = vld [vmem:[%s705 + $0x1c] sm:$0xf]
          %v4543 = vsel %vm4529, %v4445, %v4542
          %4544 = vst [vmem:[%s705 + $0x1c] sm:$0xf] %v4543
          %4545 = vst.msk [vmem:[%s705 + $0x20] sm:$0xf] %vm4526, %v4447
          %v4546 = vld [vmem:[%s705 + $0x24] sm:$0xf]
          %v4547 = vsel %vm4529, %v4449, %v4546
          %4548 = vst [vmem:[%s705 + $0x24] sm:$0xf] %v4547
          %4549 = vst.msk [vmem:[%s705 + $0x28] sm:$0xf] %vm4526, %v4451
          %v4550 = vld [vmem:[%s705 + $0x2c] sm:$0xf]
          %v4551 = vsel %vm4529, %v4453, %v4550
          %4552 = vst [vmem:[%s705 + $0x2c] sm:$0xf] %v4551
          %4553 = vst.msk [vmem:[%s705 + $0x30] sm:$0xf] %vm4526, %v4455
          %v4554 = vld [vmem:[%s705 + $0x34] sm:$0xf]
          %v4555 = vsel %vm4529, %v4457, %v4554
          %4556 = vst [vmem:[%s705 + $0x34] sm:$0xf] %v4555
          %4557 = vst.msk [vmem:[%s705 + $0x38] sm:$0xf] %vm4526, %v4459
          %v4558 = vld [vmem:[%s705 + $0x3c] sm:$0xf]
          %v4559 = vsel %vm4529, %v4461, %v4558
          %4560 = vst [vmem:[%s705 + $0x3c] sm:$0xf] %v4559
          %4561 = vst.msk [vmem:[%s705 + $0x40] sm:$0xf] %vm4526, %v4463
          %v4562 = vld [vmem:[%s705 + $0x44] sm:$0xf]
          %v4563 = vsel %vm4529, %v4465, %v4562
          %4564 = vst [vmem:[%s705 + $0x44] sm:$0xf] %v4563
          %4565 = vst.msk [vmem:[%s705 + $0x48] sm:$0xf] %vm4526, %v4467
          %v4566 = vld [vmem:[%s705 + $0x4c] sm:$0xf]
          %v4567 = vsel %vm4529, %v4469, %v4566
          %4568 = vst [vmem:[%s705 + $0x4c] sm:$0xf] %v4567
          %4569 = vst.msk [vmem:[%s705 + $0x50] sm:$0xf] %vm4526, %v4471
          %v4570 = vld [vmem:[%s705 + $0x54] sm:$0xf]
          %v4571 = vsel %vm4529, %v4473, %v4570
          %4572 = vst [vmem:[%s705 + $0x54] sm:$0xf] %v4571
          %4573 = vst.msk [vmem:[%s705 + $0x58] sm:$0xf] %vm4526, %v4475
          %v4574 = vld [vmem:[%s705 + $0x5c] sm:$0xf]
          %v4575 = vsel %vm4529, %v4477, %v4574
          %4576 = vst [vmem:[%s705 + $0x5c] sm:$0xf] %v4575
          %4577 = vst.msk [vmem:[%s705 + $0x60] sm:$0xf] %vm4526, %v4479
          %v4578 = vld [vmem:[%s705 + $0x64] sm:$0xf]
          %v4579 = vsel %vm4529, %v4481, %v4578
          %4580 = vst [vmem:[%s705 + $0x64] sm:$0xf] %v4579
          %4581 = vst.msk [vmem:[%s705 + $0x68] sm:$0xf] %vm4526, %v4483
          %v4582 = vld [vmem:[%s705 + $0x6c] sm:$0xf]
          %v4583 = vsel %vm4529, %v4485, %v4582
          %4584 = vst [vmem:[%s705 + $0x6c] sm:$0xf] %v4583
          %4585 = vst.msk [vmem:[%s705 + $0x70] sm:$0xf] %vm4526, %v4487
          %v4586 = vld [vmem:[%s705 + $0x74] sm:$0xf]
          %v4587 = vsel %vm4529, %v4489, %v4586
          %4588 = vst [vmem:[%s705 + $0x74] sm:$0xf] %v4587
          %4589 = vst.msk [vmem:[%s705 + $0x78] sm:$0xf] %vm4526, %v4491
          %v4590 = vld [vmem:[%s705 + $0x7c] sm:$0xf]
          %v4591 = vsel %vm4529, %v4493, %v4590
          %4592 = vst [vmem:[%s705 + $0x7c] sm:$0xf] %v4591
          %4593 = vrot.lane.b32.xlu0 %v3744, 64
          %v4594 = vpop.permute.xlu0 %4593
          %4595 = vrot.lane.b32.xlu0 %v3753, 64
          %v4596 = vpop.permute.xlu0 %4595
          %4597 = vrot.lane.b32.xlu0 %v3760, 64
          %v4598 = vpop.permute.xlu0 %4597
          %4599 = vrot.lane.b32.xlu0 %v3769, 64
          %v4600 = vpop.permute.xlu0 %4599
          %4601 = vrot.lane.b32.xlu0 %v3776, 64
          %v4602 = vpop.permute.xlu0 %4601
          %4603 = vrot.lane.b32.xlu0 %v3785, 64
          %v4604 = vpop.permute.xlu0 %4603
          %4605 = vrot.lane.b32.xlu0 %v3792, 64
          %v4606 = vpop.permute.xlu0 %4605
          %4607 = vrot.lane.b32.xlu0 %v3801, 64
          %v4608 = vpop.permute.xlu0 %4607
          %4609 = vrot.lane.b32.xlu0 %v3808, 64
          %v4610 = vpop.permute.xlu0 %4609
          %4611 = vrot.lane.b32.xlu0 %v3817, 64
          %v4612 = vpop.permute.xlu0 %4611
          %4613 = vrot.lane.b32.xlu0 %v3824, 64
          %v4614 = vpop.permute.xlu0 %4613
          %4615 = vrot.lane.b32.xlu0 %v3833, 64
          %v4616 = vpop.permute.xlu0 %4615
          %4617 = vrot.lane.b32.xlu0 %v3840, 64
          %v4618 = vpop.permute.xlu0 %4617
          %4619 = vrot.lane.b32.xlu0 %v3849, 64
          %v4620 = vpop.permute.xlu0 %4619
          %4621 = vrot.lane.b32.xlu0 %v3856, 64
          %v4622 = vpop.permute.xlu0 %4621
          %4623 = vrot.lane.b32.xlu0 %v3865, 64
          %v4624 = vpop.permute.xlu0 %4623
          %4625 = vrot.lane.b32.xlu0 %v3872, 64
          %v4626 = vpop.permute.xlu0 %4625
          %4627 = vrot.lane.b32.xlu0 %v3881, 64
          %v4628 = vpop.permute.xlu0 %4627
          %4629 = vrot.lane.b32.xlu0 %v3888, 64
          %v4630 = vpop.permute.xlu0 %4629
          %4631 = vrot.lane.b32.xlu0 %v3897, 64
          %v4632 = vpop.permute.xlu0 %4631
          %4633 = vrot.lane.b32.xlu0 %v3904, 64
          %v4634 = vpop.permute.xlu0 %4633
          %4635 = vrot.lane.b32.xlu0 %v3913, 64
          %v4636 = vpop.permute.xlu0 %4635
          %4637 = vrot.lane.b32.xlu0 %v3920, 64
          %v4638 = vpop.permute.xlu0 %4637
          %4639 = vrot.lane.b32.xlu0 %v3929, 64
          %v4640 = vpop.permute.xlu0 %4639
          %4641 = vrot.lane.b32.xlu0 %v3936, 64
          %v4642 = vpop.permute.xlu0 %4641
          %4643 = vrot.lane.b32.xlu0 %v3945, 64
          %v4644 = vpop.permute.xlu0 %4643
          %4645 = vrot.lane.b32.xlu0 %v3952, 64
          %v4646 = vpop.permute.xlu0 %4645
          %4647 = vrot.lane.b32.xlu0 %v3961, 64
          %v4648 = vpop.permute.xlu0 %4647
          %4649 = vrot.lane.b32.xlu0 %v3968, 64
          %v4650 = vpop.permute.xlu0 %4649
          %4651 = vrot.lane.b32.xlu0 %v3977, 64
          %v4652 = vpop.permute.xlu0 %4651
          %4653 = vrot.lane.b32.xlu0 %v3984, 64
          %v4654 = vpop.permute.xlu0 %4653
          %4655 = vrot.lane.b32.xlu0 %v3993, 64
          %v4656 = vpop.permute.xlu0 %4655
          %s4689 = scalar_lea.vmem [#allocation4], 16
          %vm4690 = vcmask 257024
          %vm4691 = vmand %vm4690, %vm707
          %v4692 = vld [vmem:[%s4689] sm:$0xf]
          %v4693 = vsel %vm4691, %v4594, %v4692
          %4694 = vst [vmem:[%s4689] sm:$0xf] %v4693
          %vm4695 = vcmask 257024
          %4696 = vst.msk [vmem:[%s4689 + $0x8] sm:$0xf] %vm4695, %v4596
          %v4697 = vld [vmem:[%s4689 + $0x10] sm:$0xf]
          %v4698 = vsel %vm4691, %v4598, %v4697
          %4699 = vst [vmem:[%s4689 + $0x10] sm:$0xf] %v4698
          %4700 = vst.msk [vmem:[%s4689 + $0x18] sm:$0xf] %vm4695, %v4600
          %v4701 = vld [vmem:[%s4689 + $0x20] sm:$0xf]
          %v4702 = vsel %vm4691, %v4602, %v4701
          %4703 = vst [vmem:[%s4689 + $0x20] sm:$0xf] %v4702
          %4704 = vst.msk [vmem:[%s4689 + $0x28] sm:$0xf] %vm4695, %v4604
          %v4705 = vld [vmem:[%s4689 + $0x30] sm:$0xf]
          %v4706 = vsel %vm4691, %v4606, %v4705
          %4707 = vst [vmem:[%s4689 + $0x30] sm:$0xf] %v4706
          %4708 = vst.msk [vmem:[%s4689 + $0x38] sm:$0xf] %vm4695, %v4608
          %v4709 = vld [vmem:[%s4689 + $0x40] sm:$0xf]
          %v4710 = vsel %vm4691, %v4610, %v4709
          %4711 = vst [vmem:[%s4689 + $0x40] sm:$0xf] %v4710
          %4712 = vst.msk [vmem:[%s4689 + $0x48] sm:$0xf] %vm4695, %v4612
          %v4713 = vld [vmem:[%s4689 + $0x50] sm:$0xf]
          %v4714 = vsel %vm4691, %v4614, %v4713
          %4715 = vst [vmem:[%s4689 + $0x50] sm:$0xf] %v4714
          %4716 = vst.msk [vmem:[%s4689 + $0x58] sm:$0xf] %vm4695, %v4616
          %v4717 = vld [vmem:[%s4689 + $0x60] sm:$0xf]
          %v4718 = vsel %vm4691, %v4618, %v4717
          %4719 = vst [vmem:[%s4689 + $0x60] sm:$0xf] %v4718
          %4720 = vst.msk [vmem:[%s4689 + $0x68] sm:$0xf] %vm4695, %v4620
          %v4721 = vld [vmem:[%s4689 + $0x70] sm:$0xf]
          %v4722 = vsel %vm4691, %v4622, %v4721
          %4723 = vst [vmem:[%s4689 + $0x70] sm:$0xf] %v4722
          %4724 = vst.msk [vmem:[%s4689 + $0x78] sm:$0xf] %vm4695, %v4624
          %v4725 = vld [vmem:[%s4689 + $0x80] sm:$0xf]
          %v4726 = vsel %vm4691, %v4626, %v4725
          %4727 = vst [vmem:[%s4689 + $0x80] sm:$0xf] %v4726
          %4728 = vst.msk [vmem:[%s4689 + $0x88] sm:$0xf] %vm4695, %v4628
          %v4729 = vld [vmem:[%s4689 + $0x90] sm:$0xf]
          %v4730 = vsel %vm4691, %v4630, %v4729
          %4731 = vst [vmem:[%s4689 + $0x90] sm:$0xf] %v4730
          %4732 = vst.msk [vmem:[%s4689 + $0x98] sm:$0xf] %vm4695, %v4632
          %v4733 = vld [vmem:[%s4689 + $0xa0] sm:$0xf]
          %v4734 = vsel %vm4691, %v4634, %v4733
          %4735 = vst [vmem:[%s4689 + $0xa0] sm:$0xf] %v4734
          %4736 = vst.msk [vmem:[%s4689 + $0xa8] sm:$0xf] %vm4695, %v4636
          %v4737 = vld [vmem:[%s4689 + $0xb0] sm:$0xf]
          %v4738 = vsel %vm4691, %v4638, %v4737
          %4739 = vst [vmem:[%s4689 + $0xb0] sm:$0xf] %v4738
          %4740 = vst.msk [vmem:[%s4689 + $0xb8] sm:$0xf] %vm4695, %v4640
          %v4741 = vld [vmem:[%s4689 + $0xc0] sm:$0xf]
          %v4742 = vsel %vm4691, %v4642, %v4741
          %4743 = vst [vmem:[%s4689 + $0xc0] sm:$0xf] %v4742
          %4744 = vst.msk [vmem:[%s4689 + $0xc8] sm:$0xf] %vm4695, %v4644
          %v4745 = vld [vmem:[%s4689 + $0xd0] sm:$0xf]
          %v4746 = vsel %vm4691, %v4646, %v4745
          %4747 = vst [vmem:[%s4689 + $0xd0] sm:$0xf] %v4746
          %4748 = vst.msk [vmem:[%s4689 + $0xd8] sm:$0xf] %vm4695, %v4648
          %v4749 = vld [vmem:[%s4689 + $0xe0] sm:$0xf]
          %v4750 = vsel %vm4691, %v4650, %v4749
          %4751 = vst [vmem:[%s4689 + $0xe0] sm:$0xf] %v4750
          %4752 = vst.msk [vmem:[%s4689 + $0xe8] sm:$0xf] %vm4695, %v4652
          %v4753 = vld [vmem:[%s4689 + $0xf0] sm:$0xf]
          %v4754 = vsel %vm4691, %v4654, %v4753
          %4755 = vst [vmem:[%s4689 + $0xf0] sm:$0xf] %v4754
          %4756 = vst.msk [vmem:[%s4689 + $0xf8] sm:$0xf] %vm4695, %v4656
          %vm4789 = vcmask 781824
          %4790 = vst.msk [vmem:[%s4689] sm:$0xf] %vm4789, %v3706
          %4791 = vst.msk [vmem:[%s4689 + $0x8] sm:$0xf] %vm4789, %v3707
          %4792 = vst.msk [vmem:[%s4689 + $0x10] sm:$0xf] %vm4789, %v3708
          %4793 = vst.msk [vmem:[%s4689 + $0x18] sm:$0xf] %vm4789, %v3709
          %4794 = vst.msk [vmem:[%s4689 + $0x20] sm:$0xf] %vm4789, %v3710
          %4795 = vst.msk [vmem:[%s4689 + $0x28] sm:$0xf] %vm4789, %v3711
          %4796 = vst.msk [vmem:[%s4689 + $0x30] sm:$0xf] %vm4789, %v3712
          %4797 = vst.msk [vmem:[%s4689 + $0x38] sm:$0xf] %vm4789, %v3713
          %4798 = vst.msk [vmem:[%s4689 + $0x40] sm:$0xf] %vm4789, %v3714
          %4799 = vst.msk [vmem:[%s4689 + $0x48] sm:$0xf] %vm4789, %v3715
          %4800 = vst.msk [vmem:[%s4689 + $0x50] sm:$0xf] %vm4789, %v3716
          %4801 = vst.msk [vmem:[%s4689 + $0x58] sm:$0xf] %vm4789, %v3717
          %4802 = vst.msk [vmem:[%s4689 + $0x60] sm:$0xf] %vm4789, %v3718
          %4803 = vst.msk [vmem:[%s4689 + $0x68] sm:$0xf] %vm4789, %v3719
          %4804 = vst.msk [vmem:[%s4689 + $0x70] sm:$0xf] %vm4789, %v3720
          %4805 = vst.msk [vmem:[%s4689 + $0x78] sm:$0xf] %vm4789, %v3721
          %4806 = vst.msk [vmem:[%s4689 + $0x80] sm:$0xf] %vm4789, %v3722
          %4807 = vst.msk [vmem:[%s4689 + $0x88] sm:$0xf] %vm4789, %v3723
          %4808 = vst.msk [vmem:[%s4689 + $0x90] sm:$0xf] %vm4789, %v3724
          %4809 = vst.msk [vmem:[%s4689 + $0x98] sm:$0xf] %vm4789, %v3725
          %4810 = vst.msk [vmem:[%s4689 + $0xa0] sm:$0xf] %vm4789, %v3726
          %4811 = vst.msk [vmem:[%s4689 + $0xa8] sm:$0xf] %vm4789, %v3727
          %4812 = vst.msk [vmem:[%s4689 + $0xb0] sm:$0xf] %vm4789, %v3728
          %4813 = vst.msk [vmem:[%s4689 + $0xb8] sm:$0xf] %vm4789, %v3729
          %4814 = vst.msk [vmem:[%s4689 + $0xc0] sm:$0xf] %vm4789, %v3730
          %4815 = vst.msk [vmem:[%s4689 + $0xc8] sm:$0xf] %vm4789, %v3731
          %4816 = vst.msk [vmem:[%s4689 + $0xd0] sm:$0xf] %vm4789, %v3732
          %4817 = vst.msk [vmem:[%s4689 + $0xd8] sm:$0xf] %vm4789, %v3733
          %4818 = vst.msk [vmem:[%s4689 + $0xe0] sm:$0xf] %vm4789, %v3734
          %4819 = vst.msk [vmem:[%s4689 + $0xe8] sm:$0xf] %vm4789, %v3735
          %4820 = vst.msk [vmem:[%s4689 + $0xf0] sm:$0xf] %vm4789, %v3736
          %4821 = vst.msk [vmem:[%s4689 + $0xf8] sm:$0xf] %vm4789, %v3737
          %4822 = vrot.lane.b32.xlu0 %v4291, 64
          %v4823 = vpop.permute.xlu0 %4822
          %4824 = vrot.lane.b32.xlu0 %v4294, 64
          %v4825 = vpop.permute.xlu0 %4824
          %4826 = vrot.lane.b32.xlu0 %v4300, 64
          %v4827 = vpop.permute.xlu0 %4826
          %4828 = vrot.lane.b32.xlu0 %v4303, 64
          %v4829 = vpop.permute.xlu0 %4828
          %4830 = vrot.lane.b32.xlu0 %v4309, 64
          %v4831 = vpop.permute.xlu0 %4830
          %4832 = vrot.lane.b32.xlu0 %v4312, 64
          %v4833 = vpop.permute.xlu0 %4832
          %4834 = vrot.lane.b32.xlu0 %v4318, 64
          %v4835 = vpop.permute.xlu0 %4834
          %4836 = vrot.lane.b32.xlu0 %v4321, 64
          %v4837 = vpop.permute.xlu0 %4836
          %4838 = vrot.lane.b32.xlu0 %v4327, 64
          %v4839 = vpop.permute.xlu0 %4838
          %4840 = vrot.lane.b32.xlu0 %v4330, 64
          %v4841 = vpop.permute.xlu0 %4840
          %4842 = vrot.lane.b32.xlu0 %v4336, 64
          %v4843 = vpop.permute.xlu0 %4842
          %4844 = vrot.lane.b32.xlu0 %v4339, 64
          %v4845 = vpop.permute.xlu0 %4844
          %4846 = vrot.lane.b32.xlu0 %v4345, 64
          %v4847 = vpop.permute.xlu0 %4846
          %4848 = vrot.lane.b32.xlu0 %v4348, 64
          %v4849 = vpop.permute.xlu0 %4848
          %4850 = vrot.lane.b32.xlu0 %v4354, 64
          %v4851 = vpop.permute.xlu0 %4850
          %4852 = vrot.lane.b32.xlu0 %v4357, 64
          %v4853 = vpop.permute.xlu0 %4852
          %4854 = vrot.lane.b32.xlu0 %v4363, 64
          %v4855 = vpop.permute.xlu0 %4854
          %4856 = vrot.lane.b32.xlu0 %v4366, 64
          %v4857 = vpop.permute.xlu0 %4856
          %4858 = vrot.lane.b32.xlu0 %v4372, 64
          %v4859 = vpop.permute.xlu0 %4858
          %4860 = vrot.lane.b32.xlu0 %v4375, 64
          %v4861 = vpop.permute.xlu0 %4860
          %4862 = vrot.lane.b32.xlu0 %v4381, 64
          %v4863 = vpop.permute.xlu0 %4862
          %4864 = vrot.lane.b32.xlu0 %v4384, 64
          %v4865 = vpop.permute.xlu0 %4864
          %4866 = vrot.lane.b32.xlu0 %v4390, 64
          %v4867 = vpop.permute.xlu0 %4866
          %4868 = vrot.lane.b32.xlu0 %v4393, 64
          %v4869 = vpop.permute.xlu0 %4868
          %4870 = vrot.lane.b32.xlu0 %v4399, 64
          %v4871 = vpop.permute.xlu0 %4870
          %4872 = vrot.lane.b32.xlu0 %v4402, 64
          %v4873 = vpop.permute.xlu0 %4872
          %4874 = vrot.lane.b32.xlu0 %v4408, 64
          %v4875 = vpop.permute.xlu0 %4874
          %4876 = vrot.lane.b32.xlu0 %v4411, 64
          %v4877 = vpop.permute.xlu0 %4876
          %4878 = vrot.lane.b32.xlu0 %v4417, 64
          %v4879 = vpop.permute.xlu0 %4878
          %4880 = vrot.lane.b32.xlu0 %v4420, 64
          %v4881 = vpop.permute.xlu0 %4880
          %4882 = vrot.lane.b32.xlu0 %v4426, 64
          %v4883 = vpop.permute.xlu0 %4882
          %4884 = vrot.lane.b32.xlu0 %v4429, 64
          %v4885 = vpop.permute.xlu0 %4884
          %4918 = vst.msk [vmem:[%s4689 + $0x4] sm:$0xf] %vm4695, %v4823
          %vm4919 = vmand %vm4690, %vm935
          %v4920 = vld [vmem:[%s4689 + $0xc] sm:$0xf]
          %v4921 = vsel %vm4919, %v4825, %v4920
          %4922 = vst [vmem:[%s4689 + $0xc] sm:$0xf] %v4921
          %4923 = vst.msk [vmem:[%s4689 + $0x14] sm:$0xf] %vm4695, %v4827
          %v4924 = vld [vmem:[%s4689 + $0x1c] sm:$0xf]
          %v4925 = vsel %vm4919, %v4829, %v4924
          %4926 = vst [vmem:[%s4689 + $0x1c] sm:$0xf] %v4925
          %4927 = vst.msk [vmem:[%s4689 + $0x24] sm:$0xf] %vm4695, %v4831
          %v4928 = vld [vmem:[%s4689 + $0x2c] sm:$0xf]
          %v4929 = vsel %vm4919, %v4833, %v4928
          %4930 = vst [vmem:[%s4689 + $0x2c] sm:$0xf] %v4929
          %4931 = vst.msk [vmem:[%s4689 + $0x34] sm:$0xf] %vm4695, %v4835
          %v4932 = vld [vmem:[%s4689 + $0x3c] sm:$0xf]
          %v4933 = vsel %vm4919, %v4837, %v4932
          %4934 = vst [vmem:[%s4689 + $0x3c] sm:$0xf] %v4933
          %4935 = vst.msk [vmem:[%s4689 + $0x44] sm:$0xf] %vm4695, %v4839
          %v4936 = vld [vmem:[%s4689 + $0x4c] sm:$0xf]
          %v4937 = vsel %vm4919, %v4841, %v4936
          %4938 = vst [vmem:[%s4689 + $0x4c] sm:$0xf] %v4937
          %4939 = vst.msk [vmem:[%s4689 + $0x54] sm:$0xf] %vm4695, %v4843
          %v4940 = vld [vmem:[%s4689 + $0x5c] sm:$0xf]
          %v4941 = vsel %vm4919, %v4845, %v4940
          %4942 = vst [vmem:[%s4689 + $0x5c] sm:$0xf] %v4941
          %4943 = vst.msk [vmem:[%s4689 + $0x64] sm:$0xf] %vm4695, %v4847
          %v4944 = vld [vmem:[%s4689 + $0x6c] sm:$0xf]
          %v4945 = vsel %vm4919, %v4849, %v4944
          %4946 = vst [vmem:[%s4689 + $0x6c] sm:$0xf] %v4945
          %4947 = vst.msk [vmem:[%s4689 + $0x74] sm:$0xf] %vm4695, %v4851
          %v4948 = vld [vmem:[%s4689 + $0x7c] sm:$0xf]
          %v4949 = vsel %vm4919, %v4853, %v4948
          %4950 = vst [vmem:[%s4689 + $0x7c] sm:$0xf] %v4949
          %4951 = vst.msk [vmem:[%s4689 + $0x84] sm:$0xf] %vm4695, %v4855
          %v4952 = vld [vmem:[%s4689 + $0x8c] sm:$0xf]
          %v4953 = vsel %vm4919, %v4857, %v4952
          %4954 = vst [vmem:[%s4689 + $0x8c] sm:$0xf] %v4953
          %4955 = vst.msk [vmem:[%s4689 + $0x94] sm:$0xf] %vm4695, %v4859
          %v4956 = vld [vmem:[%s4689 + $0x9c] sm:$0xf]
          %v4957 = vsel %vm4919, %v4861, %v4956
          %4958 = vst [vmem:[%s4689 + $0x9c] sm:$0xf] %v4957
          %4959 = vst.msk [vmem:[%s4689 + $0xa4] sm:$0xf] %vm4695, %v4863
          %v4960 = vld [vmem:[%s4689 + $0xac] sm:$0xf]
          %v4961 = vsel %vm4919, %v4865, %v4960
          %4962 = vst [vmem:[%s4689 + $0xac] sm:$0xf] %v4961
          %4963 = vst.msk [vmem:[%s4689 + $0xb4] sm:$0xf] %vm4695, %v4867
          %v4964 = vld [vmem:[%s4689 + $0xbc] sm:$0xf]
          %v4965 = vsel %vm4919, %v4869, %v4964
          %4966 = vst [vmem:[%s4689 + $0xbc] sm:$0xf] %v4965
          %4967 = vst.msk [vmem:[%s4689 + $0xc4] sm:$0xf] %vm4695, %v4871
          %v4968 = vld [vmem:[%s4689 + $0xcc] sm:$0xf]
          %v4969 = vsel %vm4919, %v4873, %v4968
          %4970 = vst [vmem:[%s4689 + $0xcc] sm:$0xf] %v4969
          %4971 = vst.msk [vmem:[%s4689 + $0xd4] sm:$0xf] %vm4695, %v4875
          %v4972 = vld [vmem:[%s4689 + $0xdc] sm:$0xf]
          %v4973 = vsel %vm4919, %v4877, %v4972
          %4974 = vst [vmem:[%s4689 + $0xdc] sm:$0xf] %v4973
          %4975 = vst.msk [vmem:[%s4689 + $0xe4] sm:$0xf] %vm4695, %v4879
          %v4976 = vld [vmem:[%s4689 + $0xec] sm:$0xf]
          %v4977 = vsel %vm4919, %v4881, %v4976
          %4978 = vst [vmem:[%s4689 + $0xec] sm:$0xf] %v4977
          %4979 = vst.msk [vmem:[%s4689 + $0xf4] sm:$0xf] %vm4695, %v4883
          %v4980 = vld [vmem:[%s4689 + $0xfc] sm:$0xf]
          %v4981 = vsel %vm4919, %v4885, %v4980
          %4982 = vst [vmem:[%s4689 + $0xfc] sm:$0xf] %v4981
          %v4983 = vld [vmem:[#allocation4] sm:$0xff]
          %v4984 = vld [vmem:[#allocation4 + $0x8] sm:$0xff]
          %v4985 = vld [vmem:[#allocation4 + $0x10] sm:$0xff]
          %v4986 = vld [vmem:[#allocation4 + $0x18] sm:$0xff]
          %v4987 = vld [vmem:[#allocation4 + $0x20] sm:$0xff]
          %v4988 = vld [vmem:[#allocation4 + $0x28] sm:$0xff]
          %v4989 = vld [vmem:[#allocation4 + $0x30] sm:$0xff]
          %v4990 = vld [vmem:[#allocation4 + $0x38] sm:$0xff]
          %v4991 = vld [vmem:[#allocation4 + $0x40] sm:$0xff]
          %v4992 = vld [vmem:[#allocation4 + $0x48] sm:$0xff]
          %v4993 = vld [vmem:[#allocation4 + $0x50] sm:$0xff]
          %v4994 = vld [vmem:[#allocation4 + $0x58] sm:$0xff]
          %v4995 = vld [vmem:[#allocation4 + $0x60] sm:$0xff]
          %v4996 = vld [vmem:[#allocation4 + $0x68] sm:$0xff]
          %v4997 = vld [vmem:[#allocation4 + $0x70] sm:$0xff]
          %v4998 = vld [vmem:[#allocation4 + $0x78] sm:$0xff]
          %v4999 = vld [vmem:[#allocation4 + $0x80] sm:$0xff]
          %v5000 = vld [vmem:[#allocation4 + $0x88] sm:$0xff]
          %v5001 = vld [vmem:[#allocation4 + $0x90] sm:$0xff]
          %v5002 = vld [vmem:[#allocation4 + $0x98] sm:$0xff]
          %v5003 = vld [vmem:[#allocation4 + $0xa0] sm:$0xff]
          %v5004 = vld [vmem:[#allocation4 + $0xa8] sm:$0xff]
          %v5005 = vld [vmem:[#allocation4 + $0xb0] sm:$0xff]
          %v5006 = vld [vmem:[#allocation4 + $0xb8] sm:$0xff]
          %v5007 = vld [vmem:[#allocation4 + $0xc0] sm:$0xff]
          %v5008 = vld [vmem:[#allocation4 + $0xc8] sm:$0xff]
          %v5009 = vld [vmem:[#allocation4 + $0xd0] sm:$0xff]
          %v5010 = vld [vmem:[#allocation4 + $0xd8] sm:$0xff]
          %v5011 = vld [vmem:[#allocation4 + $0xe0] sm:$0xff]
          %v5012 = vld [vmem:[#allocation4 + $0xe8] sm:$0xff]
          %v5013 = vld [vmem:[#allocation4 + $0xf0] sm:$0xff]
          %v5014 = vld [vmem:[#allocation4 + $0xf8] sm:$0xff]
          %v5015 = vld [vmem:[%s3] sm:$0xf]
          %v5016 = vld [vmem:[%s3 + $0x4] sm:$0xf]
          %v5017 = vld [vmem:[%s3 + $0x8] sm:$0xf]
          %v5018 = vld [vmem:[%s3 + $0xc] sm:$0xf]
          %v5019 = vld [vmem:[%s3 + $0x10] sm:$0xf]
          %v5020 = vld [vmem:[%s3 + $0x14] sm:$0xf]
          %v5021 = vld [vmem:[%s3 + $0x18] sm:$0xf]
          %v5022 = vld [vmem:[%s3 + $0x1c] sm:$0xf]
          %v5023 = vld [vmem:[%s3 + $0x20] sm:$0xf]
          %v5024 = vld [vmem:[%s3 + $0x24] sm:$0xf]
          %v5025 = vld [vmem:[%s3 + $0x28] sm:$0xf]
          %v5026 = vld [vmem:[%s3 + $0x2c] sm:$0xf]
          %v5027 = vld [vmem:[%s3 + $0x30] sm:$0xf]
          %v5028 = vld [vmem:[%s3 + $0x34] sm:$0xf]
          %v5029 = vld [vmem:[%s3 + $0x38] sm:$0xf]
          %v5030 = vld [vmem:[%s3 + $0x3c] sm:$0xf]
          %v5031 = vld [vmem:[%s3 + $0x40] sm:$0xf]
          %v5032 = vld [vmem:[%s3 + $0x44] sm:$0xf]
          %v5033 = vld [vmem:[%s3 + $0x48] sm:$0xf]
          %v5034 = vld [vmem:[%s3 + $0x4c] sm:$0xf]
          %v5035 = vld [vmem:[%s3 + $0x50] sm:$0xf]
          %v5036 = vld [vmem:[%s3 + $0x54] sm:$0xf]
          %v5037 = vld [vmem:[%s3 + $0x58] sm:$0xf]
          %v5038 = vld [vmem:[%s3 + $0x5c] sm:$0xf]
          %v5039 = vld [vmem:[%s4689] sm:$0xff]
          %v5040 = vld [vmem:[%s4689 + $0x8] sm:$0xff]
          %v5041 = vld [vmem:[%s4689 + $0x10] sm:$0xff]
          %v5042 = vld [vmem:[%s4689 + $0x18] sm:$0xff]
          %v5043 = vld [vmem:[%s4689 + $0x20] sm:$0xff]
          %v5044 = vld [vmem:[%s4689 + $0x28] sm:$0xff]
          %v5045 = vld [vmem:[%s4689 + $0x30] sm:$0xff]
          %v5046 = vld [vmem:[%s4689 + $0x38] sm:$0xff]
          %v5047 = vld [vmem:[%s4689 + $0x40] sm:$0xff]
          %v5048 = vld [vmem:[%s4689 + $0x48] sm:$0xff]
          %v5049 = vld [vmem:[%s4689 + $0x50] sm:$0xff]
          %v5050 = vld [vmem:[%s4689 + $0x58] sm:$0xff]
          %v5051 = vld [vmem:[%s4689 + $0x60] sm:$0xff]
          %v5052 = vld [vmem:[%s4689 + $0x68] sm:$0xff]
          %v5053 = vld [vmem:[%s4689 + $0x70] sm:$0xff]
          %v5054 = vld [vmem:[%s4689 + $0x78] sm:$0xff]
          %v5055 = vld [vmem:[%s4689 + $0x80] sm:$0xff]
          %v5056 = vld [vmem:[%s4689 + $0x88] sm:$0xff]
          %v5057 = vld [vmem:[%s4689 + $0x90] sm:$0xff]
          %v5058 = vld [vmem:[%s4689 + $0x98] sm:$0xff]
          %v5059 = vld [vmem:[%s4689 + $0xa0] sm:$0xff]
          %v5060 = vld [vmem:[%s4689 + $0xa8] sm:$0xff]
          %v5061 = vld [vmem:[%s4689 + $0xb0] sm:$0xff]
          %v5062 = vld [vmem:[%s4689 + $0xb8] sm:$0xff]
          %v5063 = vld [vmem:[%s4689 + $0xc0] sm:$0xff]
          %v5064 = vld [vmem:[%s4689 + $0xc8] sm:$0xff]
          %v5065 = vld [vmem:[%s4689 + $0xd0] sm:$0xff]
          %v5066 = vld [vmem:[%s4689 + $0xd8] sm:$0xff]
          %v5067 = vld [vmem:[%s4689 + $0xe0] sm:$0xff]
          %v5068 = vld [vmem:[%s4689 + $0xe8] sm:$0xff]
          %v5069 = vld [vmem:[%s4689 + $0xf0] sm:$0xff]
          %v5070 = vld [vmem:[%s4689 + $0xf8] sm:$0xff]
          %s5071 = scalar_lea.vmem %s3, 96
          %v5072 = vld [vmem:[%s5071] sm:$0xf]
          %v5073 = vld [vmem:[%s5071 + $0x4] sm:$0xf]
          %v5074 = vld [vmem:[%s5071 + $0x8] sm:$0xf]
          %v5075 = vld [vmem:[%s5071 + $0xc] sm:$0xf]
          %v5076 = vld [vmem:[%s5071 + $0x10] sm:$0xf]
          %v5077 = vld [vmem:[%s5071 + $0x14] sm:$0xf]
          %v5078 = vld [vmem:[%s5071 + $0x18] sm:$0xf]
          %v5079 = vld [vmem:[%s5071 + $0x1c] sm:$0xf]
          %v5080 = vld [vmem:[%s5071 + $0x20] sm:$0xf]
          %v5081 = vld [vmem:[%s5071 + $0x24] sm:$0xf]
          %v5082 = vld [vmem:[%s5071 + $0x28] sm:$0xf]
          %v5083 = vld [vmem:[%s5071 + $0x2c] sm:$0xf]
          %v5084 = vld [vmem:[%s5071 + $0x30] sm:$0xf]
          %v5085 = vld [vmem:[%s5071 + $0x34] sm:$0xf]
          %v5086 = vld [vmem:[%s5071 + $0x38] sm:$0xf]
          %v5087 = vld [vmem:[%s5071 + $0x3c] sm:$0xf]
          %v5088 = vld [vmem:[%s5071 + $0x40] sm:$0xf]
          %v5089 = vld [vmem:[%s5071 + $0x44] sm:$0xf]
          %v5090 = vld [vmem:[%s5071 + $0x48] sm:$0xf]
          %v5091 = vld [vmem:[%s5071 + $0x4c] sm:$0xf]
          %v5092 = vld [vmem:[%s5071 + $0x50] sm:$0xf]
          %v5093 = vld [vmem:[%s5071 + $0x54] sm:$0xf]
          %v5094 = vld [vmem:[%s5071 + $0x58] sm:$0xf]
          %v5095 = vld [vmem:[%s5071 + $0x5c] sm:$0xf]
          %v5128 = vunpack.c.l.b16 %v5039
          %v5129 = vunpack.c.h.b16 %v5039
          %v5130 = vunpack.c.l.b16 %v5040
          %v5131 = vunpack.c.h.b16 %v5040
          %v5132 = vunpack.c.l.b16 %v5041
          %v5133 = vunpack.c.h.b16 %v5041
          %v5134 = vunpack.c.l.b16 %v5042
          %v5135 = vunpack.c.h.b16 %v5042
          %v5136 = vunpack.c.l.b16 %v5043
          %v5137 = vunpack.c.h.b16 %v5043
          %v5138 = vunpack.c.l.b16 %v5044
          %v5139 = vunpack.c.h.b16 %v5044
          %v5140 = vunpack.c.l.b16 %v5045
          %v5141 = vunpack.c.h.b16 %v5045
          %v5142 = vunpack.c.l.b16 %v5046
          %v5143 = vunpack.c.h.b16 %v5046
          %v5144 = vunpack.c.l.b16 %v5047
          %v5145 = vunpack.c.h.b16 %v5047
          %v5146 = vunpack.c.l.b16 %v5048
          %v5147 = vunpack.c.h.b16 %v5048
          %v5148 = vunpack.c.l.b16 %v5049
          %v5149 = vunpack.c.h.b16 %v5049
          %v5150 = vunpack.c.l.b16 %v5050
          %v5151 = vunpack.c.h.b16 %v5050
          %v5152 = vunpack.c.l.b16 %v5051
          %v5153 = vunpack.c.h.b16 %v5051
          %v5154 = vunpack.c.l.b16 %v5052
          %v5155 = vunpack.c.h.b16 %v5052
          %v5156 = vunpack.c.l.b16 %v5053
          %v5157 = vunpack.c.h.b16 %v5053
          %v5158 = vunpack.c.l.b16 %v5054
          %v5159 = vunpack.c.h.b16 %v5054
          %v5160 = vunpack.c.l.b16 %v5055
          %v5161 = vunpack.c.h.b16 %v5055
          %v5162 = vunpack.c.l.b16 %v5056
          %v5163 = vunpack.c.h.b16 %v5056
          %v5164 = vunpack.c.l.b16 %v5057
          %v5165 = vunpack.c.h.b16 %v5057
          %v5166 = vunpack.c.l.b16 %v5058
          %v5167 = vunpack.c.h.b16 %v5058
          %v5168 = vunpack.c.l.b16 %v5059
          %v5169 = vunpack.c.h.b16 %v5059
          %v5170 = vunpack.c.l.b16 %v5060
          %v5171 = vunpack.c.h.b16 %v5060
          %v5172 = vunpack.c.l.b16 %v5061
          %v5173 = vunpack.c.h.b16 %v5061
          %v5174 = vunpack.c.l.b16 %v5062
          %v5175 = vunpack.c.h.b16 %v5062
          %v5176 = vunpack.c.l.b16 %v5063
          %v5177 = vunpack.c.h.b16 %v5063
          %v5178 = vunpack.c.l.b16 %v5064
          %v5179 = vunpack.c.h.b16 %v5064
          %v5180 = vunpack.c.l.b16 %v5065
          %v5181 = vunpack.c.h.b16 %v5065
          %v5182 = vunpack.c.l.b16 %v5066
          %v5183 = vunpack.c.h.b16 %v5066
          %v5184 = vunpack.c.l.b16 %v5067
          %v5185 = vunpack.c.h.b16 %v5067
          %v5186 = vunpack.c.l.b16 %v5068
          %v5187 = vunpack.c.h.b16 %v5068
          %v5188 = vunpack.c.l.b16 %v5069
          %v5189 = vunpack.c.h.b16 %v5069
          %v5190 = vunpack.c.l.b16 %v5070
          %v5191 = vunpack.c.h.b16 %v5070
          %v5192 = vpack.c.b16 %v5130, %v5128
          %v5193 = vpack.c.b16 %v5131, %v5129
          %v5194 = vpack.c.b16 %v5134, %v5132
          %v5195 = vpack.c.b16 %v5135, %v5133
          %v5196 = vpack.c.b16 %v5138, %v5136
          %v5197 = vpack.c.b16 %v5139, %v5137
          %v5198 = vpack.c.b16 %v5142, %v5140
          %v5199 = vpack.c.b16 %v5143, %v5141
          %v5200 = vpack.c.b16 %v5146, %v5144
          %v5201 = vpack.c.b16 %v5147, %v5145
          %v5202 = vpack.c.b16 %v5150, %v5148
          %v5203 = vpack.c.b16 %v5151, %v5149
          %v5204 = vpack.c.b16 %v5154, %v5152
          %v5205 = vpack.c.b16 %v5155, %v5153
          %v5206 = vpack.c.b16 %v5158, %v5156
          %v5207 = vpack.c.b16 %v5159, %v5157
          %v5208 = vpack.c.b16 %v5162, %v5160
          %v5209 = vpack.c.b16 %v5163, %v5161
          %v5210 = vpack.c.b16 %v5166, %v5164
          %v5211 = vpack.c.b16 %v5167, %v5165
          %v5212 = vpack.c.b16 %v5170, %v5168
          %v5213 = vpack.c.b16 %v5171, %v5169
          %v5214 = vpack.c.b16 %v5174, %v5172
          %v5215 = vpack.c.b16 %v5175, %v5173
          %v5216 = vpack.c.b16 %v5178, %v5176
          %v5217 = vpack.c.b16 %v5179, %v5177
          %v5218 = vpack.c.b16 %v5182, %v5180
          %v5219 = vpack.c.b16 %v5183, %v5181
          %v5220 = vpack.c.b16 %v5186, %v5184
          %v5221 = vpack.c.b16 %v5187, %v5185
          %v5222 = vpack.c.b16 %v5190, %v5188
          %v5223 = vpack.c.b16 %v5191, %v5189
          %v5264 = vunpack.c.l.b16 %v5072
          %v5265 = vunpack.c.l.b16 %v5073
          %v5266 = vunpack.c.l.b16 %v5074
          %v5267 = vunpack.c.l.b16 %v5075
          %v5268 = vunpack.c.l.b16 %v5076
          %v5269 = vunpack.c.l.b16 %v5077
          %v5270 = vunpack.c.l.b16 %v5078
          %v5271 = vunpack.c.l.b16 %v5079
          %v5272 = vunpack.c.l.b16 %v5080
          %v5273 = vunpack.c.l.b16 %v5081
          %v5274 = vunpack.c.l.b16 %v5082
          %v5275 = vunpack.c.l.b16 %v5083
          %v5276 = vunpack.c.l.b16 %v5084
          %v5277 = vunpack.c.l.b16 %v5085
          %v5278 = vunpack.c.l.b16 %v5086
          %v5279 = vunpack.c.l.b16 %v5087
          %v5280 = vunpack.c.l.b16 %v5088
          %v5281 = vunpack.c.l.b16 %v5089
          %v5282 = vunpack.c.l.b16 %v5090
          %v5283 = vunpack.c.l.b16 %v5091
          %v5284 = vunpack.c.l.b16 %v5092
          %v5285 = vunpack.c.l.b16 %v5093
          %v5286 = vunpack.c.l.b16 %v5094
          %v5287 = vunpack.c.l.b16 %v5095
          %v5288 = vpack.c.b16 %v5265, %v5264
          %v5289 = vpack.c.b16 %v5267, %v5266
          %v5290 = vpack.c.b16 %v5269, %v5268
          %v5291 = vpack.c.b16 %v5271, %v5270
          %v5292 = vpack.c.b16 %v5273, %v5272
          %v5293 = vpack.c.b16 %v5275, %v5274
          %v5294 = vpack.c.b16 %v5277, %v5276
          %v5295 = vpack.c.b16 %v5279, %v5278
          %v5296 = vpack.c.b16 %v5281, %v5280
          %v5297 = vpack.c.b16 %v5283, %v5282
          %v5298 = vpack.c.b16 %v5285, %v5284
          %v5299 = vpack.c.b16 %v5287, %v5286
          %vm5312 = vcmask 523264
          %v5314 = vsel %vm5312, %v5193, 0
          %v5317 = vsel %vm5312, %v5195, 0
          %v5320 = vsel %vm5312, %v5197, 0
          %v5323 = vsel %vm5312, %v5199, 0
          %v5326 = vsel %vm5312, %v5201, 0
          %v5329 = vsel %vm5312, %v5203, 0
          %v5332 = vsel %vm5312, %v5205, 0
          %v5335 = vsel %vm5312, %v5207, 0
          %v5338 = vsel %vm5312, %v5209, 0
          %v5341 = vsel %vm5312, %v5211, 0
          %v5344 = vsel %vm5312, %v5213, 0
          %v5347 = vsel %vm5312, %v5215, 0
          %v5350 = vsel %vm5312, %v5217, 0
          %v5353 = vsel %vm5312, %v5219, 0
          %v5356 = vsel %vm5312, %v5221, 0
          %v5359 = vsel %vm5312, %v5223, 0
          %5361 = vmatprep.subr.bf16.mxu0 0
          %5362 = vmatpush1.bf16.msra.mxu0 %v5295
          %5363 = vmatprep.subr.bf16.mxu0 0
          %5364 = vmatpush1.bf16.msra.mxu0 %v5294
          %5365 = vmatprep.subr.bf16.mxu0 0
          %5366 = vmatpush1.bf16.msra.mxu0 %v5293
          %5367 = vmatprep.subr.bf16.mxu0 0
          %5368 = vmatpush1.bf16.msra.mxu0 %v5292
          %5369 = vmatprep.subr.bf16.mxu0 0
          %5370 = vmatpush1.bf16.msra.mxu0 %v5291
          %5371 = vmatprep.subr.bf16.mxu0 0
          %5372 = vmatpush1.bf16.msra.mxu0 %v5290
          %5373 = vmatprep.subr.bf16.mxu0 0
          %5374 = vmatpush1.bf16.msra.mxu0 %v5289
          %5375 = vmatprep.subr.bf16.mxu0 0
          %5376 = vmatpush1.bf16.msra.mxu0 %v5288
          %5377 = vmatprep.subr.bf16.mxu0 0
          %5378 = vmatpush2.bf16.msra.mxu0 0
          %5379 = vmatprep.subr.bf16.mxu0 0
          %5380 = vmatpush2.bf16.msra.mxu0 0
          %5381 = vmatprep.subr.bf16.mxu0 0
          %5382 = vmatpush2.bf16.msra.mxu0 0
          %5383 = vmatprep.subr.bf16.mxu0 0
          %5384 = vmatpush2.bf16.msra.mxu0 0
          %5385 = vmatprep.subr.bf16.mxu0 0
          %5386 = vmatpush2.bf16.msra.mxu0 %v5299
          %5387 = vmatprep.subr.bf16.mxu0 0
          %5388 = vmatpush2.bf16.msra.mxu0 %v5298
          %5389 = vmatprep.subr.bf16.mxu0 0
          %5390 = vmatpush2.bf16.msra.mxu0 %v5297
          %5391 = vmatprep.subr.bf16.mxu0 0
          %5392 = vmatpush2.bf16.msra.mxu0 %v5296
          %5393 = vmatprep.mubr.bf16.mxu0 %v5314
          %5394 = vmatmul.mubr.bf16.gmra.mxu0 %v5192
          %v5395 = vpop.f32.mrf.mxu0
          %v5396 = vadd.f32 0.0, %v5395
          %v5397 = vpop.f32.mrf.mxu0
          %v5398 = vpop.f32.mrf.mxu0
          %v5399 = vadd.f32 0.0, %v5398
          %v5400 = vpop.f32.mrf.mxu0
          %5401 = vmatprep.mubr.bf16.mxu0 %v5317
          %5402 = vmatmul.mubr.bf16.gmra.mxu0 %v5194
          %v5403 = vpop.f32.mrf.mxu0
          %v5404 = vadd.f32 0.0, %v5403
          %v5405 = vpop.f32.mrf.mxu0
          %v5406 = vpop.f32.mrf.mxu0
          %v5407 = vadd.f32 0.0, %v5406
          %v5408 = vpop.f32.mrf.mxu0
          %5409 = vmatprep.mubr.bf16.mxu0 %v5320
          %5410 = vmatmul.mubr.bf16.gmra.mxu0 %v5196
          %v5411 = vpop.f32.mrf.mxu0
          %v5412 = vadd.f32 0.0, %v5411
          %v5413 = vpop.f32.mrf.mxu0
          %v5414 = vpop.f32.mrf.mxu0
          %v5415 = vadd.f32 0.0, %v5414
          %v5416 = vpop.f32.mrf.mxu0
          %5417 = vmatprep.mubr.bf16.mxu0 %v5323
          %5418 = vmatmul.mubr.bf16.gmra.mxu0 %v5198
          %v5419 = vpop.f32.mrf.mxu0
          %v5420 = vadd.f32 0.0, %v5419
          %v5421 = vpop.f32.mrf.mxu0
          %v5422 = vpop.f32.mrf.mxu0
          %v5423 = vadd.f32 0.0, %v5422
          %v5424 = vpop.f32.mrf.mxu0
          %5425 = vmatprep.mubr.bf16.mxu0 %v5326
          %5426 = vmatmul.mubr.bf16.gmra.mxu0 %v5200
          %v5427 = vpop.f32.mrf.mxu0
          %v5428 = vadd.f32 0.0, %v5427
          %v5429 = vpop.f32.mrf.mxu0
          %v5430 = vpop.f32.mrf.mxu0
          %v5431 = vadd.f32 0.0, %v5430
          %v5432 = vpop.f32.mrf.mxu0
          %5433 = vmatprep.mubr.bf16.mxu0 %v5329
          %5434 = vmatmul.mubr.bf16.gmra.mxu0 %v5202
          %v5435 = vpop.f32.mrf.mxu0
          %v5436 = vadd.f32 0.0, %v5435
          %v5437 = vpop.f32.mrf.mxu0
          %v5438 = vpop.f32.mrf.mxu0
          %v5439 = vadd.f32 0.0, %v5438
          %v5440 = vpop.f32.mrf.mxu0
          %5441 = vmatprep.mubr.bf16.mxu0 %v5332
          %5442 = vmatmul.mubr.bf16.gmra.mxu0 %v5204
          %v5443 = vpop.f32.mrf.mxu0
          %v5444 = vadd.f32 0.0, %v5443
          %v5445 = vpop.f32.mrf.mxu0
          %v5446 = vpop.f32.mrf.mxu0
          %v5447 = vadd.f32 0.0, %v5446
          %v5448 = vpop.f32.mrf.mxu0
          %5449 = vmatprep.mubr.bf16.mxu0 %v5335
          %5450 = vmatmul.mubr.bf16.gmra.mxu0 %v5206
          %v5451 = vpop.f32.mrf.mxu0
          %v5452 = vadd.f32 0.0, %v5451
          %v5453 = vpop.f32.mrf.mxu0
          %v5454 = vpop.f32.mrf.mxu0
          %v5455 = vadd.f32 0.0, %v5454
          %v5456 = vpop.f32.mrf.mxu0
          %5457 = vmatprep.mubr.bf16.mxu0 %v5338
          %5458 = vmatmul.mubr.bf16.gmra.mxu0 %v5208
          %v5459 = vpop.f32.mrf.mxu0
          %v5460 = vadd.f32 0.0, %v5459
          %v5461 = vpop.f32.mrf.mxu0
          %v5462 = vpop.f32.mrf.mxu0
          %v5463 = vadd.f32 0.0, %v5462
          %v5464 = vpop.f32.mrf.mxu0
          %5465 = vmatprep.mubr.bf16.mxu0 %v5341
          %5466 = vmatmul.mubr.bf16.gmra.mxu0 %v5210
          %v5467 = vpop.f32.mrf.mxu0
          %v5468 = vadd.f32 0.0, %v5467
          %v5469 = vpop.f32.mrf.mxu0
          %v5470 = vpop.f32.mrf.mxu0
          %v5471 = vadd.f32 0.0, %v5470
          %v5472 = vpop.f32.mrf.mxu0
          %5473 = vmatprep.mubr.bf16.mxu0 %v5344
          %5474 = vmatmul.mubr.bf16.gmra.mxu0 %v5212
          %v5475 = vpop.f32.mrf.mxu0
          %v5476 = vadd.f32 0.0, %v5475
          %v5477 = vpop.f32.mrf.mxu0
          %v5478 = vpop.f32.mrf.mxu0
          %v5479 = vadd.f32 0.0, %v5478
          %v5480 = vpop.f32.mrf.mxu0
          %5481 = vmatprep.mubr.bf16.mxu0 %v5347
          %5482 = vmatmul.mubr.bf16.gmra.mxu0 %v5214
          %v5483 = vpop.f32.mrf.mxu0
          %v5484 = vadd.f32 0.0, %v5483
          %v5485 = vpop.f32.mrf.mxu0
          %v5486 = vpop.f32.mrf.mxu0
          %v5487 = vadd.f32 0.0, %v5486
          %v5488 = vpop.f32.mrf.mxu0
          %5489 = vmatprep.mubr.bf16.mxu0 %v5350
          %5490 = vmatmul.mubr.bf16.gmra.mxu0 %v5216
          %v5491 = vpop.f32.mrf.mxu0
          %v5492 = vadd.f32 0.0, %v5491
          %v5493 = vpop.f32.mrf.mxu0
          %v5494 = vpop.f32.mrf.mxu0
          %v5495 = vadd.f32 0.0, %v5494
          %v5496 = vpop.f32.mrf.mxu0
          %5497 = vmatprep.mubr.bf16.mxu0 %v5353
          %5498 = vmatmul.mubr.bf16.gmra.mxu0 %v5218
          %v5499 = vpop.f32.mrf.mxu0
          %v5500 = vadd.f32 0.0, %v5499
          %v5501 = vpop.f32.mrf.mxu0
          %v5502 = vpop.f32.mrf.mxu0
          %v5503 = vadd.f32 0.0, %v5502
          %v5504 = vpop.f32.mrf.mxu0
          %5505 = vmatprep.mubr.bf16.mxu0 %v5356
          %5506 = vmatmul.mubr.bf16.gmra.mxu0 %v5220
          %v5507 = vpop.f32.mrf.mxu0
          %v5508 = vadd.f32 0.0, %v5507
          %v5509 = vpop.f32.mrf.mxu0
          %v5510 = vpop.f32.mrf.mxu0
          %v5511 = vadd.f32 0.0, %v5510
          %v5512 = vpop.f32.mrf.mxu0
          %5513 = vmatprep.mubr.bf16.mxu0 %v5359
          %5514 = vmatmul.mubr.bf16.gmra.mxu0 %v5222
          %v5515 = vpop.f32.mrf.mxu0
          %v5516 = vadd.f32 0.0, %v5515
          %v5517 = vpop.f32.mrf.mxu0
          %v5518 = vpop.f32.mrf.mxu0
          %v5519 = vadd.f32 0.0, %v5518
          %v5520 = vpop.f32.mrf.mxu0
          %5521 = vdwg.mxu0
          %v5554 = vunpack.c.l.b16 %v4983
          %v5555 = vunpack.c.h.b16 %v4983
          %v5556 = vunpack.c.l.b16 %v4984
          %v5557 = vunpack.c.h.b16 %v4984
          %v5558 = vunpack.c.l.b16 %v4985
          %v5559 = vunpack.c.h.b16 %v4985
          %v5560 = vunpack.c.l.b16 %v4986
          %v5561 = vunpack.c.h.b16 %v4986
          %v5562 = vunpack.c.l.b16 %v4987
          %v5563 = vunpack.c.h.b16 %v4987
          %v5564 = vunpack.c.l.b16 %v4988
          %v5565 = vunpack.c.h.b16 %v4988
          %v5566 = vunpack.c.l.b16 %v4989
          %v5567 = vunpack.c.h.b16 %v4989
          %v5568 = vunpack.c.l.b16 %v4990
          %v5569 = vunpack.c.h.b16 %v4990
          %v5570 = vunpack.c.l.b16 %v4991
          %v5571 = vunpack.c.h.b16 %v4991
          %v5572 = vunpack.c.l.b16 %v4992
          %v5573 = vunpack.c.h.b16 %v4992
          %v5574 = vunpack.c.l.b16 %v4993
          %v5575 = vunpack.c.h.b16 %v4993
          %v5576 = vunpack.c.l.b16 %v4994
          %v5577 = vunpack.c.h.b16 %v4994
          %v5578 = vunpack.c.l.b16 %v4995
          %v5579 = vunpack.c.h.b16 %v4995
          %v5580 = vunpack.c.l.b16 %v4996
          %v5581 = vunpack.c.h.b16 %v4996
          %v5582 = vunpack.c.l.b16 %v4997
          %v5583 = vunpack.c.h.b16 %v4997
          %v5584 = vunpack.c.l.b16 %v4998
          %v5585 = vunpack.c.h.b16 %v4998
          %v5586 = vunpack.c.l.b16 %v4999
          %v5587 = vunpack.c.h.b16 %v4999
          %v5588 = vunpack.c.l.b16 %v5000
          %v5589 = vunpack.c.h.b16 %v5000
          %v5590 = vunpack.c.l.b16 %v5001
          %v5591 = vunpack.c.h.b16 %v5001
          %v5592 = vunpack.c.l.b16 %v5002
          %v5593 = vunpack.c.h.b16 %v5002
          %v5594 = vunpack.c.l.b16 %v5003
          %v5595 = vunpack.c.h.b16 %v5003
          %v5596 = vunpack.c.l.b16 %v5004
          %v5597 = vunpack.c.h.b16 %v5004
          %v5598 = vunpack.c.l.b16 %v5005
          %v5599 = vunpack.c.h.b16 %v5005
          %v5600 = vunpack.c.l.b16 %v5006
          %v5601 = vunpack.c.h.b16 %v5006
          %v5602 = vunpack.c.l.b16 %v5007
          %v5603 = vunpack.c.h.b16 %v5007
          %v5604 = vunpack.c.l.b16 %v5008
          %v5605 = vunpack.c.h.b16 %v5008
          %v5606 = vunpack.c.l.b16 %v5009
          %v5607 = vunpack.c.h.b16 %v5009
          %v5608 = vunpack.c.l.b16 %v5010
          %v5609 = vunpack.c.h.b16 %v5010
          %v5610 = vunpack.c.l.b16 %v5011
          %v5611 = vunpack.c.h.b16 %v5011
          %v5612 = vunpack.c.l.b16 %v5012
          %v5613 = vunpack.c.h.b16 %v5012
          %v5614 = vunpack.c.l.b16 %v5013
          %v5615 = vunpack.c.h.b16 %v5013
          %v5616 = vunpack.c.l.b16 %v5014
          %v5617 = vunpack.c.h.b16 %v5014
          %v5618 = vpack.c.b16 %v5556, %v5554
          %v5619 = vpack.c.b16 %v5557, %v5555
          %v5620 = vpack.c.b16 %v5560, %v5558
          %v5621 = vpack.c.b16 %v5561, %v5559
          %v5622 = vpack.c.b16 %v5564, %v5562
          %v5623 = vpack.c.b16 %v5565, %v5563
          %v5624 = vpack.c.b16 %v5568, %v5566
          %v5625 = vpack.c.b16 %v5569, %v5567
          %v5626 = vpack.c.b16 %v5572, %v5570
          %v5627 = vpack.c.b16 %v5573, %v5571
          %v5628 = vpack.c.b16 %v5576, %v5574
          %v5629 = vpack.c.b16 %v5577, %v5575
          %v5630 = vpack.c.b16 %v5580, %v5578
          %v5631 = vpack.c.b16 %v5581, %v5579
          %v5632 = vpack.c.b16 %v5584, %v5582
          %v5633 = vpack.c.b16 %v5585, %v5583
          %v5634 = vpack.c.b16 %v5588, %v5586
          %v5635 = vpack.c.b16 %v5589, %v5587
          %v5636 = vpack.c.b16 %v5592, %v5590
          %v5637 = vpack.c.b16 %v5593, %v5591
          %v5638 = vpack.c.b16 %v5596, %v5594
          %v5639 = vpack.c.b16 %v5597, %v5595
          %v5640 = vpack.c.b16 %v5600, %v5598
          %v5641 = vpack.c.b16 %v5601, %v5599
          %v5642 = vpack.c.b16 %v5604, %v5602
          %v5643 = vpack.c.b16 %v5605, %v5603
          %v5644 = vpack.c.b16 %v5608, %v5606
          %v5645 = vpack.c.b16 %v5609, %v5607
          %v5646 = vpack.c.b16 %v5612, %v5610
          %v5647 = vpack.c.b16 %v5613, %v5611
          %v5648 = vpack.c.b16 %v5616, %v5614
          %v5649 = vpack.c.b16 %v5617, %v5615
          %v5690 = vunpack.c.l.b16 %v5015
          %v5691 = vunpack.c.l.b16 %v5016
          %v5692 = vunpack.c.l.b16 %v5017
          %v5693 = vunpack.c.l.b16 %v5018
          %v5694 = vunpack.c.l.b16 %v5019
          %v5695 = vunpack.c.l.b16 %v5020
          %v5696 = vunpack.c.l.b16 %v5021
          %v5697 = vunpack.c.l.b16 %v5022
          %v5698 = vunpack.c.l.b16 %v5023
          %v5699 = vunpack.c.l.b16 %v5024
          %v5700 = vunpack.c.l.b16 %v5025
          %v5701 = vunpack.c.l.b16 %v5026
          %v5702 = vunpack.c.l.b16 %v5027
          %v5703 = vunpack.c.l.b16 %v5028
          %v5704 = vunpack.c.l.b16 %v5029
          %v5705 = vunpack.c.l.b16 %v5030
          %v5706 = vunpack.c.l.b16 %v5031
          %v5707 = vunpack.c.l.b16 %v5032
          %v5708 = vunpack.c.l.b16 %v5033
          %v5709 = vunpack.c.l.b16 %v5034
          %v5710 = vunpack.c.l.b16 %v5035
          %v5711 = vunpack.c.l.b16 %v5036
          %v5712 = vunpack.c.l.b16 %v5037
          %v5713 = vunpack.c.l.b16 %v5038
          %v5714 = vpack.c.b16 %v5691, %v5690
          %v5715 = vpack.c.b16 %v5693, %v5692
          %v5716 = vpack.c.b16 %v5695, %v5694
          %v5717 = vpack.c.b16 %v5697, %v5696
          %v5718 = vpack.c.b16 %v5699, %v5698
          %v5719 = vpack.c.b16 %v5701, %v5700
          %v5720 = vpack.c.b16 %v5703, %v5702
          %v5721 = vpack.c.b16 %v5705, %v5704
          %v5722 = vpack.c.b16 %v5707, %v5706
          %v5723 = vpack.c.b16 %v5709, %v5708
          %v5724 = vpack.c.b16 %v5711, %v5710
          %v5725 = vpack.c.b16 %v5713, %v5712
          %v5739 = vsel %vm5312, %v5619, 0
          %v5742 = vsel %vm5312, %v5621, 0
          %v5745 = vsel %vm5312, %v5623, 0
          %v5748 = vsel %vm5312, %v5625, 0
          %v5751 = vsel %vm5312, %v5627, 0
          %v5754 = vsel %vm5312, %v5629, 0
          %v5757 = vsel %vm5312, %v5631, 0
          %v5760 = vsel %vm5312, %v5633, 0
          %v5763 = vsel %vm5312, %v5635, 0
          %v5766 = vsel %vm5312, %v5637, 0
          %v5769 = vsel %vm5312, %v5639, 0
          %v5772 = vsel %vm5312, %v5641, 0
          %v5775 = vsel %vm5312, %v5643, 0
          %v5778 = vsel %vm5312, %v5645, 0
          %v5781 = vsel %vm5312, %v5647, 0
          %v5784 = vsel %vm5312, %v5649, 0
          %5786 = vmatprep.subr.bf16.mxu0 0
          %5787 = vmatpush1.bf16.msra.mxu0 %v5721
          %5788 = vmatprep.subr.bf16.mxu0 0
          %5789 = vmatpush1.bf16.msra.mxu0 %v5720
          %5790 = vmatprep.subr.bf16.mxu0 0
          %5791 = vmatpush1.bf16.msra.mxu0 %v5719
          %5792 = vmatprep.subr.bf16.mxu0 0
          %5793 = vmatpush1.bf16.msra.mxu0 %v5718
          %5794 = vmatprep.subr.bf16.mxu0 0
          %5795 = vmatpush1.bf16.msra.mxu0 %v5717
          %5796 = vmatprep.subr.bf16.mxu0 0
          %5797 = vmatpush1.bf16.msra.mxu0 %v5716
          %5798 = vmatprep.subr.bf16.mxu0 0
          %5799 = vmatpush1.bf16.msra.mxu0 %v5715
          %5800 = vmatprep.subr.bf16.mxu0 0
          %5801 = vmatpush1.bf16.msra.mxu0 %v5714
          %5802 = vmatprep.subr.bf16.mxu0 0
          %5803 = vmatpush2.bf16.msra.mxu0 0
          %5804 = vmatprep.subr.bf16.mxu0 0
          %5805 = vmatpush2.bf16.msra.mxu0 0
          %5806 = vmatprep.subr.bf16.mxu0 0
          %5807 = vmatpush2.bf16.msra.mxu0 0
          %5808 = vmatprep.subr.bf16.mxu0 0
          %5809 = vmatpush2.bf16.msra.mxu0 0
          %5810 = vmatprep.subr.bf16.mxu0 0
          %5811 = vmatpush2.bf16.msra.mxu0 %v5725
          %5812 = vmatprep.subr.bf16.mxu0 0
          %5813 = vmatpush2.bf16.msra.mxu0 %v5724
          %5814 = vmatprep.subr.bf16.mxu0 0
          %5815 = vmatpush2.bf16.msra.mxu0 %v5723
          %5816 = vmatprep.subr.bf16.mxu0 0
          %5817 = vmatpush2.bf16.msra.mxu0 %v5722
          %5818 = vmatprep.mubr.bf16.mxu0 %v5739
          %5819 = vmatmul.mubr.bf16.gmra.mxu0 %v5618
          %v5820 = vpop.f32.mrf.mxu0
          %v5821 = vadd.f32 %v5396, %v5820
          %v5822 = vpop.f32.mrf.mxu0
          %v5823 = vpop.f32.mrf.mxu0
          %v5824 = vadd.f32 %v5399, %v5823
          %v5825 = vpop.f32.mrf.mxu0
          %5826 = vmatprep.mubr.bf16.mxu0 %v5742
          %5827 = vmatmul.mubr.bf16.gmra.mxu0 %v5620
          %v5828 = vpop.f32.mrf.mxu0
          %v5829 = vadd.f32 %v5404, %v5828
          %v5830 = vpop.f32.mrf.mxu0
          %v5831 = vpop.f32.mrf.mxu0
          %v5832 = vadd.f32 %v5407, %v5831
          %v5833 = vpop.f32.mrf.mxu0
          %5834 = vmatprep.mubr.bf16.mxu0 %v5745
          %5835 = vmatmul.mubr.bf16.gmra.mxu0 %v5622
          %v5836 = vpop.f32.mrf.mxu0
          %v5837 = vadd.f32 %v5412, %v5836
          %v5838 = vpop.f32.mrf.mxu0
          %v5839 = vpop.f32.mrf.mxu0
          %v5840 = vadd.f32 %v5415, %v5839
          %v5841 = vpop.f32.mrf.mxu0
          %5842 = vmatprep.mubr.bf16.mxu0 %v5748
          %5843 = vmatmul.mubr.bf16.gmra.mxu0 %v5624
          %v5844 = vpop.f32.mrf.mxu0
          %v5845 = vadd.f32 %v5420, %v5844
          %v5846 = vpop.f32.mrf.mxu0
          %v5847 = vpop.f32.mrf.mxu0
          %v5848 = vadd.f32 %v5423, %v5847
          %v5849 = vpop.f32.mrf.mxu0
          %5850 = vmatprep.mubr.bf16.mxu0 %v5751
          %5851 = vmatmul.mubr.bf16.gmra.mxu0 %v5626
          %v5852 = vpop.f32.mrf.mxu0
          %v5853 = vadd.f32 %v5428, %v5852
          %v5854 = vpop.f32.mrf.mxu0
          %v5855 = vpop.f32.mrf.mxu0
          %v5856 = vadd.f32 %v5431, %v5855
          %v5857 = vpop.f32.mrf.mxu0
          %5858 = vmatprep.mubr.bf16.mxu0 %v5754
          %5859 = vmatmul.mubr.bf16.gmra.mxu0 %v5628
          %v5860 = vpop.f32.mrf.mxu0
          %v5861 = vadd.f32 %v5436, %v5860
          %v5862 = vpop.f32.mrf.mxu0
          %v5863 = vpop.f32.mrf.mxu0
          %v5864 = vadd.f32 %v5439, %v5863
          %v5865 = vpop.f32.mrf.mxu0
          %5866 = vmatprep.mubr.bf16.mxu0 %v5757
          %5867 = vmatmul.mubr.bf16.gmra.mxu0 %v5630
          %v5868 = vpop.f32.mrf.mxu0
          %v5869 = vadd.f32 %v5444, %v5868
          %v5870 = vpop.f32.mrf.mxu0
          %v5871 = vpop.f32.mrf.mxu0
          %v5872 = vadd.f32 %v5447, %v5871
          %v5873 = vpop.f32.mrf.mxu0
          %5874 = vmatprep.mubr.bf16.mxu0 %v5760
          %5875 = vmatmul.mubr.bf16.gmra.mxu0 %v5632
          %v5876 = vpop.f32.mrf.mxu0
          %v5877 = vadd.f32 %v5452, %v5876
          %v5878 = vpop.f32.mrf.mxu0
          %v5879 = vpop.f32.mrf.mxu0
          %v5880 = vadd.f32 %v5455, %v5879
          %v5881 = vpop.f32.mrf.mxu0
          %5882 = vmatprep.mubr.bf16.mxu0 %v5763
          %5883 = vmatmul.mubr.bf16.gmra.mxu0 %v5634
          %v5884 = vpop.f32.mrf.mxu0
          %v5885 = vadd.f32 %v5460, %v5884
          %v5886 = vpop.f32.mrf.mxu0
          %v5887 = vpop.f32.mrf.mxu0
          %v5888 = vadd.f32 %v5463, %v5887
          %v5889 = vpop.f32.mrf.mxu0
          %5890 = vmatprep.mubr.bf16.mxu0 %v5766
          %5891 = vmatmul.mubr.bf16.gmra.mxu0 %v5636
          %v5892 = vpop.f32.mrf.mxu0
          %v5893 = vadd.f32 %v5468, %v5892
          %v5894 = vpop.f32.mrf.mxu0
          %v5895 = vpop.f32.mrf.mxu0
          %v5896 = vadd.f32 %v5471, %v5895
          %v5897 = vpop.f32.mrf.mxu0
          %5898 = vmatprep.mubr.bf16.mxu0 %v5769
          %5899 = vmatmul.mubr.bf16.gmra.mxu0 %v5638
          %v5900 = vpop.f32.mrf.mxu0
          %v5901 = vadd.f32 %v5476, %v5900
          %v5902 = vpop.f32.mrf.mxu0
          %v5903 = vpop.f32.mrf.mxu0
          %v5904 = vadd.f32 %v5479, %v5903
          %v5905 = vpop.f32.mrf.mxu0
          %5906 = vmatprep.mubr.bf16.mxu0 %v5772
          %5907 = vmatmul.mubr.bf16.gmra.mxu0 %v5640
          %v5908 = vpop.f32.mrf.mxu0
          %v5909 = vadd.f32 %v5484, %v5908
          %v5910 = vpop.f32.mrf.mxu0
          %v5911 = vpop.f32.mrf.mxu0
          %v5912 = vadd.f32 %v5487, %v5911
          %v5913 = vpop.f32.mrf.mxu0
          %5914 = vmatprep.mubr.bf16.mxu0 %v5775
          %5915 = vmatmul.mubr.bf16.gmra.mxu0 %v5642
          %v5916 = vpop.f32.mrf.mxu0
          %v5917 = vadd.f32 %v5492, %v5916
          %v5918 = vpop.f32.mrf.mxu0
          %v5919 = vpop.f32.mrf.mxu0
          %v5920 = vadd.f32 %v5495, %v5919
          %v5921 = vpop.f32.mrf.mxu0
          %5922 = vmatprep.mubr.bf16.mxu0 %v5778
          %5923 = vmatmul.mubr.bf16.gmra.mxu0 %v5644
          %v5924 = vpop.f32.mrf.mxu0
          %v5925 = vadd.f32 %v5500, %v5924
          %v5926 = vpop.f32.mrf.mxu0
          %v5927 = vpop.f32.mrf.mxu0
          %v5928 = vadd.f32 %v5503, %v5927
          %v5929 = vpop.f32.mrf.mxu0
          %5930 = vmatprep.mubr.bf16.mxu0 %v5781
          %5931 = vmatmul.mubr.bf16.gmra.mxu0 %v5646
          %v5932 = vpop.f32.mrf.mxu0
          %v5933 = vadd.f32 %v5508, %v5932
          %v5934 = vpop.f32.mrf.mxu0
          %v5935 = vpop.f32.mrf.mxu0
          %v5936 = vadd.f32 %v5511, %v5935
          %v5937 = vpop.f32.mrf.mxu0
          %5938 = vmatprep.mubr.bf16.mxu0 %v5784
          %5939 = vmatmul.mubr.bf16.gmra.mxu0 %v5648
          %v5940 = vpop.f32.mrf.mxu0
          %v5941 = vadd.f32 %v5516, %v5940
          %v5942 = vpop.f32.mrf.mxu0
          %v5943 = vpop.f32.mrf.mxu0
          %v5944 = vadd.f32 %v5519, %v5943
          %v5945 = vpop.f32.mrf.mxu0
          %5946 = vdwg.mxu0
          %s5947 = scalar_lea.vmem [#allocation4], 32
          %v5948 = vld [vmem:[%s5947] sm:$0xff]
          %v5949 = vld [vmem:[%s5947 + $0x8] sm:$0xff]
          %v5950 = vld [vmem:[%s5947 + $0x10] sm:$0xff]
          %v5951 = vld [vmem:[%s5947 + $0x18] sm:$0xff]
          %v5952 = vld [vmem:[%s5947 + $0x20] sm:$0xff]
          %v5953 = vld [vmem:[%s5947 + $0x28] sm:$0xff]
          %v5954 = vld [vmem:[%s5947 + $0x30] sm:$0xff]
          %v5955 = vld [vmem:[%s5947 + $0x38] sm:$0xff]
          %v5956 = vld [vmem:[%s5947 + $0x40] sm:$0xff]
          %v5957 = vld [vmem:[%s5947 + $0x48] sm:$0xff]
          %v5958 = vld [vmem:[%s5947 + $0x50] sm:$0xff]
          %v5959 = vld [vmem:[%s5947 + $0x58] sm:$0xff]
          %v5960 = vld [vmem:[%s5947 + $0x60] sm:$0xff]
          %v5961 = vld [vmem:[%s5947 + $0x68] sm:$0xff]
          %v5962 = vld [vmem:[%s5947 + $0x70] sm:$0xff]
          %v5963 = vld [vmem:[%s5947 + $0x78] sm:$0xff]
          %v5964 = vld [vmem:[%s5947 + $0x80] sm:$0xff]
          %v5965 = vld [vmem:[%s5947 + $0x88] sm:$0xff]
          %v5966 = vld [vmem:[%s5947 + $0x90] sm:$0xff]
          %v5967 = vld [vmem:[%s5947 + $0x98] sm:$0xff]
          %v5968 = vld [vmem:[%s5947 + $0xa0] sm:$0xff]
          %v5969 = vld [vmem:[%s5947 + $0xa8] sm:$0xff]
          %v5970 = vld [vmem:[%s5947 + $0xb0] sm:$0xff]
          %v5971 = vld [vmem:[%s5947 + $0xb8] sm:$0xff]
          %v5972 = vld [vmem:[%s5947 + $0xc0] sm:$0xff]
          %v5973 = vld [vmem:[%s5947 + $0xc8] sm:$0xff]
          %v5974 = vld [vmem:[%s5947 + $0xd0] sm:$0xff]
          %v5975 = vld [vmem:[%s5947 + $0xd8] sm:$0xff]
          %v5976 = vld [vmem:[%s5947 + $0xe0] sm:$0xff]
          %v5977 = vld [vmem:[%s5947 + $0xe8] sm:$0xff]
          %v5978 = vld [vmem:[%s5947 + $0xf0] sm:$0xff]
          %v5979 = vld [vmem:[%s5947 + $0xf8] sm:$0xff]
          %s5980 = scalar_lea.vmem %s3, 192
          %v5981 = vld [vmem:[%s5980] sm:$0xf]
          %v5982 = vld [vmem:[%s5980 + $0x4] sm:$0xf]
          %v5983 = vld [vmem:[%s5980 + $0x8] sm:$0xf]
          %v5984 = vld [vmem:[%s5980 + $0xc] sm:$0xf]
          %v5985 = vld [vmem:[%s5980 + $0x10] sm:$0xf]
          %v5986 = vld [vmem:[%s5980 + $0x14] sm:$0xf]
          %v5987 = vld [vmem:[%s5980 + $0x18] sm:$0xf]
          %v5988 = vld [vmem:[%s5980 + $0x1c] sm:$0xf]
          %v5989 = vld [vmem:[%s5980 + $0x20] sm:$0xf]
          %v5990 = vld [vmem:[%s5980 + $0x24] sm:$0xf]
          %v5991 = vld [vmem:[%s5980 + $0x28] sm:$0xf]
          %v5992 = vld [vmem:[%s5980 + $0x2c] sm:$0xf]
          %v5993 = vld [vmem:[%s5980 + $0x30] sm:$0xf]
          %v5994 = vld [vmem:[%s5980 + $0x34] sm:$0xf]
          %v5995 = vld [vmem:[%s5980 + $0x38] sm:$0xf]
          %v5996 = vld [vmem:[%s5980 + $0x3c] sm:$0xf]
          %v5997 = vld [vmem:[%s5980 + $0x40] sm:$0xf]
          %v5998 = vld [vmem:[%s5980 + $0x44] sm:$0xf]
          %v5999 = vld [vmem:[%s5980 + $0x48] sm:$0xf]
          %v6000 = vld [vmem:[%s5980 + $0x4c] sm:$0xf]
          %v6001 = vld [vmem:[%s5980 + $0x50] sm:$0xf]
          %v6002 = vld [vmem:[%s5980 + $0x54] sm:$0xf]
          %v6003 = vld [vmem:[%s5980 + $0x58] sm:$0xf]
          %v6004 = vld [vmem:[%s5980 + $0x5c] sm:$0xf]
          %v6037 = vunpack.c.l.b16 %v5948
          %v6038 = vunpack.c.h.b16 %v5948
          %v6039 = vunpack.c.l.b16 %v5949
          %v6040 = vunpack.c.h.b16 %v5949
          %v6041 = vunpack.c.l.b16 %v5950
          %v6042 = vunpack.c.h.b16 %v5950
          %v6043 = vunpack.c.l.b16 %v5951
          %v6044 = vunpack.c.h.b16 %v5951
          %v6045 = vunpack.c.l.b16 %v5952
          %v6046 = vunpack.c.h.b16 %v5952
          %v6047 = vunpack.c.l.b16 %v5953
          %v6048 = vunpack.c.h.b16 %v5953
          %v6049 = vunpack.c.l.b16 %v5954
          %v6050 = vunpack.c.h.b16 %v5954
          %v6051 = vunpack.c.l.b16 %v5955
          %v6052 = vunpack.c.h.b16 %v5955
          %v6053 = vunpack.c.l.b16 %v5956
          %v6054 = vunpack.c.h.b16 %v5956
          %v6055 = vunpack.c.l.b16 %v5957
          %v6056 = vunpack.c.h.b16 %v5957
          %v6057 = vunpack.c.l.b16 %v5958
          %v6058 = vunpack.c.h.b16 %v5958
          %v6059 = vunpack.c.l.b16 %v5959
          %v6060 = vunpack.c.h.b16 %v5959
          %v6061 = vunpack.c.l.b16 %v5960
          %v6062 = vunpack.c.h.b16 %v5960
          %v6063 = vunpack.c.l.b16 %v5961
          %v6064 = vunpack.c.h.b16 %v5961
          %v6065 = vunpack.c.l.b16 %v5962
          %v6066 = vunpack.c.h.b16 %v5962
          %v6067 = vunpack.c.l.b16 %v5963
          %v6068 = vunpack.c.h.b16 %v5963
          %v6069 = vunpack.c.l.b16 %v5964
          %v6070 = vunpack.c.h.b16 %v5964
          %v6071 = vunpack.c.l.b16 %v5965
          %v6072 = vunpack.c.h.b16 %v5965
          %v6073 = vunpack.c.l.b16 %v5966
          %v6074 = vunpack.c.h.b16 %v5966
          %v6075 = vunpack.c.l.b16 %v5967
          %v6076 = vunpack.c.h.b16 %v5967
          %v6077 = vunpack.c.l.b16 %v5968
          %v6078 = vunpack.c.h.b16 %v5968
          %v6079 = vunpack.c.l.b16 %v5969
          %v6080 = vunpack.c.h.b16 %v5969
          %v6081 = vunpack.c.l.b16 %v5970
          %v6082 = vunpack.c.h.b16 %v5970
          %v6083 = vunpack.c.l.b16 %v5971
          %v6084 = vunpack.c.h.b16 %v5971
          %v6085 = vunpack.c.l.b16 %v5972
          %v6086 = vunpack.c.h.b16 %v5972
          %v6087 = vunpack.c.l.b16 %v5973
          %v6088 = vunpack.c.h.b16 %v5973
          %v6089 = vunpack.c.l.b16 %v5974
          %v6090 = vunpack.c.h.b16 %v5974
          %v6091 = vunpack.c.l.b16 %v5975
          %v6092 = vunpack.c.h.b16 %v5975
          %v6093 = vunpack.c.l.b16 %v5976
          %v6094 = vunpack.c.h.b16 %v5976
          %v6095 = vunpack.c.l.b16 %v5977
          %v6096 = vunpack.c.h.b16 %v5977
          %v6097 = vunpack.c.l.b16 %v5978
          %v6098 = vunpack.c.h.b16 %v5978
          %v6099 = vunpack.c.l.b16 %v5979
          %v6100 = vunpack.c.h.b16 %v5979
          %v6101 = vpack.c.b16 %v6039, %v6037
          %v6102 = vpack.c.b16 %v6040, %v6038
          %v6103 = vpack.c.b16 %v6043, %v6041
          %v6104 = vpack.c.b16 %v6044, %v6042
          %v6105 = vpack.c.b16 %v6047, %v6045
          %v6106 = vpack.c.b16 %v6048, %v6046
          %v6107 = vpack.c.b16 %v6051, %v6049
          %v6108 = vpack.c.b16 %v6052, %v6050
          %v6109 = vpack.c.b16 %v6055, %v6053
          %v6110 = vpack.c.b16 %v6056, %v6054
          %v6111 = vpack.c.b16 %v6059, %v6057
          %v6112 = vpack.c.b16 %v6060, %v6058
          %v6113 = vpack.c.b16 %v6063, %v6061
          %v6114 = vpack.c.b16 %v6064, %v6062
          %v6115 = vpack.c.b16 %v6067, %v6065
          %v6116 = vpack.c.b16 %v6068, %v6066
          %v6117 = vpack.c.b16 %v6071, %v6069
          %v6118 = vpack.c.b16 %v6072, %v6070
          %v6119 = vpack.c.b16 %v6075, %v6073
          %v6120 = vpack.c.b16 %v6076, %v6074
          %v6121 = vpack.c.b16 %v6079, %v6077
          %v6122 = vpack.c.b16 %v6080, %v6078
          %v6123 = vpack.c.b16 %v6083, %v6081
          %v6124 = vpack.c.b16 %v6084, %v6082
          %v6125 = vpack.c.b16 %v6087, %v6085
          %v6126 = vpack.c.b16 %v6088, %v6086
          %v6127 = vpack.c.b16 %v6091, %v6089
          %v6128 = vpack.c.b16 %v6092, %v6090
          %v6129 = vpack.c.b16 %v6095, %v6093
          %v6130 = vpack.c.b16 %v6096, %v6094
          %v6131 = vpack.c.b16 %v6099, %v6097
          %v6132 = vpack.c.b16 %v6100, %v6098
          %v6173 = vunpack.c.l.b16 %v5981
          %v6174 = vunpack.c.l.b16 %v5982
          %v6175 = vunpack.c.l.b16 %v5983
          %v6176 = vunpack.c.l.b16 %v5984
          %v6177 = vunpack.c.l.b16 %v5985
          %v6178 = vunpack.c.l.b16 %v5986
          %v6179 = vunpack.c.l.b16 %v5987
          %v6180 = vunpack.c.l.b16 %v5988
          %v6181 = vunpack.c.l.b16 %v5989
          %v6182 = vunpack.c.l.b16 %v5990
          %v6183 = vunpack.c.l.b16 %v5991
          %v6184 = vunpack.c.l.b16 %v5992
          %v6185 = vunpack.c.l.b16 %v5993
          %v6186 = vunpack.c.l.b16 %v5994
          %v6187 = vunpack.c.l.b16 %v5995
          %v6188 = vunpack.c.l.b16 %v5996
          %v6189 = vunpack.c.l.b16 %v5997
          %v6190 = vunpack.c.l.b16 %v5998
          %v6191 = vunpack.c.l.b16 %v5999
          %v6192 = vunpack.c.l.b16 %v6000
          %v6193 = vunpack.c.l.b16 %v6001
          %v6194 = vunpack.c.l.b16 %v6002
          %v6195 = vunpack.c.l.b16 %v6003
          %v6196 = vunpack.c.l.b16 %v6004
          %v6197 = vpack.c.b16 %v6174, %v6173
          %v6198 = vpack.c.b16 %v6176, %v6175
          %v6199 = vpack.c.b16 %v6178, %v6177
          %v6200 = vpack.c.b16 %v6180, %v6179
          %v6201 = vpack.c.b16 %v6182, %v6181
          %v6202 = vpack.c.b16 %v6184, %v6183
          %v6203 = vpack.c.b16 %v6186, %v6185
          %v6204 = vpack.c.b16 %v6188, %v6187
          %v6205 = vpack.c.b16 %v6190, %v6189
          %v6206 = vpack.c.b16 %v6192, %v6191
          %v6207 = vpack.c.b16 %v6194, %v6193
          %v6208 = vpack.c.b16 %v6196, %v6195
          %v6222 = vsel %vm5312, %v6102, 0
          %v6225 = vsel %vm5312, %v6104, 0
          %v6228 = vsel %vm5312, %v6106, 0
          %v6231 = vsel %vm5312, %v6108, 0
          %v6234 = vsel %vm5312, %v6110, 0
          %v6237 = vsel %vm5312, %v6112, 0
          %v6240 = vsel %vm5312, %v6114, 0
          %v6243 = vsel %vm5312, %v6116, 0
          %v6246 = vsel %vm5312, %v6118, 0
          %v6249 = vsel %vm5312, %v6120, 0
          %v6252 = vsel %vm5312, %v6122, 0
          %v6255 = vsel %vm5312, %v6124, 0
          %v6258 = vsel %vm5312, %v6126, 0
          %v6261 = vsel %vm5312, %v6128, 0
          %v6264 = vsel %vm5312, %v6130, 0
          %v6267 = vsel %vm5312, %v6132, 0
          %6269 = vmatprep.subr.bf16.mxu0 0
          %6270 = vmatpush1.bf16.msra.mxu0 %v6204
          %6271 = vmatprep.subr.bf16.mxu0 0
          %6272 = vmatpush1.bf16.msra.mxu0 %v6203
          %6273 = vmatprep.subr.bf16.mxu0 0
          %6274 = vmatpush1.bf16.msra.mxu0 %v6202
          %6275 = vmatprep.subr.bf16.mxu0 0
          %6276 = vmatpush1.bf16.msra.mxu0 %v6201
          %6277 = vmatprep.subr.bf16.mxu0 0
          %6278 = vmatpush1.bf16.msra.mxu0 %v6200
          %6279 = vmatprep.subr.bf16.mxu0 0
          %6280 = vmatpush1.bf16.msra.mxu0 %v6199
          %6281 = vmatprep.subr.bf16.mxu0 0
          %6282 = vmatpush1.bf16.msra.mxu0 %v6198
          %6283 = vmatprep.subr.bf16.mxu0 0
          %6284 = vmatpush1.bf16.msra.mxu0 %v6197
          %6285 = vmatprep.subr.bf16.mxu0 0
          %6286 = vmatpush2.bf16.msra.mxu0 0
          %6287 = vmatprep.subr.bf16.mxu0 0
          %6288 = vmatpush2.bf16.msra.mxu0 0
          %6289 = vmatprep.subr.bf16.mxu0 0
          %6290 = vmatpush2.bf16.msra.mxu0 0
          %6291 = vmatprep.subr.bf16.mxu0 0
          %6292 = vmatpush2.bf16.msra.mxu0 0
          %6293 = vmatprep.subr.bf16.mxu0 0
          %6294 = vmatpush2.bf16.msra.mxu0 %v6208
          %6295 = vmatprep.subr.bf16.mxu0 0
          %6296 = vmatpush2.bf16.msra.mxu0 %v6207
          %6297 = vmatprep.subr.bf16.mxu0 0
          %6298 = vmatpush2.bf16.msra.mxu0 %v6206
          %6299 = vmatprep.subr.bf16.mxu0 0
          %6300 = vmatpush2.bf16.msra.mxu0 %v6205
          %6301 = vmatprep.mubr.bf16.mxu0 %v6222
          %6302 = vmatmul.mubr.bf16.gmra.mxu0 %v6101
          %v6303 = vpop.f32.mrf.mxu0
          %v6304 = vadd.f32 0.0, %v6303
          %v6305 = vpop.f32.mrf.mxu0
          %v6306 = vpop.f32.mrf.mxu0
          %v6307 = vadd.f32 0.0, %v6306
          %v6308 = vpop.f32.mrf.mxu0
          %6309 = vmatprep.mubr.bf16.mxu0 %v6225
          %6310 = vmatmul.mubr.bf16.gmra.mxu0 %v6103
          %v6311 = vpop.f32.mrf.mxu0
          %v6312 = vadd.f32 0.0, %v6311
          %v6313 = vpop.f32.mrf.mxu0
          %v6314 = vpop.f32.mrf.mxu0
          %v6315 = vadd.f32 0.0, %v6314
          %v6316 = vpop.f32.mrf.mxu0
          %6317 = vmatprep.mubr.bf16.mxu0 %v6228
          %6318 = vmatmul.mubr.bf16.gmra.mxu0 %v6105
          %v6319 = vpop.f32.mrf.mxu0
          %v6320 = vadd.f32 0.0, %v6319
          %v6321 = vpop.f32.mrf.mxu0
          %v6322 = vpop.f32.mrf.mxu0
          %v6323 = vadd.f32 0.0, %v6322
          %v6324 = vpop.f32.mrf.mxu0
          %6325 = vmatprep.mubr.bf16.mxu0 %v6231
          %6326 = vmatmul.mubr.bf16.gmra.mxu0 %v6107
          %v6327 = vpop.f32.mrf.mxu0
          %v6328 = vadd.f32 0.0, %v6327
          %v6329 = vpop.f32.mrf.mxu0
          %v6330 = vpop.f32.mrf.mxu0
          %v6331 = vadd.f32 0.0, %v6330
          %v6332 = vpop.f32.mrf.mxu0
          %6333 = vmatprep.mubr.bf16.mxu0 %v6234
          %6334 = vmatmul.mubr.bf16.gmra.mxu0 %v6109
          %v6335 = vpop.f32.mrf.mxu0
          %v6336 = vadd.f32 0.0, %v6335
          %v6337 = vpop.f32.mrf.mxu0
          %v6338 = vpop.f32.mrf.mxu0
          %v6339 = vadd.f32 0.0, %v6338
          %v6340 = vpop.f32.mrf.mxu0
          %6341 = vmatprep.mubr.bf16.mxu0 %v6237
          %6342 = vmatmul.mubr.bf16.gmra.mxu0 %v6111
          %v6343 = vpop.f32.mrf.mxu0
          %v6344 = vadd.f32 0.0, %v6343
          %v6345 = vpop.f32.mrf.mxu0
          %v6346 = vpop.f32.mrf.mxu0
          %v6347 = vadd.f32 0.0, %v6346
          %v6348 = vpop.f32.mrf.mxu0
          %6349 = vmatprep.mubr.bf16.mxu0 %v6240
          %6350 = vmatmul.mubr.bf16.gmra.mxu0 %v6113
          %v6351 = vpop.f32.mrf.mxu0
          %v6352 = vadd.f32 0.0, %v6351
          %v6353 = vpop.f32.mrf.mxu0
          %v6354 = vpop.f32.mrf.mxu0
          %v6355 = vadd.f32 0.0, %v6354
          %v6356 = vpop.f32.mrf.mxu0
          %6357 = vmatprep.mubr.bf16.mxu0 %v6243
          %6358 = vmatmul.mubr.bf16.gmra.mxu0 %v6115
          %v6359 = vpop.f32.mrf.mxu0
          %v6360 = vadd.f32 0.0, %v6359
          %v6361 = vpop.f32.mrf.mxu0
          %v6362 = vpop.f32.mrf.mxu0
          %v6363 = vadd.f32 0.0, %v6362
          %v6364 = vpop.f32.mrf.mxu0
          %6365 = vmatprep.mubr.bf16.mxu0 %v6246
          %6366 = vmatmul.mubr.bf16.gmra.mxu0 %v6117
          %v6367 = vpop.f32.mrf.mxu0
          %v6368 = vadd.f32 0.0, %v6367
          %v6369 = vpop.f32.mrf.mxu0
          %v6370 = vpop.f32.mrf.mxu0
          %v6371 = vadd.f32 0.0, %v6370
          %v6372 = vpop.f32.mrf.mxu0
          %6373 = vmatprep.mubr.bf16.mxu0 %v6249
          %6374 = vmatmul.mubr.bf16.gmra.mxu0 %v6119
          %v6375 = vpop.f32.mrf.mxu0
          %v6376 = vadd.f32 0.0, %v6375
          %v6377 = vpop.f32.mrf.mxu0
          %v6378 = vpop.f32.mrf.mxu0
          %v6379 = vadd.f32 0.0, %v6378
          %v6380 = vpop.f32.mrf.mxu0
          %6381 = vmatprep.mubr.bf16.mxu0 %v6252
          %6382 = vmatmul.mubr.bf16.gmra.mxu0 %v6121
          %v6383 = vpop.f32.mrf.mxu0
          %v6384 = vadd.f32 0.0, %v6383
          %v6385 = vpop.f32.mrf.mxu0
          %v6386 = vpop.f32.mrf.mxu0
          %v6387 = vadd.f32 0.0, %v6386
          %v6388 = vpop.f32.mrf.mxu0
          %6389 = vmatprep.mubr.bf16.mxu0 %v6255
          %6390 = vmatmul.mubr.bf16.gmra.mxu0 %v6123
          %v6391 = vpop.f32.mrf.mxu0
          %v6392 = vadd.f32 0.0, %v6391
          %v6393 = vpop.f32.mrf.mxu0
          %v6394 = vpop.f32.mrf.mxu0
          %v6395 = vadd.f32 0.0, %v6394
          %v6396 = vpop.f32.mrf.mxu0
          %6397 = vmatprep.mubr.bf16.mxu0 %v6258
          %6398 = vmatmul.mubr.bf16.gmra.mxu0 %v6125
          %v6399 = vpop.f32.mrf.mxu0
          %v6400 = vadd.f32 0.0, %v6399
          %v6401 = vpop.f32.mrf.mxu0
          %v6402 = vpop.f32.mrf.mxu0
          %v6403 = vadd.f32 0.0, %v6402
          %v6404 = vpop.f32.mrf.mxu0
          %6405 = vmatprep.mubr.bf16.mxu0 %v6261
          %6406 = vmatmul.mubr.bf16.gmra.mxu0 %v6127
          %v6407 = vpop.f32.mrf.mxu0
          %v6408 = vadd.f32 0.0, %v6407
          %v6409 = vpop.f32.mrf.mxu0
          %v6410 = vpop.f32.mrf.mxu0
          %v6411 = vadd.f32 0.0, %v6410
          %v6412 = vpop.f32.mrf.mxu0
          %6413 = vmatprep.mubr.bf16.mxu0 %v6264
          %6414 = vmatmul.mubr.bf16.gmra.mxu0 %v6129
          %v6415 = vpop.f32.mrf.mxu0
          %v6416 = vadd.f32 0.0, %v6415
          %v6417 = vpop.f32.mrf.mxu0
          %v6418 = vpop.f32.mrf.mxu0
          %v6419 = vadd.f32 0.0, %v6418
          %v6420 = vpop.f32.mrf.mxu0
          %6421 = vmatprep.mubr.bf16.mxu0 %v6267
          %6422 = vmatmul.mubr.bf16.gmra.mxu0 %v6131
          %v6423 = vpop.f32.mrf.mxu0
          %v6424 = vadd.f32 0.0, %v6423
          %v6425 = vpop.f32.mrf.mxu0
          %v6426 = vpop.f32.mrf.mxu0
          %v6427 = vadd.f32 0.0, %v6426
          %v6428 = vpop.f32.mrf.mxu0
          %6429 = vdwg.mxu0
          %v6430 = vadd.f32 %v5821, %v6304
          %v6431 = vadd.f32 %v5824, %v6307
          %v6432 = vadd.f32 %v5829, %v6312
          %v6433 = vadd.f32 %v5832, %v6315
          %v6434 = vadd.f32 %v5837, %v6320
          %v6435 = vadd.f32 %v5840, %v6323
          %v6436 = vadd.f32 %v5845, %v6328
          %v6437 = vadd.f32 %v5848, %v6331
          %v6438 = vadd.f32 %v5853, %v6336
          %v6439 = vadd.f32 %v5856, %v6339
          %v6440 = vadd.f32 %v5861, %v6344
          %v6441 = vadd.f32 %v5864, %v6347
          %v6442 = vadd.f32 %v5869, %v6352
          %v6443 = vadd.f32 %v5872, %v6355
          %v6444 = vadd.f32 %v5877, %v6360
          %v6445 = vadd.f32 %v5880, %v6363
          %v6446 = vadd.f32 %v5885, %v6368
          %v6447 = vadd.f32 %v5888, %v6371
          %v6448 = vadd.f32 %v5893, %v6376
          %v6449 = vadd.f32 %v5896, %v6379
          %v6450 = vadd.f32 %v5901, %v6384
          %v6451 = vadd.f32 %v5904, %v6387
          %v6452 = vadd.f32 %v5909, %v6392
          %v6453 = vadd.f32 %v5912, %v6395
          %v6454 = vadd.f32 %v5917, %v6400
          %v6455 = vadd.f32 %v5920, %v6403
          %v6456 = vadd.f32 %v5925, %v6408
          %v6457 = vadd.f32 %v5928, %v6411
          %v6458 = vadd.f32 %v5933, %v6416
          %v6459 = vadd.f32 %v5936, %v6419
          %v6460 = vadd.f32 %v5941, %v6424
          %v6461 = vadd.f32 %v5944, %v6427
          %v6462 = vld [vmem:[%s4] sm:$0x1]
          %v6464 = vlaneseq
          %v6465 = vshrl.u32 %v6464, 7
          %v6466 = vsub.s32 0, %v6465
          %v6467 = vrot.slane %v6462, %v6466
          %v6469 = vadd.f32 %v6430, %v6467
          %v6470 = vadd.f32 %v6431, %v6467
          %v6471 = vadd.f32 %v6432, %v6467
          %v6472 = vadd.f32 %v6433, %v6467
          %v6473 = vadd.f32 %v6434, %v6467
          %v6474 = vadd.f32 %v6435, %v6467
          %v6475 = vadd.f32 %v6436, %v6467
          %v6476 = vadd.f32 %v6437, %v6467
          %v6477 = vadd.f32 %v6438, %v6467
          %v6478 = vadd.f32 %v6439, %v6467
          %v6479 = vadd.f32 %v6440, %v6467
          %v6480 = vadd.f32 %v6441, %v6467
          %v6481 = vadd.f32 %v6442, %v6467
          %v6482 = vadd.f32 %v6443, %v6467
          %v6483 = vadd.f32 %v6444, %v6467
          %v6484 = vadd.f32 %v6445, %v6467
          %v6485 = vadd.f32 %v6446, %v6467
          %v6486 = vadd.f32 %v6447, %v6467
          %v6487 = vadd.f32 %v6448, %v6467
          %v6488 = vadd.f32 %v6449, %v6467
          %v6489 = vadd.f32 %v6450, %v6467
          %v6490 = vadd.f32 %v6451, %v6467
          %v6491 = vadd.f32 %v6452, %v6467
          %v6492 = vadd.f32 %v6453, %v6467
          %v6493 = vadd.f32 %v6454, %v6467
          %v6494 = vadd.f32 %v6455, %v6467
          %v6495 = vadd.f32 %v6456, %v6467
          %v6496 = vadd.f32 %v6457, %v6467
          %v6497 = vadd.f32 %v6458, %v6467
          %v6498 = vadd.f32 %v6459, %v6467
          %v6499 = vadd.f32 %v6460, %v6467
          %v6500 = vadd.f32 %v6461, %v6467
          %v6501 = vadd.f32 %v6469, %v6469
          %v6502 = vadd.f32 %v6470, %v6470
          %v6503 = vadd.f32 %v6471, %v6471
          %v6504 = vadd.f32 %v6472, %v6472
          %v6505 = vadd.f32 %v6473, %v6473
          %v6506 = vadd.f32 %v6474, %v6474
          %v6507 = vadd.f32 %v6475, %v6475
          %v6508 = vadd.f32 %v6476, %v6476
          %v6509 = vadd.f32 %v6477, %v6477
          %v6510 = vadd.f32 %v6478, %v6478
          %v6511 = vadd.f32 %v6479, %v6479
          %v6512 = vadd.f32 %v6480, %v6480
          %v6513 = vadd.f32 %v6481, %v6481
          %v6514 = vadd.f32 %v6482, %v6482
          %v6515 = vadd.f32 %v6483, %v6483
          %v6516 = vadd.f32 %v6484, %v6484
          %v6517 = vadd.f32 %v6485, %v6485
          %v6518 = vadd.f32 %v6486, %v6486
          %v6519 = vadd.f32 %v6487, %v6487
          %v6520 = vadd.f32 %v6488, %v6488
          %v6521 = vadd.f32 %v6489, %v6489
          %v6522 = vadd.f32 %v6490, %v6490
          %v6523 = vadd.f32 %v6491, %v6491
          %v6524 = vadd.f32 %v6492, %v6492
          %v6525 = vadd.f32 %v6493, %v6493
          %v6526 = vadd.f32 %v6494, %v6494
          %v6527 = vadd.f32 %v6495, %v6495
          %v6528 = vadd.f32 %v6496, %v6496
          %v6529 = vadd.f32 %v6497, %v6497
          %v6530 = vadd.f32 %v6498, %v6498
          %v6531 = vadd.f32 %v6499, %v6499
          %v6532 = vadd.f32 %v6500, %v6500
          %v6533 = vsel %vm372, %v6469, %v6501
          %v6534 = vsel %vm372, %v6470, %v6502
          %v6535 = vsel %vm372, %v6471, %v6503
          %v6536 = vsel %vm372, %v6472, %v6504
          %v6537 = vsel %vm372, %v6473, %v6505
          %v6538 = vsel %vm372, %v6474, %v6506
          %v6539 = vsel %vm372, %v6475, %v6507
          %v6540 = vsel %vm372, %v6476, %v6508
          %v6541 = vsel %vm372, %v6477, %v6509
          %v6542 = vsel %vm372, %v6478, %v6510
          %v6543 = vsel %vm372, %v6479, %v6511
          %v6544 = vsel %vm372, %v6480, %v6512
          %v6545 = vsel %vm372, %v6481, %v6513
          %v6546 = vsel %vm372, %v6482, %v6514
          %v6547 = vsel %vm372, %v6483, %v6515
          %v6548 = vsel %vm372, %v6484, %v6516
          %v6549 = vsel %vm372, %v6485, %v6517
          %v6550 = vsel %vm372, %v6486, %v6518
          %v6551 = vsel %vm372, %v6487, %v6519
          %v6552 = vsel %vm372, %v6488, %v6520
          %v6553 = vsel %vm372, %v6489, %v6521
          %v6554 = vsel %vm372, %v6490, %v6522
          %v6555 = vsel %vm372, %v6491, %v6523
          %v6556 = vsel %vm372, %v6492, %v6524
          %v6557 = vsel %vm372, %v6493, %v6525
          %v6558 = vsel %vm372, %v6494, %v6526
          %v6559 = vsel %vm372, %v6495, %v6527
          %v6560 = vsel %vm372, %v6496, %v6528
          %v6561 = vsel %vm372, %v6497, %v6529
          %v6562 = vsel %vm372, %v6498, %v6530
          %v6563 = vsel %vm372, %v6499, %v6531
          %v6564 = vsel %vm372, %v6500, %v6532
          %v6565 = vxor.u32 %v6533, 2147483648
          %v6566 = vxor.u32 %v6534, 2147483648
          %v6567 = vxor.u32 %v6535, 2147483648
          %v6568 = vxor.u32 %v6536, 2147483648
          %v6569 = vxor.u32 %v6537, 2147483648
          %v6570 = vxor.u32 %v6538, 2147483648
          %v6571 = vxor.u32 %v6539, 2147483648
          %v6572 = vxor.u32 %v6540, 2147483648
          %v6573 = vxor.u32 %v6541, 2147483648
          %v6574 = vxor.u32 %v6542, 2147483648
          %v6575 = vxor.u32 %v6543, 2147483648
          %v6576 = vxor.u32 %v6544, 2147483648
          %v6577 = vxor.u32 %v6545, 2147483648
          %v6578 = vxor.u32 %v6546, 2147483648
          %v6579 = vxor.u32 %v6547, 2147483648
          %v6580 = vxor.u32 %v6548, 2147483648
          %v6581 = vxor.u32 %v6549, 2147483648
          %v6582 = vxor.u32 %v6550, 2147483648
          %v6583 = vxor.u32 %v6551, 2147483648
          %v6584 = vxor.u32 %v6552, 2147483648
          %v6585 = vxor.u32 %v6553, 2147483648
          %v6586 = vxor.u32 %v6554, 2147483648
          %v6587 = vxor.u32 %v6555, 2147483648
          %v6588 = vxor.u32 %v6556, 2147483648
          %v6589 = vxor.u32 %v6557, 2147483648
          %v6590 = vxor.u32 %v6558, 2147483648
          %v6591 = vxor.u32 %v6559, 2147483648
          %v6592 = vxor.u32 %v6560, 2147483648
          %v6593 = vxor.u32 %v6561, 2147483648
          %v6594 = vxor.u32 %v6562, 2147483648
          %v6595 = vxor.u32 %v6563, 2147483648
          %v6596 = vxor.u32 %v6564, 2147483648
          %v6597 = vmul.f32 %v6565, 1.442695
          %v6598 = vpow.pop %v6597
          %v6599 = vmul.f32 %v6566, 1.442695
          %v6600 = vpow.pop %v6599
          %v6601 = vmul.f32 %v6567, 1.442695
          %v6602 = vpow.pop %v6601
          %v6603 = vmul.f32 %v6568, 1.442695
          %v6604 = vpow.pop %v6603
          %v6605 = vmul.f32 %v6569, 1.442695
          %v6606 = vpow.pop %v6605
          %v6607 = vmul.f32 %v6570, 1.442695
          %v6608 = vpow.pop %v6607
          %v6609 = vmul.f32 %v6571, 1.442695
          %v6610 = vpow.pop %v6609
          %v6611 = vmul.f32 %v6572, 1.442695
          %v6612 = vpow.pop %v6611
          %v6613 = vmul.f32 %v6573, 1.442695
          %v6614 = vpow.pop %v6613
          %v6615 = vmul.f32 %v6574, 1.442695
          %v6616 = vpow.pop %v6615
          %v6617 = vmul.f32 %v6575, 1.442695
          %v6618 = vpow.pop %v6617
          %v6619 = vmul.f32 %v6576, 1.442695
          %v6620 = vpow.pop %v6619
          %v6621 = vmul.f32 %v6577, 1.442695
          %v6622 = vpow.pop %v6621
          %v6623 = vmul.f32 %v6578, 1.442695
          %v6624 = vpow.pop %v6623
          %v6625 = vmul.f32 %v6579, 1.442695
          %v6626 = vpow.pop %v6625
          %v6627 = vmul.f32 %v6580, 1.442695
          %v6628 = vpow.pop %v6627
          %v6629 = vmul.f32 %v6581, 1.442695
          %v6630 = vpow.pop %v6629
          %v6631 = vmul.f32 %v6582, 1.442695
          %v6632 = vpow.pop %v6631
          %v6633 = vmul.f32 %v6583, 1.442695
          %v6634 = vpow.pop %v6633
          %v6635 = vmul.f32 %v6584, 1.442695
          %v6636 = vpow.pop %v6635
          %v6637 = vmul.f32 %v6585, 1.442695
          %v6638 = vpow.pop %v6637
          %v6639 = vmul.f32 %v6586, 1.442695
          %v6640 = vpow.pop %v6639
          %v6641 = vmul.f32 %v6587, 1.442695
          %v6642 = vpow.pop %v6641
          %v6643 = vmul.f32 %v6588, 1.442695
          %v6644 = vpow.pop %v6643
          %v6645 = vmul.f32 %v6589, 1.442695
          %v6646 = vpow.pop %v6645
          %v6647 = vmul.f32 %v6590, 1.442695
          %v6648 = vpow.pop %v6647
          %v6649 = vmul.f32 %v6591, 1.442695
          %v6650 = vpow.pop %v6649
          %v6651 = vmul.f32 %v6592, 1.442695
          %v6652 = vpow.pop %v6651
          %v6653 = vmul.f32 %v6593, 1.442695
          %v6654 = vpow.pop %v6653
          %v6655 = vmul.f32 %v6594, 1.442695
          %v6656 = vpow.pop %v6655
          %v6657 = vmul.f32 %v6595, 1.442695
          %v6658 = vpow.pop %v6657
          %v6659 = vmul.f32 %v6596, 1.442695
          %v6660 = vpow.pop %v6659
          %v6661 = vadd.f32 %v6598, 1.0
          %v6662 = vadd.f32 %v6600, 1.0
          %v6663 = vadd.f32 %v6602, 1.0
          %v6664 = vadd.f32 %v6604, 1.0
          %v6665 = vadd.f32 %v6606, 1.0
          %v6666 = vadd.f32 %v6608, 1.0
          %v6667 = vadd.f32 %v6610, 1.0
          %v6668 = vadd.f32 %v6612, 1.0
          %v6669 = vadd.f32 %v6614, 1.0
          %v6670 = vadd.f32 %v6616, 1.0
          %v6671 = vadd.f32 %v6618, 1.0
          %v6672 = vadd.f32 %v6620, 1.0
          %v6673 = vadd.f32 %v6622, 1.0
          %v6674 = vadd.f32 %v6624, 1.0
          %v6675 = vadd.f32 %v6626, 1.0
          %v6676 = vadd.f32 %v6628, 1.0
          %v6677 = vadd.f32 %v6630, 1.0
          %v6678 = vadd.f32 %v6632, 1.0
          %v6679 = vadd.f32 %v6634, 1.0
          %v6680 = vadd.f32 %v6636, 1.0
          %v6681 = vadd.f32 %v6638, 1.0
          %v6682 = vadd.f32 %v6640, 1.0
          %v6683 = vadd.f32 %v6642, 1.0
          %v6684 = vadd.f32 %v6644, 1.0
          %v6685 = vadd.f32 %v6646, 1.0
          %v6686 = vadd.f32 %v6648, 1.0
          %v6687 = vadd.f32 %v6650, 1.0
          %v6688 = vadd.f32 %v6652, 1.0
          %v6689 = vadd.f32 %v6654, 1.0
          %v6690 = vadd.f32 %v6656, 1.0
          %v6691 = vadd.f32 %v6658, 1.0
          %v6692 = vadd.f32 %v6660, 1.0
          %v6693 = vrcp.pop %v6661
          %v6694 = vmul.f32 1.0, %v6693
          %v6695 = vrcp.pop %v6662
          %v6696 = vmul.f32 1.0, %v6695
          %v6697 = vrcp.pop %v6663
          %v6698 = vmul.f32 1.0, %v6697
          %v6699 = vrcp.pop %v6664
          %v6700 = vmul.f32 1.0, %v6699
          %v6701 = vrcp.pop %v6665
          %v6702 = vmul.f32 1.0, %v6701
          %v6703 = vrcp.pop %v6666
          %v6704 = vmul.f32 1.0, %v6703
          %v6705 = vrcp.pop %v6667
          %v6706 = vmul.f32 1.0, %v6705
          %v6707 = vrcp.pop %v6668
          %v6708 = vmul.f32 1.0, %v6707
          %v6709 = vrcp.pop %v6669
          %v6710 = vmul.f32 1.0, %v6709
          %v6711 = vrcp.pop %v6670
          %v6712 = vmul.f32 1.0, %v6711
          %v6713 = vrcp.pop %v6671
          %v6714 = vmul.f32 1.0, %v6713
          %v6715 = vrcp.pop %v6672
          %v6716 = vmul.f32 1.0, %v6715
          %v6717 = vrcp.pop %v6673
          %v6718 = vmul.f32 1.0, %v6717
          %v6719 = vrcp.pop %v6674
          %v6720 = vmul.f32 1.0, %v6719
          %v6721 = vrcp.pop %v6675
          %v6722 = vmul.f32 1.0, %v6721
          %v6723 = vrcp.pop %v6676
          %v6724 = vmul.f32 1.0, %v6723
          %v6725 = vrcp.pop %v6677
          %v6726 = vmul.f32 1.0, %v6725
          %v6727 = vrcp.pop %v6678
          %v6728 = vmul.f32 1.0, %v6727
          %v6729 = vrcp.pop %v6679
          %v6730 = vmul.f32 1.0, %v6729
          %v6731 = vrcp.pop %v6680
          %v6732 = vmul.f32 1.0, %v6731
          %v6733 = vrcp.pop %v6681
          %v6734 = vmul.f32 1.0, %v6733
          %v6735 = vrcp.pop %v6682
          %v6736 = vmul.f32 1.0, %v6735
          %v6737 = vrcp.pop %v6683
          %v6738 = vmul.f32 1.0, %v6737
          %v6739 = vrcp.pop %v6684
          %v6740 = vmul.f32 1.0, %v6739
          %v6741 = vrcp.pop %v6685
          %v6742 = vmul.f32 1.0, %v6741
          %v6743 = vrcp.pop %v6686
          %v6744 = vmul.f32 1.0, %v6743
          %v6745 = vrcp.pop %v6687
          %v6746 = vmul.f32 1.0, %v6745
          %v6747 = vrcp.pop %v6688
          %v6748 = vmul.f32 1.0, %v6747
          %v6749 = vrcp.pop %v6689
          %v6750 = vmul.f32 1.0, %v6749
          %v6751 = vrcp.pop %v6690
          %v6752 = vmul.f32 1.0, %v6751
          %v6753 = vrcp.pop %v6691
          %v6754 = vmul.f32 1.0, %v6753
          %v6755 = vrcp.pop %v6692
          %v6756 = vmul.f32 1.0, %v6755
          %v6757 = vmul.f32 %v6694, 2.0
          %v6758 = vmul.f32 %v6696, 2.0
          %v6759 = vmul.f32 %v6698, 2.0
          %v6760 = vmul.f32 %v6700, 2.0
          %v6761 = vmul.f32 %v6702, 2.0
          %v6762 = vmul.f32 %v6704, 2.0
          %v6763 = vmul.f32 %v6706, 2.0
          %v6764 = vmul.f32 %v6708, 2.0
          %v6765 = vmul.f32 %v6710, 2.0
          %v6766 = vmul.f32 %v6712, 2.0
          %v6767 = vmul.f32 %v6714, 2.0
          %v6768 = vmul.f32 %v6716, 2.0
          %v6769 = vmul.f32 %v6718, 2.0
          %v6770 = vmul.f32 %v6720, 2.0
          %v6771 = vmul.f32 %v6722, 2.0
          %v6772 = vmul.f32 %v6724, 2.0
          %v6773 = vmul.f32 %v6726, 2.0
          %v6774 = vmul.f32 %v6728, 2.0
          %v6775 = vmul.f32 %v6730, 2.0
          %v6776 = vmul.f32 %v6732, 2.0
          %v6777 = vmul.f32 %v6734, 2.0
          %v6778 = vmul.f32 %v6736, 2.0
          %v6779 = vmul.f32 %v6738, 2.0
          %v6780 = vmul.f32 %v6740, 2.0
          %v6781 = vmul.f32 %v6742, 2.0
          %v6782 = vmul.f32 %v6744, 2.0
          %v6783 = vmul.f32 %v6746, 2.0
          %v6784 = vmul.f32 %v6748, 2.0
          %v6785 = vmul.f32 %v6750, 2.0
          %v6786 = vmul.f32 %v6752, 2.0
          %v6787 = vmul.f32 %v6754, 2.0
          %v6788 = vmul.f32 %v6756, 2.0
          %v6789 = vsub.f32 %v6757, 1.0
          %v6790 = vsub.f32 %v6758, 1.0
          %v6791 = vsub.f32 %v6759, 1.0
          %v6792 = vsub.f32 %v6760, 1.0
          %v6793 = vsub.f32 %v6761, 1.0
          %v6794 = vsub.f32 %v6762, 1.0
          %v6795 = vsub.f32 %v6763, 1.0
          %v6796 = vsub.f32 %v6764, 1.0
          %v6797 = vsub.f32 %v6765, 1.0
          %v6798 = vsub.f32 %v6766, 1.0
          %v6799 = vsub.f32 %v6767, 1.0
          %v6800 = vsub.f32 %v6768, 1.0
          %v6801 = vsub.f32 %v6769, 1.0
          %v6802 = vsub.f32 %v6770, 1.0
          %v6803 = vsub.f32 %v6771, 1.0
          %v6804 = vsub.f32 %v6772, 1.0
          %v6805 = vsub.f32 %v6773, 1.0
          %v6806 = vsub.f32 %v6774, 1.0
          %v6807 = vsub.f32 %v6775, 1.0
          %v6808 = vsub.f32 %v6776, 1.0
          %v6809 = vsub.f32 %v6777, 1.0
          %v6810 = vsub.f32 %v6778, 1.0
          %v6811 = vsub.f32 %v6779, 1.0
          %v6812 = vsub.f32 %v6780, 1.0
          %v6813 = vsub.f32 %v6781, 1.0
          %v6814 = vsub.f32 %v6782, 1.0
          %v6815 = vsub.f32 %v6783, 1.0
          %v6816 = vsub.f32 %v6784, 1.0
          %v6817 = vsub.f32 %v6785, 1.0
          %v6818 = vsub.f32 %v6786, 1.0
          %v6819 = vsub.f32 %v6787, 1.0
          %v6820 = vsub.f32 %v6788, 1.0
          %v6821 = vld [vmem:[#allocation5] sm:$0xff]
          %v6822 = vld [vmem:[#allocation5 + $0x8] sm:$0xff]
          %v6823 = vld [vmem:[#allocation5 + $0x10] sm:$0xff]
          %v6824 = vld [vmem:[#allocation5 + $0x18] sm:$0xff]
          %v6825 = vld [vmem:[#allocation5 + $0x20] sm:$0xff]
          %v6826 = vld [vmem:[#allocation5 + $0x28] sm:$0xff]
          %v6827 = vld [vmem:[#allocation5 + $0x30] sm:$0xff]
          %v6828 = vld [vmem:[#allocation5 + $0x38] sm:$0xff]
          %v6829 = vld [vmem:[#allocation5 + $0x40] sm:$0xff]
          %v6830 = vld [vmem:[#allocation5 + $0x48] sm:$0xff]
          %v6831 = vld [vmem:[#allocation5 + $0x50] sm:$0xff]
          %v6832 = vld [vmem:[#allocation5 + $0x58] sm:$0xff]
          %v6833 = vld [vmem:[#allocation5 + $0x60] sm:$0xff]
          %v6834 = vld [vmem:[#allocation5 + $0x68] sm:$0xff]
          %v6835 = vld [vmem:[#allocation5 + $0x70] sm:$0xff]
          %v6836 = vld [vmem:[#allocation5 + $0x78] sm:$0xff]
          %v6837 = vld [vmem:[#allocation5 + $0x80] sm:$0xff]
          %v6838 = vld [vmem:[#allocation5 + $0x88] sm:$0xff]
          %v6839 = vld [vmem:[#allocation5 + $0x90] sm:$0xff]
          %v6840 = vld [vmem:[#allocation5 + $0x98] sm:$0xff]
          %v6841 = vld [vmem:[#allocation5 + $0xa0] sm:$0xff]
          %v6842 = vld [vmem:[#allocation5 + $0xa8] sm:$0xff]
          %v6843 = vld [vmem:[#allocation5 + $0xb0] sm:$0xff]
          %v6844 = vld [vmem:[#allocation5 + $0xb8] sm:$0xff]
          %v6845 = vld [vmem:[#allocation5 + $0xc0] sm:$0xff]
          %v6846 = vld [vmem:[#allocation5 + $0xc8] sm:$0xff]
          %v6847 = vld [vmem:[#allocation5 + $0xd0] sm:$0xff]
          %v6848 = vld [vmem:[#allocation5 + $0xd8] sm:$0xff]
          %v6849 = vld [vmem:[#allocation5 + $0xe0] sm:$0xff]
          %v6850 = vld [vmem:[#allocation5 + $0xe8] sm:$0xff]
          %v6851 = vld [vmem:[#allocation5 + $0xf0] sm:$0xff]
          %v6852 = vld [vmem:[#allocation5 + $0xf8] sm:$0xff]
          %6885 = vrot.lane.b32.xlu0 %v6821, 32
          %v6886 = vpop.permute.xlu0 %6885
          %6887 = vrot.lane.b32.xlu0 %v6822, 32
          %v6888 = vpop.permute.xlu0 %6887
          %6889 = vrot.lane.b32.xlu0 %v6823, 32
          %v6890 = vpop.permute.xlu0 %6889
          %6891 = vrot.lane.b32.xlu0 %v6824, 32
          %v6892 = vpop.permute.xlu0 %6891
          %6893 = vrot.lane.b32.xlu0 %v6825, 32
          %v6894 = vpop.permute.xlu0 %6893
          %6895 = vrot.lane.b32.xlu0 %v6826, 32
          %v6896 = vpop.permute.xlu0 %6895
          %6897 = vrot.lane.b32.xlu0 %v6827, 32
          %v6898 = vpop.permute.xlu0 %6897
          %6899 = vrot.lane.b32.xlu0 %v6828, 32
          %v6900 = vpop.permute.xlu0 %6899
          %6901 = vrot.lane.b32.xlu0 %v6829, 32
          %v6902 = vpop.permute.xlu0 %6901
          %6903 = vrot.lane.b32.xlu0 %v6830, 32
          %v6904 = vpop.permute.xlu0 %6903
          %6905 = vrot.lane.b32.xlu0 %v6831, 32
          %v6906 = vpop.permute.xlu0 %6905
          %6907 = vrot.lane.b32.xlu0 %v6832, 32
          %v6908 = vpop.permute.xlu0 %6907
          %6909 = vrot.lane.b32.xlu0 %v6833, 32
          %v6910 = vpop.permute.xlu0 %6909
          %6911 = vrot.lane.b32.xlu0 %v6834, 32
          %v6912 = vpop.permute.xlu0 %6911
          %6913 = vrot.lane.b32.xlu0 %v6835, 32
          %v6914 = vpop.permute.xlu0 %6913
          %6915 = vrot.lane.b32.xlu0 %v6836, 32
          %v6916 = vpop.permute.xlu0 %6915
          %6917 = vrot.lane.b32.xlu0 %v6837, 32
          %v6918 = vpop.permute.xlu0 %6917
          %6919 = vrot.lane.b32.xlu0 %v6838, 32
          %v6920 = vpop.permute.xlu0 %6919
          %6921 = vrot.lane.b32.xlu0 %v6839, 32
          %v6922 = vpop.permute.xlu0 %6921
          %6923 = vrot.lane.b32.xlu0 %v6840, 32
          %v6924 = vpop.permute.xlu0 %6923
          %6925 = vrot.lane.b32.xlu0 %v6841, 32
          %v6926 = vpop.permute.xlu0 %6925
          %6927 = vrot.lane.b32.xlu0 %v6842, 32
          %v6928 = vpop.permute.xlu0 %6927
          %6929 = vrot.lane.b32.xlu0 %v6843, 32
          %v6930 = vpop.permute.xlu0 %6929
          %6931 = vrot.lane.b32.xlu0 %v6844, 32
          %v6932 = vpop.permute.xlu0 %6931
          %6933 = vrot.lane.b32.xlu0 %v6845, 32
          %v6934 = vpop.permute.xlu0 %6933
          %6935 = vrot.lane.b32.xlu0 %v6846, 32
          %v6936 = vpop.permute.xlu0 %6935
          %6937 = vrot.lane.b32.xlu0 %v6847, 32
          %v6938 = vpop.permute.xlu0 %6937
          %6939 = vrot.lane.b32.xlu0 %v6848, 32
          %v6940 = vpop.permute.xlu0 %6939
          %6941 = vrot.lane.b32.xlu0 %v6849, 32
          %v6942 = vpop.permute.xlu0 %6941
          %6943 = vrot.lane.b32.xlu0 %v6850, 32
          %v6944 = vpop.permute.xlu0 %6943
          %6945 = vrot.lane.b32.xlu0 %v6851, 32
          %v6946 = vpop.permute.xlu0 %6945
          %6947 = vrot.lane.b32.xlu0 %v6852, 32
          %v6948 = vpop.permute.xlu0 %6947
          %v6981 = vmul.f32 %v6694, %v6886
          %v6982 = vmul.f32 %v6696, %v6888
          %v6983 = vmul.f32 %v6698, %v6890
          %v6984 = vmul.f32 %v6700, %v6892
          %v6985 = vmul.f32 %v6702, %v6894
          %v6986 = vmul.f32 %v6704, %v6896
          %v6987 = vmul.f32 %v6706, %v6898
          %v6988 = vmul.f32 %v6708, %v6900
          %v6989 = vmul.f32 %v6710, %v6902
          %v6990 = vmul.f32 %v6712, %v6904
          %v6991 = vmul.f32 %v6714, %v6906
          %v6992 = vmul.f32 %v6716, %v6908
          %v6993 = vmul.f32 %v6718, %v6910
          %v6994 = vmul.f32 %v6720, %v6912
          %v6995 = vmul.f32 %v6722, %v6914
          %v6996 = vmul.f32 %v6724, %v6916
          %v6997 = vmul.f32 %v6726, %v6918
          %v6998 = vmul.f32 %v6728, %v6920
          %v6999 = vmul.f32 %v6730, %v6922
          %v7000 = vmul.f32 %v6732, %v6924
          %v7001 = vmul.f32 %v6734, %v6926
          %v7002 = vmul.f32 %v6736, %v6928
          %v7003 = vmul.f32 %v6738, %v6930
          %v7004 = vmul.f32 %v6740, %v6932
          %v7005 = vmul.f32 %v6742, %v6934
          %v7006 = vmul.f32 %v6744, %v6936
          %v7007 = vmul.f32 %v6746, %v6938
          %v7008 = vmul.f32 %v6748, %v6940
          %v7009 = vmul.f32 %v6750, %v6942
          %v7010 = vmul.f32 %v6752, %v6944
          %v7011 = vmul.f32 %v6754, %v6946
          %v7012 = vmul.f32 %v6756, %v6948
          %7045 = vrot.lane.b32.xlu0 %v6789, 32
          %v7046 = vpop.permute.xlu0 %7045
          %7047 = vrot.lane.b32.xlu0 %v6790, 32
          %v7048 = vpop.permute.xlu0 %7047
          %7049 = vrot.lane.b32.xlu0 %v6791, 32
          %v7050 = vpop.permute.xlu0 %7049
          %7051 = vrot.lane.b32.xlu0 %v6792, 32
          %v7052 = vpop.permute.xlu0 %7051
          %7053 = vrot.lane.b32.xlu0 %v6793, 32
          %v7054 = vpop.permute.xlu0 %7053
          %7055 = vrot.lane.b32.xlu0 %v6794, 32
          %v7056 = vpop.permute.xlu0 %7055
          %7057 = vrot.lane.b32.xlu0 %v6795, 32
          %v7058 = vpop.permute.xlu0 %7057
          %7059 = vrot.lane.b32.xlu0 %v6796, 32
          %v7060 = vpop.permute.xlu0 %7059
          %7061 = vrot.lane.b32.xlu0 %v6797, 32
          %v7062 = vpop.permute.xlu0 %7061
          %7063 = vrot.lane.b32.xlu0 %v6798, 32
          %v7064 = vpop.permute.xlu0 %7063
          %7065 = vrot.lane.b32.xlu0 %v6799, 32
          %v7066 = vpop.permute.xlu0 %7065
          %7067 = vrot.lane.b32.xlu0 %v6800, 32
          %v7068 = vpop.permute.xlu0 %7067
          %7069 = vrot.lane.b32.xlu0 %v6801, 32
          %v7070 = vpop.permute.xlu0 %7069
          %7071 = vrot.lane.b32.xlu0 %v6802, 32
          %v7072 = vpop.permute.xlu0 %7071
          %7073 = vrot.lane.b32.xlu0 %v6803, 32
          %v7074 = vpop.permute.xlu0 %7073
          %7075 = vrot.lane.b32.xlu0 %v6804, 32
          %v7076 = vpop.permute.xlu0 %7075
          %7077 = vrot.lane.b32.xlu0 %v6805, 32
          %v7078 = vpop.permute.xlu0 %7077
          %7079 = vrot.lane.b32.xlu0 %v6806, 32
          %v7080 = vpop.permute.xlu0 %7079
          %7081 = vrot.lane.b32.xlu0 %v6807, 32
          %v7082 = vpop.permute.xlu0 %7081
          %7083 = vrot.lane.b32.xlu0 %v6808, 32
          %v7084 = vpop.permute.xlu0 %7083
          %7085 = vrot.lane.b32.xlu0 %v6809, 32
          %v7086 = vpop.permute.xlu0 %7085
          %7087 = vrot.lane.b32.xlu0 %v6810, 32
          %v7088 = vpop.permute.xlu0 %7087
          %7089 = vrot.lane.b32.xlu0 %v6811, 32
          %v7090 = vpop.permute.xlu0 %7089
          %7091 = vrot.lane.b32.xlu0 %v6812, 32
          %v7092 = vpop.permute.xlu0 %7091
          %7093 = vrot.lane.b32.xlu0 %v6813, 32
          %v7094 = vpop.permute.xlu0 %7093
          %7095 = vrot.lane.b32.xlu0 %v6814, 32
          %v7096 = vpop.permute.xlu0 %7095
          %7097 = vrot.lane.b32.xlu0 %v6815, 32
          %v7098 = vpop.permute.xlu0 %7097
          %7099 = vrot.lane.b32.xlu0 %v6816, 32
          %v7100 = vpop.permute.xlu0 %7099
          %7101 = vrot.lane.b32.xlu0 %v6817, 32
          %v7102 = vpop.permute.xlu0 %7101
          %7103 = vrot.lane.b32.xlu0 %v6818, 32
          %v7104 = vpop.permute.xlu0 %7103
          %7105 = vrot.lane.b32.xlu0 %v6819, 32
          %v7106 = vpop.permute.xlu0 %7105
          %7107 = vrot.lane.b32.xlu0 %v6820, 32
          %v7108 = vpop.permute.xlu0 %7107
          %v7141 = vmul.f32 %v6694, %v7046
          %v7142 = vmul.f32 %v6696, %v7048
          %v7143 = vmul.f32 %v6698, %v7050
          %v7144 = vmul.f32 %v6700, %v7052
          %v7145 = vmul.f32 %v6702, %v7054
          %v7146 = vmul.f32 %v6704, %v7056
          %v7147 = vmul.f32 %v6706, %v7058
          %v7148 = vmul.f32 %v6708, %v7060
          %v7149 = vmul.f32 %v6710, %v7062
          %v7150 = vmul.f32 %v6712, %v7064
          %v7151 = vmul.f32 %v6714, %v7066
          %v7152 = vmul.f32 %v6716, %v7068
          %v7153 = vmul.f32 %v6718, %v7070
          %v7154 = vmul.f32 %v6720, %v7072
          %v7155 = vmul.f32 %v6722, %v7074
          %v7156 = vmul.f32 %v6724, %v7076
          %v7157 = vmul.f32 %v6726, %v7078
          %v7158 = vmul.f32 %v6728, %v7080
          %v7159 = vmul.f32 %v6730, %v7082
          %v7160 = vmul.f32 %v6732, %v7084
          %v7161 = vmul.f32 %v6734, %v7086
          %v7162 = vmul.f32 %v6736, %v7088
          %v7163 = vmul.f32 %v6738, %v7090
          %v7164 = vmul.f32 %v6740, %v7092
          %v7165 = vmul.f32 %v6742, %v7094
          %v7166 = vmul.f32 %v6744, %v7096
          %v7167 = vmul.f32 %v6746, %v7098
          %v7168 = vmul.f32 %v6748, %v7100
          %v7169 = vmul.f32 %v6750, %v7102
          %v7170 = vmul.f32 %v6752, %v7104
          %v7171 = vmul.f32 %v6754, %v7106
          %v7172 = vmul.f32 %v6756, %v7108
          %7205 = vrot.lane.b32.xlu0 %v7141, 32
          %v7206 = vpop.permute.xlu0 %7205
          %7207 = vrot.lane.b32.xlu0 %v7142, 32
          %v7208 = vpop.permute.xlu0 %7207
          %7209 = vrot.lane.b32.xlu0 %v7143, 32
          %v7210 = vpop.permute.xlu0 %7209
          %7211 = vrot.lane.b32.xlu0 %v7144, 32
          %v7212 = vpop.permute.xlu0 %7211
          %7213 = vrot.lane.b32.xlu0 %v7145, 32
          %v7214 = vpop.permute.xlu0 %7213
          %7215 = vrot.lane.b32.xlu0 %v7146, 32
          %v7216 = vpop.permute.xlu0 %7215
          %7217 = vrot.lane.b32.xlu0 %v7147, 32
          %v7218 = vpop.permute.xlu0 %7217
          %7219 = vrot.lane.b32.xlu0 %v7148, 32
          %v7220 = vpop.permute.xlu0 %7219
          %7221 = vrot.lane.b32.xlu0 %v7149, 32
          %v7222 = vpop.permute.xlu0 %7221
          %7223 = vrot.lane.b32.xlu0 %v7150, 32
          %v7224 = vpop.permute.xlu0 %7223
          %7225 = vrot.lane.b32.xlu0 %v7151, 32
          %v7226 = vpop.permute.xlu0 %7225
          %7227 = vrot.lane.b32.xlu0 %v7152, 32
          %v7228 = vpop.permute.xlu0 %7227
          %7229 = vrot.lane.b32.xlu0 %v7153, 32
          %v7230 = vpop.permute.xlu0 %7229
          %7231 = vrot.lane.b32.xlu0 %v7154, 32
          %v7232 = vpop.permute.xlu0 %7231
          %7233 = vrot.lane.b32.xlu0 %v7155, 32
          %v7234 = vpop.permute.xlu0 %7233
          %7235 = vrot.lane.b32.xlu0 %v7156, 32
          %v7236 = vpop.permute.xlu0 %7235
          %7237 = vrot.lane.b32.xlu0 %v7157, 32
          %v7238 = vpop.permute.xlu0 %7237
          %7239 = vrot.lane.b32.xlu0 %v7158, 32
          %v7240 = vpop.permute.xlu0 %7239
          %7241 = vrot.lane.b32.xlu0 %v7159, 32
          %v7242 = vpop.permute.xlu0 %7241
          %7243 = vrot.lane.b32.xlu0 %v7160, 32
          %v7244 = vpop.permute.xlu0 %7243
          %7245 = vrot.lane.b32.xlu0 %v7161, 32
          %v7246 = vpop.permute.xlu0 %7245
          %7247 = vrot.lane.b32.xlu0 %v7162, 32
          %v7248 = vpop.permute.xlu0 %7247
          %7249 = vrot.lane.b32.xlu0 %v7163, 32
          %v7250 = vpop.permute.xlu0 %7249
          %7251 = vrot.lane.b32.xlu0 %v7164, 32
          %v7252 = vpop.permute.xlu0 %7251
          %7253 = vrot.lane.b32.xlu0 %v7165, 32
          %v7254 = vpop.permute.xlu0 %7253
          %7255 = vrot.lane.b32.xlu0 %v7166, 32
          %v7256 = vpop.permute.xlu0 %7255
          %7257 = vrot.lane.b32.xlu0 %v7167, 32
          %v7258 = vpop.permute.xlu0 %7257
          %7259 = vrot.lane.b32.xlu0 %v7168, 32
          %v7260 = vpop.permute.xlu0 %7259
          %7261 = vrot.lane.b32.xlu0 %v7169, 32
          %v7262 = vpop.permute.xlu0 %7261
          %7263 = vrot.lane.b32.xlu0 %v7170, 32
          %v7264 = vpop.permute.xlu0 %7263
          %7265 = vrot.lane.b32.xlu0 %v7171, 32
          %v7266 = vpop.permute.xlu0 %7265
          %7267 = vrot.lane.b32.xlu0 %v7172, 32
          %v7268 = vpop.permute.xlu0 %7267
          %v7301 = vadd.f32 %v6981, %v7206
          %v7302 = vadd.f32 %v6982, %v7208
          %v7303 = vadd.f32 %v6983, %v7210
          %v7304 = vadd.f32 %v6984, %v7212
          %v7305 = vadd.f32 %v6985, %v7214
          %v7306 = vadd.f32 %v6986, %v7216
          %v7307 = vadd.f32 %v6987, %v7218
          %v7308 = vadd.f32 %v6988, %v7220
          %v7309 = vadd.f32 %v6989, %v7222
          %v7310 = vadd.f32 %v6990, %v7224
          %v7311 = vadd.f32 %v6991, %v7226
          %v7312 = vadd.f32 %v6992, %v7228
          %v7313 = vadd.f32 %v6993, %v7230
          %v7314 = vadd.f32 %v6994, %v7232
          %v7315 = vadd.f32 %v6995, %v7234
          %v7316 = vadd.f32 %v6996, %v7236
          %v7317 = vadd.f32 %v6997, %v7238
          %v7318 = vadd.f32 %v6998, %v7240
          %v7319 = vadd.f32 %v6999, %v7242
          %v7320 = vadd.f32 %v7000, %v7244
          %v7321 = vadd.f32 %v7001, %v7246
          %v7322 = vadd.f32 %v7002, %v7248
          %v7323 = vadd.f32 %v7003, %v7250
          %v7324 = vadd.f32 %v7004, %v7252
          %v7325 = vadd.f32 %v7005, %v7254
          %v7326 = vadd.f32 %v7006, %v7256
          %v7327 = vadd.f32 %v7007, %v7258
          %v7328 = vadd.f32 %v7008, %v7260
          %v7329 = vadd.f32 %v7009, %v7262
          %v7330 = vadd.f32 %v7010, %v7264
          %v7331 = vadd.f32 %v7011, %v7266
          %v7332 = vadd.f32 %v7012, %v7268
          %v7333 = vtanh.pop %v7301
          %v7334 = vtanh.pop %v7302
          %v7335 = vtanh.pop %v7303
          %v7336 = vtanh.pop %v7304
          %v7337 = vtanh.pop %v7305
          %v7338 = vtanh.pop %v7306
          %v7339 = vtanh.pop %v7307
          %v7340 = vtanh.pop %v7308
          %v7341 = vtanh.pop %v7309
          %v7342 = vtanh.pop %v7310
          %v7343 = vtanh.pop %v7311
          %v7344 = vtanh.pop %v7312
          %v7345 = vtanh.pop %v7313
          %v7346 = vtanh.pop %v7314
          %v7347 = vtanh.pop %v7315
          %v7348 = vtanh.pop %v7316
          %v7349 = vtanh.pop %v7317
          %v7350 = vtanh.pop %v7318
          %v7351 = vtanh.pop %v7319
          %v7352 = vtanh.pop %v7320
          %v7353 = vtanh.pop %v7321
          %v7354 = vtanh.pop %v7322
          %v7355 = vtanh.pop %v7323
          %v7356 = vtanh.pop %v7324
          %v7357 = vtanh.pop %v7325
          %v7358 = vtanh.pop %v7326
          %v7359 = vtanh.pop %v7327
          %v7360 = vtanh.pop %v7328
          %v7361 = vtanh.pop %v7329
          %v7362 = vtanh.pop %v7330
          %v7363 = vtanh.pop %v7331
          %v7364 = vtanh.pop %v7332
          %7397 = vrot.lane.b32.xlu0 %v7333, 32
          %v7398 = vpop.permute.xlu0 %7397
          %7399 = vrot.lane.b32.xlu0 %v7334, 32
          %v7400 = vpop.permute.xlu0 %7399
          %7401 = vrot.lane.b32.xlu0 %v7335, 32
          %v7402 = vpop.permute.xlu0 %7401
          %7403 = vrot.lane.b32.xlu0 %v7336, 32
          %v7404 = vpop.permute.xlu0 %7403
          %7405 = vrot.lane.b32.xlu0 %v7337, 32
          %v7406 = vpop.permute.xlu0 %7405
          %7407 = vrot.lane.b32.xlu0 %v7338, 32
          %v7408 = vpop.permute.xlu0 %7407
          %7409 = vrot.lane.b32.xlu0 %v7339, 32
          %v7410 = vpop.permute.xlu0 %7409
          %7411 = vrot.lane.b32.xlu0 %v7340, 32
          %v7412 = vpop.permute.xlu0 %7411
          %7413 = vrot.lane.b32.xlu0 %v7341, 32
          %v7414 = vpop.permute.xlu0 %7413
          %7415 = vrot.lane.b32.xlu0 %v7342, 32
          %v7416 = vpop.permute.xlu0 %7415
          %7417 = vrot.lane.b32.xlu0 %v7343, 32
          %v7418 = vpop.permute.xlu0 %7417
          %7419 = vrot.lane.b32.xlu0 %v7344, 32
          %v7420 = vpop.permute.xlu0 %7419
          %7421 = vrot.lane.b32.xlu0 %v7345, 32
          %v7422 = vpop.permute.xlu0 %7421
          %7423 = vrot.lane.b32.xlu0 %v7346, 32
          %v7424 = vpop.permute.xlu0 %7423
          %7425 = vrot.lane.b32.xlu0 %v7347, 32
          %v7426 = vpop.permute.xlu0 %7425
          %7427 = vrot.lane.b32.xlu0 %v7348, 32
          %v7428 = vpop.permute.xlu0 %7427
          %7429 = vrot.lane.b32.xlu0 %v7349, 32
          %v7430 = vpop.permute.xlu0 %7429
          %7431 = vrot.lane.b32.xlu0 %v7350, 32
          %v7432 = vpop.permute.xlu0 %7431
          %7433 = vrot.lane.b32.xlu0 %v7351, 32
          %v7434 = vpop.permute.xlu0 %7433
          %7435 = vrot.lane.b32.xlu0 %v7352, 32
          %v7436 = vpop.permute.xlu0 %7435
          %7437 = vrot.lane.b32.xlu0 %v7353, 32
          %v7438 = vpop.permute.xlu0 %7437
          %7439 = vrot.lane.b32.xlu0 %v7354, 32
          %v7440 = vpop.permute.xlu0 %7439
          %7441 = vrot.lane.b32.xlu0 %v7355, 32
          %v7442 = vpop.permute.xlu0 %7441
          %7443 = vrot.lane.b32.xlu0 %v7356, 32
          %v7444 = vpop.permute.xlu0 %7443
          %7445 = vrot.lane.b32.xlu0 %v7357, 32
          %v7446 = vpop.permute.xlu0 %7445
          %7447 = vrot.lane.b32.xlu0 %v7358, 32
          %v7448 = vpop.permute.xlu0 %7447
          %7449 = vrot.lane.b32.xlu0 %v7359, 32
          %v7450 = vpop.permute.xlu0 %7449
          %7451 = vrot.lane.b32.xlu0 %v7360, 32
          %v7452 = vpop.permute.xlu0 %7451
          %7453 = vrot.lane.b32.xlu0 %v7361, 32
          %v7454 = vpop.permute.xlu0 %7453
          %7455 = vrot.lane.b32.xlu0 %v7362, 32
          %v7456 = vpop.permute.xlu0 %7455
          %7457 = vrot.lane.b32.xlu0 %v7363, 32
          %v7458 = vpop.permute.xlu0 %7457
          %7459 = vrot.lane.b32.xlu0 %v7364, 32
          %v7460 = vpop.permute.xlu0 %7459
          %v7493 = vmul.f32 %v6694, %v7398
          %v7494 = vmul.f32 %v6696, %v7400
          %v7495 = vmul.f32 %v6698, %v7402
          %v7496 = vmul.f32 %v6700, %v7404
          %v7497 = vmul.f32 %v6702, %v7406
          %v7498 = vmul.f32 %v6704, %v7408
          %v7499 = vmul.f32 %v6706, %v7410
          %v7500 = vmul.f32 %v6708, %v7412
          %v7501 = vmul.f32 %v6710, %v7414
          %v7502 = vmul.f32 %v6712, %v7416
          %v7503 = vmul.f32 %v6714, %v7418
          %v7504 = vmul.f32 %v6716, %v7420
          %v7505 = vmul.f32 %v6718, %v7422
          %v7506 = vmul.f32 %v6720, %v7424
          %v7507 = vmul.f32 %v6722, %v7426
          %v7508 = vmul.f32 %v6724, %v7428
          %v7509 = vmul.f32 %v6726, %v7430
          %v7510 = vmul.f32 %v6728, %v7432
          %v7511 = vmul.f32 %v6730, %v7434
          %v7512 = vmul.f32 %v6732, %v7436
          %v7513 = vmul.f32 %v6734, %v7438
          %v7514 = vmul.f32 %v6736, %v7440
          %v7515 = vmul.f32 %v6738, %v7442
          %v7516 = vmul.f32 %v6740, %v7444
          %v7517 = vmul.f32 %v6742, %v7446
          %v7518 = vmul.f32 %v6744, %v7448
          %v7519 = vmul.f32 %v6746, %v7450
          %v7520 = vmul.f32 %v6748, %v7452
          %v7521 = vmul.f32 %v6750, %v7454
          %v7522 = vmul.f32 %v6752, %v7456
          %v7523 = vmul.f32 %v6754, %v7458
          %v7524 = vmul.f32 %v6756, %v7460
          %7557 = vrot.lane.b32.xlu0 %v7301, 96
          %v7558 = vpop.permute.xlu0 %7557
          %7559 = vrot.lane.b32.xlu0 %v7302, 96
          %v7560 = vpop.permute.xlu0 %7559
          %7561 = vrot.lane.b32.xlu0 %v7303, 96
          %v7562 = vpop.permute.xlu0 %7561
          %7563 = vrot.lane.b32.xlu0 %v7304, 96
          %v7564 = vpop.permute.xlu0 %7563
          %7565 = vrot.lane.b32.xlu0 %v7305, 96
          %v7566 = vpop.permute.xlu0 %7565
          %7567 = vrot.lane.b32.xlu0 %v7306, 96
          %v7568 = vpop.permute.xlu0 %7567
          %7569 = vrot.lane.b32.xlu0 %v7307, 96
          %v7570 = vpop.permute.xlu0 %7569
          %7571 = vrot.lane.b32.xlu0 %v7308, 96
          %v7572 = vpop.permute.xlu0 %7571
          %7573 = vrot.lane.b32.xlu0 %v7309, 96
          %v7574 = vpop.permute.xlu0 %7573
          %7575 = vrot.lane.b32.xlu0 %v7310, 96
          %v7576 = vpop.permute.xlu0 %7575
          %7577 = vrot.lane.b32.xlu0 %v7311, 96
          %v7578 = vpop.permute.xlu0 %7577
          %7579 = vrot.lane.b32.xlu0 %v7312, 96
          %v7580 = vpop.permute.xlu0 %7579
          %7581 = vrot.lane.b32.xlu0 %v7313, 96
          %v7582 = vpop.permute.xlu0 %7581
          %7583 = vrot.lane.b32.xlu0 %v7314, 96
          %v7584 = vpop.permute.xlu0 %7583
          %7585 = vrot.lane.b32.xlu0 %v7315, 96
          %v7586 = vpop.permute.xlu0 %7585
          %7587 = vrot.lane.b32.xlu0 %v7316, 96
          %v7588 = vpop.permute.xlu0 %7587
          %7589 = vrot.lane.b32.xlu0 %v7317, 96
          %v7590 = vpop.permute.xlu0 %7589
          %7591 = vrot.lane.b32.xlu0 %v7318, 96
          %v7592 = vpop.permute.xlu0 %7591
          %7593 = vrot.lane.b32.xlu0 %v7319, 96
          %v7594 = vpop.permute.xlu0 %7593
          %7595 = vrot.lane.b32.xlu0 %v7320, 96
          %v7596 = vpop.permute.xlu0 %7595
          %7597 = vrot.lane.b32.xlu0 %v7321, 96
          %v7598 = vpop.permute.xlu0 %7597
          %7599 = vrot.lane.b32.xlu0 %v7322, 96
          %v7600 = vpop.permute.xlu0 %7599
          %7601 = vrot.lane.b32.xlu0 %v7323, 96
          %v7602 = vpop.permute.xlu0 %7601
          %7603 = vrot.lane.b32.xlu0 %v7324, 96
          %v7604 = vpop.permute.xlu0 %7603
          %7605 = vrot.lane.b32.xlu0 %v7325, 96
          %v7606 = vpop.permute.xlu0 %7605
          %7607 = vrot.lane.b32.xlu0 %v7326, 96
          %v7608 = vpop.permute.xlu0 %7607
          %7609 = vrot.lane.b32.xlu0 %v7327, 96
          %v7610 = vpop.permute.xlu0 %7609
          %7611 = vrot.lane.b32.xlu0 %v7328, 96
          %v7612 = vpop.permute.xlu0 %7611
          %7613 = vrot.lane.b32.xlu0 %v7329, 96
          %v7614 = vpop.permute.xlu0 %7613
          %7615 = vrot.lane.b32.xlu0 %v7330, 96
          %v7616 = vpop.permute.xlu0 %7615
          %7617 = vrot.lane.b32.xlu0 %v7331, 96
          %v7618 = vpop.permute.xlu0 %7617
          %7619 = vrot.lane.b32.xlu0 %v7332, 96
          %v7620 = vpop.permute.xlu0 %7619
          %7653 = vst.msk [vmem:[#allocation5] sm:$0xff] %vm266, %v7558
          %7654 = vst.msk [vmem:[#allocation5 + $0x8] sm:$0xff] %vm266, %v7560
          %7655 = vst.msk [vmem:[#allocation5 + $0x10] sm:$0xff] %vm266, %v7562
          %7656 = vst.msk [vmem:[#allocation5 + $0x18] sm:$0xff] %vm266, %v7564
          %7657 = vst.msk [vmem:[#allocation5 + $0x20] sm:$0xff] %vm266, %v7566
          %7658 = vst.msk [vmem:[#allocation5 + $0x28] sm:$0xff] %vm266, %v7568
          %7659 = vst.msk [vmem:[#allocation5 + $0x30] sm:$0xff] %vm266, %v7570
          %7660 = vst.msk [vmem:[#allocation5 + $0x38] sm:$0xff] %vm266, %v7572
          %7661 = vst.msk [vmem:[#allocation5 + $0x40] sm:$0xff] %vm266, %v7574
          %7662 = vst.msk [vmem:[#allocation5 + $0x48] sm:$0xff] %vm266, %v7576
          %7663 = vst.msk [vmem:[#allocation5 + $0x50] sm:$0xff] %vm266, %v7578
          %7664 = vst.msk [vmem:[#allocation5 + $0x58] sm:$0xff] %vm266, %v7580
          %7665 = vst.msk [vmem:[#allocation5 + $0x60] sm:$0xff] %vm266, %v7582
          %7666 = vst.msk [vmem:[#allocation5 + $0x68] sm:$0xff] %vm266, %v7584
          %7667 = vst.msk [vmem:[#allocation5 + $0x70] sm:$0xff] %vm266, %v7586
          %7668 = vst.msk [vmem:[#allocation5 + $0x78] sm:$0xff] %vm266, %v7588
          %7669 = vst.msk [vmem:[#allocation5 + $0x80] sm:$0xff] %vm266, %v7590
          %7670 = vst.msk [vmem:[#allocation5 + $0x88] sm:$0xff] %vm266, %v7592
          %7671 = vst.msk [vmem:[#allocation5 + $0x90] sm:$0xff] %vm266, %v7594
          %7672 = vst.msk [vmem:[#allocation5 + $0x98] sm:$0xff] %vm266, %v7596
          %7673 = vst.msk [vmem:[#allocation5 + $0xa0] sm:$0xff] %vm266, %v7598
          %7674 = vst.msk [vmem:[#allocation5 + $0xa8] sm:$0xff] %vm266, %v7600
          %7675 = vst.msk [vmem:[#allocation5 + $0xb0] sm:$0xff] %vm266, %v7602
          %7676 = vst.msk [vmem:[#allocation5 + $0xb8] sm:$0xff] %vm266, %v7604
          %7677 = vst.msk [vmem:[#allocation5 + $0xc0] sm:$0xff] %vm266, %v7606
          %7678 = vst.msk [vmem:[#allocation5 + $0xc8] sm:$0xff] %vm266, %v7608
          %7679 = vst.msk [vmem:[#allocation5 + $0xd0] sm:$0xff] %vm266, %v7610
          %7680 = vst.msk [vmem:[#allocation5 + $0xd8] sm:$0xff] %vm266, %v7612
          %7681 = vst.msk [vmem:[#allocation5 + $0xe0] sm:$0xff] %vm266, %v7614
          %7682 = vst.msk [vmem:[#allocation5 + $0xe8] sm:$0xff] %vm266, %v7616
          %7683 = vst.msk [vmem:[#allocation5 + $0xf0] sm:$0xff] %vm266, %v7618
          %7684 = vst.msk [vmem:[#allocation5 + $0xf8] sm:$0xff] %vm266, %v7620
          %v7685 = vpack.c.bf16 %v7494, %v7493
          %v7686 = vpack.c.bf16 %v7496, %v7495
          %v7687 = vpack.c.bf16 %v7498, %v7497
          %v7688 = vpack.c.bf16 %v7500, %v7499
          %v7689 = vpack.c.bf16 %v7502, %v7501
          %v7690 = vpack.c.bf16 %v7504, %v7503
          %v7691 = vpack.c.bf16 %v7506, %v7505
          %v7692 = vpack.c.bf16 %v7508, %v7507
          %v7693 = vpack.c.bf16 %v7510, %v7509
          %v7694 = vpack.c.bf16 %v7512, %v7511
          %v7695 = vpack.c.bf16 %v7514, %v7513
          %v7696 = vpack.c.bf16 %v7516, %v7515
          %v7697 = vpack.c.bf16 %v7518, %v7517
          %v7698 = vpack.c.bf16 %v7520, %v7519
          %v7699 = vpack.c.bf16 %v7522, %v7521
          %v7700 = vpack.c.bf16 %v7524, %v7523
          %v7717 = vunpack.c.l.b16 %v7685
          %v7718 = vunpack.c.h.b16 %v7685
          %v7719 = vunpack.c.l.b16 %v7686
          %v7720 = vunpack.c.h.b16 %v7686
          %v7721 = vunpack.c.l.b16 %v7687
          %v7722 = vunpack.c.h.b16 %v7687
          %v7723 = vunpack.c.l.b16 %v7688
          %v7724 = vunpack.c.h.b16 %v7688
          %v7725 = vunpack.c.l.b16 %v7689
          %v7726 = vunpack.c.h.b16 %v7689
          %v7727 = vunpack.c.l.b16 %v7690
          %v7728 = vunpack.c.h.b16 %v7690
          %v7729 = vunpack.c.l.b16 %v7691
          %v7730 = vunpack.c.h.b16 %v7691
          %v7731 = vunpack.c.l.b16 %v7692
          %v7732 = vunpack.c.h.b16 %v7692
          %v7733 = vunpack.c.l.b16 %v7693
          %v7734 = vunpack.c.h.b16 %v7693
          %v7735 = vunpack.c.l.b16 %v7694
          %v7736 = vunpack.c.h.b16 %v7694
          %v7737 = vunpack.c.l.b16 %v7695
          %v7738 = vunpack.c.h.b16 %v7695
          %v7739 = vunpack.c.l.b16 %v7696
          %v7740 = vunpack.c.h.b16 %v7696
          %v7741 = vunpack.c.l.b16 %v7697
          %v7742 = vunpack.c.h.b16 %v7697
          %v7743 = vunpack.c.l.b16 %v7698
          %v7744 = vunpack.c.h.b16 %v7698
          %v7745 = vunpack.c.l.b16 %v7699
          %v7746 = vunpack.c.h.b16 %v7699
          %v7747 = vunpack.c.l.b16 %v7700
          %v7748 = vunpack.c.h.b16 %v7700
          %v7749 = vpack.c.b16 %v7717, %v7717
          %v7750 = vpack.c.b16 %v7718, %v7718
          %v7751 = vpack.c.b16 %v7719, %v7719
          %v7752 = vpack.c.b16 %v7720, %v7720
          %v7753 = vpack.c.b16 %v7721, %v7721
          %v7754 = vpack.c.b16 %v7722, %v7722
          %v7755 = vpack.c.b16 %v7723, %v7723
          %v7756 = vpack.c.b16 %v7724, %v7724
          %v7757 = vpack.c.b16 %v7725, %v7725
          %v7758 = vpack.c.b16 %v7726, %v7726
          %v7759 = vpack.c.b16 %v7727, %v7727
          %v7760 = vpack.c.b16 %v7728, %v7728
          %v7761 = vpack.c.b16 %v7729, %v7729
          %v7762 = vpack.c.b16 %v7730, %v7730
          %v7763 = vpack.c.b16 %v7731, %v7731
          %v7764 = vpack.c.b16 %v7732, %v7732
          %v7765 = vpack.c.b16 %v7733, %v7733
          %v7766 = vpack.c.b16 %v7734, %v7734
          %v7767 = vpack.c.b16 %v7735, %v7735
          %v7768 = vpack.c.b16 %v7736, %v7736
          %v7769 = vpack.c.b16 %v7737, %v7737
          %v7770 = vpack.c.b16 %v7738, %v7738
          %v7771 = vpack.c.b16 %v7739, %v7739
          %v7772 = vpack.c.b16 %v7740, %v7740
          %v7773 = vpack.c.b16 %v7741, %v7741
          %v7774 = vpack.c.b16 %v7742, %v7742
          %v7775 = vpack.c.b16 %v7743, %v7743
          %v7776 = vpack.c.b16 %v7744, %v7744
          %v7777 = vpack.c.b16 %v7745, %v7745
          %v7778 = vpack.c.b16 %v7746, %v7746
          %v7779 = vpack.c.b16 %v7747, %v7747
          %v7780 = vpack.c.b16 %v7748, %v7748
          %v7782 = vshrl.u32 %v7749, 16
          %v7784 = vrot.slane %v7782, 7
          %v7785 = vshll.u32 %v7749, 16
          %v7787 = vor.u32 %v7784, %v7785
          %v7788 = vrot.slane %v7784, 4
          %v7790 = vshrl.u32 %v7750, 16
          %v7792 = vrot.slane %v7790, 7
          %v7793 = vshll.u32 %v7750, 16
          %v7795 = vor.u32 %v7792, %v7793
          %v7796 = vsel %vm416, %v7788, %v7795
          %v7798 = vshrl.u32 %v7751, 16
          %v7800 = vrot.slane %v7798, 7
          %v7801 = vshll.u32 %v7751, 16
          %v7803 = vor.u32 %v7800, %v7801
          %v7804 = vrot.slane %v7800, 4
          %v7806 = vshrl.u32 %v7752, 16
          %v7808 = vrot.slane %v7806, 7
          %v7809 = vshll.u32 %v7752, 16
          %v7811 = vor.u32 %v7808, %v7809
          %v7812 = vsel %vm416, %v7804, %v7811
          %v7814 = vshrl.u32 %v7753, 16
          %v7816 = vrot.slane %v7814, 7
          %v7817 = vshll.u32 %v7753, 16
          %v7819 = vor.u32 %v7816, %v7817
          %v7820 = vrot.slane %v7816, 4
          %v7822 = vshrl.u32 %v7754, 16
          %v7824 = vrot.slane %v7822, 7
          %v7825 = vshll.u32 %v7754, 16
          %v7827 = vor.u32 %v7824, %v7825
          %v7828 = vsel %vm416, %v7820, %v7827
          %v7830 = vshrl.u32 %v7755, 16
          %v7832 = vrot.slane %v7830, 7
          %v7833 = vshll.u32 %v7755, 16
          %v7835 = vor.u32 %v7832, %v7833
          %v7836 = vrot.slane %v7832, 4
          %v7838 = vshrl.u32 %v7756, 16
          %v7840 = vrot.slane %v7838, 7
          %v7841 = vshll.u32 %v7756, 16
          %v7843 = vor.u32 %v7840, %v7841
          %v7844 = vsel %vm416, %v7836, %v7843
          %v7846 = vshrl.u32 %v7757, 16
          %v7848 = vrot.slane %v7846, 7
          %v7849 = vshll.u32 %v7757, 16
          %v7851 = vor.u32 %v7848, %v7849
          %v7852 = vrot.slane %v7848, 4
          %v7854 = vshrl.u32 %v7758, 16
          %v7856 = vrot.slane %v7854, 7
          %v7857 = vshll.u32 %v7758, 16
          %v7859 = vor.u32 %v7856, %v7857
          %v7860 = vsel %vm416, %v7852, %v7859
          %v7862 = vshrl.u32 %v7759, 16
          %v7864 = vrot.slane %v7862, 7
          %v7865 = vshll.u32 %v7759, 16
          %v7867 = vor.u32 %v7864, %v7865
          %v7868 = vrot.slane %v7864, 4
          %v7870 = vshrl.u32 %v7760, 16
          %v7872 = vrot.slane %v7870, 7
          %v7873 = vshll.u32 %v7760, 16
          %v7875 = vor.u32 %v7872, %v7873
          %v7876 = vsel %vm416, %v7868, %v7875
          %v7878 = vshrl.u32 %v7761, 16
          %v7880 = vrot.slane %v7878, 7
          %v7881 = vshll.u32 %v7761, 16
          %v7883 = vor.u32 %v7880, %v7881
          %v7884 = vrot.slane %v7880, 4
          %v7886 = vshrl.u32 %v7762, 16
          %v7888 = vrot.slane %v7886, 7
          %v7889 = vshll.u32 %v7762, 16
          %v7891 = vor.u32 %v7888, %v7889
          %v7892 = vsel %vm416, %v7884, %v7891
          %v7894 = vshrl.u32 %v7763, 16
          %v7896 = vrot.slane %v7894, 7
          %v7897 = vshll.u32 %v7763, 16
          %v7899 = vor.u32 %v7896, %v7897
          %v7900 = vrot.slane %v7896, 4
          %v7902 = vshrl.u32 %v7764, 16
          %v7904 = vrot.slane %v7902, 7
          %v7905 = vshll.u32 %v7764, 16
          %v7907 = vor.u32 %v7904, %v7905
          %v7908 = vsel %vm416, %v7900, %v7907
          %v7910 = vshrl.u32 %v7765, 16
          %v7912 = vrot.slane %v7910, 7
          %v7913 = vshll.u32 %v7765, 16
          %v7915 = vor.u32 %v7912, %v7913
          %v7916 = vrot.slane %v7912, 4
          %v7918 = vshrl.u32 %v7766, 16
          %v7920 = vrot.slane %v7918, 7
          %v7921 = vshll.u32 %v7766, 16
          %v7923 = vor.u32 %v7920, %v7921
          %v7924 = vsel %vm416, %v7916, %v7923
          %v7926 = vshrl.u32 %v7767, 16
          %v7928 = vrot.slane %v7926, 7
          %v7929 = vshll.u32 %v7767, 16
          %v7931 = vor.u32 %v7928, %v7929
          %v7932 = vrot.slane %v7928, 4
          %v7934 = vshrl.u32 %v7768, 16
          %v7936 = vrot.slane %v7934, 7
          %v7937 = vshll.u32 %v7768, 16
          %v7939 = vor.u32 %v7936, %v7937
          %v7940 = vsel %vm416, %v7932, %v7939
          %v7942 = vshrl.u32 %v7769, 16
          %v7944 = vrot.slane %v7942, 7
          %v7945 = vshll.u32 %v7769, 16
          %v7947 = vor.u32 %v7944, %v7945
          %v7948 = vrot.slane %v7944, 4
          %v7950 = vshrl.u32 %v7770, 16
          %v7952 = vrot.slane %v7950, 7
          %v7953 = vshll.u32 %v7770, 16
          %v7955 = vor.u32 %v7952, %v7953
          %v7956 = vsel %vm416, %v7948, %v7955
          %v7958 = vshrl.u32 %v7771, 16
          %v7960 = vrot.slane %v7958, 7
          %v7961 = vshll.u32 %v7771, 16
          %v7963 = vor.u32 %v7960, %v7961
          %v7964 = vrot.slane %v7960, 4
          %v7966 = vshrl.u32 %v7772, 16
          %v7968 = vrot.slane %v7966, 7
          %v7969 = vshll.u32 %v7772, 16
          %v7971 = vor.u32 %v7968, %v7969
          %v7972 = vsel %vm416, %v7964, %v7971
          %v7974 = vshrl.u32 %v7773, 16
          %v7976 = vrot.slane %v7974, 7
          %v7977 = vshll.u32 %v7773, 16
          %v7979 = vor.u32 %v7976, %v7977
          %v7980 = vrot.slane %v7976, 4
          %v7982 = vshrl.u32 %v7774, 16
          %v7984 = vrot.slane %v7982, 7
          %v7985 = vshll.u32 %v7774, 16
          %v7987 = vor.u32 %v7984, %v7985
          %v7988 = vsel %vm416, %v7980, %v7987
          %v7990 = vshrl.u32 %v7775, 16
          %v7992 = vrot.slane %v7990, 7
          %v7993 = vshll.u32 %v7775, 16
          %v7995 = vor.u32 %v7992, %v7993
          %v7996 = vrot.slane %v7992, 4
          %v7998 = vshrl.u32 %v7776, 16
          %v8000 = vrot.slane %v7998, 7
          %v8001 = vshll.u32 %v7776, 16
          %v8003 = vor.u32 %v8000, %v8001
          %v8004 = vsel %vm416, %v7996, %v8003
          %v8006 = vshrl.u32 %v7777, 16
          %v8008 = vrot.slane %v8006, 7
          %v8009 = vshll.u32 %v7777, 16
          %v8011 = vor.u32 %v8008, %v8009
          %v8012 = vrot.slane %v8008, 4
          %v8014 = vshrl.u32 %v7778, 16
          %v8016 = vrot.slane %v8014, 7
          %v8017 = vshll.u32 %v7778, 16
          %v8019 = vor.u32 %v8016, %v8017
          %v8020 = vsel %vm416, %v8012, %v8019
          %v8022 = vshrl.u32 %v7779, 16
          %v8024 = vrot.slane %v8022, 7
          %v8025 = vshll.u32 %v7779, 16
          %v8027 = vor.u32 %v8024, %v8025
          %v8028 = vrot.slane %v8024, 4
          %v8030 = vshrl.u32 %v7780, 16
          %v8032 = vrot.slane %v8030, 7
          %v8033 = vshll.u32 %v7780, 16
          %v8035 = vor.u32 %v8032, %v8033
          %v8036 = vsel %vm416, %v8028, %v8035
          %8037 = vrot.lane.b32.xlu0 %v7787, 96
          %v8038 = vpop.permute.xlu0 %8037
          %8039 = vrot.lane.b32.xlu0 %v7796, 96
          %v8040 = vpop.permute.xlu0 %8039
          %8041 = vrot.lane.b32.xlu0 %v7803, 96
          %v8042 = vpop.permute.xlu0 %8041
          %8043 = vrot.lane.b32.xlu0 %v7812, 96
          %v8044 = vpop.permute.xlu0 %8043
          %8045 = vrot.lane.b32.xlu0 %v7819, 96
          %v8046 = vpop.permute.xlu0 %8045
          %8047 = vrot.lane.b32.xlu0 %v7828, 96
          %v8048 = vpop.permute.xlu0 %8047
          %8049 = vrot.lane.b32.xlu0 %v7835, 96
          %v8050 = vpop.permute.xlu0 %8049
          %8051 = vrot.lane.b32.xlu0 %v7844, 96
          %v8052 = vpop.permute.xlu0 %8051
          %8053 = vrot.lane.b32.xlu0 %v7851, 96
          %v8054 = vpop.permute.xlu0 %8053
          %8055 = vrot.lane.b32.xlu0 %v7860, 96
          %v8056 = vpop.permute.xlu0 %8055
          %8057 = vrot.lane.b32.xlu0 %v7867, 96
          %v8058 = vpop.permute.xlu0 %8057
          %8059 = vrot.lane.b32.xlu0 %v7876, 96
          %v8060 = vpop.permute.xlu0 %8059
          %8061 = vrot.lane.b32.xlu0 %v7883, 96
          %v8062 = vpop.permute.xlu0 %8061
          %8063 = vrot.lane.b32.xlu0 %v7892, 96
          %v8064 = vpop.permute.xlu0 %8063
          %8065 = vrot.lane.b32.xlu0 %v7899, 96
          %v8066 = vpop.permute.xlu0 %8065
          %8067 = vrot.lane.b32.xlu0 %v7908, 96
          %v8068 = vpop.permute.xlu0 %8067
          %8069 = vrot.lane.b32.xlu0 %v7915, 96
          %v8070 = vpop.permute.xlu0 %8069
          %8071 = vrot.lane.b32.xlu0 %v7924, 96
          %v8072 = vpop.permute.xlu0 %8071
          %8073 = vrot.lane.b32.xlu0 %v7931, 96
          %v8074 = vpop.permute.xlu0 %8073
          %8075 = vrot.lane.b32.xlu0 %v7940, 96
          %v8076 = vpop.permute.xlu0 %8075
          %8077 = vrot.lane.b32.xlu0 %v7947, 96
          %v8078 = vpop.permute.xlu0 %8077
          %8079 = vrot.lane.b32.xlu0 %v7956, 96
          %v8080 = vpop.permute.xlu0 %8079
          %8081 = vrot.lane.b32.xlu0 %v7963, 96
          %v8082 = vpop.permute.xlu0 %8081
          %8083 = vrot.lane.b32.xlu0 %v7972, 96
          %v8084 = vpop.permute.xlu0 %8083
          %8085 = vrot.lane.b32.xlu0 %v7979, 96
          %v8086 = vpop.permute.xlu0 %8085
          %8087 = vrot.lane.b32.xlu0 %v7988, 96
          %v8088 = vpop.permute.xlu0 %8087
          %8089 = vrot.lane.b32.xlu0 %v7995, 96
          %v8090 = vpop.permute.xlu0 %8089
          %8091 = vrot.lane.b32.xlu0 %v8004, 96
          %v8092 = vpop.permute.xlu0 %8091
          %8093 = vrot.lane.b32.xlu0 %v8011, 96
          %v8094 = vpop.permute.xlu0 %8093
          %8095 = vrot.lane.b32.xlu0 %v8020, 96
          %v8096 = vpop.permute.xlu0 %8095
          %8097 = vrot.lane.b32.xlu0 %v8027, 96
          %v8098 = vpop.permute.xlu0 %8097
          %8099 = vrot.lane.b32.xlu0 %v8036, 96
          %v8100 = vpop.permute.xlu0 %8099
          %vm8133 = vcmask 519424
          %vm8134 = vmand %vm8133, %vm707
          %v8135 = vld [vmem:[%s4689] sm:$0xf]
          %v8136 = vsel %vm8134, %v8038, %v8135
          %8137 = vst [vmem:[%s4689] sm:$0xf] %v8136
          %vm8138 = vcmask 519424
          %8139 = vst.msk [vmem:[%s4689 + $0x8] sm:$0xf] %vm8138, %v8040
          %v8140 = vld [vmem:[%s4689 + $0x10] sm:$0xf]
          %v8141 = vsel %vm8134, %v8042, %v8140
          %8142 = vst [vmem:[%s4689 + $0x10] sm:$0xf] %v8141
          %8143 = vst.msk [vmem:[%s4689 + $0x18] sm:$0xf] %vm8138, %v8044
          %v8144 = vld [vmem:[%s4689 + $0x20] sm:$0xf]
          %v8145 = vsel %vm8134, %v8046, %v8144
          %8146 = vst [vmem:[%s4689 + $0x20] sm:$0xf] %v8145
          %8147 = vst.msk [vmem:[%s4689 + $0x28] sm:$0xf] %vm8138, %v8048
          %v8148 = vld [vmem:[%s4689 + $0x30] sm:$0xf]
          %v8149 = vsel %vm8134, %v8050, %v8148
          %8150 = vst [vmem:[%s4689 + $0x30] sm:$0xf] %v8149
          %8151 = vst.msk [vmem:[%s4689 + $0x38] sm:$0xf] %vm8138, %v8052
          %v8152 = vld [vmem:[%s4689 + $0x40] sm:$0xf]
          %v8153 = vsel %vm8134, %v8054, %v8152
          %8154 = vst [vmem:[%s4689 + $0x40] sm:$0xf] %v8153
          %8155 = vst.msk [vmem:[%s4689 + $0x48] sm:$0xf] %vm8138, %v8056
          %v8156 = vld [vmem:[%s4689 + $0x50] sm:$0xf]
          %v8157 = vsel %vm8134, %v8058, %v8156
          %8158 = vst [vmem:[%s4689 + $0x50] sm:$0xf] %v8157
          %8159 = vst.msk [vmem:[%s4689 + $0x58] sm:$0xf] %vm8138, %v8060
          %v8160 = vld [vmem:[%s4689 + $0x60] sm:$0xf]
          %v8161 = vsel %vm8134, %v8062, %v8160
          %8162 = vst [vmem:[%s4689 + $0x60] sm:$0xf] %v8161
          %8163 = vst.msk [vmem:[%s4689 + $0x68] sm:$0xf] %vm8138, %v8064
          %v8164 = vld [vmem:[%s4689 + $0x70] sm:$0xf]
          %v8165 = vsel %vm8134, %v8066, %v8164
          %8166 = vst [vmem:[%s4689 + $0x70] sm:$0xf] %v8165
          %8167 = vst.msk [vmem:[%s4689 + $0x78] sm:$0xf] %vm8138, %v8068
          %v8168 = vld [vmem:[%s4689 + $0x80] sm:$0xf]
          %v8169 = vsel %vm8134, %v8070, %v8168
          %8170 = vst [vmem:[%s4689 + $0x80] sm:$0xf] %v8169
          %8171 = vst.msk [vmem:[%s4689 + $0x88] sm:$0xf] %vm8138, %v8072
          %v8172 = vld [vmem:[%s4689 + $0x90] sm:$0xf]
          %v8173 = vsel %vm8134, %v8074, %v8172
          %8174 = vst [vmem:[%s4689 + $0x90] sm:$0xf] %v8173
          %8175 = vst.msk [vmem:[%s4689 + $0x98] sm:$0xf] %vm8138, %v8076
          %v8176 = vld [vmem:[%s4689 + $0xa0] sm:$0xf]
          %v8177 = vsel %vm8134, %v8078, %v8176
          %8178 = vst [vmem:[%s4689 + $0xa0] sm:$0xf] %v8177
          %8179 = vst.msk [vmem:[%s4689 + $0xa8] sm:$0xf] %vm8138, %v8080
          %v8180 = vld [vmem:[%s4689 + $0xb0] sm:$0xf]
          %v8181 = vsel %vm8134, %v8082, %v8180
          %8182 = vst [vmem:[%s4689 + $0xb0] sm:$0xf] %v8181
          %8183 = vst.msk [vmem:[%s4689 + $0xb8] sm:$0xf] %vm8138, %v8084
          %v8184 = vld [vmem:[%s4689 + $0xc0] sm:$0xf]
          %v8185 = vsel %vm8134, %v8086, %v8184
          %8186 = vst [vmem:[%s4689 + $0xc0] sm:$0xf] %v8185
          %8187 = vst.msk [vmem:[%s4689 + $0xc8] sm:$0xf] %vm8138, %v8088
          %v8188 = vld [vmem:[%s4689 + $0xd0] sm:$0xf]
          %v8189 = vsel %vm8134, %v8090, %v8188
          %8190 = vst [vmem:[%s4689 + $0xd0] sm:$0xf] %v8189
          %8191 = vst.msk [vmem:[%s4689 + $0xd8] sm:$0xf] %vm8138, %v8092
          %v8192 = vld [vmem:[%s4689 + $0xe0] sm:$0xf]
          %v8193 = vsel %vm8134, %v8094, %v8192
          %8194 = vst [vmem:[%s4689 + $0xe0] sm:$0xf] %v8193
          %8195 = vst.msk [vmem:[%s4689 + $0xe8] sm:$0xf] %vm8138, %v8096
          %v8196 = vld [vmem:[%s4689 + $0xf0] sm:$0xf]
          %v8197 = vsel %vm8134, %v8098, %v8196
          %8198 = vst [vmem:[%s4689 + $0xf0] sm:$0xf] %v8197
          %8199 = vst.msk [vmem:[%s4689 + $0xf8] sm:$0xf] %vm8138, %v8100
          %8200 = vrot.lane.b32.xlu0 %v7749, 32
          %v8201 = vpop.permute.xlu0 %8200
          %8202 = vrot.lane.b32.xlu0 %v7750, 32
          %v8203 = vpop.permute.xlu0 %8202
          %8204 = vrot.lane.b32.xlu0 %v7751, 32
          %v8205 = vpop.permute.xlu0 %8204
          %8206 = vrot.lane.b32.xlu0 %v7752, 32
          %v8207 = vpop.permute.xlu0 %8206
          %8208 = vrot.lane.b32.xlu0 %v7753, 32
          %v8209 = vpop.permute.xlu0 %8208
          %8210 = vrot.lane.b32.xlu0 %v7754, 32
          %v8211 = vpop.permute.xlu0 %8210
          %8212 = vrot.lane.b32.xlu0 %v7755, 32
          %v8213 = vpop.permute.xlu0 %8212
          %8214 = vrot.lane.b32.xlu0 %v7756, 32
          %v8215 = vpop.permute.xlu0 %8214
          %8216 = vrot.lane.b32.xlu0 %v7757, 32
          %v8217 = vpop.permute.xlu0 %8216
          %8218 = vrot.lane.b32.xlu0 %v7758, 32
          %v8219 = vpop.permute.xlu0 %8218
          %8220 = vrot.lane.b32.xlu0 %v7759, 32
          %v8221 = vpop.permute.xlu0 %8220
          %8222 = vrot.lane.b32.xlu0 %v7760, 32
          %v8223 = vpop.permute.xlu0 %8222
          %8224 = vrot.lane.b32.xlu0 %v7761, 32
          %v8225 = vpop.permute.xlu0 %8224
          %8226 = vrot.lane.b32.xlu0 %v7762, 32
          %v8227 = vpop.permute.xlu0 %8226
          %8228 = vrot.lane.b32.xlu0 %v7763, 32
          %v8229 = vpop.permute.xlu0 %8228
          %8230 = vrot.lane.b32.xlu0 %v7764, 32
          %v8231 = vpop.permute.xlu0 %8230
          %8232 = vrot.lane.b32.xlu0 %v7765, 32
          %v8233 = vpop.permute.xlu0 %8232
          %8234 = vrot.lane.b32.xlu0 %v7766, 32
          %v8235 = vpop.permute.xlu0 %8234
          %8236 = vrot.lane.b32.xlu0 %v7767, 32
          %v8237 = vpop.permute.xlu0 %8236
          %8238 = vrot.lane.b32.xlu0 %v7768, 32
          %v8239 = vpop.permute.xlu0 %8238
          %8240 = vrot.lane.b32.xlu0 %v7769, 32
          %v8241 = vpop.permute.xlu0 %8240
          %8242 = vrot.lane.b32.xlu0 %v7770, 32
          %v8243 = vpop.permute.xlu0 %8242
          %8244 = vrot.lane.b32.xlu0 %v7771, 32
          %v8245 = vpop.permute.xlu0 %8244
          %8246 = vrot.lane.b32.xlu0 %v7772, 32
          %v8247 = vpop.permute.xlu0 %8246
          %8248 = vrot.lane.b32.xlu0 %v7773, 32
          %v8249 = vpop.permute.xlu0 %8248
          %8250 = vrot.lane.b32.xlu0 %v7774, 32
          %v8251 = vpop.permute.xlu0 %8250
          %8252 = vrot.lane.b32.xlu0 %v7775, 32
          %v8253 = vpop.permute.xlu0 %8252
          %8254 = vrot.lane.b32.xlu0 %v7776, 32
          %v8255 = vpop.permute.xlu0 %8254
          %8256 = vrot.lane.b32.xlu0 %v7777, 32
          %v8257 = vpop.permute.xlu0 %8256
          %8258 = vrot.lane.b32.xlu0 %v7778, 32
          %v8259 = vpop.permute.xlu0 %8258
          %8260 = vrot.lane.b32.xlu0 %v7779, 32
          %v8261 = vpop.permute.xlu0 %8260
          %8262 = vrot.lane.b32.xlu0 %v7780, 32
          %v8263 = vpop.permute.xlu0 %8262
          %vm8296 = vcmask 1044224
          %8297 = vst.msk [vmem:[%s4689] sm:$0xf] %vm8296, %v8201
          %8298 = vst.msk [vmem:[%s4689 + $0x8] sm:$0xf] %vm8296, %v8203
          %8299 = vst.msk [vmem:[%s4689 + $0x10] sm:$0xf] %vm8296, %v8205
          %8300 = vst.msk [vmem:[%s4689 + $0x18] sm:$0xf] %vm8296, %v8207
          %8301 = vst.msk [vmem:[%s4689 + $0x20] sm:$0xf] %vm8296, %v8209
          %8302 = vst.msk [vmem:[%s4689 + $0x28] sm:$0xf] %vm8296, %v8211
          %8303 = vst.msk [vmem:[%s4689 + $0x30] sm:$0xf] %vm8296, %v8213
          %8304 = vst.msk [vmem:[%s4689 + $0x38] sm:$0xf] %vm8296, %v8215
          %8305 = vst.msk [vmem:[%s4689 + $0x40] sm:$0xf] %vm8296, %v8217
          %8306 = vst.msk [vmem:[%s4689 + $0x48] sm:$0xf] %vm8296, %v8219
          %8307 = vst.msk [vmem:[%s4689 + $0x50] sm:$0xf] %vm8296, %v8221
          %8308 = vst.msk [vmem:[%s4689 + $0x58] sm:$0xf] %vm8296, %v8223
          %8309 = vst.msk [vmem:[%s4689 + $0x60] sm:$0xf] %vm8296, %v8225
          %8310 = vst.msk [vmem:[%s4689 + $0x68] sm:$0xf] %vm8296, %v8227
          %8311 = vst.msk [vmem:[%s4689 + $0x70] sm:$0xf] %vm8296, %v8229
          %8312 = vst.msk [vmem:[%s4689 + $0x78] sm:$0xf] %vm8296, %v8231
          %8313 = vst.msk [vmem:[%s4689 + $0x80] sm:$0xf] %vm8296, %v8233
          %8314 = vst.msk [vmem:[%s4689 + $0x88] sm:$0xf] %vm8296, %v8235
          %8315 = vst.msk [vmem:[%s4689 + $0x90] sm:$0xf] %vm8296, %v8237
          %8316 = vst.msk [vmem:[%s4689 + $0x98] sm:$0xf] %vm8296, %v8239
          %8317 = vst.msk [vmem:[%s4689 + $0xa0] sm:$0xf] %vm8296, %v8241
          %8318 = vst.msk [vmem:[%s4689 + $0xa8] sm:$0xf] %vm8296, %v8243
          %8319 = vst.msk [vmem:[%s4689 + $0xb0] sm:$0xf] %vm8296, %v8245
          %8320 = vst.msk [vmem:[%s4689 + $0xb8] sm:$0xf] %vm8296, %v8247
          %8321 = vst.msk [vmem:[%s4689 + $0xc0] sm:$0xf] %vm8296, %v8249
          %8322 = vst.msk [vmem:[%s4689 + $0xc8] sm:$0xf] %vm8296, %v8251
          %8323 = vst.msk [vmem:[%s4689 + $0xd0] sm:$0xf] %vm8296, %v8253
          %8324 = vst.msk [vmem:[%s4689 + $0xd8] sm:$0xf] %vm8296, %v8255
          %8325 = vst.msk [vmem:[%s4689 + $0xe0] sm:$0xf] %vm8296, %v8257
          %8326 = vst.msk [vmem:[%s4689 + $0xe8] sm:$0xf] %vm8296, %v8259
          %8327 = vst.msk [vmem:[%s4689 + $0xf0] sm:$0xf] %vm8296, %v8261
          %8328 = vst.msk [vmem:[%s4689 + $0xf8] sm:$0xf] %vm8296, %v8263
          %v8329 = vrot.slane %v7782, 4
          %v8330 = vrot.slane %v7785, 5
          %v8331 = vor.u32 %v8329, %v8330
          %v8332 = vrot.slane %v8331, 4
          %v8333 = vrot.slane %v7793, 5
          %v8334 = vsel %vm937, %v8332, %v8333
          %v8335 = vrot.slane %v7790, 4
          %v8336 = vor.u32 %v8335, %v8333
          %v8337 = vrot.slane %v8336, 4
          %v8338 = vrot.slane %v7798, 4
          %v8339 = vrot.slane %v7801, 5
          %v8340 = vor.u32 %v8338, %v8339
          %v8341 = vrot.slane %v8340, 4
          %v8342 = vrot.slane %v7809, 5
          %v8343 = vsel %vm937, %v8341, %v8342
          %v8344 = vrot.slane %v7806, 4
          %v8345 = vor.u32 %v8344, %v8342
          %v8346 = vrot.slane %v8345, 4
          %v8347 = vrot.slane %v7814, 4
          %v8348 = vrot.slane %v7817, 5
          %v8349 = vor.u32 %v8347, %v8348
          %v8350 = vrot.slane %v8349, 4
          %v8351 = vrot.slane %v7825, 5
          %v8352 = vsel %vm937, %v8350, %v8351
          %v8353 = vrot.slane %v7822, 4
          %v8354 = vor.u32 %v8353, %v8351
          %v8355 = vrot.slane %v8354, 4
          %v8356 = vrot.slane %v7830, 4
          %v8357 = vrot.slane %v7833, 5
          %v8358 = vor.u32 %v8356, %v8357
          %v8359 = vrot.slane %v8358, 4
          %v8360 = vrot.slane %v7841, 5
          %v8361 = vsel %vm937, %v8359, %v8360
          %v8362 = vrot.slane %v7838, 4
          %v8363 = vor.u32 %v8362, %v8360
          %v8364 = vrot.slane %v8363, 4
          %v8365 = vrot.slane %v7846, 4
          %v8366 = vrot.slane %v7849, 5
          %v8367 = vor.u32 %v8365, %v8366
          %v8368 = vrot.slane %v8367, 4
          %v8369 = vrot.slane %v7857, 5
          %v8370 = vsel %vm937, %v8368, %v8369
          %v8371 = vrot.slane %v7854, 4
          %v8372 = vor.u32 %v8371, %v8369
          %v8373 = vrot.slane %v8372, 4
          %v8374 = vrot.slane %v7862, 4
          %v8375 = vrot.slane %v7865, 5
          %v8376 = vor.u32 %v8374, %v8375
          %v8377 = vrot.slane %v8376, 4
          %v8378 = vrot.slane %v7873, 5
          %v8379 = vsel %vm937, %v8377, %v8378
          %v8380 = vrot.slane %v7870, 4
          %v8381 = vor.u32 %v8380, %v8378
          %v8382 = vrot.slane %v8381, 4
          %v8383 = vrot.slane %v7878, 4
          %v8384 = vrot.slane %v7881, 5
          %v8385 = vor.u32 %v8383, %v8384
          %v8386 = vrot.slane %v8385, 4
          %v8387 = vrot.slane %v7889, 5
          %v8388 = vsel %vm937, %v8386, %v8387
          %v8389 = vrot.slane %v7886, 4
          %v8390 = vor.u32 %v8389, %v8387
          %v8391 = vrot.slane %v8390, 4
          %v8392 = vrot.slane %v7894, 4
          %v8393 = vrot.slane %v7897, 5
          %v8394 = vor.u32 %v8392, %v8393
          %v8395 = vrot.slane %v8394, 4
          %v8396 = vrot.slane %v7905, 5
          %v8397 = vsel %vm937, %v8395, %v8396
          %v8398 = vrot.slane %v7902, 4
          %v8399 = vor.u32 %v8398, %v8396
          %v8400 = vrot.slane %v8399, 4
          %v8401 = vrot.slane %v7910, 4
          %v8402 = vrot.slane %v7913, 5
          %v8403 = vor.u32 %v8401, %v8402
          %v8404 = vrot.slane %v8403, 4
          %v8405 = vrot.slane %v7921, 5
          %v8406 = vsel %vm937, %v8404, %v8405
          %v8407 = vrot.slane %v7918, 4
          %v8408 = vor.u32 %v8407, %v8405
          %v8409 = vrot.slane %v8408, 4
          %v8410 = vrot.slane %v7926, 4
          %v8411 = vrot.slane %v7929, 5
          %v8412 = vor.u32 %v8410, %v8411
          %v8413 = vrot.slane %v8412, 4
          %v8414 = vrot.slane %v7937, 5
          %v8415 = vsel %vm937, %v8413, %v8414
          %v8416 = vrot.slane %v7934, 4
          %v8417 = vor.u32 %v8416, %v8414
          %v8418 = vrot.slane %v8417, 4
          %v8419 = vrot.slane %v7942, 4
          %v8420 = vrot.slane %v7945, 5
          %v8421 = vor.u32 %v8419, %v8420
          %v8422 = vrot.slane %v8421, 4
          %v8423 = vrot.slane %v7953, 5
          %v8424 = vsel %vm937, %v8422, %v8423
          %v8425 = vrot.slane %v7950, 4
          %v8426 = vor.u32 %v8425, %v8423
          %v8427 = vrot.slane %v8426, 4
          %v8428 = vrot.slane %v7958, 4
          %v8429 = vrot.slane %v7961, 5
          %v8430 = vor.u32 %v8428, %v8429
          %v8431 = vrot.slane %v8430, 4
          %v8432 = vrot.slane %v7969, 5
          %v8433 = vsel %vm937, %v8431, %v8432
          %v8434 = vrot.slane %v7966, 4
          %v8435 = vor.u32 %v8434, %v8432
          %v8436 = vrot.slane %v8435, 4
          %v8437 = vrot.slane %v7974, 4
          %v8438 = vrot.slane %v7977, 5
          %v8439 = vor.u32 %v8437, %v8438
          %v8440 = vrot.slane %v8439, 4
          %v8441 = vrot.slane %v7985, 5
          %v8442 = vsel %vm937, %v8440, %v8441
          %v8443 = vrot.slane %v7982, 4
          %v8444 = vor.u32 %v8443, %v8441
          %v8445 = vrot.slane %v8444, 4
          %v8446 = vrot.slane %v7990, 4
          %v8447 = vrot.slane %v7993, 5
          %v8448 = vor.u32 %v8446, %v8447
          %v8449 = vrot.slane %v8448, 4
          %v8450 = vrot.slane %v8001, 5
          %v8451 = vsel %vm937, %v8449, %v8450
          %v8452 = vrot.slane %v7998, 4
          %v8453 = vor.u32 %v8452, %v8450
          %v8454 = vrot.slane %v8453, 4
          %v8455 = vrot.slane %v8006, 4
          %v8456 = vrot.slane %v8009, 5
          %v8457 = vor.u32 %v8455, %v8456
          %v8458 = vrot.slane %v8457, 4
          %v8459 = vrot.slane %v8017, 5
          %v8460 = vsel %vm937, %v8458, %v8459
          %v8461 = vrot.slane %v8014, 4
          %v8462 = vor.u32 %v8461, %v8459
          %v8463 = vrot.slane %v8462, 4
          %v8464 = vrot.slane %v8022, 4
          %v8465 = vrot.slane %v8025, 5
          %v8466 = vor.u32 %v8464, %v8465
          %v8467 = vrot.slane %v8466, 4
          %v8468 = vrot.slane %v8033, 5
          %v8469 = vsel %vm937, %v8467, %v8468
          %v8470 = vrot.slane %v8030, 4
          %v8471 = vor.u32 %v8470, %v8468
          %v8472 = vrot.slane %v8471, 4
          %8473 = vrot.lane.b32.xlu0 %v8334, 96
          %v8474 = vpop.permute.xlu0 %8473
          %8475 = vrot.lane.b32.xlu0 %v8337, 96
          %v8476 = vpop.permute.xlu0 %8475
          %8477 = vrot.lane.b32.xlu0 %v8343, 96
          %v8478 = vpop.permute.xlu0 %8477
          %8479 = vrot.lane.b32.xlu0 %v8346, 96
          %v8480 = vpop.permute.xlu0 %8479
          %8481 = vrot.lane.b32.xlu0 %v8352, 96
          %v8482 = vpop.permute.xlu0 %8481
          %8483 = vrot.lane.b32.xlu0 %v8355, 96
          %v8484 = vpop.permute.xlu0 %8483
          %8485 = vrot.lane.b32.xlu0 %v8361, 96
          %v8486 = vpop.permute.xlu0 %8485
          %8487 = vrot.lane.b32.xlu0 %v8364, 96
          %v8488 = vpop.permute.xlu0 %8487
          %8489 = vrot.lane.b32.xlu0 %v8370, 96
          %v8490 = vpop.permute.xlu0 %8489
          %8491 = vrot.lane.b32.xlu0 %v8373, 96
          %v8492 = vpop.permute.xlu0 %8491
          %8493 = vrot.lane.b32.xlu0 %v8379, 96
          %v8494 = vpop.permute.xlu0 %8493
          %8495 = vrot.lane.b32.xlu0 %v8382, 96
          %v8496 = vpop.permute.xlu0 %8495
          %8497 = vrot.lane.b32.xlu0 %v8388, 96
          %v8498 = vpop.permute.xlu0 %8497
          %8499 = vrot.lane.b32.xlu0 %v8391, 96
          %v8500 = vpop.permute.xlu0 %8499
          %8501 = vrot.lane.b32.xlu0 %v8397, 96
          %v8502 = vpop.permute.xlu0 %8501
          %8503 = vrot.lane.b32.xlu0 %v8400, 96
          %v8504 = vpop.permute.xlu0 %8503
          %8505 = vrot.lane.b32.xlu0 %v8406, 96
          %v8506 = vpop.permute.xlu0 %8505
          %8507 = vrot.lane.b32.xlu0 %v8409, 96
          %v8508 = vpop.permute.xlu0 %8507
          %8509 = vrot.lane.b32.xlu0 %v8415, 96
          %v8510 = vpop.permute.xlu0 %8509
          %8511 = vrot.lane.b32.xlu0 %v8418, 96
          %v8512 = vpop.permute.xlu0 %8511
          %8513 = vrot.lane.b32.xlu0 %v8424, 96
          %v8514 = vpop.permute.xlu0 %8513
          %8515 = vrot.lane.b32.xlu0 %v8427, 96
          %v8516 = vpop.permute.xlu0 %8515
          %8517 = vrot.lane.b32.xlu0 %v8433, 96
          %v8518 = vpop.permute.xlu0 %8517
          %8519 = vrot.lane.b32.xlu0 %v8436, 96
          %v8520 = vpop.permute.xlu0 %8519
          %8521 = vrot.lane.b32.xlu0 %v8442, 96
          %v8522 = vpop.permute.xlu0 %8521
          %8523 = vrot.lane.b32.xlu0 %v8445, 96
          %v8524 = vpop.permute.xlu0 %8523
          %8525 = vrot.lane.b32.xlu0 %v8451, 96
          %v8526 = vpop.permute.xlu0 %8525
          %8527 = vrot.lane.b32.xlu0 %v8454, 96
          %v8528 = vpop.permute.xlu0 %8527
          %8529 = vrot.lane.b32.xlu0 %v8460, 96
          %v8530 = vpop.permute.xlu0 %8529
          %8531 = vrot.lane.b32.xlu0 %v8463, 96
          %v8532 = vpop.permute.xlu0 %8531
          %8533 = vrot.lane.b32.xlu0 %v8469, 96
          %v8534 = vpop.permute.xlu0 %8533
          %8535 = vrot.lane.b32.xlu0 %v8472, 96
          %v8536 = vpop.permute.xlu0 %8535
          %8569 = vst.msk [vmem:[%s4689 + $0x4] sm:$0xf] %vm8138, %v8474
          %vm8570 = vmand %vm8133, %vm935
          %v8571 = vld [vmem:[%s4689 + $0xc] sm:$0xf]
          %v8572 = vsel %vm8570, %v8476, %v8571
          %8573 = vst [vmem:[%s4689 + $0xc] sm:$0xf] %v8572
          %8574 = vst.msk [vmem:[%s4689 + $0x14] sm:$0xf] %vm8138, %v8478
          %v8575 = vld [vmem:[%s4689 + $0x1c] sm:$0xf]
          %v8576 = vsel %vm8570, %v8480, %v8575
          %8577 = vst [vmem:[%s4689 + $0x1c] sm:$0xf] %v8576
          %8578 = vst.msk [vmem:[%s4689 + $0x24] sm:$0xf] %vm8138, %v8482
          %v8579 = vld [vmem:[%s4689 + $0x2c] sm:$0xf]
          %v8580 = vsel %vm8570, %v8484, %v8579
          %8581 = vst [vmem:[%s4689 + $0x2c] sm:$0xf] %v8580
          %8582 = vst.msk [vmem:[%s4689 + $0x34] sm:$0xf] %vm8138, %v8486
          %v8583 = vld [vmem:[%s4689 + $0x3c] sm:$0xf]
          %v8584 = vsel %vm8570, %v8488, %v8583
          %8585 = vst [vmem:[%s4689 + $0x3c] sm:$0xf] %v8584
          %8586 = vst.msk [vmem:[%s4689 + $0x44] sm:$0xf] %vm8138, %v8490
          %v8587 = vld [vmem:[%s4689 + $0x4c] sm:$0xf]
          %v8588 = vsel %vm8570, %v8492, %v8587
          %8589 = vst [vmem:[%s4689 + $0x4c] sm:$0xf] %v8588
          %8590 = vst.msk [vmem:[%s4689 + $0x54] sm:$0xf] %vm8138, %v8494
          %v8591 = vld [vmem:[%s4689 + $0x5c] sm:$0xf]
          %v8592 = vsel %vm8570, %v8496, %v8591
          %8593 = vst [vmem:[%s4689 + $0x5c] sm:$0xf] %v8592
          %8594 = vst.msk [vmem:[%s4689 + $0x64] sm:$0xf] %vm8138, %v8498
          %v8595 = vld [vmem:[%s4689 + $0x6c] sm:$0xf]
          %v8596 = vsel %vm8570, %v8500, %v8595
          %8597 = vst [vmem:[%s4689 + $0x6c] sm:$0xf] %v8596
          %8598 = vst.msk [vmem:[%s4689 + $0x74] sm:$0xf] %vm8138, %v8502
          %v8599 = vld [vmem:[%s4689 + $0x7c] sm:$0xf]
          %v8600 = vsel %vm8570, %v8504, %v8599
          %8601 = vst [vmem:[%s4689 + $0x7c] sm:$0xf] %v8600
          %8602 = vst.msk [vmem:[%s4689 + $0x84] sm:$0xf] %vm8138, %v8506
          %v8603 = vld [vmem:[%s4689 + $0x8c] sm:$0xf]
          %v8604 = vsel %vm8570, %v8508, %v8603
          %8605 = vst [vmem:[%s4689 + $0x8c] sm:$0xf] %v8604
          %8606 = vst.msk [vmem:[%s4689 + $0x94] sm:$0xf] %vm8138, %v8510
          %v8607 = vld [vmem:[%s4689 + $0x9c] sm:$0xf]
          %v8608 = vsel %vm8570, %v8512, %v8607
          %8609 = vst [vmem:[%s4689 + $0x9c] sm:$0xf] %v8608
          %8610 = vst.msk [vmem:[%s4689 + $0xa4] sm:$0xf] %vm8138, %v8514
          %v8611 = vld [vmem:[%s4689 + $0xac] sm:$0xf]
          %v8612 = vsel %vm8570, %v8516, %v8611
          %8613 = vst [vmem:[%s4689 + $0xac] sm:$0xf] %v8612
          %8614 = vst.msk [vmem:[%s4689 + $0xb4] sm:$0xf] %vm8138, %v8518
          %v8615 = vld [vmem:[%s4689 + $0xbc] sm:$0xf]
          %v8616 = vsel %vm8570, %v8520, %v8615
          %8617 = vst [vmem:[%s4689 + $0xbc] sm:$0xf] %v8616
          %8618 = vst.msk [vmem:[%s4689 + $0xc4] sm:$0xf] %vm8138, %v8522
          %v8619 = vld [vmem:[%s4689 + $0xcc] sm:$0xf]
          %v8620 = vsel %vm8570, %v8524, %v8619
          %8621 = vst [vmem:[%s4689 + $0xcc] sm:$0xf] %v8620
          %8622 = vst.msk [vmem:[%s4689 + $0xd4] sm:$0xf] %vm8138, %v8526
          %v8623 = vld [vmem:[%s4689 + $0xdc] sm:$0xf]
          %v8624 = vsel %vm8570, %v8528, %v8623
          %8625 = vst [vmem:[%s4689 + $0xdc] sm:$0xf] %v8624
          %8626 = vst.msk [vmem:[%s4689 + $0xe4] sm:$0xf] %vm8138, %v8530
          %v8627 = vld [vmem:[%s4689 + $0xec] sm:$0xf]
          %v8628 = vsel %vm8570, %v8532, %v8627
          %8629 = vst [vmem:[%s4689 + $0xec] sm:$0xf] %v8628
          %8630 = vst.msk [vmem:[%s4689 + $0xf4] sm:$0xf] %vm8138, %v8534
          %v8631 = vld [vmem:[%s4689 + $0xfc] sm:$0xf]
          %v8632 = vsel %vm8570, %v8536, %v8631
          %8633 = vst [vmem:[%s4689 + $0xfc] sm:$0xf] %v8632
          %p8634 = scmp.eq.s32.totalorder %s374, 7
          // Predicated region
          $region48: #{convlstm_forward.1} parent=44 // pred_check
            %p8635 = pneg %p8634
          $region49: #{convlstm_forward.1} parent=44 // pred_check_branch
            %8637 = sbr.rel (%p8635) target = $region51
          $region50: #{convlstm_forward.1} parent=44 // pred_region
            %8670 = vrot.lane.b32.xlu0 %v7493, 64
            %v8671 = vpop.permute.xlu0 %8670
            %8672 = vrot.lane.b32.xlu0 %v7494, 64
            %v8673 = vpop.permute.xlu0 %8672
            %8674 = vrot.lane.b32.xlu0 %v7495, 64
            %v8675 = vpop.permute.xlu0 %8674
            %8676 = vrot.lane.b32.xlu0 %v7496, 64
            %v8677 = vpop.permute.xlu0 %8676
            %8678 = vrot.lane.b32.xlu0 %v7497, 64
            %v8679 = vpop.permute.xlu0 %8678
            %8680 = vrot.lane.b32.xlu0 %v7498, 64
            %v8681 = vpop.permute.xlu0 %8680
            %8682 = vrot.lane.b32.xlu0 %v7499, 64
            %v8683 = vpop.permute.xlu0 %8682
            %8684 = vrot.lane.b32.xlu0 %v7500, 64
            %v8685 = vpop.permute.xlu0 %8684
            %8686 = vrot.lane.b32.xlu0 %v7501, 64
            %v8687 = vpop.permute.xlu0 %8686
            %8688 = vrot.lane.b32.xlu0 %v7502, 64
            %v8689 = vpop.permute.xlu0 %8688
            %8690 = vrot.lane.b32.xlu0 %v7503, 64
            %v8691 = vpop.permute.xlu0 %8690
            %8692 = vrot.lane.b32.xlu0 %v7504, 64
            %v8693 = vpop.permute.xlu0 %8692
            %8694 = vrot.lane.b32.xlu0 %v7505, 64
            %v8695 = vpop.permute.xlu0 %8694
            %8696 = vrot.lane.b32.xlu0 %v7506, 64
            %v8697 = vpop.permute.xlu0 %8696
            %8698 = vrot.lane.b32.xlu0 %v7507, 64
            %v8699 = vpop.permute.xlu0 %8698
            %8700 = vrot.lane.b32.xlu0 %v7508, 64
            %v8701 = vpop.permute.xlu0 %8700
            %8702 = vrot.lane.b32.xlu0 %v7509, 64
            %v8703 = vpop.permute.xlu0 %8702
            %8704 = vrot.lane.b32.xlu0 %v7510, 64
            %v8705 = vpop.permute.xlu0 %8704
            %8706 = vrot.lane.b32.xlu0 %v7511, 64
            %v8707 = vpop.permute.xlu0 %8706
            %8708 = vrot.lane.b32.xlu0 %v7512, 64
            %v8709 = vpop.permute.xlu0 %8708
            %8710 = vrot.lane.b32.xlu0 %v7513, 64
            %v8711 = vpop.permute.xlu0 %8710
            %8712 = vrot.lane.b32.xlu0 %v7514, 64
            %v8713 = vpop.permute.xlu0 %8712
            %8714 = vrot.lane.b32.xlu0 %v7515, 64
            %v8715 = vpop.permute.xlu0 %8714
            %8716 = vrot.lane.b32.xlu0 %v7516, 64
            %v8717 = vpop.permute.xlu0 %8716
            %8718 = vrot.lane.b32.xlu0 %v7517, 64
            %v8719 = vpop.permute.xlu0 %8718
            %8720 = vrot.lane.b32.xlu0 %v7518, 64
            %v8721 = vpop.permute.xlu0 %8720
            %8722 = vrot.lane.b32.xlu0 %v7519, 64
            %v8723 = vpop.permute.xlu0 %8722
            %8724 = vrot.lane.b32.xlu0 %v7520, 64
            %v8725 = vpop.permute.xlu0 %8724
            %8726 = vrot.lane.b32.xlu0 %v7521, 64
            %v8727 = vpop.permute.xlu0 %8726
            %8728 = vrot.lane.b32.xlu0 %v7522, 64
            %v8729 = vpop.permute.xlu0 %8728
            %8730 = vrot.lane.b32.xlu0 %v7523, 64
            %v8731 = vpop.permute.xlu0 %8730
            %8732 = vrot.lane.b32.xlu0 %v7524, 64
            %v8733 = vpop.permute.xlu0 %8732
            %8766 = vst.msk [vmem:[%s220] sm:$0xff] %vm266, %v8671
            %8767 = vst.msk [vmem:[%s220 + $0x8] sm:$0xff] %vm266, %v8673
            %8768 = vst.msk [vmem:[%s220 + $0x10] sm:$0xff] %vm266, %v8675
            %8769 = vst.msk [vmem:[%s220 + $0x18] sm:$0xff] %vm266, %v8677
            %8770 = vst.msk [vmem:[%s220 + $0x20] sm:$0xff] %vm266, %v8679
            %8771 = vst.msk [vmem:[%s220 + $0x28] sm:$0xff] %vm266, %v8681
            %8772 = vst.msk [vmem:[%s220 + $0x30] sm:$0xff] %vm266, %v8683
            %8773 = vst.msk [vmem:[%s220 + $0x38] sm:$0xff] %vm266, %v8685
            %8774 = vst.msk [vmem:[%s220 + $0x40] sm:$0xff] %vm266, %v8687
            %8775 = vst.msk [vmem:[%s220 + $0x48] sm:$0xff] %vm266, %v8689
            %8776 = vst.msk [vmem:[%s220 + $0x50] sm:$0xff] %vm266, %v8691
            %8777 = vst.msk [vmem:[%s220 + $0x58] sm:$0xff] %vm266, %v8693
            %8778 = vst.msk [vmem:[%s220 + $0x60] sm:$0xff] %vm266, %v8695
            %8779 = vst.msk [vmem:[%s220 + $0x68] sm:$0xff] %vm266, %v8697
            %8780 = vst.msk [vmem:[%s220 + $0x70] sm:$0xff] %vm266, %v8699
            %8781 = vst.msk [vmem:[%s220 + $0x78] sm:$0xff] %vm266, %v8701
            %8782 = vst.msk [vmem:[%s220 + $0x80] sm:$0xff] %vm266, %v8703
            %8783 = vst.msk [vmem:[%s220 + $0x88] sm:$0xff] %vm266, %v8705
            %8784 = vst.msk [vmem:[%s220 + $0x90] sm:$0xff] %vm266, %v8707
            %8785 = vst.msk [vmem:[%s220 + $0x98] sm:$0xff] %vm266, %v8709
            %8786 = vst.msk [vmem:[%s220 + $0xa0] sm:$0xff] %vm266, %v8711
            %8787 = vst.msk [vmem:[%s220 + $0xa8] sm:$0xff] %vm266, %v8713
            %8788 = vst.msk [vmem:[%s220 + $0xb0] sm:$0xff] %vm266, %v8715
            %8789 = vst.msk [vmem:[%s220 + $0xb8] sm:$0xff] %vm266, %v8717
            %8790 = vst.msk [vmem:[%s220 + $0xc0] sm:$0xff] %vm266, %v8719
            %8791 = vst.msk [vmem:[%s220 + $0xc8] sm:$0xff] %vm266, %v8721
            %8792 = vst.msk [vmem:[%s220 + $0xd0] sm:$0xff] %vm266, %v8723
            %8793 = vst.msk [vmem:[%s220 + $0xd8] sm:$0xff] %vm266, %v8725
            %8794 = vst.msk [vmem:[%s220 + $0xe0] sm:$0xff] %vm266, %v8727
            %8795 = vst.msk [vmem:[%s220 + $0xe8] sm:$0xff] %vm266, %v8729
            %8796 = vst.msk [vmem:[%s220 + $0xf0] sm:$0xff] %vm266, %v8731
            %8797 = vst.msk [vmem:[%s220 + $0xf8] sm:$0xff] %vm266, %v8733
          $region51: #{convlstm_forward.1} parent=44 // pred_fallthru
            _
        $region45: #{convlstm_forward.1} parent=39 // loop_footer
          %s378 = sadd.s32 1, %s374
        $region46: #{convlstm_forward.1} parent=39 // loop_footer_branch
          %373 = sbr.rel target = $region42
        $region47: #{convlstm_forward.1} parent=39 // loop_exit
          _
        %s8798 = sand.u32 %s137, 1
        %s8799 = scalar_lea.sflag [#allocation7], %s8798
        %s8800 = sand.u32 %s137, 1
        %s8801 = smul.addr %s8800, 256
        %s8802 = scalar_lea.vmem [#allocation6], %s8801
        // Predicated region
        $region52: #{convlstm_forward.1} parent=39 // pred_check
          %p8803 = pneg %p147
        $region53: #{convlstm_forward.1} parent=39 // pred_check_branch
          %8805 = sbr.rel (%p8803) target = $region55
        $region54: #{convlstm_forward.1} parent=39 // pred_region
          %s8807 = ssub.s32 4096, 4096
          %8808 = vsyncadd %s8799, %s8807
          %s8809 = smul.addr %s19, 32
          %s8810 = smul.addr %s8809, 128
          %s8811 = scalar_lea.hbm %s5, %s8810
          %s8812 = sshll.u32 %s8802, 4
          %s8813 = int_to_ptr.vmem [resolvable:$true] %s8812
          %8818 = dma.vmem_to_hbm [thread:$0]  %s8813, 4096, %s8811, %s8799, 128, 128, 8
        $region55: #{convlstm_forward.1} parent=39 // pred_fallthru
          _
      $region40: #{convlstm_forward.1} parent=5 // pred_fallthru
        _
      %p8819 = scmp.le.s32.totalorder 2, %s14
      // Predicated region
      $region56: #{convlstm_forward.1} parent=5 // pred_check
        %p8820 = pneg %p8819
      $region57: #{convlstm_forward.1} parent=5 // pred_check_branch
        %8822 = sbr.rel (%p8820) target = $region59
      $region58: #{convlstm_forward.1} parent=5 // pred_region
        %s8823 = ssub.s32 %s14, 2
        // Predicated region
        $region60: #{convlstm_forward.1} parent=58 // pred_check
          %p8824 = pneg %p153
        $region61: #{convlstm_forward.1} parent=58 // pred_check_branch
          %8826 = sbr.rel (%p8824) target = $region63
        $region62: #{convlstm_forward.1} parent=58 // pred_region
          %s8827 = sand.u32 %s138, 1
          %s8828 = scalar_lea.sflag [#allocation7], %s8827
          %s8829 = sand.u32 %s138, 1
          %s8830 = smul.addr %s8829, 256
          %s8831 = scalar_lea.vmem [#allocation6], %s8830
          %8832 = dma.done %s8828, 4096
        $region63: #{convlstm_forward.1} parent=58 // pred_fallthru
          _
      $region59: #{convlstm_forward.1} parent=5 // pred_fallthru
        _
    $region6: #{convlstm_forward.1} parent=1 // loop_footer
      %s18 = sadd.s32 1, %s14
    $region7: #{convlstm_forward.1} parent=1 // loop_footer_branch
      %13 = sbr.rel target = $region3
    $region8: #{convlstm_forward.1} parent=1 // loop_exit
      _
    %8833 = vsyncpa [#allocation7], 1
    %s8834 = scalar_lea.sflag [#allocation7], 1
    %8835 = vsyncpa %s8834, 1

</llo_original>
